<compile_context>
chip_gen: v5e
topology: v5e:2x2
jax: 0.10.0
libtpu: 0.0.40
codegen_flags: <defaults>
</compile_context>

<pallas_src>
import numpy as np

import jax
import jax.numpy as jnp
from jax.experimental import pallas as pl
from jax.experimental.pallas import tpu as pltpu


# ----------------------------- static geometry ------------------------------

H1, W1 = 28, 28                  # conv1 output grid
HP1, WP1 = 32, 32                # 2-padded input grid
S1 = HP1 * WP1                   # 1024 flat padded positions (conv1 computed on all)
TAIL1 = 4 * WP1 + 4              # max tap offset -> input flat length S1 + TAIL1 = 1156

H2, W2 = 14, 14                  # conv2 output grid
HP2, WP2 = 18, 18                # 2-padded pooled grid
S2 = HP2 * WP2                   # 324
TAIL2 = 4 * WP2 + 4              # 76 -> conv2 input flat length S2 + TAIL2 = 400

M1_LEN = S1 - WP1 - 1            # 991: length after the two shifted-max passes (pool1)
M2_LEN = S2 - WP2 - 1            # 305: idem (pool2)


def _build_pool_selects():
    """0/1 matrices: column-gather of the 2x2-max array into the next layer's padded grid."""
    sel1 = np.zeros((M1_LEN, S2 + TAIL2), np.float32)      # (991, 400)
    for ho in range(14):
        for wo in range(14):
            r = 2 * ho * WP1 + 2 * wo                       # max over {r, r+1, r+32, r+33}
            c = (ho + 2) * WP2 + (wo + 2)                   # padded 18x18 target position
            sel1[r, c] = 1.0
    sel2 = np.zeros((M2_LEN, 49), np.float32)               # (305, 49)
    for ho in range(7):
        for wo in range(7):
            r = 2 * ho * WP2 + 2 * wo
            sel2[r, ho * 7 + wo] = 1.0
    return sel1, sel2


_SEL1_NP, _SEL2_NP = _build_pool_selects()


# ------------------------------- fused kernel -------------------------------

def _cnn_kernel(x_ref, w1_ref, b1_ref, w2_ref, b2_ref,
                sel1_ref, sel2_ref, wfc_ref, bfc_ref, o_ref):
    f32 = jnp.float32

    # ---- conv1 + ReLU (Cin=1): 25 broadcast FMAs on the VPU -> (16, 1024) ----
    acc1 = jnp.zeros((16, S1), f32)
    for kh in range(5):
        for kw in range(5):
            t = kh * 5 + kw
            d = kh * WP1 + kw
            xs = x_ref[0, :, d:d + S1]                       # (1, 1024) shifted flat window
            acc1 = acc1 + w1_ref[:, t:t + 1] * xs            # (16,1)*(1,1024) -> (16,1024)
    y1 = jnp.maximum(acc1 + b1_ref[...], 0.0)                # bias (16,1) broadcast

    # ---- maxpool 2x2 #1: shifted maxes + gather-by-matmul into padded 18x18 grid ----
    m = jnp.maximum(y1[:, 0:S1 - 1], y1[:, 1:S1])            # max with right neighbour
    m = jnp.maximum(m[:, 0:M1_LEN], m[:, WP1:S1 - 1])        # max with row below -> (16,991)
    xp2 = jnp.dot(m, sel1_ref[...], preferred_element_type=f32)   # (16, 400), zero padding

    # ---- conv2 + ReLU (Cin=16): 25 accumulated MXU dots -> (32, 324) ----
    acc2 = jnp.zeros((32, S2), f32)
    for kh in range(5):
        for kw in range(5):
            t = kh * 5 + kw
            d = kh * WP2 + kw
            sl = xp2[:, d:d + S2]                            # (16, 324)
            acc2 = acc2 + jnp.dot(w2_ref[t], sl, preferred_element_type=f32)
    y2 = jnp.maximum(acc2 + b2_ref[...], 0.0)                # (32, 324)

    # ---- maxpool 2x2 #2 -> (32, 49) FC activation ----
    m2 = jnp.maximum(y2[:, 0:S2 - 1], y2[:, 1:S2])
    m2 = jnp.maximum(m2[:, 0:M2_LEN], m2[:, WP2:S2 - 1])     # (32, 305)
    fc_act = jnp.dot(m2, sel2_ref[...], preferred_element_type=f32)   # (32, 49)

    # ---- Linear(32*7*7 -> 10): 10 multiply-reduce columns ----
    for n in range(10):
        p = fc_act * wfc_ref[n]                              # (32, 49)
        s = jnp.sum(p, axis=1, keepdims=True)                # (32, 1)
        s = jnp.sum(s, axis=0, keepdims=True)                # (1, 1)
        o_ref[0, :, n:n + 1] = s + bfc_ref[:, n:n + 1]


# ------------------------------ glue / wrapper ------------------------------

def prepare_params(params):
    """One-time re-layout of the PyTorch-style parameters (hoisted off the hot path)."""
    w2 = params["w2"]
    return dict(
        w1t=params["w1"].reshape(16, 25),                              # [co, kh*5+kw]
        b1=params["b1"].reshape(16, 1),
        w2t=jnp.transpose(w2, (2, 3, 0, 1)).reshape(25, 32, 16),       # [tap, co, ci]
        b2=params["b2"].reshape(32, 1),
        wfc=params["wfc"].reshape(10, 32, 49),                         # [n, c, h*7+w]
        bfc=params["bfc"].reshape(1, 10),
        sel1=jnp.asarray(_SEL1_NP),
        sel2=jnp.asarray(_SEL2_NP),
    )


def cnn_forward(x_nchw, prep):
    """x_nchw: (B, 1, 28, 28) f32 -> (B, 10) f32, single fused Pallas call."""
    B = x_nchw.shape[0]
    # Tiny wrapper glue on the raw input only: 2D zero-pad, flatten, zero tail.
    xp = jnp.pad(x_nchw[:, 0], ((0, 0), (2, 2), (2, 2)))               # (B, 32, 32)
    xf = jnp.pad(xp.reshape(B, 1, S1), ((0, 0), (0, 0), (0, TAIL1)))   # (B, 1, 1156)

    full = lambda shape: pl.BlockSpec(shape, lambda b: (0,) * len(shape))
    out = pl.pallas_call(
        _cnn_kernel,
        out_shape=jax.ShapeDtypeStruct((B, 1, 10), jnp.float32),
        grid=(B,),
        in_specs=[
            pl.BlockSpec((1, 1, S1 + TAIL1), lambda b: (b, 0, 0)),     # input image
            full((16, 25)),                                            # conv1 taps
            full((16, 1)),                                             # b1
            full((25, 32, 16)),                                        # conv2 taps
            full((32, 1)),                                             # b2
            full((M1_LEN, S2 + TAIL2)),                                # pool1 select
            full((M2_LEN, 49)),                                        # pool2 select
            full((10, 32, 49)),                                        # fc weight planes
            full((1, 10)),                                             # fc bias
        ],
        out_specs=pl.BlockSpec((1, 1, 10), lambda b: (b, 0, 0)),
        compiler_params=pltpu.CompilerParams(dimension_semantics=("parallel",)),
    )(xf, prep["w1t"], prep["b1"], prep["w2t"], prep["b2"],
      prep["sel1"], prep["sel2"], prep["wfc"], prep["bfc"])
    return out.reshape(B, 10)


# --------------------------- parameters / reference -------------------------

def init_params(key):
    ks = jax.random.split(key, 6)

    def u(k, shape, fan_in):
        bound = 1.0 / float(fan_in) ** 0.5
        return jax.random.uniform(k, shape, jnp.float32, -bound, bound)

    return dict(
        w1=u(ks[0], (16, 1, 5, 5), 1 * 25),
        b1=u(ks[1], (16,), 1 * 25),
        w2=u(ks[2], (32, 16, 5, 5), 16 * 25),
        b2=u(ks[3], (32,), 16 * 25),
        wfc=u(ks[4], (10, 32 * 7 * 7), 32 * 7 * 7),
        bfc=u(ks[5], (10,), 32 * 7 * 7),
    )


def cnn_reference(x_nchw, params):
    """Pure-XLA reference with PyTorch semantics (NCHW)."""
    dn = ("NCHW", "OIHW", "NCHW")
    y = jax.lax.conv_general_dilated(x_nchw, params["w1"], (1, 1),
                                     ((2, 2), (2, 2)), dimension_numbers=dn)
    y = jax.nn.relu(y + params["b1"][None, :, None, None])
    y = jax.lax.reduce_window(y, -jnp.inf, jax.lax.max, (1, 1, 2, 2), (1, 1, 2, 2), "VALID")
    y = jax.lax.conv_general_dilated(y, params["w2"], (1, 1),
                                     ((2, 2), (2, 2)), dimension_numbers=dn)
    y = jax.nn.relu(y + params["b2"][None, :, None, None])
    y = jax.lax.reduce_window(y, -jnp.inf, jax.lax.max, (1, 1, 2, 2), (1, 1, 2, 2), "VALID")
    y = y.reshape(y.shape[0], -1)
    return y @ params["wfc"].T + params["bfc"]


if __name__ == "__main__":
    key = jax.random.PRNGKey(0)
    kp, kx = jax.random.split(key)
    params = init_params(kp)
    # Linear(32*7*7, 10) implies 1x28x28 inputs (MNIST-style); batch = 2.
    x = jax.random.normal(kx, (2, 1, 28, 28), jnp.float32)

    prep = prepare_params(params)                 # hoisted, one-time weight re-layout
    fwd = jax.jit(cnn_forward)
    out = jax.block_until_ready(fwd(x, prep))
    assert out.shape == (2, 10) and out.dtype == jnp.float32

    ref = cnn_reference(x, params)
    assert jnp.allclose(out, ref, atol=1e-3, rtol=1e-3), "Pallas output mismatch vs XLA reference"

    print("KERNEL_OK")
</pallas_src>

<mosaic_0001>
module attributes {stable_mosaic.version = 11 : i64} {
  func.func @_cnn_kernel(%arg0: i32, %arg1: memref<1x1x1156xf32, #tpu.memory_space<vmem>>, %arg2: memref<16x25xf32, #tpu.memory_space<vmem>>, %arg3: memref<16x1xf32, #tpu.memory_space<vmem>>, %arg4: memref<25x32x16xf32, #tpu.memory_space<vmem>>, %arg5: memref<32x1xf32, #tpu.memory_space<vmem>>, %arg6: memref<991x400xf32, #tpu.memory_space<vmem>>, %arg7: memref<305x49xf32, #tpu.memory_space<vmem>>, %arg8: memref<10x32x49xf32, #tpu.memory_space<vmem>>, %arg9: memref<1x10xf32, #tpu.memory_space<vmem>>, %arg10: memref<1x1x10xf32, #tpu.memory_space<vmem>>) attributes {dimension_semantics = [#tpu.dimension_semantics<parallel>], iteration_bounds = array<i64: 2>, scalar_prefetch = 0 : i64, scratch_operands = 0 : i64, tpu.core_type = #tpu.core_type<tc>, window_params = [{transform_indices = @transform_0, window_bounds = array<i64: 1, 1, 1156>}, {pipeline_mode = #tpu.pipeline_mode<synchronous>, transform_indices = @transform_1, window_bounds = array<i64: 16, 25>}, {pipeline_mode = #tpu.pipeline_mode<synchronous>, transform_indices = @transform_2, window_bounds = array<i64: 16, 1>}, {pipeline_mode = #tpu.pipeline_mode<synchronous>, transform_indices = @transform_3, window_bounds = array<i64: 25, 32, 16>}, {pipeline_mode = #tpu.pipeline_mode<synchronous>, transform_indices = @transform_4, window_bounds = array<i64: 32, 1>}, {pipeline_mode = #tpu.pipeline_mode<synchronous>, transform_indices = @transform_5, window_bounds = array<i64: 991, 400>}, {pipeline_mode = #tpu.pipeline_mode<synchronous>, transform_indices = @transform_6, window_bounds = array<i64: 305, 49>}, {pipeline_mode = #tpu.pipeline_mode<synchronous>, transform_indices = @transform_7, window_bounds = array<i64: 10, 32, 49>}, {pipeline_mode = #tpu.pipeline_mode<synchronous>, transform_indices = @transform_8, window_bounds = array<i64: 1, 10>}, {transform_indices = @transform_9, window_bounds = array<i64: 1, 1, 10>}]} {
    %cst = arith.constant 0.000000e+00 : f32
    %0 = vector.broadcast %cst : f32 to vector<16x1024xf32>
    %c0 = arith.constant 0 : index
    %c0_0 = arith.constant 0 : index
    %c0_1 = arith.constant 0 : index
    %1 = vector.load %arg1[%c0, %c0_0, %c0_1] : memref<1x1x1156xf32, #tpu.memory_space<vmem>>, vector<1x1x1024xf32>
    %2 = vector.shape_cast %1 : vector<1x1x1024xf32> to vector<1x1024xf32>
    %c0_2 = arith.constant 0 : index
    %c0_3 = arith.constant 0 : index
    %3 = vector.load %arg2[%c0_2, %c0_3] : memref<16x25xf32, #tpu.memory_space<vmem>>, vector<16x1xf32>
    %4 = vector.broadcast %3 : vector<16x1xf32> to vector<16x1024xf32>
    %5 = vector.broadcast %2 : vector<1x1024xf32> to vector<16x1024xf32>
    %6 = arith.mulf %4, %5 : vector<16x1024xf32>
    %7 = arith.addf %0, %6 : vector<16x1024xf32>
    %c0_4 = arith.constant 0 : index
    %c0_5 = arith.constant 0 : index
    %c1 = arith.constant 1 : index
    %8 = vector.load %arg1[%c0_4, %c0_5, %c1] : memref<1x1x1156xf32, #tpu.memory_space<vmem>>, vector<1x1x1024xf32>
    %9 = vector.shape_cast %8 : vector<1x1x1024xf32> to vector<1x1024xf32>
    %c0_6 = arith.constant 0 : index
    %c1_7 = arith.constant 1 : index
    %10 = vector.load %arg2[%c0_6, %c1_7] : memref<16x25xf32, #tpu.memory_space<vmem>>, vector<16x1xf32>
    %11 = vector.broadcast %10 : vector<16x1xf32> to vector<16x1024xf32>
    %12 = vector.broadcast %9 : vector<1x1024xf32> to vector<16x1024xf32>
    %13 = arith.mulf %11, %12 : vector<16x1024xf32>
    %14 = arith.addf %7, %13 : vector<16x1024xf32>
    %c0_8 = arith.constant 0 : index
    %c0_9 = arith.constant 0 : index
    %c2 = arith.constant 2 : index
    %15 = vector.load %arg1[%c0_8, %c0_9, %c2] : memref<1x1x1156xf32, #tpu.memory_space<vmem>>, vector<1x1x1024xf32>
    %16 = vector.shape_cast %15 : vector<1x1x1024xf32> to vector<1x1024xf32>
    %c0_10 = arith.constant 0 : index
    %c2_11 = arith.constant 2 : index
    %17 = vector.load %arg2[%c0_10, %c2_11] : memref<16x25xf32, #tpu.memory_space<vmem>>, vector<16x1xf32>
    %18 = vector.broadcast %17 : vector<16x1xf32> to vector<16x1024xf32>
    %19 = vector.broadcast %16 : vector<1x1024xf32> to vector<16x1024xf32>
    %20 = arith.mulf %18, %19 : vector<16x1024xf32>
    %21 = arith.addf %14, %20 : vector<16x1024xf32>
    %c0_12 = arith.constant 0 : index
    %c0_13 = arith.constant 0 : index
    %c3 = arith.constant 3 : index
    %22 = vector.load %arg1[%c0_12, %c0_13, %c3] : memref<1x1x1156xf32, #tpu.memory_space<vmem>>, vector<1x1x1024xf32>
    %23 = vector.shape_cast %22 : vector<1x1x1024xf32> to vector<1x1024xf32>
    %c0_14 = arith.constant 0 : index
    %c3_15 = arith.constant 3 : index
    %24 = vector.load %arg2[%c0_14, %c3_15] : memref<16x25xf32, #tpu.memory_space<vmem>>, vector<16x1xf32>
    %25 = vector.broadcast %24 : vector<16x1xf32> to vector<16x1024xf32>
    %26 = vector.broadcast %23 : vector<1x1024xf32> to vector<16x1024xf32>
    %27 = arith.mulf %25, %26 : vector<16x1024xf32>
    %28 = arith.addf %21, %27 : vector<16x1024xf32>
    %c0_16 = arith.constant 0 : index
    %c0_17 = arith.constant 0 : index
    %c4 = arith.constant 4 : index
    %29 = vector.load %arg1[%c0_16, %c0_17, %c4] : memref<1x1x1156xf32, #tpu.memory_space<vmem>>, vector<1x1x1024xf32>
    %30 = vector.shape_cast %29 : vector<1x1x1024xf32> to vector<1x1024xf32>
    %c0_18 = arith.constant 0 : index
    %c4_19 = arith.constant 4 : index
    %31 = vector.load %arg2[%c0_18, %c4_19] : memref<16x25xf32, #tpu.memory_space<vmem>>, vector<16x1xf32>
    %32 = vector.broadcast %31 : vector<16x1xf32> to vector<16x1024xf32>
    %33 = vector.broadcast %30 : vector<1x1024xf32> to vector<16x1024xf32>
    %34 = arith.mulf %32, %33 : vector<16x1024xf32>
    %35 = arith.addf %28, %34 : vector<16x1024xf32>
    %c0_20 = arith.constant 0 : index
    %c0_21 = arith.constant 0 : index
    %c32 = arith.constant 32 : index
    %36 = vector.load %arg1[%c0_20, %c0_21, %c32] : memref<1x1x1156xf32, #tpu.memory_space<vmem>>, vector<1x1x1024xf32>
    %37 = vector.shape_cast %36 : vector<1x1x1024xf32> to vector<1x1024xf32>
    %c0_22 = arith.constant 0 : index
    %c5 = arith.constant 5 : index
    %38 = vector.load %arg2[%c0_22, %c5] : memref<16x25xf32, #tpu.memory_space<vmem>>, vector<16x1xf32>
    %39 = vector.broadcast %38 : vector<16x1xf32> to vector<16x1024xf32>
    %40 = vector.broadcast %37 : vector<1x1024xf32> to vector<16x1024xf32>
    %41 = arith.mulf %39, %40 : vector<16x1024xf32>
    %42 = arith.addf %35, %41 : vector<16x1024xf32>
    %c0_23 = arith.constant 0 : index
    %c0_24 = arith.constant 0 : index
    %c33 = arith.constant 33 : index
    %43 = vector.load %arg1[%c0_23, %c0_24, %c33] : memref<1x1x1156xf32, #tpu.memory_space<vmem>>, vector<1x1x1024xf32>
    %44 = vector.shape_cast %43 : vector<1x1x1024xf32> to vector<1x1024xf32>
    %c0_25 = arith.constant 0 : index
    %c6 = arith.constant 6 : index
    %45 = vector.load %arg2[%c0_25, %c6] : memref<16x25xf32, #tpu.memory_space<vmem>>, vector<16x1xf32>
    %46 = vector.broadcast %45 : vector<16x1xf32> to vector<16x1024xf32>
    %47 = vector.broadcast %44 : vector<1x1024xf32> to vector<16x1024xf32>
    %48 = arith.mulf %46, %47 : vector<16x1024xf32>
    %49 = arith.addf %42, %48 : vector<16x1024xf32>
    %c0_26 = arith.constant 0 : index
    %c0_27 = arith.constant 0 : index
    %c34 = arith.constant 34 : index
    %50 = vector.load %arg1[%c0_26, %c0_27, %c34] : memref<1x1x1156xf32, #tpu.memory_space<vmem>>, vector<1x1x1024xf32>
    %51 = vector.shape_cast %50 : vector<1x1x1024xf32> to vector<1x1024xf32>
    %c0_28 = arith.constant 0 : index
    %c7 = arith.constant 7 : index
    %52 = vector.load %arg2[%c0_28, %c7] : memref<16x25xf32, #tpu.memory_space<vmem>>, vector<16x1xf32>
    %53 = vector.broadcast %52 : vector<16x1xf32> to vector<16x1024xf32>
    %54 = vector.broadcast %51 : vector<1x1024xf32> to vector<16x1024xf32>
    %55 = arith.mulf %53, %54 : vector<16x1024xf32>
    %56 = arith.addf %49, %55 : vector<16x1024xf32>
    %c0_29 = arith.constant 0 : index
    %c0_30 = arith.constant 0 : index
    %c35 = arith.constant 35 : index
    %57 = vector.load %arg1[%c0_29, %c0_30, %c35] : memref<1x1x1156xf32, #tpu.memory_space<vmem>>, vector<1x1x1024xf32>
    %58 = vector.shape_cast %57 : vector<1x1x1024xf32> to vector<1x1024xf32>
    %c0_31 = arith.constant 0 : index
    %c8 = arith.constant 8 : index
    %59 = vector.load %arg2[%c0_31, %c8] : memref<16x25xf32, #tpu.memory_space<vmem>>, vector<16x1xf32>
    %60 = vector.broadcast %59 : vector<16x1xf32> to vector<16x1024xf32>
    %61 = vector.broadcast %58 : vector<1x1024xf32> to vector<16x1024xf32>
    %62 = arith.mulf %60, %61 : vector<16x1024xf32>
    %63 = arith.addf %56, %62 : vector<16x1024xf32>
    %c0_32 = arith.constant 0 : index
    %c0_33 = arith.constant 0 : index
    %c36 = arith.constant 36 : index
    %64 = vector.load %arg1[%c0_32, %c0_33, %c36] : memref<1x1x1156xf32, #tpu.memory_space<vmem>>, vector<1x1x1024xf32>
    %65 = vector.shape_cast %64 : vector<1x1x1024xf32> to vector<1x1024xf32>
    %c0_34 = arith.constant 0 : index
    %c9 = arith.constant 9 : index
    %66 = vector.load %arg2[%c0_34, %c9] : memref<16x25xf32, #tpu.memory_space<vmem>>, vector<16x1xf32>
    %67 = vector.broadcast %66 : vector<16x1xf32> to vector<16x1024xf32>
    %68 = vector.broadcast %65 : vector<1x1024xf32> to vector<16x1024xf32>
    %69 = arith.mulf %67, %68 : vector<16x1024xf32>
    %70 = arith.addf %63, %69 : vector<16x1024xf32>
    %c0_35 = arith.constant 0 : index
    %c0_36 = arith.constant 0 : index
    %c64 = arith.constant 64 : index
    %71 = vector.load %arg1[%c0_35, %c0_36, %c64] : memref<1x1x1156xf32, #tpu.memory_space<vmem>>, vector<1x1x1024xf32>
    %72 = vector.shape_cast %71 : vector<1x1x1024xf32> to vector<1x1024xf32>
    %c0_37 = arith.constant 0 : index
    %c10 = arith.constant 10 : index
    %73 = vector.load %arg2[%c0_37, %c10] : memref<16x25xf32, #tpu.memory_space<vmem>>, vector<16x1xf32>
    %74 = vector.broadcast %73 : vector<16x1xf32> to vector<16x1024xf32>
    %75 = vector.broadcast %72 : vector<1x1024xf32> to vector<16x1024xf32>
    %76 = arith.mulf %74, %75 : vector<16x1024xf32>
    %77 = arith.addf %70, %76 : vector<16x1024xf32>
    %c0_38 = arith.constant 0 : index
    %c0_39 = arith.constant 0 : index
    %c65 = arith.constant 65 : index
    %78 = vector.load %arg1[%c0_38, %c0_39, %c65] : memref<1x1x1156xf32, #tpu.memory_space<vmem>>, vector<1x1x1024xf32>
    %79 = vector.shape_cast %78 : vector<1x1x1024xf32> to vector<1x1024xf32>
    %c0_40 = arith.constant 0 : index
    %c11 = arith.constant 11 : index
    %80 = vector.load %arg2[%c0_40, %c11] : memref<16x25xf32, #tpu.memory_space<vmem>>, vector<16x1xf32>
    %81 = vector.broadcast %80 : vector<16x1xf32> to vector<16x1024xf32>
    %82 = vector.broadcast %79 : vector<1x1024xf32> to vector<16x1024xf32>
    %83 = arith.mulf %81, %82 : vector<16x1024xf32>
    %84 = arith.addf %77, %83 : vector<16x1024xf32>
    %c0_41 = arith.constant 0 : index
    %c0_42 = arith.constant 0 : index
    %c66 = arith.constant 66 : index
    %85 = vector.load %arg1[%c0_41, %c0_42, %c66] : memref<1x1x1156xf32, #tpu.memory_space<vmem>>, vector<1x1x1024xf32>
    %86 = vector.shape_cast %85 : vector<1x1x1024xf32> to vector<1x1024xf32>
    %c0_43 = arith.constant 0 : index
    %c12 = arith.constant 12 : index
    %87 = vector.load %arg2[%c0_43, %c12] : memref<16x25xf32, #tpu.memory_space<vmem>>, vector<16x1xf32>
    %88 = vector.broadcast %87 : vector<16x1xf32> to vector<16x1024xf32>
    %89 = vector.broadcast %86 : vector<1x1024xf32> to vector<16x1024xf32>
    %90 = arith.mulf %88, %89 : vector<16x1024xf32>
    %91 = arith.addf %84, %90 : vector<16x1024xf32>
    %c0_44 = arith.constant 0 : index
    %c0_45 = arith.constant 0 : index
    %c67 = arith.constant 67 : index
    %92 = vector.load %arg1[%c0_44, %c0_45, %c67] : memref<1x1x1156xf32, #tpu.memory_space<vmem>>, vector<1x1x1024xf32>
    %93 = vector.shape_cast %92 : vector<1x1x1024xf32> to vector<1x1024xf32>
    %c0_46 = arith.constant 0 : index
    %c13 = arith.constant 13 : index
    %94 = vector.load %arg2[%c0_46, %c13] : memref<16x25xf32, #tpu.memory_space<vmem>>, vector<16x1xf32>
    %95 = vector.broadcast %94 : vector<16x1xf32> to vector<16x1024xf32>
    %96 = vector.broadcast %93 : vector<1x1024xf32> to vector<16x1024xf32>
    %97 = arith.mulf %95, %96 : vector<16x1024xf32>
    %98 = arith.addf %91, %97 : vector<16x1024xf32>
    %c0_47 = arith.constant 0 : index
    %c0_48 = arith.constant 0 : index
    %c68 = arith.constant 68 : index
    %99 = vector.load %arg1[%c0_47, %c0_48, %c68] : memref<1x1x1156xf32, #tpu.memory_space<vmem>>, vector<1x1x1024xf32>
    %100 = vector.shape_cast %99 : vector<1x1x1024xf32> to vector<1x1024xf32>
    %c0_49 = arith.constant 0 : index
    %c14 = arith.constant 14 : index
    %101 = vector.load %arg2[%c0_49, %c14] : memref<16x25xf32, #tpu.memory_space<vmem>>, vector<16x1xf32>
    %102 = vector.broadcast %101 : vector<16x1xf32> to vector<16x1024xf32>
    %103 = vector.broadcast %100 : vector<1x1024xf32> to vector<16x1024xf32>
    %104 = arith.mulf %102, %103 : vector<16x1024xf32>
    %105 = arith.addf %98, %104 : vector<16x1024xf32>
    %c0_50 = arith.constant 0 : index
    %c0_51 = arith.constant 0 : index
    %c96 = arith.constant 96 : index
    %106 = vector.load %arg1[%c0_50, %c0_51, %c96] : memref<1x1x1156xf32, #tpu.memory_space<vmem>>, vector<1x1x1024xf32>
    %107 = vector.shape_cast %106 : vector<1x1x1024xf32> to vector<1x1024xf32>
    %c0_52 = arith.constant 0 : index
    %c15 = arith.constant 15 : index
    %108 = vector.load %arg2[%c0_52, %c15] : memref<16x25xf32, #tpu.memory_space<vmem>>, vector<16x1xf32>
    %109 = vector.broadcast %108 : vector<16x1xf32> to vector<16x1024xf32>
    %110 = vector.broadcast %107 : vector<1x1024xf32> to vector<16x1024xf32>
    %111 = arith.mulf %109, %110 : vector<16x1024xf32>
    %112 = arith.addf %105, %111 : vector<16x1024xf32>
    %c0_53 = arith.constant 0 : index
    %c0_54 = arith.constant 0 : index
    %c97 = arith.constant 97 : index
    %113 = vector.load %arg1[%c0_53, %c0_54, %c97] : memref<1x1x1156xf32, #tpu.memory_space<vmem>>, vector<1x1x1024xf32>
    %114 = vector.shape_cast %113 : vector<1x1x1024xf32> to vector<1x1024xf32>
    %c0_55 = arith.constant 0 : index
    %c16 = arith.constant 16 : index
    %115 = vector.load %arg2[%c0_55, %c16] : memref<16x25xf32, #tpu.memory_space<vmem>>, vector<16x1xf32>
    %116 = vector.broadcast %115 : vector<16x1xf32> to vector<16x1024xf32>
    %117 = vector.broadcast %114 : vector<1x1024xf32> to vector<16x1024xf32>
    %118 = arith.mulf %116, %117 : vector<16x1024xf32>
    %119 = arith.addf %112, %118 : vector<16x1024xf32>
    %c0_56 = arith.constant 0 : index
    %c0_57 = arith.constant 0 : index
    %c98 = arith.constant 98 : index
    %120 = vector.load %arg1[%c0_56, %c0_57, %c98] : memref<1x1x1156xf32, #tpu.memory_space<vmem>>, vector<1x1x1024xf32>
    %121 = vector.shape_cast %120 : vector<1x1x1024xf32> to vector<1x1024xf32>
    %c0_58 = arith.constant 0 : index
    %c17 = arith.constant 17 : index
    %122 = vector.load %arg2[%c0_58, %c17] : memref<16x25xf32, #tpu.memory_space<vmem>>, vector<16x1xf32>
    %123 = vector.broadcast %122 : vector<16x1xf32> to vector<16x1024xf32>
    %124 = vector.broadcast %121 : vector<1x1024xf32> to vector<16x1024xf32>
    %125 = arith.mulf %123, %124 : vector<16x1024xf32>
    %126 = arith.addf %119, %125 : vector<16x1024xf32>
    %c0_59 = arith.constant 0 : index
    %c0_60 = arith.constant 0 : index
    %c99 = arith.constant 99 : index
    %127 = vector.load %arg1[%c0_59, %c0_60, %c99] : memref<1x1x1156xf32, #tpu.memory_space<vmem>>, vector<1x1x1024xf32>
    %128 = vector.shape_cast %127 : vector<1x1x1024xf32> to vector<1x1024xf32>
    %c0_61 = arith.constant 0 : index
    %c18 = arith.constant 18 : index
    %129 = vector.load %arg2[%c0_61, %c18] : memref<16x25xf32, #tpu.memory_space<vmem>>, vector<16x1xf32>
    %130 = vector.broadcast %129 : vector<16x1xf32> to vector<16x1024xf32>
    %131 = vector.broadcast %128 : vector<1x1024xf32> to vector<16x1024xf32>
    %132 = arith.mulf %130, %131 : vector<16x1024xf32>
    %133 = arith.addf %126, %132 : vector<16x1024xf32>
    %c0_62 = arith.constant 0 : index
    %c0_63 = arith.constant 0 : index
    %c100 = arith.constant 100 : index
    %134 = vector.load %arg1[%c0_62, %c0_63, %c100] : memref<1x1x1156xf32, #tpu.memory_space<vmem>>, vector<1x1x1024xf32>
    %135 = vector.shape_cast %134 : vector<1x1x1024xf32> to vector<1x1024xf32>
    %c0_64 = arith.constant 0 : index
    %c19 = arith.constant 19 : index
    %136 = vector.load %arg2[%c0_64, %c19] : memref<16x25xf32, #tpu.memory_space<vmem>>, vector<16x1xf32>
    %137 = vector.broadcast %136 : vector<16x1xf32> to vector<16x1024xf32>
    %138 = vector.broadcast %135 : vector<1x1024xf32> to vector<16x1024xf32>
    %139 = arith.mulf %137, %138 : vector<16x1024xf32>
    %140 = arith.addf %133, %139 : vector<16x1024xf32>
    %c0_65 = arith.constant 0 : index
    %c0_66 = arith.constant 0 : index
    %c128 = arith.constant 128 : index
    %141 = vector.load %arg1[%c0_65, %c0_66, %c128] : memref<1x1x1156xf32, #tpu.memory_space<vmem>>, vector<1x1x1024xf32>
    %142 = vector.shape_cast %141 : vector<1x1x1024xf32> to vector<1x1024xf32>
    %c0_67 = arith.constant 0 : index
    %c20 = arith.constant 20 : index
    %143 = vector.load %arg2[%c0_67, %c20] : memref<16x25xf32, #tpu.memory_space<vmem>>, vector<16x1xf32>
    %144 = vector.broadcast %143 : vector<16x1xf32> to vector<16x1024xf32>
    %145 = vector.broadcast %142 : vector<1x1024xf32> to vector<16x1024xf32>
    %146 = arith.mulf %144, %145 : vector<16x1024xf32>
    %147 = arith.addf %140, %146 : vector<16x1024xf32>
    %c0_68 = arith.constant 0 : index
    %c0_69 = arith.constant 0 : index
    %c129 = arith.constant 129 : index
    %148 = vector.load %arg1[%c0_68, %c0_69, %c129] : memref<1x1x1156xf32, #tpu.memory_space<vmem>>, vector<1x1x1024xf32>
    %149 = vector.shape_cast %148 : vector<1x1x1024xf32> to vector<1x1024xf32>
    %c0_70 = arith.constant 0 : index
    %c21 = arith.constant 21 : index
    %150 = vector.load %arg2[%c0_70, %c21] : memref<16x25xf32, #tpu.memory_space<vmem>>, vector<16x1xf32>
    %151 = vector.broadcast %150 : vector<16x1xf32> to vector<16x1024xf32>
    %152 = vector.broadcast %149 : vector<1x1024xf32> to vector<16x1024xf32>
    %153 = arith.mulf %151, %152 : vector<16x1024xf32>
    %154 = arith.addf %147, %153 : vector<16x1024xf32>
    %c0_71 = arith.constant 0 : index
    %c0_72 = arith.constant 0 : index
    %c130 = arith.constant 130 : index
    %155 = vector.load %arg1[%c0_71, %c0_72, %c130] : memref<1x1x1156xf32, #tpu.memory_space<vmem>>, vector<1x1x1024xf32>
    %156 = vector.shape_cast %155 : vector<1x1x1024xf32> to vector<1x1024xf32>
    %c0_73 = arith.constant 0 : index
    %c22 = arith.constant 22 : index
    %157 = vector.load %arg2[%c0_73, %c22] : memref<16x25xf32, #tpu.memory_space<vmem>>, vector<16x1xf32>
    %158 = vector.broadcast %157 : vector<16x1xf32> to vector<16x1024xf32>
    %159 = vector.broadcast %156 : vector<1x1024xf32> to vector<16x1024xf32>
    %160 = arith.mulf %158, %159 : vector<16x1024xf32>
    %161 = arith.addf %154, %160 : vector<16x1024xf32>
    %c0_74 = arith.constant 0 : index
    %c0_75 = arith.constant 0 : index
    %c131 = arith.constant 131 : index
    %162 = vector.load %arg1[%c0_74, %c0_75, %c131] : memref<1x1x1156xf32, #tpu.memory_space<vmem>>, vector<1x1x1024xf32>
    %163 = vector.shape_cast %162 : vector<1x1x1024xf32> to vector<1x1024xf32>
    %c0_76 = arith.constant 0 : index
    %c23 = arith.constant 23 : index
    %164 = vector.load %arg2[%c0_76, %c23] : memref<16x25xf32, #tpu.memory_space<vmem>>, vector<16x1xf32>
    %165 = vector.broadcast %164 : vector<16x1xf32> to vector<16x1024xf32>
    %166 = vector.broadcast %163 : vector<1x1024xf32> to vector<16x1024xf32>
    %167 = arith.mulf %165, %166 : vector<16x1024xf32>
    %168 = arith.addf %161, %167 : vector<16x1024xf32>
    %c0_77 = arith.constant 0 : index
    %c0_78 = arith.constant 0 : index
    %c132 = arith.constant 132 : index
    %169 = vector.load %arg1[%c0_77, %c0_78, %c132] : memref<1x1x1156xf32, #tpu.memory_space<vmem>>, vector<1x1x1024xf32>
    %170 = vector.shape_cast %169 : vector<1x1x1024xf32> to vector<1x1024xf32>
    %c0_79 = arith.constant 0 : index
    %c24 = arith.constant 24 : index
    %171 = vector.load %arg2[%c0_79, %c24] : memref<16x25xf32, #tpu.memory_space<vmem>>, vector<16x1xf32>
    %172 = vector.broadcast %171 : vector<16x1xf32> to vector<16x1024xf32>
    %173 = vector.broadcast %170 : vector<1x1024xf32> to vector<16x1024xf32>
    %174 = arith.mulf %172, %173 : vector<16x1024xf32>
    %175 = arith.addf %168, %174 : vector<16x1024xf32>
    %c0_80 = arith.constant 0 : index
    %c0_81 = arith.constant 0 : index
    %176 = vector.load %arg3[%c0_80, %c0_81] : memref<16x1xf32, #tpu.memory_space<vmem>>, vector<16x1xf32>
    %177 = vector.broadcast %176 : vector<16x1xf32> to vector<16x1024xf32>
    %178 = arith.addf %175, %177 : vector<16x1024xf32>
    %cst_82 = arith.constant 0.000000e+00 : f32
    %179 = vector.broadcast %cst_82 : f32 to vector<16x1024xf32>
    %180 = arith.maximumf %178, %179 : vector<16x1024xf32>
    %181 = vector.extract_strided_slice %180 {offsets = [0, 0], sizes = [16, 1023], strides = [1, 1]} : vector<16x1024xf32> to vector<16x1023xf32>
    %182 = vector.extract_strided_slice %180 {offsets = [0, 1], sizes = [16, 1023], strides = [1, 1]} : vector<16x1024xf32> to vector<16x1023xf32>
    %183 = arith.maximumf %181, %182 : vector<16x1023xf32>
    %184 = vector.extract_strided_slice %183 {offsets = [0, 0], sizes = [16, 991], strides = [1, 1]} : vector<16x1023xf32> to vector<16x991xf32>
    %185 = vector.extract_strided_slice %183 {offsets = [0, 32], sizes = [16, 991], strides = [1, 1]} : vector<16x1023xf32> to vector<16x991xf32>
    %186 = arith.maximumf %184, %185 : vector<16x991xf32>
    %c0_83 = arith.constant 0 : index
    %c0_84 = arith.constant 0 : index
    %187 = vector.load %arg6[%c0_83, %c0_84] : memref<991x400xf32, #tpu.memory_space<vmem>>, vector<991x400xf32>
    %cst_85 = arith.constant dense<0.000000e+00> : vector<16x400xf32>
    %188 = tpu.matmul %186, %187, %cst_85 {dimension_numbers = #tpu.dot_dimension_numbers<[1], [0], [0], [1], [0, 0, 1, 1], [], []>} : vector<16x991xf32>, vector<991x400xf32>, vector<16x400xf32> -> vector<16x400xf32>
    %cst_86 = arith.constant 0.000000e+00 : f32
    %189 = vector.broadcast %cst_86 : f32 to vector<32x324xf32>
    %190 = vector.extract_strided_slice %188 {offsets = [0, 0], sizes = [16, 324], strides = [1, 1]} : vector<16x400xf32> to vector<16x324xf32>
    %c0_87 = arith.constant 0 : index
    %c0_88 = arith.constant 0 : index
    %c0_89 = arith.constant 0 : index
    %191 = vector.load %arg4[%c0_87, %c0_88, %c0_89] : memref<25x32x16xf32, #tpu.memory_space<vmem>>, vector<1x32x16xf32>
    %192 = vector.shape_cast %191 : vector<1x32x16xf32> to vector<32x16xf32>
    %cst_90 = arith.constant dense<0.000000e+00> : vector<32x324xf32>
    %193 = tpu.matmul %192, %190, %cst_90 {dimension_numbers = #tpu.dot_dimension_numbers<[1], [0], [0], [1], [0, 0, 1, 1], [], []>} : vector<32x16xf32>, vector<16x324xf32>, vector<32x324xf32> -> vector<32x324xf32>
    %194 = arith.addf %189, %193 : vector<32x324xf32>
    %195 = vector.extract_strided_slice %188 {offsets = [0, 1], sizes = [16, 324], strides = [1, 1]} : vector<16x400xf32> to vector<16x324xf32>
    %c1_91 = arith.constant 1 : index
    %c0_92 = arith.constant 0 : index
    %c0_93 = arith.constant 0 : index
    %196 = vector.load %arg4[%c1_91, %c0_92, %c0_93] : memref<25x32x16xf32, #tpu.memory_space<vmem>>, vector<1x32x16xf32>
    %197 = vector.shape_cast %196 : vector<1x32x16xf32> to vector<32x16xf32>
    %cst_94 = arith.constant dense<0.000000e+00> : vector<32x324xf32>
    %198 = tpu.matmul %197, %195, %cst_94 {dimension_numbers = #tpu.dot_dimension_numbers<[1], [0], [0], [1], [0, 0, 1, 1], [], []>} : vector<32x16xf32>, vector<16x324xf32>, vector<32x324xf32> -> vector<32x324xf32>
    %199 = arith.addf %194, %198 : vector<32x324xf32>
    %200 = vector.extract_strided_slice %188 {offsets = [0, 2], sizes = [16, 324], strides = [1, 1]} : vector<16x400xf32> to vector<16x324xf32>
    %c2_95 = arith.constant 2 : index
    %c0_96 = arith.constant 0 : index
    %c0_97 = arith.constant 0 : index
    %201 = vector.load %arg4[%c2_95, %c0_96, %c0_97] : memref<25x32x16xf32, #tpu.memory_space<vmem>>, vector<1x32x16xf32>
    %202 = vector.shape_cast %201 : vector<1x32x16xf32> to vector<32x16xf32>
    %cst_98 = arith.constant dense<0.000000e+00> : vector<32x324xf32>
    %203 = tpu.matmul %202, %200, %cst_98 {dimension_numbers = #tpu.dot_dimension_numbers<[1], [0], [0], [1], [0, 0, 1, 1], [], []>} : vector<32x16xf32>, vector<16x324xf32>, vector<32x324xf32> -> vector<32x324xf32>
    %204 = arith.addf %199, %203 : vector<32x324xf32>
    %205 = vector.extract_strided_slice %188 {offsets = [0, 3], sizes = [16, 324], strides = [1, 1]} : vector<16x400xf32> to vector<16x324xf32>
    %c3_99 = arith.constant 3 : index
    %c0_100 = arith.constant 0 : index
    %c0_101 = arith.constant 0 : index
    %206 = vector.load %arg4[%c3_99, %c0_100, %c0_101] : memref<25x32x16xf32, #tpu.memory_space<vmem>>, vector<1x32x16xf32>
    %207 = vector.shape_cast %206 : vector<1x32x16xf32> to vector<32x16xf32>
    %cst_102 = arith.constant dense<0.000000e+00> : vector<32x324xf32>
    %208 = tpu.matmul %207, %205, %cst_102 {dimension_numbers = #tpu.dot_dimension_numbers<[1], [0], [0], [1], [0, 0, 1, 1], [], []>} : vector<32x16xf32>, vector<16x324xf32>, vector<32x324xf32> -> vector<32x324xf32>
    %209 = arith.addf %204, %208 : vector<32x324xf32>
    %210 = vector.extract_strided_slice %188 {offsets = [0, 4], sizes = [16, 324], strides = [1, 1]} : vector<16x400xf32> to vector<16x324xf32>
    %c4_103 = arith.constant 4 : index
    %c0_104 = arith.constant 0 : index
    %c0_105 = arith.constant 0 : index
    %211 = vector.load %arg4[%c4_103, %c0_104, %c0_105] : memref<25x32x16xf32, #tpu.memory_space<vmem>>, vector<1x32x16xf32>
    %212 = vector.shape_cast %211 : vector<1x32x16xf32> to vector<32x16xf32>
    %cst_106 = arith.constant dense<0.000000e+00> : vector<32x324xf32>
    %213 = tpu.matmul %212, %210, %cst_106 {dimension_numbers = #tpu.dot_dimension_numbers<[1], [0], [0], [1], [0, 0, 1, 1], [], []>} : vector<32x16xf32>, vector<16x324xf32>, vector<32x324xf32> -> vector<32x324xf32>
    %214 = arith.addf %209, %213 : vector<32x324xf32>
    %215 = vector.extract_strided_slice %188 {offsets = [0, 18], sizes = [16, 324], strides = [1, 1]} : vector<16x400xf32> to vector<16x324xf32>
    %c5_107 = arith.constant 5 : index
    %c0_108 = arith.constant 0 : index
    %c0_109 = arith.constant 0 : index
    %216 = vector.load %arg4[%c5_107, %c0_108, %c0_109] : memref<25x32x16xf32, #tpu.memory_space<vmem>>, vector<1x32x16xf32>
    %217 = vector.shape_cast %216 : vector<1x32x16xf32> to vector<32x16xf32>
    %cst_110 = arith.constant dense<0.000000e+00> : vector<32x324xf32>
    %218 = tpu.matmul %217, %215, %cst_110 {dimension_numbers = #tpu.dot_dimension_numbers<[1], [0], [0], [1], [0, 0, 1, 1], [], []>} : vector<32x16xf32>, vector<16x324xf32>, vector<32x324xf32> -> vector<32x324xf32>
    %219 = arith.addf %214, %218 : vector<32x324xf32>
    %220 = vector.extract_strided_slice %188 {offsets = [0, 19], sizes = [16, 324], strides = [1, 1]} : vector<16x400xf32> to vector<16x324xf32>
    %c6_111 = arith.constant 6 : index
    %c0_112 = arith.constant 0 : index
    %c0_113 = arith.constant 0 : index
    %221 = vector.load %arg4[%c6_111, %c0_112, %c0_113] : memref<25x32x16xf32, #tpu.memory_space<vmem>>, vector<1x32x16xf32>
    %222 = vector.shape_cast %221 : vector<1x32x16xf32> to vector<32x16xf32>
    %cst_114 = arith.constant dense<0.000000e+00> : vector<32x324xf32>
    %223 = tpu.matmul %222, %220, %cst_114 {dimension_numbers = #tpu.dot_dimension_numbers<[1], [0], [0], [1], [0, 0, 1, 1], [], []>} : vector<32x16xf32>, vector<16x324xf32>, vector<32x324xf32> -> vector<32x324xf32>
    %224 = arith.addf %219, %223 : vector<32x324xf32>
    %225 = vector.extract_strided_slice %188 {offsets = [0, 20], sizes = [16, 324], strides = [1, 1]} : vector<16x400xf32> to vector<16x324xf32>
    %c7_115 = arith.constant 7 : index
    %c0_116 = arith.constant 0 : index
    %c0_117 = arith.constant 0 : index
    %226 = vector.load %arg4[%c7_115, %c0_116, %c0_117] : memref<25x32x16xf32, #tpu.memory_space<vmem>>, vector<1x32x16xf32>
    %227 = vector.shape_cast %226 : vector<1x32x16xf32> to vector<32x16xf32>
    %cst_118 = arith.constant dense<0.000000e+00> : vector<32x324xf32>
    %228 = tpu.matmul %227, %225, %cst_118 {dimension_numbers = #tpu.dot_dimension_numbers<[1], [0], [0], [1], [0, 0, 1, 1], [], []>} : vector<32x16xf32>, vector<16x324xf32>, vector<32x324xf32> -> vector<32x324xf32>
    %229 = arith.addf %224, %228 : vector<32x324xf32>
    %230 = vector.extract_strided_slice %188 {offsets = [0, 21], sizes = [16, 324], strides = [1, 1]} : vector<16x400xf32> to vector<16x324xf32>
    %c8_119 = arith.constant 8 : index
    %c0_120 = arith.constant 0 : index
    %c0_121 = arith.constant 0 : index
    %231 = vector.load %arg4[%c8_119, %c0_120, %c0_121] : memref<25x32x16xf32, #tpu.memory_space<vmem>>, vector<1x32x16xf32>
    %232 = vector.shape_cast %231 : vector<1x32x16xf32> to vector<32x16xf32>
    %cst_122 = arith.constant dense<0.000000e+00> : vector<32x324xf32>
    %233 = tpu.matmul %232, %230, %cst_122 {dimension_numbers = #tpu.dot_dimension_numbers<[1], [0], [0], [1], [0, 0, 1, 1], [], []>} : vector<32x16xf32>, vector<16x324xf32>, vector<32x324xf32> -> vector<32x324xf32>
    %234 = arith.addf %229, %233 : vector<32x324xf32>
    %235 = vector.extract_strided_slice %188 {offsets = [0, 22], sizes = [16, 324], strides = [1, 1]} : vector<16x400xf32> to vector<16x324xf32>
    %c9_123 = arith.constant 9 : index
    %c0_124 = arith.constant 0 : index
    %c0_125 = arith.constant 0 : index
    %236 = vector.load %arg4[%c9_123, %c0_124, %c0_125] : memref<25x32x16xf32, #tpu.memory_space<vmem>>, vector<1x32x16xf32>
    %237 = vector.shape_cast %236 : vector<1x32x16xf32> to vector<32x16xf32>
    %cst_126 = arith.constant dense<0.000000e+00> : vector<32x324xf32>
    %238 = tpu.matmul %237, %235, %cst_126 {dimension_numbers = #tpu.dot_dimension_numbers<[1], [0], [0], [1], [0, 0, 1, 1], [], []>} : vector<32x16xf32>, vector<16x324xf32>, vector<32x324xf32> -> vector<32x324xf32>
    %239 = arith.addf %234, %238 : vector<32x324xf32>
    %240 = vector.extract_strided_slice %188 {offsets = [0, 36], sizes = [16, 324], strides = [1, 1]} : vector<16x400xf32> to vector<16x324xf32>
    %c10_127 = arith.constant 10 : index
    %c0_128 = arith.constant 0 : index
    %c0_129 = arith.constant 0 : index
    %241 = vector.load %arg4[%c10_127, %c0_128, %c0_129] : memref<25x32x16xf32, #tpu.memory_space<vmem>>, vector<1x32x16xf32>
    %242 = vector.shape_cast %241 : vector<1x32x16xf32> to vector<32x16xf32>
    %cst_130 = arith.constant dense<0.000000e+00> : vector<32x324xf32>
    %243 = tpu.matmul %242, %240, %cst_130 {dimension_numbers = #tpu.dot_dimension_numbers<[1], [0], [0], [1], [0, 0, 1, 1], [], []>} : vector<32x16xf32>, vector<16x324xf32>, vector<32x324xf32> -> vector<32x324xf32>
    %244 = arith.addf %239, %243 : vector<32x324xf32>
    %245 = vector.extract_strided_slice %188 {offsets = [0, 37], sizes = [16, 324], strides = [1, 1]} : vector<16x400xf32> to vector<16x324xf32>
    %c11_131 = arith.constant 11 : index
    %c0_132 = arith.constant 0 : index
    %c0_133 = arith.constant 0 : index
    %246 = vector.load %arg4[%c11_131, %c0_132, %c0_133] : memref<25x32x16xf32, #tpu.memory_space<vmem>>, vector<1x32x16xf32>
    %247 = vector.shape_cast %246 : vector<1x32x16xf32> to vector<32x16xf32>
    %cst_134 = arith.constant dense<0.000000e+00> : vector<32x324xf32>
    %248 = tpu.matmul %247, %245, %cst_134 {dimension_numbers = #tpu.dot_dimension_numbers<[1], [0], [0], [1], [0, 0, 1, 1], [], []>} : vector<32x16xf32>, vector<16x324xf32>, vector<32x324xf32> -> vector<32x324xf32>
    %249 = arith.addf %244, %248 : vector<32x324xf32>
    %250 = vector.extract_strided_slice %188 {offsets = [0, 38], sizes = [16, 324], strides = [1, 1]} : vector<16x400xf32> to vector<16x324xf32>
    %c12_135 = arith.constant 12 : index
    %c0_136 = arith.constant 0 : index
    %c0_137 = arith.constant 0 : index
    %251 = vector.load %arg4[%c12_135, %c0_136, %c0_137] : memref<25x32x16xf32, #tpu.memory_space<vmem>>, vector<1x32x16xf32>
    %252 = vector.shape_cast %251 : vector<1x32x16xf32> to vector<32x16xf32>
    %cst_138 = arith.constant dense<0.000000e+00> : vector<32x324xf32>
    %253 = tpu.matmul %252, %250, %cst_138 {dimension_numbers = #tpu.dot_dimension_numbers<[1], [0], [0], [1], [0, 0, 1, 1], [], []>} : vector<32x16xf32>, vector<16x324xf32>, vector<32x324xf32> -> vector<32x324xf32>
    %254 = arith.addf %249, %253 : vector<32x324xf32>
    %255 = vector.extract_strided_slice %188 {offsets = [0, 39], sizes = [16, 324], strides = [1, 1]} : vector<16x400xf32> to vector<16x324xf32>
    %c13_139 = arith.constant 13 : index
    %c0_140 = arith.constant 0 : index
    %c0_141 = arith.constant 0 : index
    %256 = vector.load %arg4[%c13_139, %c0_140, %c0_141] : memref<25x32x16xf32, #tpu.memory_space<vmem>>, vector<1x32x16xf32>
    %257 = vector.shape_cast %256 : vector<1x32x16xf32> to vector<32x16xf32>
    %cst_142 = arith.constant dense<0.000000e+00> : vector<32x324xf32>
    %258 = tpu.matmul %257, %255, %cst_142 {dimension_numbers = #tpu.dot_dimension_numbers<[1], [0], [0], [1], [0, 0, 1, 1], [], []>} : vector<32x16xf32>, vector<16x324xf32>, vector<32x324xf32> -> vector<32x324xf32>
    %259 = arith.addf %254, %258 : vector<32x324xf32>
    %260 = vector.extract_strided_slice %188 {offsets = [0, 40], sizes = [16, 324], strides = [1, 1]} : vector<16x400xf32> to vector<16x324xf32>
    %c14_143 = arith.constant 14 : index
    %c0_144 = arith.constant 0 : index
    %c0_145 = arith.constant 0 : index
    %261 = vector.load %arg4[%c14_143, %c0_144, %c0_145] : memref<25x32x16xf32, #tpu.memory_space<vmem>>, vector<1x32x16xf32>
    %262 = vector.shape_cast %261 : vector<1x32x16xf32> to vector<32x16xf32>
    %cst_146 = arith.constant dense<0.000000e+00> : vector<32x324xf32>
    %263 = tpu.matmul %262, %260, %cst_146 {dimension_numbers = #tpu.dot_dimension_numbers<[1], [0], [0], [1], [0, 0, 1, 1], [], []>} : vector<32x16xf32>, vector<16x324xf32>, vector<32x324xf32> -> vector<32x324xf32>
    %264 = arith.addf %259, %263 : vector<32x324xf32>
    %265 = vector.extract_strided_slice %188 {offsets = [0, 54], sizes = [16, 324], strides = [1, 1]} : vector<16x400xf32> to vector<16x324xf32>
    %c15_147 = arith.constant 15 : index
    %c0_148 = arith.constant 0 : index
    %c0_149 = arith.constant 0 : index
    %266 = vector.load %arg4[%c15_147, %c0_148, %c0_149] : memref<25x32x16xf32, #tpu.memory_space<vmem>>, vector<1x32x16xf32>
    %267 = vector.shape_cast %266 : vector<1x32x16xf32> to vector<32x16xf32>
    %cst_150 = arith.constant dense<0.000000e+00> : vector<32x324xf32>
    %268 = tpu.matmul %267, %265, %cst_150 {dimension_numbers = #tpu.dot_dimension_numbers<[1], [0], [0], [1], [0, 0, 1, 1], [], []>} : vector<32x16xf32>, vector<16x324xf32>, vector<32x324xf32> -> vector<32x324xf32>
    %269 = arith.addf %264, %268 : vector<32x324xf32>
    %270 = vector.extract_strided_slice %188 {offsets = [0, 55], sizes = [16, 324], strides = [1, 1]} : vector<16x400xf32> to vector<16x324xf32>
    %c16_151 = arith.constant 16 : index
    %c0_152 = arith.constant 0 : index
    %c0_153 = arith.constant 0 : index
    %271 = vector.load %arg4[%c16_151, %c0_152, %c0_153] : memref<25x32x16xf32, #tpu.memory_space<vmem>>, vector<1x32x16xf32>
    %272 = vector.shape_cast %271 : vector<1x32x16xf32> to vector<32x16xf32>
    %cst_154 = arith.constant dense<0.000000e+00> : vector<32x324xf32>
    %273 = tpu.matmul %272, %270, %cst_154 {dimension_numbers = #tpu.dot_dimension_numbers<[1], [0], [0], [1], [0, 0, 1, 1], [], []>} : vector<32x16xf32>, vector<16x324xf32>, vector<32x324xf32> -> vector<32x324xf32>
    %274 = arith.addf %269, %273 : vector<32x324xf32>
    %275 = vector.extract_strided_slice %188 {offsets = [0, 56], sizes = [16, 324], strides = [1, 1]} : vector<16x400xf32> to vector<16x324xf32>
    %c17_155 = arith.constant 17 : index
    %c0_156 = arith.constant 0 : index
    %c0_157 = arith.constant 0 : index
    %276 = vector.load %arg4[%c17_155, %c0_156, %c0_157] : memref<25x32x16xf32, #tpu.memory_space<vmem>>, vector<1x32x16xf32>
    %277 = vector.shape_cast %276 : vector<1x32x16xf32> to vector<32x16xf32>
    %cst_158 = arith.constant dense<0.000000e+00> : vector<32x324xf32>
    %278 = tpu.matmul %277, %275, %cst_158 {dimension_numbers = #tpu.dot_dimension_numbers<[1], [0], [0], [1], [0, 0, 1, 1], [], []>} : vector<32x16xf32>, vector<16x324xf32>, vector<32x324xf32> -> vector<32x324xf32>
    %279 = arith.addf %274, %278 : vector<32x324xf32>
    %280 = vector.extract_strided_slice %188 {offsets = [0, 57], sizes = [16, 324], strides = [1, 1]} : vector<16x400xf32> to vector<16x324xf32>
    %c18_159 = arith.constant 18 : index
    %c0_160 = arith.constant 0 : index
    %c0_161 = arith.constant 0 : index
    %281 = vector.load %arg4[%c18_159, %c0_160, %c0_161] : memref<25x32x16xf32, #tpu.memory_space<vmem>>, vector<1x32x16xf32>
    %282 = vector.shape_cast %281 : vector<1x32x16xf32> to vector<32x16xf32>
    %cst_162 = arith.constant dense<0.000000e+00> : vector<32x324xf32>
    %283 = tpu.matmul %282, %280, %cst_162 {dimension_numbers = #tpu.dot_dimension_numbers<[1], [0], [0], [1], [0, 0, 1, 1], [], []>} : vector<32x16xf32>, vector<16x324xf32>, vector<32x324xf32> -> vector<32x324xf32>
    %284 = arith.addf %279, %283 : vector<32x324xf32>
    %285 = vector.extract_strided_slice %188 {offsets = [0, 58], sizes = [16, 324], strides = [1, 1]} : vector<16x400xf32> to vector<16x324xf32>
    %c19_163 = arith.constant 19 : index
    %c0_164 = arith.constant 0 : index
    %c0_165 = arith.constant 0 : index
    %286 = vector.load %arg4[%c19_163, %c0_164, %c0_165] : memref<25x32x16xf32, #tpu.memory_space<vmem>>, vector<1x32x16xf32>
    %287 = vector.shape_cast %286 : vector<1x32x16xf32> to vector<32x16xf32>
    %cst_166 = arith.constant dense<0.000000e+00> : vector<32x324xf32>
    %288 = tpu.matmul %287, %285, %cst_166 {dimension_numbers = #tpu.dot_dimension_numbers<[1], [0], [0], [1], [0, 0, 1, 1], [], []>} : vector<32x16xf32>, vector<16x324xf32>, vector<32x324xf32> -> vector<32x324xf32>
    %289 = arith.addf %284, %288 : vector<32x324xf32>
    %290 = vector.extract_strided_slice %188 {offsets = [0, 72], sizes = [16, 324], strides = [1, 1]} : vector<16x400xf32> to vector<16x324xf32>
    %c20_167 = arith.constant 20 : index
    %c0_168 = arith.constant 0 : index
    %c0_169 = arith.constant 0 : index
    %291 = vector.load %arg4[%c20_167, %c0_168, %c0_169] : memref<25x32x16xf32, #tpu.memory_space<vmem>>, vector<1x32x16xf32>
    %292 = vector.shape_cast %291 : vector<1x32x16xf32> to vector<32x16xf32>
    %cst_170 = arith.constant dense<0.000000e+00> : vector<32x324xf32>
    %293 = tpu.matmul %292, %290, %cst_170 {dimension_numbers = #tpu.dot_dimension_numbers<[1], [0], [0], [1], [0, 0, 1, 1], [], []>} : vector<32x16xf32>, vector<16x324xf32>, vector<32x324xf32> -> vector<32x324xf32>
    %294 = arith.addf %289, %293 : vector<32x324xf32>
    %295 = vector.extract_strided_slice %188 {offsets = [0, 73], sizes = [16, 324], strides = [1, 1]} : vector<16x400xf32> to vector<16x324xf32>
    %c21_171 = arith.constant 21 : index
    %c0_172 = arith.constant 0 : index
    %c0_173 = arith.constant 0 : index
    %296 = vector.load %arg4[%c21_171, %c0_172, %c0_173] : memref<25x32x16xf32, #tpu.memory_space<vmem>>, vector<1x32x16xf32>
    %297 = vector.shape_cast %296 : vector<1x32x16xf32> to vector<32x16xf32>
    %cst_174 = arith.constant dense<0.000000e+00> : vector<32x324xf32>
    %298 = tpu.matmul %297, %295, %cst_174 {dimension_numbers = #tpu.dot_dimension_numbers<[1], [0], [0], [1], [0, 0, 1, 1], [], []>} : vector<32x16xf32>, vector<16x324xf32>, vector<32x324xf32> -> vector<32x324xf32>
    %299 = arith.addf %294, %298 : vector<32x324xf32>
    %300 = vector.extract_strided_slice %188 {offsets = [0, 74], sizes = [16, 324], strides = [1, 1]} : vector<16x400xf32> to vector<16x324xf32>
    %c22_175 = arith.constant 22 : index
    %c0_176 = arith.constant 0 : index
    %c0_177 = arith.constant 0 : index
    %301 = vector.load %arg4[%c22_175, %c0_176, %c0_177] : memref<25x32x16xf32, #tpu.memory_space<vmem>>, vector<1x32x16xf32>
    %302 = vector.shape_cast %301 : vector<1x32x16xf32> to vector<32x16xf32>
    %cst_178 = arith.constant dense<0.000000e+00> : vector<32x324xf32>
    %303 = tpu.matmul %302, %300, %cst_178 {dimension_numbers = #tpu.dot_dimension_numbers<[1], [0], [0], [1], [0, 0, 1, 1], [], []>} : vector<32x16xf32>, vector<16x324xf32>, vector<32x324xf32> -> vector<32x324xf32>
    %304 = arith.addf %299, %303 : vector<32x324xf32>
    %305 = vector.extract_strided_slice %188 {offsets = [0, 75], sizes = [16, 324], strides = [1, 1]} : vector<16x400xf32> to vector<16x324xf32>
    %c23_179 = arith.constant 23 : index
    %c0_180 = arith.constant 0 : index
    %c0_181 = arith.constant 0 : index
    %306 = vector.load %arg4[%c23_179, %c0_180, %c0_181] : memref<25x32x16xf32, #tpu.memory_space<vmem>>, vector<1x32x16xf32>
    %307 = vector.shape_cast %306 : vector<1x32x16xf32> to vector<32x16xf32>
    %cst_182 = arith.constant dense<0.000000e+00> : vector<32x324xf32>
    %308 = tpu.matmul %307, %305, %cst_182 {dimension_numbers = #tpu.dot_dimension_numbers<[1], [0], [0], [1], [0, 0, 1, 1], [], []>} : vector<32x16xf32>, vector<16x324xf32>, vector<32x324xf32> -> vector<32x324xf32>
    %309 = arith.addf %304, %308 : vector<32x324xf32>
    %310 = vector.extract_strided_slice %188 {offsets = [0, 76], sizes = [16, 324], strides = [1, 1]} : vector<16x400xf32> to vector<16x324xf32>
    %c24_183 = arith.constant 24 : index
    %c0_184 = arith.constant 0 : index
    %c0_185 = arith.constant 0 : index
    %311 = vector.load %arg4[%c24_183, %c0_184, %c0_185] : memref<25x32x16xf32, #tpu.memory_space<vmem>>, vector<1x32x16xf32>
    %312 = vector.shape_cast %311 : vector<1x32x16xf32> to vector<32x16xf32>
    %cst_186 = arith.constant dense<0.000000e+00> : vector<32x324xf32>
    %313 = tpu.matmul %312, %310, %cst_186 {dimension_numbers = #tpu.dot_dimension_numbers<[1], [0], [0], [1], [0, 0, 1, 1], [], []>} : vector<32x16xf32>, vector<16x324xf32>, vector<32x324xf32> -> vector<32x324xf32>
    %314 = arith.addf %309, %313 : vector<32x324xf32>
    %c0_187 = arith.constant 0 : index
    %c0_188 = arith.constant 0 : index
    %315 = vector.load %arg5[%c0_187, %c0_188] : memref<32x1xf32, #tpu.memory_space<vmem>>, vector<32x1xf32>
    %316 = vector.broadcast %315 : vector<32x1xf32> to vector<32x324xf32>
    %317 = arith.addf %314, %316 : vector<32x324xf32>
    %cst_189 = arith.constant 0.000000e+00 : f32
    %318 = vector.broadcast %cst_189 : f32 to vector<32x324xf32>
    %319 = arith.maximumf %317, %318 : vector<32x324xf32>
    %320 = vector.extract_strided_slice %319 {offsets = [0, 0], sizes = [32, 323], strides = [1, 1]} : vector<32x324xf32> to vector<32x323xf32>
    %321 = vector.extract_strided_slice %319 {offsets = [0, 1], sizes = [32, 323], strides = [1, 1]} : vector<32x324xf32> to vector<32x323xf32>
    %322 = arith.maximumf %320, %321 : vector<32x323xf32>
    %323 = vector.extract_strided_slice %322 {offsets = [0, 0], sizes = [32, 305], strides = [1, 1]} : vector<32x323xf32> to vector<32x305xf32>
    %324 = vector.extract_strided_slice %322 {offsets = [0, 18], sizes = [32, 305], strides = [1, 1]} : vector<32x323xf32> to vector<32x305xf32>
    %325 = arith.maximumf %323, %324 : vector<32x305xf32>
    %c0_190 = arith.constant 0 : index
    %c0_191 = arith.constant 0 : index
    %326 = vector.load %arg7[%c0_190, %c0_191] : memref<305x49xf32, #tpu.memory_space<vmem>>, vector<305x49xf32>
    %cst_192 = arith.constant dense<0.000000e+00> : vector<32x49xf32>
    %327 = tpu.matmul %325, %326, %cst_192 {dimension_numbers = #tpu.dot_dimension_numbers<[1], [0], [0], [1], [0, 0, 1, 1], [], []>} : vector<32x305xf32>, vector<305x49xf32>, vector<32x49xf32> -> vector<32x49xf32>
    %c0_193 = arith.constant 0 : index
    %c0_194 = arith.constant 0 : index
    %c0_195 = arith.constant 0 : index
    %328 = vector.load %arg8[%c0_193, %c0_194, %c0_195] : memref<10x32x49xf32, #tpu.memory_space<vmem>>, vector<1x32x49xf32>
    %329 = vector.shape_cast %328 : vector<1x32x49xf32> to vector<32x49xf32>
    %330 = arith.mulf %327, %329 : vector<32x49xf32>
    %cst_196 = arith.constant dense<0.000000e+00> : vector<32xf32>
    %331 = vector.multi_reduction <add>, %330, %cst_196 [1] : vector<32x49xf32> to vector<32xf32>
    %332 = vector.shape_cast %331 : vector<32xf32> to vector<32x1xf32>
    %cst_197 = arith.constant dense<0.000000e+00> : vector<1xf32>
    %333 = vector.multi_reduction <add>, %332, %cst_197 [0] : vector<32x1xf32> to vector<1xf32>
    %334 = vector.shape_cast %333 : vector<1xf32> to vector<1x1xf32>
    %c0_198 = arith.constant 0 : index
    %c0_199 = arith.constant 0 : index
    %335 = vector.load %arg9[%c0_198, %c0_199] : memref<1x10xf32, #tpu.memory_space<vmem>>, vector<1x1xf32>
    %336 = arith.addf %334, %335 : vector<1x1xf32>
    %c0_200 = arith.constant 0 : index
    %c0_201 = arith.constant 0 : index
    %c0_202 = arith.constant 0 : index
    %337 = vector.load %arg10[%c0_200, %c0_201, %c0_202] : memref<1x1x10xf32, #tpu.memory_space<vmem>>, vector<1x1x1xf32>
    %338 = vector.shape_cast %337 : vector<1x1x1xf32> to vector<1x1xf32>
    %339 = vector.shape_cast %336 : vector<1x1xf32> to vector<1x1x1xf32>
    tpu.vector_store %arg10[%c0_200, %c0_201, %c0_202], %339 {strides = array<i32>} : memref<1x1x10xf32, #tpu.memory_space<vmem>>, vector<1x1x1xf32>,
    %c1_203 = arith.constant 1 : index
    %c0_204 = arith.constant 0 : index
    %c0_205 = arith.constant 0 : index
    %340 = vector.load %arg8[%c1_203, %c0_204, %c0_205] : memref<10x32x49xf32, #tpu.memory_space<vmem>>, vector<1x32x49xf32>
    %341 = vector.shape_cast %340 : vector<1x32x49xf32> to vector<32x49xf32>
    %342 = arith.mulf %327, %341 : vector<32x49xf32>
    %cst_206 = arith.constant dense<0.000000e+00> : vector<32xf32>
    %343 = vector.multi_reduction <add>, %342, %cst_206 [1] : vector<32x49xf32> to vector<32xf32>
    %344 = vector.shape_cast %343 : vector<32xf32> to vector<32x1xf32>
    %cst_207 = arith.constant dense<0.000000e+00> : vector<1xf32>
    %345 = vector.multi_reduction <add>, %344, %cst_207 [0] : vector<32x1xf32> to vector<1xf32>
    %346 = vector.shape_cast %345 : vector<1xf32> to vector<1x1xf32>
    %c0_208 = arith.constant 0 : index
    %c1_209 = arith.constant 1 : index
    %347 = vector.load %arg9[%c0_208, %c1_209] : memref<1x10xf32, #tpu.memory_space<vmem>>, vector<1x1xf32>
    %348 = arith.addf %346, %347 : vector<1x1xf32>
    %c0_210 = arith.constant 0 : index
    %c0_211 = arith.constant 0 : index
    %c1_212 = arith.constant 1 : index
    %349 = vector.load %arg10[%c0_210, %c0_211, %c1_212] : memref<1x1x10xf32, #tpu.memory_space<vmem>>, vector<1x1x1xf32>
    %350 = vector.shape_cast %349 : vector<1x1x1xf32> to vector<1x1xf32>
    %351 = vector.shape_cast %348 : vector<1x1xf32> to vector<1x1x1xf32>
    tpu.vector_store %arg10[%c0_210, %c0_211, %c1_212], %351 {strides = array<i32>} : memref<1x1x10xf32, #tpu.memory_space<vmem>>, vector<1x1x1xf32>,
    %c2_213 = arith.constant 2 : index
    %c0_214 = arith.constant 0 : index
    %c0_215 = arith.constant 0 : index
    %352 = vector.load %arg8[%c2_213, %c0_214, %c0_215] : memref<10x32x49xf32, #tpu.memory_space<vmem>>, vector<1x32x49xf32>
    %353 = vector.shape_cast %352 : vector<1x32x49xf32> to vector<32x49xf32>
    %354 = arith.mulf %327, %353 : vector<32x49xf32>
    %cst_216 = arith.constant dense<0.000000e+00> : vector<32xf32>
    %355 = vector.multi_reduction <add>, %354, %cst_216 [1] : vector<32x49xf32> to vector<32xf32>
    %356 = vector.shape_cast %355 : vector<32xf32> to vector<32x1xf32>
    %cst_217 = arith.constant dense<0.000000e+00> : vector<1xf32>
    %357 = vector.multi_reduction <add>, %356, %cst_217 [0] : vector<32x1xf32> to vector<1xf32>
    %358 = vector.shape_cast %357 : vector<1xf32> to vector<1x1xf32>
    %c0_218 = arith.constant 0 : index
    %c2_219 = arith.constant 2 : index
    %359 = vector.load %arg9[%c0_218, %c2_219] : memref<1x10xf32, #tpu.memory_space<vmem>>, vector<1x1xf32>
    %360 = arith.addf %358, %359 : vector<1x1xf32>
    %c0_220 = arith.constant 0 : index
    %c0_221 = arith.constant 0 : index
    %c2_222 = arith.constant 2 : index
    %361 = vector.load %arg10[%c0_220, %c0_221, %c2_222] : memref<1x1x10xf32, #tpu.memory_space<vmem>>, vector<1x1x1xf32>
    %362 = vector.shape_cast %361 : vector<1x1x1xf32> to vector<1x1xf32>
    %363 = vector.shape_cast %360 : vector<1x1xf32> to vector<1x1x1xf32>
    tpu.vector_store %arg10[%c0_220, %c0_221, %c2_222], %363 {strides = array<i32>} : memref<1x1x10xf32, #tpu.memory_space<vmem>>, vector<1x1x1xf32>,
    %c3_223 = arith.constant 3 : index
    %c0_224 = arith.constant 0 : index
    %c0_225 = arith.constant 0 : index
    %364 = vector.load %arg8[%c3_223, %c0_224, %c0_225] : memref<10x32x49xf32, #tpu.memory_space<vmem>>, vector<1x32x49xf32>
    %365 = vector.shape_cast %364 : vector<1x32x49xf32> to vector<32x49xf32>
    %366 = arith.mulf %327, %365 : vector<32x49xf32>
    %cst_226 = arith.constant dense<0.000000e+00> : vector<32xf32>
    %367 = vector.multi_reduction <add>, %366, %cst_226 [1] : vector<32x49xf32> to vector<32xf32>
    %368 = vector.shape_cast %367 : vector<32xf32> to vector<32x1xf32>
    %cst_227 = arith.constant dense<0.000000e+00> : vector<1xf32>
    %369 = vector.multi_reduction <add>, %368, %cst_227 [0] : vector<32x1xf32> to vector<1xf32>
    %370 = vector.shape_cast %369 : vector<1xf32> to vector<1x1xf32>
    %c0_228 = arith.constant 0 : index
    %c3_229 = arith.constant 3 : index
    %371 = vector.load %arg9[%c0_228, %c3_229] : memref<1x10xf32, #tpu.memory_space<vmem>>, vector<1x1xf32>
    %372 = arith.addf %370, %371 : vector<1x1xf32>
    %c0_230 = arith.constant 0 : index
    %c0_231 = arith.constant 0 : index
    %c3_232 = arith.constant 3 : index
    %373 = vector.load %arg10[%c0_230, %c0_231, %c3_232] : memref<1x1x10xf32, #tpu.memory_space<vmem>>, vector<1x1x1xf32>
    %374 = vector.shape_cast %373 : vector<1x1x1xf32> to vector<1x1xf32>
    %375 = vector.shape_cast %372 : vector<1x1xf32> to vector<1x1x1xf32>
    tpu.vector_store %arg10[%c0_230, %c0_231, %c3_232], %375 {strides = array<i32>} : memref<1x1x10xf32, #tpu.memory_space<vmem>>, vector<1x1x1xf32>,
    %c4_233 = arith.constant 4 : index
    %c0_234 = arith.constant 0 : index
    %c0_235 = arith.constant 0 : index
    %376 = vector.load %arg8[%c4_233, %c0_234, %c0_235] : memref<10x32x49xf32, #tpu.memory_space<vmem>>, vector<1x32x49xf32>
    %377 = vector.shape_cast %376 : vector<1x32x49xf32> to vector<32x49xf32>
    %378 = arith.mulf %327, %377 : vector<32x49xf32>
    %cst_236 = arith.constant dense<0.000000e+00> : vector<32xf32>
    %379 = vector.multi_reduction <add>, %378, %cst_236 [1] : vector<32x49xf32> to vector<32xf32>
    %380 = vector.shape_cast %379 : vector<32xf32> to vector<32x1xf32>
    %cst_237 = arith.constant dense<0.000000e+00> : vector<1xf32>
    %381 = vector.multi_reduction <add>, %380, %cst_237 [0] : vector<32x1xf32> to vector<1xf32>
    %382 = vector.shape_cast %381 : vector<1xf32> to vector<1x1xf32>
    %c0_238 = arith.constant 0 : index
    %c4_239 = arith.constant 4 : index
    %383 = vector.load %arg9[%c0_238, %c4_239] : memref<1x10xf32, #tpu.memory_space<vmem>>, vector<1x1xf32>
    %384 = arith.addf %382, %383 : vector<1x1xf32>
    %c0_240 = arith.constant 0 : index
    %c0_241 = arith.constant 0 : index
    %c4_242 = arith.constant 4 : index
    %385 = vector.load %arg10[%c0_240, %c0_241, %c4_242] : memref<1x1x10xf32, #tpu.memory_space<vmem>>, vector<1x1x1xf32>
    %386 = vector.shape_cast %385 : vector<1x1x1xf32> to vector<1x1xf32>
    %387 = vector.shape_cast %384 : vector<1x1xf32> to vector<1x1x1xf32>
    tpu.vector_store %arg10[%c0_240, %c0_241, %c4_242], %387 {strides = array<i32>} : memref<1x1x10xf32, #tpu.memory_space<vmem>>, vector<1x1x1xf32>,
    %c5_243 = arith.constant 5 : index
    %c0_244 = arith.constant 0 : index
    %c0_245 = arith.constant 0 : index
    %388 = vector.load %arg8[%c5_243, %c0_244, %c0_245] : memref<10x32x49xf32, #tpu.memory_space<vmem>>, vector<1x32x49xf32>
    %389 = vector.shape_cast %388 : vector<1x32x49xf32> to vector<32x49xf32>
    %390 = arith.mulf %327, %389 : vector<32x49xf32>
    %cst_246 = arith.constant dense<0.000000e+00> : vector<32xf32>
    %391 = vector.multi_reduction <add>, %390, %cst_246 [1] : vector<32x49xf32> to vector<32xf32>
    %392 = vector.shape_cast %391 : vector<32xf32> to vector<32x1xf32>
    %cst_247 = arith.constant dense<0.000000e+00> : vector<1xf32>
    %393 = vector.multi_reduction <add>, %392, %cst_247 [0] : vector<32x1xf32> to vector<1xf32>
    %394 = vector.shape_cast %393 : vector<1xf32> to vector<1x1xf32>
    %c0_248 = arith.constant 0 : index
    %c5_249 = arith.constant 5 : index
    %395 = vector.load %arg9[%c0_248, %c5_249] : memref<1x10xf32, #tpu.memory_space<vmem>>, vector<1x1xf32>
    %396 = arith.addf %394, %395 : vector<1x1xf32>
    %c0_250 = arith.constant 0 : index
    %c0_251 = arith.constant 0 : index
    %c5_252 = arith.constant 5 : index
    %397 = vector.load %arg10[%c0_250, %c0_251, %c5_252] : memref<1x1x10xf32, #tpu.memory_space<vmem>>, vector<1x1x1xf32>
    %398 = vector.shape_cast %397 : vector<1x1x1xf32> to vector<1x1xf32>
    %399 = vector.shape_cast %396 : vector<1x1xf32> to vector<1x1x1xf32>
    tpu.vector_store %arg10[%c0_250, %c0_251, %c5_252], %399 {strides = array<i32>} : memref<1x1x10xf32, #tpu.memory_space<vmem>>, vector<1x1x1xf32>,
    %c6_253 = arith.constant 6 : index
    %c0_254 = arith.constant 0 : index
    %c0_255 = arith.constant 0 : index
    %400 = vector.load %arg8[%c6_253, %c0_254, %c0_255] : memref<10x32x49xf32, #tpu.memory_space<vmem>>, vector<1x32x49xf32>
    %401 = vector.shape_cast %400 : vector<1x32x49xf32> to vector<32x49xf32>
    %402 = arith.mulf %327, %401 : vector<32x49xf32>
    %cst_256 = arith.constant dense<0.000000e+00> : vector<32xf32>
    %403 = vector.multi_reduction <add>, %402, %cst_256 [1] : vector<32x49xf32> to vector<32xf32>
    %404 = vector.shape_cast %403 : vector<32xf32> to vector<32x1xf32>
    %cst_257 = arith.constant dense<0.000000e+00> : vector<1xf32>
    %405 = vector.multi_reduction <add>, %404, %cst_257 [0] : vector<32x1xf32> to vector<1xf32>
    %406 = vector.shape_cast %405 : vector<1xf32> to vector<1x1xf32>
    %c0_258 = arith.constant 0 : index
    %c6_259 = arith.constant 6 : index
    %407 = vector.load %arg9[%c0_258, %c6_259] : memref<1x10xf32, #tpu.memory_space<vmem>>, vector<1x1xf32>
    %408 = arith.addf %406, %407 : vector<1x1xf32>
    %c0_260 = arith.constant 0 : index
    %c0_261 = arith.constant 0 : index
    %c6_262 = arith.constant 6 : index
    %409 = vector.load %arg10[%c0_260, %c0_261, %c6_262] : memref<1x1x10xf32, #tpu.memory_space<vmem>>, vector<1x1x1xf32>
    %410 = vector.shape_cast %409 : vector<1x1x1xf32> to vector<1x1xf32>
    %411 = vector.shape_cast %408 : vector<1x1xf32> to vector<1x1x1xf32>
    tpu.vector_store %arg10[%c0_260, %c0_261, %c6_262], %411 {strides = array<i32>} : memref<1x1x10xf32, #tpu.memory_space<vmem>>, vector<1x1x1xf32>,
    %c7_263 = arith.constant 7 : index
    %c0_264 = arith.constant 0 : index
    %c0_265 = arith.constant 0 : index
    %412 = vector.load %arg8[%c7_263, %c0_264, %c0_265] : memref<10x32x49xf32, #tpu.memory_space<vmem>>, vector<1x32x49xf32>
    %413 = vector.shape_cast %412 : vector<1x32x49xf32> to vector<32x49xf32>
    %414 = arith.mulf %327, %413 : vector<32x49xf32>
    %cst_266 = arith.constant dense<0.000000e+00> : vector<32xf32>
    %415 = vector.multi_reduction <add>, %414, %cst_266 [1] : vector<32x49xf32> to vector<32xf32>
    %416 = vector.shape_cast %415 : vector<32xf32> to vector<32x1xf32>
    %cst_267 = arith.constant dense<0.000000e+00> : vector<1xf32>
    %417 = vector.multi_reduction <add>, %416, %cst_267 [0] : vector<32x1xf32> to vector<1xf32>
    %418 = vector.shape_cast %417 : vector<1xf32> to vector<1x1xf32>
    %c0_268 = arith.constant 0 : index
    %c7_269 = arith.constant 7 : index
    %419 = vector.load %arg9[%c0_268, %c7_269] : memref<1x10xf32, #tpu.memory_space<vmem>>, vector<1x1xf32>
    %420 = arith.addf %418, %419 : vector<1x1xf32>
    %c0_270 = arith.constant 0 : index
    %c0_271 = arith.constant 0 : index
    %c7_272 = arith.constant 7 : index
    %421 = vector.load %arg10[%c0_270, %c0_271, %c7_272] : memref<1x1x10xf32, #tpu.memory_space<vmem>>, vector<1x1x1xf32>
    %422 = vector.shape_cast %421 : vector<1x1x1xf32> to vector<1x1xf32>
    %423 = vector.shape_cast %420 : vector<1x1xf32> to vector<1x1x1xf32>
    tpu.vector_store %arg10[%c0_270, %c0_271, %c7_272], %423 {strides = array<i32>} : memref<1x1x10xf32, #tpu.memory_space<vmem>>, vector<1x1x1xf32>,
    %c8_273 = arith.constant 8 : index
    %c0_274 = arith.constant 0 : index
    %c0_275 = arith.constant 0 : index
    %424 = vector.load %arg8[%c8_273, %c0_274, %c0_275] : memref<10x32x49xf32, #tpu.memory_space<vmem>>, vector<1x32x49xf32>
    %425 = vector.shape_cast %424 : vector<1x32x49xf32> to vector<32x49xf32>
    %426 = arith.mulf %327, %425 : vector<32x49xf32>
    %cst_276 = arith.constant dense<0.000000e+00> : vector<32xf32>
    %427 = vector.multi_reduction <add>, %426, %cst_276 [1] : vector<32x49xf32> to vector<32xf32>
    %428 = vector.shape_cast %427 : vector<32xf32> to vector<32x1xf32>
    %cst_277 = arith.constant dense<0.000000e+00> : vector<1xf32>
    %429 = vector.multi_reduction <add>, %428, %cst_277 [0] : vector<32x1xf32> to vector<1xf32>
    %430 = vector.shape_cast %429 : vector<1xf32> to vector<1x1xf32>
    %c0_278 = arith.constant 0 : index
    %c8_279 = arith.constant 8 : index
    %431 = vector.load %arg9[%c0_278, %c8_279] : memref<1x10xf32, #tpu.memory_space<vmem>>, vector<1x1xf32>
    %432 = arith.addf %430, %431 : vector<1x1xf32>
    %c0_280 = arith.constant 0 : index
    %c0_281 = arith.constant 0 : index
    %c8_282 = arith.constant 8 : index
    %433 = vector.load %arg10[%c0_280, %c0_281, %c8_282] : memref<1x1x10xf32, #tpu.memory_space<vmem>>, vector<1x1x1xf32>
    %434 = vector.shape_cast %433 : vector<1x1x1xf32> to vector<1x1xf32>
    %435 = vector.shape_cast %432 : vector<1x1xf32> to vector<1x1x1xf32>
    tpu.vector_store %arg10[%c0_280, %c0_281, %c8_282], %435 {strides = array<i32>} : memref<1x1x10xf32, #tpu.memory_space<vmem>>, vector<1x1x1xf32>,
    %c9_283 = arith.constant 9 : index
    %c0_284 = arith.constant 0 : index
    %c0_285 = arith.constant 0 : index
    %436 = vector.load %arg8[%c9_283, %c0_284, %c0_285] : memref<10x32x49xf32, #tpu.memory_space<vmem>>, vector<1x32x49xf32>
    %437 = vector.shape_cast %436 : vector<1x32x49xf32> to vector<32x49xf32>
    %438 = arith.mulf %327, %437 : vector<32x49xf32>
    %cst_286 = arith.constant dense<0.000000e+00> : vector<32xf32>
    %439 = vector.multi_reduction <add>, %438, %cst_286 [1] : vector<32x49xf32> to vector<32xf32>
    %440 = vector.shape_cast %439 : vector<32xf32> to vector<32x1xf32>
    %cst_287 = arith.constant dense<0.000000e+00> : vector<1xf32>
    %441 = vector.multi_reduction <add>, %440, %cst_287 [0] : vector<32x1xf32> to vector<1xf32>
    %442 = vector.shape_cast %441 : vector<1xf32> to vector<1x1xf32>
    %c0_288 = arith.constant 0 : index
    %c9_289 = arith.constant 9 : index
    %443 = vector.load %arg9[%c0_288, %c9_289] : memref<1x10xf32, #tpu.memory_space<vmem>>, vector<1x1xf32>
    %444 = arith.addf %442, %443 : vector<1x1xf32>
    %c0_290 = arith.constant 0 : index
    %c0_291 = arith.constant 0 : index
    %c9_292 = arith.constant 9 : index
    %445 = vector.load %arg10[%c0_290, %c0_291, %c9_292] : memref<1x1x10xf32, #tpu.memory_space<vmem>>, vector<1x1x1xf32>
    %446 = vector.shape_cast %445 : vector<1x1x1xf32> to vector<1x1xf32>
    %447 = vector.shape_cast %444 : vector<1x1xf32> to vector<1x1x1xf32>
    tpu.vector_store %arg10[%c0_290, %c0_291, %c9_292], %447 {strides = array<i32>} : memref<1x1x10xf32, #tpu.memory_space<vmem>>, vector<1x1x1xf32>,
    return
  }
  func.func @transform_0(%arg0: i32) -> (i32, i32, i32) {
    %c0_i32 = arith.constant 0 : i32
    %c0_i32_0 = arith.constant 0 : i32
    %c0_i32_1 = arith.constant 0 : i32
    return %arg0, %c0_i32, %c0_i32_0 : i32, i32, i32
  }
  func.func @transform_1(%arg0: i32) -> (i32, i32) {
    %c0_i32 = arith.constant 0 : i32
    %c0_i32_0 = arith.constant 0 : i32
    %c0_i32_1 = arith.constant 0 : i32
    return %c0_i32, %c0_i32_0 : i32, i32
  }
  func.func @transform_2(%arg0: i32) -> (i32, i32) {
    %c0_i32 = arith.constant 0 : i32
    %c0_i32_0 = arith.constant 0 : i32
    %c0_i32_1 = arith.constant 0 : i32
    return %c0_i32, %c0_i32_0 : i32, i32
  }
  func.func @transform_3(%arg0: i32) -> (i32, i32, i32) {
    %c0_i32 = arith.constant 0 : i32
    %c0_i32_0 = arith.constant 0 : i32
    %c0_i32_1 = arith.constant 0 : i32
    %c0_i32_2 = arith.constant 0 : i32
    return %c0_i32, %c0_i32_0, %c0_i32_1 : i32, i32, i32
  }
  func.func @transform_4(%arg0: i32) -> (i32, i32) {
    %c0_i32 = arith.constant 0 : i32
    %c0_i32_0 = arith.constant 0 : i32
    %c0_i32_1 = arith.constant 0 : i32
    return %c0_i32, %c0_i32_0 : i32, i32
  }
  func.func @transform_5(%arg0: i32) -> (i32, i32) {
    %c0_i32 = arith.constant 0 : i32
    %c0_i32_0 = arith.constant 0 : i32
    %c0_i32_1 = arith.constant 0 : i32
    return %c0_i32, %c0_i32_0 : i32, i32
  }
  func.func @transform_6(%arg0: i32) -> (i32, i32) {
    %c0_i32 = arith.constant 0 : i32
    %c0_i32_0 = arith.constant 0 : i32
    %c0_i32_1 = arith.constant 0 : i32
    return %c0_i32, %c0_i32_0 : i32, i32
  }
  func.func @transform_7(%arg0: i32) -> (i32, i32, i32) {
    %c0_i32 = arith.constant 0 : i32
    %c0_i32_0 = arith.constant 0 : i32
    %c0_i32_1 = arith.constant 0 : i32
    %c0_i32_2 = arith.constant 0 : i32
    return %c0_i32, %c0_i32_0, %c0_i32_1 : i32, i32, i32
  }
  func.func @transform_8(%arg0: i32) -> (i32, i32) {
    %c0_i32 = arith.constant 0 : i32
    %c0_i32_0 = arith.constant 0 : i32
    %c0_i32_1 = arith.constant 0 : i32
    return %c0_i32, %c0_i32_0 : i32, i32
  }
  func.func @transform_9(%arg0: i32) -> (i32, i32, i32) {
    %c0_i32 = arith.constant 0 : i32
    %c0_i32_0 = arith.constant 0 : i32
    %c0_i32_1 = arith.constant 0 : i32
    return %arg0, %c0_i32, %c0_i32_0 : i32, i32, i32
  }
}

</mosaic_0001>

<llo_original>
// kernel: cnn_forward.1
$region0: #{cnn_forward.1}
  #allocation0 [shape = 'u32[]', space=smem, size = 0x4, offset = 0x4, fixed_abs, tag = 'smem constant byte address 0x4 - core index']
  #allocation1 [shape = 'u32[72,128]{1,0:T(1,128)}', space=vmem, size = 0x9000, scoped, tag = 'internal scratch']
  %s0 = inlined_call_operand.vmem [shape: f32[2,1,1156], index: 0, kind: input, shape index: {}]
  %s1 = inlined_call_operand.vmem [shape: f32[16,25], index: 1, kind: input, shape index: {}]
  %s2 = inlined_call_operand.vmem [shape: f32[16,1], index: 2, kind: input, shape index: {}]
  %s3 = inlined_call_operand.vmem [shape: f32[25,32,16], index: 3, kind: input, shape index: {}]
  %s4 = inlined_call_operand.vmem [shape: f32[32,1], index: 4, kind: input, shape index: {}]
  %s5 = inlined_call_operand.vmem [shape: f32[991,400], index: 5, kind: input, shape index: {}]
  %s6 = inlined_call_operand.vmem [shape: f32[305,49], index: 6, kind: input, shape index: {}]
  %s7 = inlined_call_operand.vmem [shape: f32[10,32,49], index: 7, kind: input, shape index: {}]
  %s8 = inlined_call_operand.vmem [shape: f32[1,10], index: 8, kind: input, shape index: {}]
  %s9 = inlined_call_operand.hbm [shape: f32[2,1,10], index: 9, kind: output, shape index: {}]
  %s10 = sld [smem:[#allocation0]]
  $region69: #{cnn_forward.1} parent=0
    _
  %s12 = ssub.s32 1, %s10
  %s13 = scalar_select 0, %s12, %s10
  $region1: #{cnn_forward.1} parent=0
    #allocation2 [shape = 'u8[1024]{0}', space=vmem, size = 0x400, scoped, tag = 'output window, operand 0']
    #allocation3 [shape = 's32[2]{0}', space=sflag, size = 0x8, scoped, tag = 'scoped memory for cnn_forward.1']
    %14 = vsyncpa [#allocation3], 0
    %s15 = scalar_lea.sflag [#allocation3], 1
    %16 = vsyncpa %s15, 0
    loop: start=0, step=1, limit=4
    $region2: #{cnn_forward.1} parent=1 // loop_pre_header
      _
    $region3: #{cnn_forward.1} parent=1 // loop_header
      %s18 = sphi 0, %s22
      %p19 = scmp.ge.s32.totalorder %s18, 4
      %s28 = sphi 0, %s30
      %s31 = sphi 0, %s28
      %s32 = sphi 0, %s31
      %s48 = sphi 0, %s32
      %s52 = sphi 0, %s52
      %s54 = sphi 0, %s52
      %s55 = sphi 0, %s54
      %s69 = sphi 0, %s55
      %s73 = sphi 0, %s73
      %s75 = sphi 0, %s73
      %s76 = sphi 0, %s75
      %s90 = sphi 0, %s76
      %s94 = sphi 0, %s94
      %s96 = sphi 0, %s94
      %s97 = sphi 0, %s96
      %s111 = sphi 0, %s97
      %s115 = sphi 0, %s115
      %s117 = sphi 0, %s115
      %s118 = sphi 0, %s117
      %s132 = sphi 0, %s118
      %s136 = sphi 0, %s136
      %s138 = sphi 0, %s136
      %s139 = sphi 0, %s138
      %s153 = sphi 0, %s139
      %s157 = sphi 0, %s157
      %s159 = sphi 0, %s157
      %s160 = sphi 0, %s159
      %s174 = sphi 0, %s160
      %s178 = sphi 0, %s178
      %s180 = sphi 0, %s178
      %s181 = sphi 0, %s180
      %s195 = sphi 0, %s181
      %s199 = sphi 0, %s199
      %s201 = sphi 0, %s199
      %s202 = sphi 0, %s201
      %s216 = sphi 0, %s202
      %s222 = sphi 0, %s224
      %s225 = sphi 0, %s222
      %s226 = sphi 0, %s225
      %s242 = sphi 0, %s226
    $region4: #{cnn_forward.1} parent=1 // loop_header_branch
      %21 = sbr.rel (%p19) target = $region8
    $region5: #{cnn_forward.1} parent=1 // loop_body
      %s23 = ssub.s32 %s18, 1
      %s24 = ssub.s32 %s18, 2
      %s25 = sadd.s32 %s18, 1
      %s26 = ssub.s32 %s18, %s25
      %p27 = scmp.eq.s32.totalorder %s26, 0
      %s29 = sadd.s32 %s28, 1
      %s30 = scalar_select %p27, %s28, %s29
      %p33 = pneg %p27
      %p34 = scmp.eq.s32.totalorder %s18, 1
      %p35 = por %p33, %p34
      %p36 = scmp.ne.s32.totalorder %s28, %s31
      %p37 = scmp.eq.s32.totalorder %s18, 0
      %p38 = por %p36, %p37
      %p39 = scmp.ne.s32.totalorder %s28, %s31
      %p40 = scmp.eq.s32.totalorder %s23, 1
      %p41 = por %p39, %p40
      %p42 = scmp.ne.s32.totalorder %s31, %s32
      %p43 = scmp.eq.s32.totalorder %s23, 0
      %p44 = por %p42, %p43
      %p45 = scmp.ne.s32.totalorder %s31, %s32
      %p46 = scmp.eq.s32.totalorder %s24, 1
      %p47 = por %p45, %p46
      %p49 = scmp.ne.s32.totalorder %s32, %s48
      %p50 = scmp.eq.s32.totalorder %s24, 0
      %p51 = por %p49, %p50
      %s53 = sadd.s32 %s52, 1
      %p56 = scmp.eq.s32.totalorder %s18, 1
      %p57 = scmp.ne.s32.totalorder %s52, %s54
      %p58 = scmp.eq.s32.totalorder %s18, 0
      %p59 = por %p57, %p58
      %p60 = scmp.ne.s32.totalorder %s52, %s54
      %p61 = scmp.eq.s32.totalorder %s23, 1
      %p62 = por %p60, %p61
      %p63 = scmp.ne.s32.totalorder %s54, %s55
      %p64 = scmp.eq.s32.totalorder %s23, 0
      %p65 = por %p63, %p64
      %p66 = scmp.ne.s32.totalorder %s54, %s55
      %p67 = scmp.eq.s32.totalorder %s24, 1
      %p68 = por %p66, %p67
      %p70 = scmp.ne.s32.totalorder %s55, %s69
      %p71 = scmp.eq.s32.totalorder %s24, 0
      %p72 = por %p70, %p71
      %s74 = sadd.s32 %s73, 1
      %p77 = scmp.eq.s32.totalorder %s18, 1
      %p78 = scmp.ne.s32.totalorder %s73, %s75
      %p79 = scmp.eq.s32.totalorder %s18, 0
      %p80 = por %p78, %p79
      %p81 = scmp.ne.s32.totalorder %s73, %s75
      %p82 = scmp.eq.s32.totalorder %s23, 1
      %p83 = por %p81, %p82
      %p84 = scmp.ne.s32.totalorder %s75, %s76
      %p85 = scmp.eq.s32.totalorder %s23, 0
      %p86 = por %p84, %p85
      %p87 = scmp.ne.s32.totalorder %s75, %s76
      %p88 = scmp.eq.s32.totalorder %s24, 1
      %p89 = por %p87, %p88
      %p91 = scmp.ne.s32.totalorder %s76, %s90
      %p92 = scmp.eq.s32.totalorder %s24, 0
      %p93 = por %p91, %p92
      %s95 = sadd.s32 %s94, 1
      %p98 = scmp.eq.s32.totalorder %s18, 1
      %p99 = scmp.ne.s32.totalorder %s94, %s96
      %p100 = scmp.eq.s32.totalorder %s18, 0
      %p101 = por %p99, %p100
      %p102 = scmp.ne.s32.totalorder %s94, %s96
      %p103 = scmp.eq.s32.totalorder %s23, 1
      %p104 = por %p102, %p103
      %p105 = scmp.ne.s32.totalorder %s96, %s97
      %p106 = scmp.eq.s32.totalorder %s23, 0
      %p107 = por %p105, %p106
      %p108 = scmp.ne.s32.totalorder %s96, %s97
      %p109 = scmp.eq.s32.totalorder %s24, 1
      %p110 = por %p108, %p109
      %p112 = scmp.ne.s32.totalorder %s97, %s111
      %p113 = scmp.eq.s32.totalorder %s24, 0
      %p114 = por %p112, %p113
      %s116 = sadd.s32 %s115, 1
      %p119 = scmp.eq.s32.totalorder %s18, 1
      %p120 = scmp.ne.s32.totalorder %s115, %s117
      %p121 = scmp.eq.s32.totalorder %s18, 0
      %p122 = por %p120, %p121
      %p123 = scmp.ne.s32.totalorder %s115, %s117
      %p124 = scmp.eq.s32.totalorder %s23, 1
      %p125 = por %p123, %p124
      %p126 = scmp.ne.s32.totalorder %s117, %s118
      %p127 = scmp.eq.s32.totalorder %s23, 0
      %p128 = por %p126, %p127
      %p129 = scmp.ne.s32.totalorder %s117, %s118
      %p130 = scmp.eq.s32.totalorder %s24, 1
      %p131 = por %p129, %p130
      %p133 = scmp.ne.s32.totalorder %s118, %s132
      %p134 = scmp.eq.s32.totalorder %s24, 0
      %p135 = por %p133, %p134
      %s137 = sadd.s32 %s136, 1
      %p140 = scmp.eq.s32.totalorder %s18, 1
      %p141 = scmp.ne.s32.totalorder %s136, %s138
      %p142 = scmp.eq.s32.totalorder %s18, 0
      %p143 = por %p141, %p142
      %p144 = scmp.ne.s32.totalorder %s136, %s138
      %p145 = scmp.eq.s32.totalorder %s23, 1
      %p146 = por %p144, %p145
      %p147 = scmp.ne.s32.totalorder %s138, %s139
      %p148 = scmp.eq.s32.totalorder %s23, 0
      %p149 = por %p147, %p148
      %p150 = scmp.ne.s32.totalorder %s138, %s139
      %p151 = scmp.eq.s32.totalorder %s24, 1
      %p152 = por %p150, %p151
      %p154 = scmp.ne.s32.totalorder %s139, %s153
      %p155 = scmp.eq.s32.totalorder %s24, 0
      %p156 = por %p154, %p155
      %s158 = sadd.s32 %s157, 1
      %p161 = scmp.eq.s32.totalorder %s18, 1
      %p162 = scmp.ne.s32.totalorder %s157, %s159
      %p163 = scmp.eq.s32.totalorder %s18, 0
      %p164 = por %p162, %p163
      %p165 = scmp.ne.s32.totalorder %s157, %s159
      %p166 = scmp.eq.s32.totalorder %s23, 1
      %p167 = por %p165, %p166
      %p168 = scmp.ne.s32.totalorder %s159, %s160
      %p169 = scmp.eq.s32.totalorder %s23, 0
      %p170 = por %p168, %p169
      %p171 = scmp.ne.s32.totalorder %s159, %s160
      %p172 = scmp.eq.s32.totalorder %s24, 1
      %p173 = por %p171, %p172
      %p175 = scmp.ne.s32.totalorder %s160, %s174
      %p176 = scmp.eq.s32.totalorder %s24, 0
      %p177 = por %p175, %p176
      %s179 = sadd.s32 %s178, 1
      %p182 = scmp.eq.s32.totalorder %s18, 1
      %p183 = scmp.ne.s32.totalorder %s178, %s180
      %p184 = scmp.eq.s32.totalorder %s18, 0
      %p185 = por %p183, %p184
      %p186 = scmp.ne.s32.totalorder %s178, %s180
      %p187 = scmp.eq.s32.totalorder %s23, 1
      %p188 = por %p186, %p187
      %p189 = scmp.ne.s32.totalorder %s180, %s181
      %p190 = scmp.eq.s32.totalorder %s23, 0
      %p191 = por %p189, %p190
      %p192 = scmp.ne.s32.totalorder %s180, %s181
      %p193 = scmp.eq.s32.totalorder %s24, 1
      %p194 = por %p192, %p193
      %p196 = scmp.ne.s32.totalorder %s181, %s195
      %p197 = scmp.eq.s32.totalorder %s24, 0
      %p198 = por %p196, %p197
      %s200 = sadd.s32 %s199, 1
      %p203 = scmp.eq.s32.totalorder %s18, 1
      %p204 = scmp.ne.s32.totalorder %s199, %s201
      %p205 = scmp.eq.s32.totalorder %s18, 0
      %p206 = por %p204, %p205
      %p207 = scmp.ne.s32.totalorder %s199, %s201
      %p208 = scmp.eq.s32.totalorder %s23, 1
      %p209 = por %p207, %p208
      %p210 = scmp.ne.s32.totalorder %s201, %s202
      %p211 = scmp.eq.s32.totalorder %s23, 0
      %p212 = por %p210, %p211
      %p213 = scmp.ne.s32.totalorder %s201, %s202
      %p214 = scmp.eq.s32.totalorder %s24, 1
      %p215 = por %p213, %p214
      %p217 = scmp.ne.s32.totalorder %s202, %s216
      %p218 = scmp.eq.s32.totalorder %s24, 0
      %p219 = por %p217, %p218
      %s220 = ssub.s32 %s18, %s25
      %p221 = scmp.eq.s32.totalorder %s220, 0
      %s223 = sadd.s32 %s222, 1
      %s224 = scalar_select %p221, %s222, %s223
      %p227 = pneg %p221
      %p228 = scmp.eq.s32.totalorder %s18, 1
      %p229 = por %p227, %p228
      %p230 = scmp.ne.s32.totalorder %s222, %s225
      %p231 = scmp.eq.s32.totalorder %s18, 0
      %p232 = por %p230, %p231
      %p233 = scmp.ne.s32.totalorder %s222, %s225
      %p234 = scmp.eq.s32.totalorder %s23, 1
      %p235 = por %p233, %p234
      %p236 = scmp.ne.s32.totalorder %s225, %s226
      %p237 = scmp.eq.s32.totalorder %s23, 0
      %p238 = por %p236, %p237
      %p239 = scmp.ne.s32.totalorder %s225, %s226
      %p240 = scmp.eq.s32.totalorder %s24, 1
      %p241 = por %p239, %p240
      %p243 = scmp.ne.s32.totalorder %s226, %s242
      %p244 = scmp.eq.s32.totalorder %s24, 0
      %p245 = por %p243, %p244
      %p246 = scmp.le.s32.totalorder 1, %s18
      %p247 = scmp.lt.s32.totalorder %s18, 3
      %p248 = pnand %p246, %p247
      %p249 = pneg %p248
      // Predicated region
      $region9: #{cnn_forward.1} parent=5 // pred_check
        _
      $region10: #{cnn_forward.1} parent=5 // pred_check_branch
        %251 = sbr.rel (%p248) target = $region12
      $region11: #{cnn_forward.1} parent=5 // pred_region
        %s252 = ssub.s32 %s18, 1
        // Predicated region
        $region13: #{cnn_forward.1} parent=11 // pred_check
          %p253 = pneg %p65
        $region14: #{cnn_forward.1} parent=11 // pred_check_branch
          %255 = sbr.rel (%p253) target = $region16
        $region15: #{cnn_forward.1} parent=11 // pred_region
          _
        $region16: #{cnn_forward.1} parent=11 // pred_fallthru
          _
        // Predicated region
        $region17: #{cnn_forward.1} parent=11 // pred_check
          %p256 = pneg %p86
        $region18: #{cnn_forward.1} parent=11 // pred_check_branch
          %258 = sbr.rel (%p256) target = $region20
        $region19: #{cnn_forward.1} parent=11 // pred_region
          _
        $region20: #{cnn_forward.1} parent=11 // pred_fallthru
          _
        // Predicated region
        $region21: #{cnn_forward.1} parent=11 // pred_check
          %p259 = pneg %p107
        $region22: #{cnn_forward.1} parent=11 // pred_check_branch
          %261 = sbr.rel (%p259) target = $region24
        $region23: #{cnn_forward.1} parent=11 // pred_region
          _
        $region24: #{cnn_forward.1} parent=11 // pred_fallthru
          _
        // Predicated region
        $region25: #{cnn_forward.1} parent=11 // pred_check
          %p262 = pneg %p128
        $region26: #{cnn_forward.1} parent=11 // pred_check_branch
          %264 = sbr.rel (%p262) target = $region28
        $region27: #{cnn_forward.1} parent=11 // pred_region
          _
        $region28: #{cnn_forward.1} parent=11 // pred_fallthru
          _
        // Predicated region
        $region29: #{cnn_forward.1} parent=11 // pred_check
          %p265 = pneg %p149
        $region30: #{cnn_forward.1} parent=11 // pred_check_branch
          %267 = sbr.rel (%p265) target = $region32
        $region31: #{cnn_forward.1} parent=11 // pred_region
          _
        $region32: #{cnn_forward.1} parent=11 // pred_fallthru
          _
        // Predicated region
        $region33: #{cnn_forward.1} parent=11 // pred_check
          %p268 = pneg %p170
        $region34: #{cnn_forward.1} parent=11 // pred_check_branch
          %270 = sbr.rel (%p268) target = $region36
        $region35: #{cnn_forward.1} parent=11 // pred_region
          _
        $region36: #{cnn_forward.1} parent=11 // pred_fallthru
          _
        // Predicated region
        $region37: #{cnn_forward.1} parent=11 // pred_check
          %p271 = pneg %p191
        $region38: #{cnn_forward.1} parent=11 // pred_check_branch
          %273 = sbr.rel (%p271) target = $region40
        $region39: #{cnn_forward.1} parent=11 // pred_region
          _
        $region40: #{cnn_forward.1} parent=11 // pred_fallthru
          _
        // Predicated region
        $region41: #{cnn_forward.1} parent=11 // pred_check
          %p274 = pneg %p212
        $region42: #{cnn_forward.1} parent=11 // pred_check_branch
          %276 = sbr.rel (%p274) target = $region44
        $region43: #{cnn_forward.1} parent=11 // pred_region
          _
        $region44: #{cnn_forward.1} parent=11 // pred_fallthru
          _
      $region12: #{cnn_forward.1} parent=5 // pred_fallthru
        _
      %p277 = scmp.lt.s32.totalorder %s18, 2
      // Predicated region
      $region45: #{cnn_forward.1} parent=5 // pred_check
        %p278 = pneg %p277
      $region46: #{cnn_forward.1} parent=5 // pred_check_branch
        %280 = sbr.rel (%p278) target = $region48
      $region47: #{cnn_forward.1} parent=5 // pred_region
        // Predicated region
        $region49: #{cnn_forward.1} parent=47 // pred_check
          %p281 = pneg %p38
        $region50: #{cnn_forward.1} parent=47 // pred_check_branch
          %283 = sbr.rel (%p281) target = $region52
        $region51: #{cnn_forward.1} parent=47 // pred_region
          %p284 = scmp.lt.s32.totalorder %s18, 1
          %s285 = scalar_select %p284, %s18, 1
          %s286 = smul.addr %s285, 10
          %s287 = scalar_lea.vmem %s0, %s286
        $region52: #{cnn_forward.1} parent=47 // pred_fallthru
          _
      $region48: #{cnn_forward.1} parent=5 // pred_fallthru
        _
      %p288 = scmp.le.s32.totalorder 1, %s18
      %p289 = scmp.lt.s32.totalorder %s18, 3
      %p290 = pnand %p288, %p289
      %p291 = pneg %p290
      // Predicated region
      $region53: #{cnn_forward.1} parent=5 // pred_check
        _
      $region54: #{cnn_forward.1} parent=5 // pred_check_branch
        %293 = sbr.rel (%p290) target = $region56
      $region55: #{cnn_forward.1} parent=5 // pred_region
        %s294 = ssub.s32 %s18, 1
        %p295 = scmp.lt.s32.totalorder %s23, 1
        %s296 = scalar_select %p295, %s23, 1
        %s297 = smul.addr %s296, 10
        %s298 = scalar_lea.vmem %s0, %s297
        %p299 = pneg %p44
        %p300 = pneg %p41
        %p301 = pneg %p65
        %p302 = pneg %p62
        %p303 = pneg %p86
        %p304 = pneg %p83
        %p305 = pneg %p107
        %p306 = pneg %p104
        %p307 = pneg %p128
        %p308 = pneg %p125
        %p309 = pneg %p149
        %p310 = pneg %p146
        %p311 = pneg %p170
        %p312 = pneg %p167
        %p313 = pneg %p191
        %p314 = pneg %p188
        %p315 = pneg %p212
        %p316 = pneg %p209
        %p317 = pneg %p238
        %p318 = pneg %p235
        %s319 = sand.u32 %s225, 1
        %s320 = scalar_lea.sflag [#allocation3], %s319
        %s321 = sand.u32 %s225, 1
        %s322 = scalar_lea.vmem [#allocation2], %s321
        %p323 = scmp.lt.s32.totalorder %s23, 1
        %s324 = scalar_select %p323, %s23, 1
        %s325 = smul.addr %s324, 10
        %s326 = scalar_lea.vmem %s0, %s325
        %v327 = vld [vmem:[%s326] sm:$0xff]
        %v328 = vld [vmem:[%s1] sm:$0xff]
        %v329 = vld [vmem:[%s1 + $0x8] sm:$0xff]
        %331 = vset.pattern.permute.xlu0 0
        %332 = vperm.xlu0 %331, %v328
        %v333 = vpop.permute.xlu0 %332
        %336 = vset.pattern.permute.xlu0 0
        %337 = vperm.xlu0 %336, %v329
        %v338 = vpop.permute.xlu0 %337
        %v341 = vperm.slane %v327, 0
        %v342 = vperm.slane %v327, 1
        %v343 = vperm.slane %v327, 2
        %v344 = vperm.slane %v327, 3
        %v345 = vperm.slane %v327, 4
        %v346 = vperm.slane %v327, 5
        %v347 = vperm.slane %v327, 6
        %v348 = vperm.slane %v327, 7
        %v357 = vmul.f32 %v333, %v341
        %v358 = vmul.f32 %v333, %v342
        %v359 = vmul.f32 %v333, %v343
        %v360 = vmul.f32 %v333, %v344
        %v361 = vmul.f32 %v333, %v345
        %v362 = vmul.f32 %v333, %v346
        %v363 = vmul.f32 %v333, %v347
        %v364 = vmul.f32 %v333, %v348
        %v365 = vmul.f32 %v338, %v341
        %v366 = vmul.f32 %v338, %v342
        %v367 = vmul.f32 %v338, %v343
        %v368 = vmul.f32 %v338, %v344
        %v369 = vmul.f32 %v338, %v345
        %v370 = vmul.f32 %v338, %v346
        %v371 = vmul.f32 %v338, %v347
        %v372 = vmul.f32 %v338, %v348
        %v373 = vadd.f32 %v357, 0.0
        %v374 = vadd.f32 %v358, 0.0
        %v375 = vadd.f32 %v359, 0.0
        %v376 = vadd.f32 %v360, 0.0
        %v377 = vadd.f32 %v361, 0.0
        %v378 = vadd.f32 %v362, 0.0
        %v379 = vadd.f32 %v363, 0.0
        %v380 = vadd.f32 %v364, 0.0
        %v381 = vadd.f32 %v365, 0.0
        %v382 = vadd.f32 %v366, 0.0
        %v383 = vadd.f32 %v367, 0.0
        %v384 = vadd.f32 %v368, 0.0
        %v385 = vadd.f32 %v369, 0.0
        %v386 = vadd.f32 %v370, 0.0
        %v387 = vadd.f32 %v371, 0.0
        %v388 = vadd.f32 %v372, 0.0
        %v389 = vld [vmem:[%s326] sm:$0xff]
        %v390 = vld [vmem:[%s326 + $0x8] sm:$0x1]
        %391 = vset.pattern.permute.xlu0 1
        %392 = vperm.xlu0 %391, %v328
        %v393 = vpop.permute.xlu0 %392
        %395 = vset.pattern.permute.xlu0 1
        %396 = vperm.xlu0 %395, %v329
        %v397 = vpop.permute.xlu0 %396
        %v401 = vperm.slane %v389, 0
        %v402 = vperm.slane %v389, 1
        %v403 = vperm.slane %v389, 2
        %v404 = vperm.slane %v389, 3
        %v405 = vperm.slane %v389, 4
        %v406 = vperm.slane %v389, 5
        %v407 = vperm.slane %v389, 6
        %v408 = vperm.slane %v389, 7
        %v409 = vperm.slane %v390, 0
        %v419 = vmul.f32 %v393, %v401
        %v420 = vmul.f32 %v393, %v402
        %v421 = vmul.f32 %v393, %v403
        %v422 = vmul.f32 %v393, %v404
        %v423 = vmul.f32 %v393, %v405
        %v424 = vmul.f32 %v393, %v406
        %v425 = vmul.f32 %v393, %v407
        %v426 = vmul.f32 %v393, %v408
        %v427 = vmul.f32 %v393, %v409
        %v428 = vmul.f32 %v397, %v401
        %v429 = vmul.f32 %v397, %v402
        %v430 = vmul.f32 %v397, %v403
        %v431 = vmul.f32 %v397, %v404
        %v432 = vmul.f32 %v397, %v405
        %v433 = vmul.f32 %v397, %v406
        %v434 = vmul.f32 %v397, %v407
        %v435 = vmul.f32 %v397, %v408
        %v436 = vmul.f32 %v397, %v409
        %455 = vrot.lane.b32.xlu0 %v419, 127
        %v456 = vpop.permute.xlu0 %455
        %457 = vrot.lane.b32.xlu0 %v420, 127
        %v458 = vpop.permute.xlu0 %457
        %459 = vrot.lane.b32.xlu0 %v421, 127
        %v460 = vpop.permute.xlu0 %459
        %461 = vrot.lane.b32.xlu0 %v422, 127
        %v462 = vpop.permute.xlu0 %461
        %463 = vrot.lane.b32.xlu0 %v423, 127
        %v464 = vpop.permute.xlu0 %463
        %465 = vrot.lane.b32.xlu0 %v424, 127
        %v466 = vpop.permute.xlu0 %465
        %467 = vrot.lane.b32.xlu0 %v425, 127
        %v468 = vpop.permute.xlu0 %467
        %469 = vrot.lane.b32.xlu0 %v426, 127
        %v470 = vpop.permute.xlu0 %469
        %471 = vrot.lane.b32.xlu0 %v427, 127
        %v472 = vpop.permute.xlu0 %471
        %473 = vrot.lane.b32.xlu0 %v428, 127
        %v474 = vpop.permute.xlu0 %473
        %475 = vrot.lane.b32.xlu0 %v429, 127
        %v476 = vpop.permute.xlu0 %475
        %477 = vrot.lane.b32.xlu0 %v430, 127
        %v478 = vpop.permute.xlu0 %477
        %479 = vrot.lane.b32.xlu0 %v431, 127
        %v480 = vpop.permute.xlu0 %479
        %481 = vrot.lane.b32.xlu0 %v432, 127
        %v482 = vpop.permute.xlu0 %481
        %483 = vrot.lane.b32.xlu0 %v433, 127
        %v484 = vpop.permute.xlu0 %483
        %485 = vrot.lane.b32.xlu0 %v434, 127
        %v486 = vpop.permute.xlu0 %485
        %487 = vrot.lane.b32.xlu0 %v435, 127
        %v488 = vpop.permute.xlu0 %487
        %489 = vrot.lane.b32.xlu0 %v436, 127
        %v490 = vpop.permute.xlu0 %489
        %vm491 = vcmask 1039360
        %v492 = vsel %vm491, %v456, %v458
        %v493 = vsel %vm491, %v458, %v460
        %v494 = vsel %vm491, %v460, %v462
        %v495 = vsel %vm491, %v462, %v464
        %v496 = vsel %vm491, %v464, %v466
        %v497 = vsel %vm491, %v466, %v468
        %v498 = vsel %vm491, %v468, %v470
        %v499 = vsel %vm491, %v470, %v472
        %v500 = vsel %vm491, %v474, %v476
        %v501 = vsel %vm491, %v476, %v478
        %v502 = vsel %vm491, %v478, %v480
        %v503 = vsel %vm491, %v480, %v482
        %v504 = vsel %vm491, %v482, %v484
        %v505 = vsel %vm491, %v484, %v486
        %v506 = vsel %vm491, %v486, %v488
        %v507 = vsel %vm491, %v488, %v490
        %v524 = vadd.f32 %v373, %v492
        %v525 = vadd.f32 %v374, %v493
        %v526 = vadd.f32 %v375, %v494
        %v527 = vadd.f32 %v376, %v495
        %v528 = vadd.f32 %v377, %v496
        %v529 = vadd.f32 %v378, %v497
        %v530 = vadd.f32 %v379, %v498
        %v531 = vadd.f32 %v380, %v499
        %v532 = vadd.f32 %v381, %v500
        %v533 = vadd.f32 %v382, %v501
        %v534 = vadd.f32 %v383, %v502
        %v535 = vadd.f32 %v384, %v503
        %v536 = vadd.f32 %v385, %v504
        %v537 = vadd.f32 %v386, %v505
        %v538 = vadd.f32 %v387, %v506
        %v539 = vadd.f32 %v388, %v507
        %540 = vset.pattern.permute.xlu0 2
        %541 = vperm.xlu0 %540, %v328
        %v542 = vpop.permute.xlu0 %541
        %544 = vset.pattern.permute.xlu0 2
        %545 = vperm.xlu0 %544, %v329
        %v546 = vpop.permute.xlu0 %545
        %v548 = vmul.f32 %v542, %v401
        %v549 = vmul.f32 %v542, %v402
        %v550 = vmul.f32 %v542, %v403
        %v551 = vmul.f32 %v542, %v404
        %v552 = vmul.f32 %v542, %v405
        %v553 = vmul.f32 %v542, %v406
        %v554 = vmul.f32 %v542, %v407
        %v555 = vmul.f32 %v542, %v408
        %v556 = vmul.f32 %v542, %v409
        %v557 = vmul.f32 %v546, %v401
        %v558 = vmul.f32 %v546, %v402
        %v559 = vmul.f32 %v546, %v403
        %v560 = vmul.f32 %v546, %v404
        %v561 = vmul.f32 %v546, %v405
        %v562 = vmul.f32 %v546, %v406
        %v563 = vmul.f32 %v546, %v407
        %v564 = vmul.f32 %v546, %v408
        %v565 = vmul.f32 %v546, %v409
        %584 = vrot.lane.b32.xlu0 %v548, 126
        %v585 = vpop.permute.xlu0 %584
        %586 = vrot.lane.b32.xlu0 %v549, 126
        %v587 = vpop.permute.xlu0 %586
        %588 = vrot.lane.b32.xlu0 %v550, 126
        %v589 = vpop.permute.xlu0 %588
        %590 = vrot.lane.b32.xlu0 %v551, 126
        %v591 = vpop.permute.xlu0 %590
        %592 = vrot.lane.b32.xlu0 %v552, 126
        %v593 = vpop.permute.xlu0 %592
        %594 = vrot.lane.b32.xlu0 %v553, 126
        %v595 = vpop.permute.xlu0 %594
        %596 = vrot.lane.b32.xlu0 %v554, 126
        %v597 = vpop.permute.xlu0 %596
        %598 = vrot.lane.b32.xlu0 %v555, 126
        %v599 = vpop.permute.xlu0 %598
        %600 = vrot.lane.b32.xlu0 %v556, 126
        %v601 = vpop.permute.xlu0 %600
        %602 = vrot.lane.b32.xlu0 %v557, 126
        %v603 = vpop.permute.xlu0 %602
        %604 = vrot.lane.b32.xlu0 %v558, 126
        %v605 = vpop.permute.xlu0 %604
        %606 = vrot.lane.b32.xlu0 %v559, 126
        %v607 = vpop.permute.xlu0 %606
        %608 = vrot.lane.b32.xlu0 %v560, 126
        %v609 = vpop.permute.xlu0 %608
        %610 = vrot.lane.b32.xlu0 %v561, 126
        %v611 = vpop.permute.xlu0 %610
        %612 = vrot.lane.b32.xlu0 %v562, 126
        %v613 = vpop.permute.xlu0 %612
        %614 = vrot.lane.b32.xlu0 %v563, 126
        %v615 = vpop.permute.xlu0 %614
        %616 = vrot.lane.b32.xlu0 %v564, 126
        %v617 = vpop.permute.xlu0 %616
        %618 = vrot.lane.b32.xlu0 %v565, 126
        %v619 = vpop.permute.xlu0 %618
        %vm620 = vcmask 1031168
        %v621 = vsel %vm620, %v585, %v587
        %v622 = vsel %vm620, %v587, %v589
        %v623 = vsel %vm620, %v589, %v591
        %v624 = vsel %vm620, %v591, %v593
        %v625 = vsel %vm620, %v593, %v595
        %v626 = vsel %vm620, %v595, %v597
        %v627 = vsel %vm620, %v597, %v599
        %v628 = vsel %vm620, %v599, %v601
        %v629 = vsel %vm620, %v603, %v605
        %v630 = vsel %vm620, %v605, %v607
        %v631 = vsel %vm620, %v607, %v609
        %v632 = vsel %vm620, %v609, %v611
        %v633 = vsel %vm620, %v611, %v613
        %v634 = vsel %vm620, %v613, %v615
        %v635 = vsel %vm620, %v615, %v617
        %v636 = vsel %vm620, %v617, %v619
        %v653 = vadd.f32 %v524, %v621
        %v654 = vadd.f32 %v525, %v622
        %v655 = vadd.f32 %v526, %v623
        %v656 = vadd.f32 %v527, %v624
        %v657 = vadd.f32 %v528, %v625
        %v658 = vadd.f32 %v529, %v626
        %v659 = vadd.f32 %v530, %v627
        %v660 = vadd.f32 %v531, %v628
        %v661 = vadd.f32 %v532, %v629
        %v662 = vadd.f32 %v533, %v630
        %v663 = vadd.f32 %v534, %v631
        %v664 = vadd.f32 %v535, %v632
        %v665 = vadd.f32 %v536, %v633
        %v666 = vadd.f32 %v537, %v634
        %v667 = vadd.f32 %v538, %v635
        %v668 = vadd.f32 %v539, %v636
        %669 = vset.pattern.permute.xlu0 3
        %670 = vperm.xlu0 %669, %v328
        %v671 = vpop.permute.xlu0 %670
        %673 = vset.pattern.permute.xlu0 3
        %674 = vperm.xlu0 %673, %v329
        %v675 = vpop.permute.xlu0 %674
        %v677 = vmul.f32 %v671, %v401
        %v678 = vmul.f32 %v671, %v402
        %v679 = vmul.f32 %v671, %v403
        %v680 = vmul.f32 %v671, %v404
        %v681 = vmul.f32 %v671, %v405
        %v682 = vmul.f32 %v671, %v406
        %v683 = vmul.f32 %v671, %v407
        %v684 = vmul.f32 %v671, %v408
        %v685 = vmul.f32 %v671, %v409
        %v686 = vmul.f32 %v675, %v401
        %v687 = vmul.f32 %v675, %v402
        %v688 = vmul.f32 %v675, %v403
        %v689 = vmul.f32 %v675, %v404
        %v690 = vmul.f32 %v675, %v405
        %v691 = vmul.f32 %v675, %v406
        %v692 = vmul.f32 %v675, %v407
        %v693 = vmul.f32 %v675, %v408
        %v694 = vmul.f32 %v675, %v409
        %713 = vrot.lane.b32.xlu0 %v677, 125
        %v714 = vpop.permute.xlu0 %713
        %715 = vrot.lane.b32.xlu0 %v678, 125
        %v716 = vpop.permute.xlu0 %715
        %717 = vrot.lane.b32.xlu0 %v679, 125
        %v718 = vpop.permute.xlu0 %717
        %719 = vrot.lane.b32.xlu0 %v680, 125
        %v720 = vpop.permute.xlu0 %719
        %721 = vrot.lane.b32.xlu0 %v681, 125
        %v722 = vpop.permute.xlu0 %721
        %723 = vrot.lane.b32.xlu0 %v682, 125
        %v724 = vpop.permute.xlu0 %723
        %725 = vrot.lane.b32.xlu0 %v683, 125
        %v726 = vpop.permute.xlu0 %725
        %727 = vrot.lane.b32.xlu0 %v684, 125
        %v728 = vpop.permute.xlu0 %727
        %729 = vrot.lane.b32.xlu0 %v685, 125
        %v730 = vpop.permute.xlu0 %729
        %731 = vrot.lane.b32.xlu0 %v686, 125
        %v732 = vpop.permute.xlu0 %731
        %733 = vrot.lane.b32.xlu0 %v687, 125
        %v734 = vpop.permute.xlu0 %733
        %735 = vrot.lane.b32.xlu0 %v688, 125
        %v736 = vpop.permute.xlu0 %735
        %737 = vrot.lane.b32.xlu0 %v689, 125
        %v738 = vpop.permute.xlu0 %737
        %739 = vrot.lane.b32.xlu0 %v690, 125
        %v740 = vpop.permute.xlu0 %739
        %741 = vrot.lane.b32.xlu0 %v691, 125
        %v742 = vpop.permute.xlu0 %741
        %743 = vrot.lane.b32.xlu0 %v692, 125
        %v744 = vpop.permute.xlu0 %743
        %745 = vrot.lane.b32.xlu0 %v693, 125
        %v746 = vpop.permute.xlu0 %745
        %747 = vrot.lane.b32.xlu0 %v694, 125
        %v748 = vpop.permute.xlu0 %747
        %vm749 = vcmask 1022976
        %v750 = vsel %vm749, %v714, %v716
        %v751 = vsel %vm749, %v716, %v718
        %v752 = vsel %vm749, %v718, %v720
        %v753 = vsel %vm749, %v720, %v722
        %v754 = vsel %vm749, %v722, %v724
        %v755 = vsel %vm749, %v724, %v726
        %v756 = vsel %vm749, %v726, %v728
        %v757 = vsel %vm749, %v728, %v730
        %v758 = vsel %vm749, %v732, %v734
        %v759 = vsel %vm749, %v734, %v736
        %v760 = vsel %vm749, %v736, %v738
        %v761 = vsel %vm749, %v738, %v740
        %v762 = vsel %vm749, %v740, %v742
        %v763 = vsel %vm749, %v742, %v744
        %v764 = vsel %vm749, %v744, %v746
        %v765 = vsel %vm749, %v746, %v748
        %v782 = vadd.f32 %v653, %v750
        %v783 = vadd.f32 %v654, %v751
        %v784 = vadd.f32 %v655, %v752
        %v785 = vadd.f32 %v656, %v753
        %v786 = vadd.f32 %v657, %v754
        %v787 = vadd.f32 %v658, %v755
        %v788 = vadd.f32 %v659, %v756
        %v789 = vadd.f32 %v660, %v757
        %v790 = vadd.f32 %v661, %v758
        %v791 = vadd.f32 %v662, %v759
        %v792 = vadd.f32 %v663, %v760
        %v793 = vadd.f32 %v664, %v761
        %v794 = vadd.f32 %v665, %v762
        %v795 = vadd.f32 %v666, %v763
        %v796 = vadd.f32 %v667, %v764
        %v797 = vadd.f32 %v668, %v765
        %798 = vset.pattern.permute.xlu0 4
        %799 = vperm.xlu0 %798, %v328
        %v800 = vpop.permute.xlu0 %799
        %802 = vset.pattern.permute.xlu0 4
        %803 = vperm.xlu0 %802, %v329
        %v804 = vpop.permute.xlu0 %803
        %v806 = vmul.f32 %v800, %v401
        %v807 = vmul.f32 %v800, %v402
        %v808 = vmul.f32 %v800, %v403
        %v809 = vmul.f32 %v800, %v404
        %v810 = vmul.f32 %v800, %v405
        %v811 = vmul.f32 %v800, %v406
        %v812 = vmul.f32 %v800, %v407
        %v813 = vmul.f32 %v800, %v408
        %v814 = vmul.f32 %v800, %v409
        %v815 = vmul.f32 %v804, %v401
        %v816 = vmul.f32 %v804, %v402
        %v817 = vmul.f32 %v804, %v403
        %v818 = vmul.f32 %v804, %v404
        %v819 = vmul.f32 %v804, %v405
        %v820 = vmul.f32 %v804, %v406
        %v821 = vmul.f32 %v804, %v407
        %v822 = vmul.f32 %v804, %v408
        %v823 = vmul.f32 %v804, %v409
        %842 = vrot.lane.b32.xlu0 %v806, 124
        %v843 = vpop.permute.xlu0 %842
        %844 = vrot.lane.b32.xlu0 %v807, 124
        %v845 = vpop.permute.xlu0 %844
        %846 = vrot.lane.b32.xlu0 %v808, 124
        %v847 = vpop.permute.xlu0 %846
        %848 = vrot.lane.b32.xlu0 %v809, 124
        %v849 = vpop.permute.xlu0 %848
        %850 = vrot.lane.b32.xlu0 %v810, 124
        %v851 = vpop.permute.xlu0 %850
        %852 = vrot.lane.b32.xlu0 %v811, 124
        %v853 = vpop.permute.xlu0 %852
        %854 = vrot.lane.b32.xlu0 %v812, 124
        %v855 = vpop.permute.xlu0 %854
        %856 = vrot.lane.b32.xlu0 %v813, 124
        %v857 = vpop.permute.xlu0 %856
        %858 = vrot.lane.b32.xlu0 %v814, 124
        %v859 = vpop.permute.xlu0 %858
        %860 = vrot.lane.b32.xlu0 %v815, 124
        %v861 = vpop.permute.xlu0 %860
        %862 = vrot.lane.b32.xlu0 %v816, 124
        %v863 = vpop.permute.xlu0 %862
        %864 = vrot.lane.b32.xlu0 %v817, 124
        %v865 = vpop.permute.xlu0 %864
        %866 = vrot.lane.b32.xlu0 %v818, 124
        %v867 = vpop.permute.xlu0 %866
        %868 = vrot.lane.b32.xlu0 %v819, 124
        %v869 = vpop.permute.xlu0 %868
        %870 = vrot.lane.b32.xlu0 %v820, 124
        %v871 = vpop.permute.xlu0 %870
        %872 = vrot.lane.b32.xlu0 %v821, 124
        %v873 = vpop.permute.xlu0 %872
        %874 = vrot.lane.b32.xlu0 %v822, 124
        %v875 = vpop.permute.xlu0 %874
        %876 = vrot.lane.b32.xlu0 %v823, 124
        %v877 = vpop.permute.xlu0 %876
        %vm878 = vcmask 1014784
        %v879 = vsel %vm878, %v843, %v845
        %v880 = vsel %vm878, %v845, %v847
        %v881 = vsel %vm878, %v847, %v849
        %v882 = vsel %vm878, %v849, %v851
        %v883 = vsel %vm878, %v851, %v853
        %v884 = vsel %vm878, %v853, %v855
        %v885 = vsel %vm878, %v855, %v857
        %v886 = vsel %vm878, %v857, %v859
        %v887 = vsel %vm878, %v861, %v863
        %v888 = vsel %vm878, %v863, %v865
        %v889 = vsel %vm878, %v865, %v867
        %v890 = vsel %vm878, %v867, %v869
        %v891 = vsel %vm878, %v869, %v871
        %v892 = vsel %vm878, %v871, %v873
        %v893 = vsel %vm878, %v873, %v875
        %v894 = vsel %vm878, %v875, %v877
        %v911 = vadd.f32 %v782, %v879
        %v912 = vadd.f32 %v783, %v880
        %v913 = vadd.f32 %v784, %v881
        %v914 = vadd.f32 %v785, %v882
        %v915 = vadd.f32 %v786, %v883
        %v916 = vadd.f32 %v787, %v884
        %v917 = vadd.f32 %v788, %v885
        %v918 = vadd.f32 %v789, %v886
        %v919 = vadd.f32 %v790, %v887
        %v920 = vadd.f32 %v791, %v888
        %v921 = vadd.f32 %v792, %v889
        %v922 = vadd.f32 %v793, %v890
        %v923 = vadd.f32 %v794, %v891
        %v924 = vadd.f32 %v795, %v892
        %v925 = vadd.f32 %v796, %v893
        %v926 = vadd.f32 %v797, %v894
        %927 = vset.pattern.permute.xlu0 5
        %928 = vperm.xlu0 %927, %v328
        %v929 = vpop.permute.xlu0 %928
        %931 = vset.pattern.permute.xlu0 5
        %932 = vperm.xlu0 %931, %v329
        %v933 = vpop.permute.xlu0 %932
        %v935 = vmul.f32 %v929, %v401
        %v936 = vmul.f32 %v929, %v402
        %v937 = vmul.f32 %v929, %v403
        %v938 = vmul.f32 %v929, %v404
        %v939 = vmul.f32 %v929, %v405
        %v940 = vmul.f32 %v929, %v406
        %v941 = vmul.f32 %v929, %v407
        %v942 = vmul.f32 %v929, %v408
        %v943 = vmul.f32 %v929, %v409
        %v944 = vmul.f32 %v933, %v401
        %v945 = vmul.f32 %v933, %v402
        %v946 = vmul.f32 %v933, %v403
        %v947 = vmul.f32 %v933, %v404
        %v948 = vmul.f32 %v933, %v405
        %v949 = vmul.f32 %v933, %v406
        %v950 = vmul.f32 %v933, %v407
        %v951 = vmul.f32 %v933, %v408
        %v952 = vmul.f32 %v933, %v409
        %971 = vrot.lane.b32.xlu0 %v935, 96
        %v972 = vpop.permute.xlu0 %971
        %973 = vrot.lane.b32.xlu0 %v936, 96
        %v974 = vpop.permute.xlu0 %973
        %975 = vrot.lane.b32.xlu0 %v937, 96
        %v976 = vpop.permute.xlu0 %975
        %977 = vrot.lane.b32.xlu0 %v938, 96
        %v978 = vpop.permute.xlu0 %977
        %979 = vrot.lane.b32.xlu0 %v939, 96
        %v980 = vpop.permute.xlu0 %979
        %981 = vrot.lane.b32.xlu0 %v940, 96
        %v982 = vpop.permute.xlu0 %981
        %983 = vrot.lane.b32.xlu0 %v941, 96
        %v984 = vpop.permute.xlu0 %983
        %985 = vrot.lane.b32.xlu0 %v942, 96
        %v986 = vpop.permute.xlu0 %985
        %987 = vrot.lane.b32.xlu0 %v943, 96
        %v988 = vpop.permute.xlu0 %987
        %989 = vrot.lane.b32.xlu0 %v944, 96
        %v990 = vpop.permute.xlu0 %989
        %991 = vrot.lane.b32.xlu0 %v945, 96
        %v992 = vpop.permute.xlu0 %991
        %993 = vrot.lane.b32.xlu0 %v946, 96
        %v994 = vpop.permute.xlu0 %993
        %995 = vrot.lane.b32.xlu0 %v947, 96
        %v996 = vpop.permute.xlu0 %995
        %997 = vrot.lane.b32.xlu0 %v948, 96
        %v998 = vpop.permute.xlu0 %997
        %999 = vrot.lane.b32.xlu0 %v949, 96
        %v1000 = vpop.permute.xlu0 %999
        %1001 = vrot.lane.b32.xlu0 %v950, 96
        %v1002 = vpop.permute.xlu0 %1001
        %1003 = vrot.lane.b32.xlu0 %v951, 96
        %v1004 = vpop.permute.xlu0 %1003
        %1005 = vrot.lane.b32.xlu0 %v952, 96
        %v1006 = vpop.permute.xlu0 %1005
        %vm1007 = vcmask 785408
        %v1008 = vsel %vm1007, %v972, %v974
        %v1009 = vsel %vm1007, %v974, %v976
        %v1010 = vsel %vm1007, %v976, %v978
        %v1011 = vsel %vm1007, %v978, %v980
        %v1012 = vsel %vm1007, %v980, %v982
        %v1013 = vsel %vm1007, %v982, %v984
        %v1014 = vsel %vm1007, %v984, %v986
        %v1015 = vsel %vm1007, %v986, %v988
        %v1016 = vsel %vm1007, %v990, %v992
        %v1017 = vsel %vm1007, %v992, %v994
        %v1018 = vsel %vm1007, %v994, %v996
        %v1019 = vsel %vm1007, %v996, %v998
        %v1020 = vsel %vm1007, %v998, %v1000
        %v1021 = vsel %vm1007, %v1000, %v1002
        %v1022 = vsel %vm1007, %v1002, %v1004
        %v1023 = vsel %vm1007, %v1004, %v1006
        %v1040 = vadd.f32 %v911, %v1008
        %v1041 = vadd.f32 %v912, %v1009
        %v1042 = vadd.f32 %v913, %v1010
        %v1043 = vadd.f32 %v914, %v1011
        %v1044 = vadd.f32 %v915, %v1012
        %v1045 = vadd.f32 %v916, %v1013
        %v1046 = vadd.f32 %v917, %v1014
        %v1047 = vadd.f32 %v918, %v1015
        %v1048 = vadd.f32 %v919, %v1016
        %v1049 = vadd.f32 %v920, %v1017
        %v1050 = vadd.f32 %v921, %v1018
        %v1051 = vadd.f32 %v922, %v1019
        %v1052 = vadd.f32 %v923, %v1020
        %v1053 = vadd.f32 %v924, %v1021
        %v1054 = vadd.f32 %v925, %v1022
        %v1055 = vadd.f32 %v926, %v1023
        %1056 = vset.pattern.permute.xlu0 6
        %1057 = vperm.xlu0 %1056, %v328
        %v1058 = vpop.permute.xlu0 %1057
        %1060 = vset.pattern.permute.xlu0 6
        %1061 = vperm.xlu0 %1060, %v329
        %v1062 = vpop.permute.xlu0 %1061
        %v1064 = vmul.f32 %v1058, %v401
        %v1065 = vmul.f32 %v1058, %v402
        %v1066 = vmul.f32 %v1058, %v403
        %v1067 = vmul.f32 %v1058, %v404
        %v1068 = vmul.f32 %v1058, %v405
        %v1069 = vmul.f32 %v1058, %v406
        %v1070 = vmul.f32 %v1058, %v407
        %v1071 = vmul.f32 %v1058, %v408
        %v1072 = vmul.f32 %v1058, %v409
        %v1073 = vmul.f32 %v1062, %v401
        %v1074 = vmul.f32 %v1062, %v402
        %v1075 = vmul.f32 %v1062, %v403
        %v1076 = vmul.f32 %v1062, %v404
        %v1077 = vmul.f32 %v1062, %v405
        %v1078 = vmul.f32 %v1062, %v406
        %v1079 = vmul.f32 %v1062, %v407
        %v1080 = vmul.f32 %v1062, %v408
        %v1081 = vmul.f32 %v1062, %v409
        %1100 = vrot.lane.b32.xlu0 %v1064, 95
        %v1101 = vpop.permute.xlu0 %1100
        %1102 = vrot.lane.b32.xlu0 %v1065, 95
        %v1103 = vpop.permute.xlu0 %1102
        %1104 = vrot.lane.b32.xlu0 %v1066, 95
        %v1105 = vpop.permute.xlu0 %1104
        %1106 = vrot.lane.b32.xlu0 %v1067, 95
        %v1107 = vpop.permute.xlu0 %1106
        %1108 = vrot.lane.b32.xlu0 %v1068, 95
        %v1109 = vpop.permute.xlu0 %1108
        %1110 = vrot.lane.b32.xlu0 %v1069, 95
        %v1111 = vpop.permute.xlu0 %1110
        %1112 = vrot.lane.b32.xlu0 %v1070, 95
        %v1113 = vpop.permute.xlu0 %1112
        %1114 = vrot.lane.b32.xlu0 %v1071, 95
        %v1115 = vpop.permute.xlu0 %1114
        %1116 = vrot.lane.b32.xlu0 %v1072, 95
        %v1117 = vpop.permute.xlu0 %1116
        %1118 = vrot.lane.b32.xlu0 %v1073, 95
        %v1119 = vpop.permute.xlu0 %1118
        %1120 = vrot.lane.b32.xlu0 %v1074, 95
        %v1121 = vpop.permute.xlu0 %1120
        %1122 = vrot.lane.b32.xlu0 %v1075, 95
        %v1123 = vpop.permute.xlu0 %1122
        %1124 = vrot.lane.b32.xlu0 %v1076, 95
        %v1125 = vpop.permute.xlu0 %1124
        %1126 = vrot.lane.b32.xlu0 %v1077, 95
        %v1127 = vpop.permute.xlu0 %1126
        %1128 = vrot.lane.b32.xlu0 %v1078, 95
        %v1129 = vpop.permute.xlu0 %1128
        %1130 = vrot.lane.b32.xlu0 %v1079, 95
        %v1131 = vpop.permute.xlu0 %1130
        %1132 = vrot.lane.b32.xlu0 %v1080, 95
        %v1133 = vpop.permute.xlu0 %1132
        %1134 = vrot.lane.b32.xlu0 %v1081, 95
        %v1135 = vpop.permute.xlu0 %1134
        %vm1136 = vcmask 777216
        %v1137 = vsel %vm1136, %v1101, %v1103
        %v1138 = vsel %vm1136, %v1103, %v1105
        %v1139 = vsel %vm1136, %v1105, %v1107
        %v1140 = vsel %vm1136, %v1107, %v1109
        %v1141 = vsel %vm1136, %v1109, %v1111
        %v1142 = vsel %vm1136, %v1111, %v1113
        %v1143 = vsel %vm1136, %v1113, %v1115
        %v1144 = vsel %vm1136, %v1115, %v1117
        %v1145 = vsel %vm1136, %v1119, %v1121
        %v1146 = vsel %vm1136, %v1121, %v1123
        %v1147 = vsel %vm1136, %v1123, %v1125
        %v1148 = vsel %vm1136, %v1125, %v1127
        %v1149 = vsel %vm1136, %v1127, %v1129
        %v1150 = vsel %vm1136, %v1129, %v1131
        %v1151 = vsel %vm1136, %v1131, %v1133
        %v1152 = vsel %vm1136, %v1133, %v1135
        %v1169 = vadd.f32 %v1040, %v1137
        %v1170 = vadd.f32 %v1041, %v1138
        %v1171 = vadd.f32 %v1042, %v1139
        %v1172 = vadd.f32 %v1043, %v1140
        %v1173 = vadd.f32 %v1044, %v1141
        %v1174 = vadd.f32 %v1045, %v1142
        %v1175 = vadd.f32 %v1046, %v1143
        %v1176 = vadd.f32 %v1047, %v1144
        %v1177 = vadd.f32 %v1048, %v1145
        %v1178 = vadd.f32 %v1049, %v1146
        %v1179 = vadd.f32 %v1050, %v1147
        %v1180 = vadd.f32 %v1051, %v1148
        %v1181 = vadd.f32 %v1052, %v1149
        %v1182 = vadd.f32 %v1053, %v1150
        %v1183 = vadd.f32 %v1054, %v1151
        %v1184 = vadd.f32 %v1055, %v1152
        %1185 = vset.pattern.permute.xlu0 7
        %1186 = vperm.xlu0 %1185, %v328
        %v1187 = vpop.permute.xlu0 %1186
        %1189 = vset.pattern.permute.xlu0 7
        %1190 = vperm.xlu0 %1189, %v329
        %v1191 = vpop.permute.xlu0 %1190
        %v1193 = vmul.f32 %v1187, %v401
        %v1194 = vmul.f32 %v1187, %v402
        %v1195 = vmul.f32 %v1187, %v403
        %v1196 = vmul.f32 %v1187, %v404
        %v1197 = vmul.f32 %v1187, %v405
        %v1198 = vmul.f32 %v1187, %v406
        %v1199 = vmul.f32 %v1187, %v407
        %v1200 = vmul.f32 %v1187, %v408
        %v1201 = vmul.f32 %v1187, %v409
        %v1202 = vmul.f32 %v1191, %v401
        %v1203 = vmul.f32 %v1191, %v402
        %v1204 = vmul.f32 %v1191, %v403
        %v1205 = vmul.f32 %v1191, %v404
        %v1206 = vmul.f32 %v1191, %v405
        %v1207 = vmul.f32 %v1191, %v406
        %v1208 = vmul.f32 %v1191, %v407
        %v1209 = vmul.f32 %v1191, %v408
        %v1210 = vmul.f32 %v1191, %v409
        %1229 = vrot.lane.b32.xlu0 %v1193, 94
        %v1230 = vpop.permute.xlu0 %1229
        %1231 = vrot.lane.b32.xlu0 %v1194, 94
        %v1232 = vpop.permute.xlu0 %1231
        %1233 = vrot.lane.b32.xlu0 %v1195, 94
        %v1234 = vpop.permute.xlu0 %1233
        %1235 = vrot.lane.b32.xlu0 %v1196, 94
        %v1236 = vpop.permute.xlu0 %1235
        %1237 = vrot.lane.b32.xlu0 %v1197, 94
        %v1238 = vpop.permute.xlu0 %1237
        %1239 = vrot.lane.b32.xlu0 %v1198, 94
        %v1240 = vpop.permute.xlu0 %1239
        %1241 = vrot.lane.b32.xlu0 %v1199, 94
        %v1242 = vpop.permute.xlu0 %1241
        %1243 = vrot.lane.b32.xlu0 %v1200, 94
        %v1244 = vpop.permute.xlu0 %1243
        %1245 = vrot.lane.b32.xlu0 %v1201, 94
        %v1246 = vpop.permute.xlu0 %1245
        %1247 = vrot.lane.b32.xlu0 %v1202, 94
        %v1248 = vpop.permute.xlu0 %1247
        %1249 = vrot.lane.b32.xlu0 %v1203, 94
        %v1250 = vpop.permute.xlu0 %1249
        %1251 = vrot.lane.b32.xlu0 %v1204, 94
        %v1252 = vpop.permute.xlu0 %1251
        %1253 = vrot.lane.b32.xlu0 %v1205, 94
        %v1254 = vpop.permute.xlu0 %1253
        %1255 = vrot.lane.b32.xlu0 %v1206, 94
        %v1256 = vpop.permute.xlu0 %1255
        %1257 = vrot.lane.b32.xlu0 %v1207, 94
        %v1258 = vpop.permute.xlu0 %1257
        %1259 = vrot.lane.b32.xlu0 %v1208, 94
        %v1260 = vpop.permute.xlu0 %1259
        %1261 = vrot.lane.b32.xlu0 %v1209, 94
        %v1262 = vpop.permute.xlu0 %1261
        %1263 = vrot.lane.b32.xlu0 %v1210, 94
        %v1264 = vpop.permute.xlu0 %1263
        %vm1265 = vcmask 769024
        %v1266 = vsel %vm1265, %v1230, %v1232
        %v1267 = vsel %vm1265, %v1232, %v1234
        %v1268 = vsel %vm1265, %v1234, %v1236
        %v1269 = vsel %vm1265, %v1236, %v1238
        %v1270 = vsel %vm1265, %v1238, %v1240
        %v1271 = vsel %vm1265, %v1240, %v1242
        %v1272 = vsel %vm1265, %v1242, %v1244
        %v1273 = vsel %vm1265, %v1244, %v1246
        %v1274 = vsel %vm1265, %v1248, %v1250
        %v1275 = vsel %vm1265, %v1250, %v1252
        %v1276 = vsel %vm1265, %v1252, %v1254
        %v1277 = vsel %vm1265, %v1254, %v1256
        %v1278 = vsel %vm1265, %v1256, %v1258
        %v1279 = vsel %vm1265, %v1258, %v1260
        %v1280 = vsel %vm1265, %v1260, %v1262
        %v1281 = vsel %vm1265, %v1262, %v1264
        %v1298 = vadd.f32 %v1169, %v1266
        %v1299 = vadd.f32 %v1170, %v1267
        %v1300 = vadd.f32 %v1171, %v1268
        %v1301 = vadd.f32 %v1172, %v1269
        %v1302 = vadd.f32 %v1173, %v1270
        %v1303 = vadd.f32 %v1174, %v1271
        %v1304 = vadd.f32 %v1175, %v1272
        %v1305 = vadd.f32 %v1176, %v1273
        %v1306 = vadd.f32 %v1177, %v1274
        %v1307 = vadd.f32 %v1178, %v1275
        %v1308 = vadd.f32 %v1179, %v1276
        %v1309 = vadd.f32 %v1180, %v1277
        %v1310 = vadd.f32 %v1181, %v1278
        %v1311 = vadd.f32 %v1182, %v1279
        %v1312 = vadd.f32 %v1183, %v1280
        %v1313 = vadd.f32 %v1184, %v1281
        %1314 = vset.pattern.permute.xlu0 8
        %1315 = vperm.xlu0 %1314, %v328
        %v1316 = vpop.permute.xlu0 %1315
        %1318 = vset.pattern.permute.xlu0 8
        %1319 = vperm.xlu0 %1318, %v329
        %v1320 = vpop.permute.xlu0 %1319
        %v1322 = vmul.f32 %v1316, %v401
        %v1323 = vmul.f32 %v1316, %v402
        %v1324 = vmul.f32 %v1316, %v403
        %v1325 = vmul.f32 %v1316, %v404
        %v1326 = vmul.f32 %v1316, %v405
        %v1327 = vmul.f32 %v1316, %v406
        %v1328 = vmul.f32 %v1316, %v407
        %v1329 = vmul.f32 %v1316, %v408
        %v1330 = vmul.f32 %v1316, %v409
        %v1331 = vmul.f32 %v1320, %v401
        %v1332 = vmul.f32 %v1320, %v402
        %v1333 = vmul.f32 %v1320, %v403
        %v1334 = vmul.f32 %v1320, %v404
        %v1335 = vmul.f32 %v1320, %v405
        %v1336 = vmul.f32 %v1320, %v406
        %v1337 = vmul.f32 %v1320, %v407
        %v1338 = vmul.f32 %v1320, %v408
        %v1339 = vmul.f32 %v1320, %v409
        %1358 = vrot.lane.b32.xlu0 %v1322, 93
        %v1359 = vpop.permute.xlu0 %1358
        %1360 = vrot.lane.b32.xlu0 %v1323, 93
        %v1361 = vpop.permute.xlu0 %1360
        %1362 = vrot.lane.b32.xlu0 %v1324, 93
        %v1363 = vpop.permute.xlu0 %1362
        %1364 = vrot.lane.b32.xlu0 %v1325, 93
        %v1365 = vpop.permute.xlu0 %1364
        %1366 = vrot.lane.b32.xlu0 %v1326, 93
        %v1367 = vpop.permute.xlu0 %1366
        %1368 = vrot.lane.b32.xlu0 %v1327, 93
        %v1369 = vpop.permute.xlu0 %1368
        %1370 = vrot.lane.b32.xlu0 %v1328, 93
        %v1371 = vpop.permute.xlu0 %1370
        %1372 = vrot.lane.b32.xlu0 %v1329, 93
        %v1373 = vpop.permute.xlu0 %1372
        %1374 = vrot.lane.b32.xlu0 %v1330, 93
        %v1375 = vpop.permute.xlu0 %1374
        %1376 = vrot.lane.b32.xlu0 %v1331, 93
        %v1377 = vpop.permute.xlu0 %1376
        %1378 = vrot.lane.b32.xlu0 %v1332, 93
        %v1379 = vpop.permute.xlu0 %1378
        %1380 = vrot.lane.b32.xlu0 %v1333, 93
        %v1381 = vpop.permute.xlu0 %1380
        %1382 = vrot.lane.b32.xlu0 %v1334, 93
        %v1383 = vpop.permute.xlu0 %1382
        %1384 = vrot.lane.b32.xlu0 %v1335, 93
        %v1385 = vpop.permute.xlu0 %1384
        %1386 = vrot.lane.b32.xlu0 %v1336, 93
        %v1387 = vpop.permute.xlu0 %1386
        %1388 = vrot.lane.b32.xlu0 %v1337, 93
        %v1389 = vpop.permute.xlu0 %1388
        %1390 = vrot.lane.b32.xlu0 %v1338, 93
        %v1391 = vpop.permute.xlu0 %1390
        %1392 = vrot.lane.b32.xlu0 %v1339, 93
        %v1393 = vpop.permute.xlu0 %1392
        %vm1394 = vcmask 760832
        %v1395 = vsel %vm1394, %v1359, %v1361
        %v1396 = vsel %vm1394, %v1361, %v1363
        %v1397 = vsel %vm1394, %v1363, %v1365
        %v1398 = vsel %vm1394, %v1365, %v1367
        %v1399 = vsel %vm1394, %v1367, %v1369
        %v1400 = vsel %vm1394, %v1369, %v1371
        %v1401 = vsel %vm1394, %v1371, %v1373
        %v1402 = vsel %vm1394, %v1373, %v1375
        %v1403 = vsel %vm1394, %v1377, %v1379
        %v1404 = vsel %vm1394, %v1379, %v1381
        %v1405 = vsel %vm1394, %v1381, %v1383
        %v1406 = vsel %vm1394, %v1383, %v1385
        %v1407 = vsel %vm1394, %v1385, %v1387
        %v1408 = vsel %vm1394, %v1387, %v1389
        %v1409 = vsel %vm1394, %v1389, %v1391
        %v1410 = vsel %vm1394, %v1391, %v1393
        %v1427 = vadd.f32 %v1298, %v1395
        %v1428 = vadd.f32 %v1299, %v1396
        %v1429 = vadd.f32 %v1300, %v1397
        %v1430 = vadd.f32 %v1301, %v1398
        %v1431 = vadd.f32 %v1302, %v1399
        %v1432 = vadd.f32 %v1303, %v1400
        %v1433 = vadd.f32 %v1304, %v1401
        %v1434 = vadd.f32 %v1305, %v1402
        %v1435 = vadd.f32 %v1306, %v1403
        %v1436 = vadd.f32 %v1307, %v1404
        %v1437 = vadd.f32 %v1308, %v1405
        %v1438 = vadd.f32 %v1309, %v1406
        %v1439 = vadd.f32 %v1310, %v1407
        %v1440 = vadd.f32 %v1311, %v1408
        %v1441 = vadd.f32 %v1312, %v1409
        %v1442 = vadd.f32 %v1313, %v1410
        %1443 = vset.pattern.permute.xlu0 9
        %1444 = vperm.xlu0 %1443, %v328
        %v1445 = vpop.permute.xlu0 %1444
        %1447 = vset.pattern.permute.xlu0 9
        %1448 = vperm.xlu0 %1447, %v329
        %v1449 = vpop.permute.xlu0 %1448
        %v1451 = vmul.f32 %v1445, %v401
        %v1452 = vmul.f32 %v1445, %v402
        %v1453 = vmul.f32 %v1445, %v403
        %v1454 = vmul.f32 %v1445, %v404
        %v1455 = vmul.f32 %v1445, %v405
        %v1456 = vmul.f32 %v1445, %v406
        %v1457 = vmul.f32 %v1445, %v407
        %v1458 = vmul.f32 %v1445, %v408
        %v1459 = vmul.f32 %v1445, %v409
        %v1460 = vmul.f32 %v1449, %v401
        %v1461 = vmul.f32 %v1449, %v402
        %v1462 = vmul.f32 %v1449, %v403
        %v1463 = vmul.f32 %v1449, %v404
        %v1464 = vmul.f32 %v1449, %v405
        %v1465 = vmul.f32 %v1449, %v406
        %v1466 = vmul.f32 %v1449, %v407
        %v1467 = vmul.f32 %v1449, %v408
        %v1468 = vmul.f32 %v1449, %v409
        %1487 = vrot.lane.b32.xlu0 %v1451, 92
        %v1488 = vpop.permute.xlu0 %1487
        %1489 = vrot.lane.b32.xlu0 %v1452, 92
        %v1490 = vpop.permute.xlu0 %1489
        %1491 = vrot.lane.b32.xlu0 %v1453, 92
        %v1492 = vpop.permute.xlu0 %1491
        %1493 = vrot.lane.b32.xlu0 %v1454, 92
        %v1494 = vpop.permute.xlu0 %1493
        %1495 = vrot.lane.b32.xlu0 %v1455, 92
        %v1496 = vpop.permute.xlu0 %1495
        %1497 = vrot.lane.b32.xlu0 %v1456, 92
        %v1498 = vpop.permute.xlu0 %1497
        %1499 = vrot.lane.b32.xlu0 %v1457, 92
        %v1500 = vpop.permute.xlu0 %1499
        %1501 = vrot.lane.b32.xlu0 %v1458, 92
        %v1502 = vpop.permute.xlu0 %1501
        %1503 = vrot.lane.b32.xlu0 %v1459, 92
        %v1504 = vpop.permute.xlu0 %1503
        %1505 = vrot.lane.b32.xlu0 %v1460, 92
        %v1506 = vpop.permute.xlu0 %1505
        %1507 = vrot.lane.b32.xlu0 %v1461, 92
        %v1508 = vpop.permute.xlu0 %1507
        %1509 = vrot.lane.b32.xlu0 %v1462, 92
        %v1510 = vpop.permute.xlu0 %1509
        %1511 = vrot.lane.b32.xlu0 %v1463, 92
        %v1512 = vpop.permute.xlu0 %1511
        %1513 = vrot.lane.b32.xlu0 %v1464, 92
        %v1514 = vpop.permute.xlu0 %1513
        %1515 = vrot.lane.b32.xlu0 %v1465, 92
        %v1516 = vpop.permute.xlu0 %1515
        %1517 = vrot.lane.b32.xlu0 %v1466, 92
        %v1518 = vpop.permute.xlu0 %1517
        %1519 = vrot.lane.b32.xlu0 %v1467, 92
        %v1520 = vpop.permute.xlu0 %1519
        %1521 = vrot.lane.b32.xlu0 %v1468, 92
        %v1522 = vpop.permute.xlu0 %1521
        %vm1523 = vcmask 752640
        %v1524 = vsel %vm1523, %v1488, %v1490
        %v1525 = vsel %vm1523, %v1490, %v1492
        %v1526 = vsel %vm1523, %v1492, %v1494
        %v1527 = vsel %vm1523, %v1494, %v1496
        %v1528 = vsel %vm1523, %v1496, %v1498
        %v1529 = vsel %vm1523, %v1498, %v1500
        %v1530 = vsel %vm1523, %v1500, %v1502
        %v1531 = vsel %vm1523, %v1502, %v1504
        %v1532 = vsel %vm1523, %v1506, %v1508
        %v1533 = vsel %vm1523, %v1508, %v1510
        %v1534 = vsel %vm1523, %v1510, %v1512
        %v1535 = vsel %vm1523, %v1512, %v1514
        %v1536 = vsel %vm1523, %v1514, %v1516
        %v1537 = vsel %vm1523, %v1516, %v1518
        %v1538 = vsel %vm1523, %v1518, %v1520
        %v1539 = vsel %vm1523, %v1520, %v1522
        %v1556 = vadd.f32 %v1427, %v1524
        %v1557 = vadd.f32 %v1428, %v1525
        %v1558 = vadd.f32 %v1429, %v1526
        %v1559 = vadd.f32 %v1430, %v1527
        %v1560 = vadd.f32 %v1431, %v1528
        %v1561 = vadd.f32 %v1432, %v1529
        %v1562 = vadd.f32 %v1433, %v1530
        %v1563 = vadd.f32 %v1434, %v1531
        %v1564 = vadd.f32 %v1435, %v1532
        %v1565 = vadd.f32 %v1436, %v1533
        %v1566 = vadd.f32 %v1437, %v1534
        %v1567 = vadd.f32 %v1438, %v1535
        %v1568 = vadd.f32 %v1439, %v1536
        %v1569 = vadd.f32 %v1440, %v1537
        %v1570 = vadd.f32 %v1441, %v1538
        %v1571 = vadd.f32 %v1442, %v1539
        %1572 = vset.pattern.permute.xlu0 10
        %1573 = vperm.xlu0 %1572, %v328
        %v1574 = vpop.permute.xlu0 %1573
        %1576 = vset.pattern.permute.xlu0 10
        %1577 = vperm.xlu0 %1576, %v329
        %v1578 = vpop.permute.xlu0 %1577
        %v1580 = vmul.f32 %v1574, %v401
        %v1581 = vmul.f32 %v1574, %v402
        %v1582 = vmul.f32 %v1574, %v403
        %v1583 = vmul.f32 %v1574, %v404
        %v1584 = vmul.f32 %v1574, %v405
        %v1585 = vmul.f32 %v1574, %v406
        %v1586 = vmul.f32 %v1574, %v407
        %v1587 = vmul.f32 %v1574, %v408
        %v1588 = vmul.f32 %v1574, %v409
        %v1589 = vmul.f32 %v1578, %v401
        %v1590 = vmul.f32 %v1578, %v402
        %v1591 = vmul.f32 %v1578, %v403
        %v1592 = vmul.f32 %v1578, %v404
        %v1593 = vmul.f32 %v1578, %v405
        %v1594 = vmul.f32 %v1578, %v406
        %v1595 = vmul.f32 %v1578, %v407
        %v1596 = vmul.f32 %v1578, %v408
        %v1597 = vmul.f32 %v1578, %v409
        %1616 = vrot.lane.b32.xlu0 %v1580, 64
        %v1617 = vpop.permute.xlu0 %1616
        %1618 = vrot.lane.b32.xlu0 %v1581, 64
        %v1619 = vpop.permute.xlu0 %1618
        %1620 = vrot.lane.b32.xlu0 %v1582, 64
        %v1621 = vpop.permute.xlu0 %1620
        %1622 = vrot.lane.b32.xlu0 %v1583, 64
        %v1623 = vpop.permute.xlu0 %1622
        %1624 = vrot.lane.b32.xlu0 %v1584, 64
        %v1625 = vpop.permute.xlu0 %1624
        %1626 = vrot.lane.b32.xlu0 %v1585, 64
        %v1627 = vpop.permute.xlu0 %1626
        %1628 = vrot.lane.b32.xlu0 %v1586, 64
        %v1629 = vpop.permute.xlu0 %1628
        %1630 = vrot.lane.b32.xlu0 %v1587, 64
        %v1631 = vpop.permute.xlu0 %1630
        %1632 = vrot.lane.b32.xlu0 %v1588, 64
        %v1633 = vpop.permute.xlu0 %1632
        %1634 = vrot.lane.b32.xlu0 %v1589, 64
        %v1635 = vpop.permute.xlu0 %1634
        %1636 = vrot.lane.b32.xlu0 %v1590, 64
        %v1637 = vpop.permute.xlu0 %1636
        %1638 = vrot.lane.b32.xlu0 %v1591, 64
        %v1639 = vpop.permute.xlu0 %1638
        %1640 = vrot.lane.b32.xlu0 %v1592, 64
        %v1641 = vpop.permute.xlu0 %1640
        %1642 = vrot.lane.b32.xlu0 %v1593, 64
        %v1643 = vpop.permute.xlu0 %1642
        %1644 = vrot.lane.b32.xlu0 %v1594, 64
        %v1645 = vpop.permute.xlu0 %1644
        %1646 = vrot.lane.b32.xlu0 %v1595, 64
        %v1647 = vpop.permute.xlu0 %1646
        %1648 = vrot.lane.b32.xlu0 %v1596, 64
        %v1649 = vpop.permute.xlu0 %1648
        %1650 = vrot.lane.b32.xlu0 %v1597, 64
        %v1651 = vpop.permute.xlu0 %1650
        %vm1652 = vcmask 523264
        %v1653 = vsel %vm1652, %v1617, %v1619
        %v1654 = vsel %vm1652, %v1619, %v1621
        %v1655 = vsel %vm1652, %v1621, %v1623
        %v1656 = vsel %vm1652, %v1623, %v1625
        %v1657 = vsel %vm1652, %v1625, %v1627
        %v1658 = vsel %vm1652, %v1627, %v1629
        %v1659 = vsel %vm1652, %v1629, %v1631
        %v1660 = vsel %vm1652, %v1631, %v1633
        %v1661 = vsel %vm1652, %v1635, %v1637
        %v1662 = vsel %vm1652, %v1637, %v1639
        %v1663 = vsel %vm1652, %v1639, %v1641
        %v1664 = vsel %vm1652, %v1641, %v1643
        %v1665 = vsel %vm1652, %v1643, %v1645
        %v1666 = vsel %vm1652, %v1645, %v1647
        %v1667 = vsel %vm1652, %v1647, %v1649
        %v1668 = vsel %vm1652, %v1649, %v1651
        %v1685 = vadd.f32 %v1556, %v1653
        %v1686 = vadd.f32 %v1557, %v1654
        %v1687 = vadd.f32 %v1558, %v1655
        %v1688 = vadd.f32 %v1559, %v1656
        %v1689 = vadd.f32 %v1560, %v1657
        %v1690 = vadd.f32 %v1561, %v1658
        %v1691 = vadd.f32 %v1562, %v1659
        %v1692 = vadd.f32 %v1563, %v1660
        %v1693 = vadd.f32 %v1564, %v1661
        %v1694 = vadd.f32 %v1565, %v1662
        %v1695 = vadd.f32 %v1566, %v1663
        %v1696 = vadd.f32 %v1567, %v1664
        %v1697 = vadd.f32 %v1568, %v1665
        %v1698 = vadd.f32 %v1569, %v1666
        %v1699 = vadd.f32 %v1570, %v1667
        %v1700 = vadd.f32 %v1571, %v1668
        %1701 = vset.pattern.permute.xlu0 11
        %1702 = vperm.xlu0 %1701, %v328
        %v1703 = vpop.permute.xlu0 %1702
        %1705 = vset.pattern.permute.xlu0 11
        %1706 = vperm.xlu0 %1705, %v329
        %v1707 = vpop.permute.xlu0 %1706
        %v1709 = vmul.f32 %v1703, %v401
        %v1710 = vmul.f32 %v1703, %v402
        %v1711 = vmul.f32 %v1703, %v403
        %v1712 = vmul.f32 %v1703, %v404
        %v1713 = vmul.f32 %v1703, %v405
        %v1714 = vmul.f32 %v1703, %v406
        %v1715 = vmul.f32 %v1703, %v407
        %v1716 = vmul.f32 %v1703, %v408
        %v1717 = vmul.f32 %v1703, %v409
        %v1718 = vmul.f32 %v1707, %v401
        %v1719 = vmul.f32 %v1707, %v402
        %v1720 = vmul.f32 %v1707, %v403
        %v1721 = vmul.f32 %v1707, %v404
        %v1722 = vmul.f32 %v1707, %v405
        %v1723 = vmul.f32 %v1707, %v406
        %v1724 = vmul.f32 %v1707, %v407
        %v1725 = vmul.f32 %v1707, %v408
        %v1726 = vmul.f32 %v1707, %v409
        %1745 = vrot.lane.b32.xlu0 %v1709, 63
        %v1746 = vpop.permute.xlu0 %1745
        %1747 = vrot.lane.b32.xlu0 %v1710, 63
        %v1748 = vpop.permute.xlu0 %1747
        %1749 = vrot.lane.b32.xlu0 %v1711, 63
        %v1750 = vpop.permute.xlu0 %1749
        %1751 = vrot.lane.b32.xlu0 %v1712, 63
        %v1752 = vpop.permute.xlu0 %1751
        %1753 = vrot.lane.b32.xlu0 %v1713, 63
        %v1754 = vpop.permute.xlu0 %1753
        %1755 = vrot.lane.b32.xlu0 %v1714, 63
        %v1756 = vpop.permute.xlu0 %1755
        %1757 = vrot.lane.b32.xlu0 %v1715, 63
        %v1758 = vpop.permute.xlu0 %1757
        %1759 = vrot.lane.b32.xlu0 %v1716, 63
        %v1760 = vpop.permute.xlu0 %1759
        %1761 = vrot.lane.b32.xlu0 %v1717, 63
        %v1762 = vpop.permute.xlu0 %1761
        %1763 = vrot.lane.b32.xlu0 %v1718, 63
        %v1764 = vpop.permute.xlu0 %1763
        %1765 = vrot.lane.b32.xlu0 %v1719, 63
        %v1766 = vpop.permute.xlu0 %1765
        %1767 = vrot.lane.b32.xlu0 %v1720, 63
        %v1768 = vpop.permute.xlu0 %1767
        %1769 = vrot.lane.b32.xlu0 %v1721, 63
        %v1770 = vpop.permute.xlu0 %1769
        %1771 = vrot.lane.b32.xlu0 %v1722, 63
        %v1772 = vpop.permute.xlu0 %1771
        %1773 = vrot.lane.b32.xlu0 %v1723, 63
        %v1774 = vpop.permute.xlu0 %1773
        %1775 = vrot.lane.b32.xlu0 %v1724, 63
        %v1776 = vpop.permute.xlu0 %1775
        %1777 = vrot.lane.b32.xlu0 %v1725, 63
        %v1778 = vpop.permute.xlu0 %1777
        %1779 = vrot.lane.b32.xlu0 %v1726, 63
        %v1780 = vpop.permute.xlu0 %1779
        %vm1781 = vcmask 515072
        %v1782 = vsel %vm1781, %v1746, %v1748
        %v1783 = vsel %vm1781, %v1748, %v1750
        %v1784 = vsel %vm1781, %v1750, %v1752
        %v1785 = vsel %vm1781, %v1752, %v1754
        %v1786 = vsel %vm1781, %v1754, %v1756
        %v1787 = vsel %vm1781, %v1756, %v1758
        %v1788 = vsel %vm1781, %v1758, %v1760
        %v1789 = vsel %vm1781, %v1760, %v1762
        %v1790 = vsel %vm1781, %v1764, %v1766
        %v1791 = vsel %vm1781, %v1766, %v1768
        %v1792 = vsel %vm1781, %v1768, %v1770
        %v1793 = vsel %vm1781, %v1770, %v1772
        %v1794 = vsel %vm1781, %v1772, %v1774
        %v1795 = vsel %vm1781, %v1774, %v1776
        %v1796 = vsel %vm1781, %v1776, %v1778
        %v1797 = vsel %vm1781, %v1778, %v1780
        %v1814 = vadd.f32 %v1685, %v1782
        %v1815 = vadd.f32 %v1686, %v1783
        %v1816 = vadd.f32 %v1687, %v1784
        %v1817 = vadd.f32 %v1688, %v1785
        %v1818 = vadd.f32 %v1689, %v1786
        %v1819 = vadd.f32 %v1690, %v1787
        %v1820 = vadd.f32 %v1691, %v1788
        %v1821 = vadd.f32 %v1692, %v1789
        %v1822 = vadd.f32 %v1693, %v1790
        %v1823 = vadd.f32 %v1694, %v1791
        %v1824 = vadd.f32 %v1695, %v1792
        %v1825 = vadd.f32 %v1696, %v1793
        %v1826 = vadd.f32 %v1697, %v1794
        %v1827 = vadd.f32 %v1698, %v1795
        %v1828 = vadd.f32 %v1699, %v1796
        %v1829 = vadd.f32 %v1700, %v1797
        %1830 = vset.pattern.permute.xlu0 12
        %1831 = vperm.xlu0 %1830, %v328
        %v1832 = vpop.permute.xlu0 %1831
        %1834 = vset.pattern.permute.xlu0 12
        %1835 = vperm.xlu0 %1834, %v329
        %v1836 = vpop.permute.xlu0 %1835
        %v1838 = vmul.f32 %v1832, %v401
        %v1839 = vmul.f32 %v1832, %v402
        %v1840 = vmul.f32 %v1832, %v403
        %v1841 = vmul.f32 %v1832, %v404
        %v1842 = vmul.f32 %v1832, %v405
        %v1843 = vmul.f32 %v1832, %v406
        %v1844 = vmul.f32 %v1832, %v407
        %v1845 = vmul.f32 %v1832, %v408
        %v1846 = vmul.f32 %v1832, %v409
        %v1847 = vmul.f32 %v1836, %v401
        %v1848 = vmul.f32 %v1836, %v402
        %v1849 = vmul.f32 %v1836, %v403
        %v1850 = vmul.f32 %v1836, %v404
        %v1851 = vmul.f32 %v1836, %v405
        %v1852 = vmul.f32 %v1836, %v406
        %v1853 = vmul.f32 %v1836, %v407
        %v1854 = vmul.f32 %v1836, %v408
        %v1855 = vmul.f32 %v1836, %v409
        %1874 = vrot.lane.b32.xlu0 %v1838, 62
        %v1875 = vpop.permute.xlu0 %1874
        %1876 = vrot.lane.b32.xlu0 %v1839, 62
        %v1877 = vpop.permute.xlu0 %1876
        %1878 = vrot.lane.b32.xlu0 %v1840, 62
        %v1879 = vpop.permute.xlu0 %1878
        %1880 = vrot.lane.b32.xlu0 %v1841, 62
        %v1881 = vpop.permute.xlu0 %1880
        %1882 = vrot.lane.b32.xlu0 %v1842, 62
        %v1883 = vpop.permute.xlu0 %1882
        %1884 = vrot.lane.b32.xlu0 %v1843, 62
        %v1885 = vpop.permute.xlu0 %1884
        %1886 = vrot.lane.b32.xlu0 %v1844, 62
        %v1887 = vpop.permute.xlu0 %1886
        %1888 = vrot.lane.b32.xlu0 %v1845, 62
        %v1889 = vpop.permute.xlu0 %1888
        %1890 = vrot.lane.b32.xlu0 %v1846, 62
        %v1891 = vpop.permute.xlu0 %1890
        %1892 = vrot.lane.b32.xlu0 %v1847, 62
        %v1893 = vpop.permute.xlu0 %1892
        %1894 = vrot.lane.b32.xlu0 %v1848, 62
        %v1895 = vpop.permute.xlu0 %1894
        %1896 = vrot.lane.b32.xlu0 %v1849, 62
        %v1897 = vpop.permute.xlu0 %1896
        %1898 = vrot.lane.b32.xlu0 %v1850, 62
        %v1899 = vpop.permute.xlu0 %1898
        %1900 = vrot.lane.b32.xlu0 %v1851, 62
        %v1901 = vpop.permute.xlu0 %1900
        %1902 = vrot.lane.b32.xlu0 %v1852, 62
        %v1903 = vpop.permute.xlu0 %1902
        %1904 = vrot.lane.b32.xlu0 %v1853, 62
        %v1905 = vpop.permute.xlu0 %1904
        %1906 = vrot.lane.b32.xlu0 %v1854, 62
        %v1907 = vpop.permute.xlu0 %1906
        %1908 = vrot.lane.b32.xlu0 %v1855, 62
        %v1909 = vpop.permute.xlu0 %1908
        %vm1910 = vcmask 506880
        %v1911 = vsel %vm1910, %v1875, %v1877
        %v1912 = vsel %vm1910, %v1877, %v1879
        %v1913 = vsel %vm1910, %v1879, %v1881
        %v1914 = vsel %vm1910, %v1881, %v1883
        %v1915 = vsel %vm1910, %v1883, %v1885
        %v1916 = vsel %vm1910, %v1885, %v1887
        %v1917 = vsel %vm1910, %v1887, %v1889
        %v1918 = vsel %vm1910, %v1889, %v1891
        %v1919 = vsel %vm1910, %v1893, %v1895
        %v1920 = vsel %vm1910, %v1895, %v1897
        %v1921 = vsel %vm1910, %v1897, %v1899
        %v1922 = vsel %vm1910, %v1899, %v1901
        %v1923 = vsel %vm1910, %v1901, %v1903
        %v1924 = vsel %vm1910, %v1903, %v1905
        %v1925 = vsel %vm1910, %v1905, %v1907
        %v1926 = vsel %vm1910, %v1907, %v1909
        %v1943 = vadd.f32 %v1814, %v1911
        %v1944 = vadd.f32 %v1815, %v1912
        %v1945 = vadd.f32 %v1816, %v1913
        %v1946 = vadd.f32 %v1817, %v1914
        %v1947 = vadd.f32 %v1818, %v1915
        %v1948 = vadd.f32 %v1819, %v1916
        %v1949 = vadd.f32 %v1820, %v1917
        %v1950 = vadd.f32 %v1821, %v1918
        %v1951 = vadd.f32 %v1822, %v1919
        %v1952 = vadd.f32 %v1823, %v1920
        %v1953 = vadd.f32 %v1824, %v1921
        %v1954 = vadd.f32 %v1825, %v1922
        %v1955 = vadd.f32 %v1826, %v1923
        %v1956 = vadd.f32 %v1827, %v1924
        %v1957 = vadd.f32 %v1828, %v1925
        %v1958 = vadd.f32 %v1829, %v1926
        %1959 = vset.pattern.permute.xlu0 13
        %1960 = vperm.xlu0 %1959, %v328
        %v1961 = vpop.permute.xlu0 %1960
        %1963 = vset.pattern.permute.xlu0 13
        %1964 = vperm.xlu0 %1963, %v329
        %v1965 = vpop.permute.xlu0 %1964
        %v1967 = vmul.f32 %v1961, %v401
        %v1968 = vmul.f32 %v1961, %v402
        %v1969 = vmul.f32 %v1961, %v403
        %v1970 = vmul.f32 %v1961, %v404
        %v1971 = vmul.f32 %v1961, %v405
        %v1972 = vmul.f32 %v1961, %v406
        %v1973 = vmul.f32 %v1961, %v407
        %v1974 = vmul.f32 %v1961, %v408
        %v1975 = vmul.f32 %v1961, %v409
        %v1976 = vmul.f32 %v1965, %v401
        %v1977 = vmul.f32 %v1965, %v402
        %v1978 = vmul.f32 %v1965, %v403
        %v1979 = vmul.f32 %v1965, %v404
        %v1980 = vmul.f32 %v1965, %v405
        %v1981 = vmul.f32 %v1965, %v406
        %v1982 = vmul.f32 %v1965, %v407
        %v1983 = vmul.f32 %v1965, %v408
        %v1984 = vmul.f32 %v1965, %v409
        %2003 = vrot.lane.b32.xlu0 %v1967, 61
        %v2004 = vpop.permute.xlu0 %2003
        %2005 = vrot.lane.b32.xlu0 %v1968, 61
        %v2006 = vpop.permute.xlu0 %2005
        %2007 = vrot.lane.b32.xlu0 %v1969, 61
        %v2008 = vpop.permute.xlu0 %2007
        %2009 = vrot.lane.b32.xlu0 %v1970, 61
        %v2010 = vpop.permute.xlu0 %2009
        %2011 = vrot.lane.b32.xlu0 %v1971, 61
        %v2012 = vpop.permute.xlu0 %2011
        %2013 = vrot.lane.b32.xlu0 %v1972, 61
        %v2014 = vpop.permute.xlu0 %2013
        %2015 = vrot.lane.b32.xlu0 %v1973, 61
        %v2016 = vpop.permute.xlu0 %2015
        %2017 = vrot.lane.b32.xlu0 %v1974, 61
        %v2018 = vpop.permute.xlu0 %2017
        %2019 = vrot.lane.b32.xlu0 %v1975, 61
        %v2020 = vpop.permute.xlu0 %2019
        %2021 = vrot.lane.b32.xlu0 %v1976, 61
        %v2022 = vpop.permute.xlu0 %2021
        %2023 = vrot.lane.b32.xlu0 %v1977, 61
        %v2024 = vpop.permute.xlu0 %2023
        %2025 = vrot.lane.b32.xlu0 %v1978, 61
        %v2026 = vpop.permute.xlu0 %2025
        %2027 = vrot.lane.b32.xlu0 %v1979, 61
        %v2028 = vpop.permute.xlu0 %2027
        %2029 = vrot.lane.b32.xlu0 %v1980, 61
        %v2030 = vpop.permute.xlu0 %2029
        %2031 = vrot.lane.b32.xlu0 %v1981, 61
        %v2032 = vpop.permute.xlu0 %2031
        %2033 = vrot.lane.b32.xlu0 %v1982, 61
        %v2034 = vpop.permute.xlu0 %2033
        %2035 = vrot.lane.b32.xlu0 %v1983, 61
        %v2036 = vpop.permute.xlu0 %2035
        %2037 = vrot.lane.b32.xlu0 %v1984, 61
        %v2038 = vpop.permute.xlu0 %2037
        %vm2039 = vcmask 498688
        %v2040 = vsel %vm2039, %v2004, %v2006
        %v2041 = vsel %vm2039, %v2006, %v2008
        %v2042 = vsel %vm2039, %v2008, %v2010
        %v2043 = vsel %vm2039, %v2010, %v2012
        %v2044 = vsel %vm2039, %v2012, %v2014
        %v2045 = vsel %vm2039, %v2014, %v2016
        %v2046 = vsel %vm2039, %v2016, %v2018
        %v2047 = vsel %vm2039, %v2018, %v2020
        %v2048 = vsel %vm2039, %v2022, %v2024
        %v2049 = vsel %vm2039, %v2024, %v2026
        %v2050 = vsel %vm2039, %v2026, %v2028
        %v2051 = vsel %vm2039, %v2028, %v2030
        %v2052 = vsel %vm2039, %v2030, %v2032
        %v2053 = vsel %vm2039, %v2032, %v2034
        %v2054 = vsel %vm2039, %v2034, %v2036
        %v2055 = vsel %vm2039, %v2036, %v2038
        %v2072 = vadd.f32 %v1943, %v2040
        %v2073 = vadd.f32 %v1944, %v2041
        %v2074 = vadd.f32 %v1945, %v2042
        %v2075 = vadd.f32 %v1946, %v2043
        %v2076 = vadd.f32 %v1947, %v2044
        %v2077 = vadd.f32 %v1948, %v2045
        %v2078 = vadd.f32 %v1949, %v2046
        %v2079 = vadd.f32 %v1950, %v2047
        %v2080 = vadd.f32 %v1951, %v2048
        %v2081 = vadd.f32 %v1952, %v2049
        %v2082 = vadd.f32 %v1953, %v2050
        %v2083 = vadd.f32 %v1954, %v2051
        %v2084 = vadd.f32 %v1955, %v2052
        %v2085 = vadd.f32 %v1956, %v2053
        %v2086 = vadd.f32 %v1957, %v2054
        %v2087 = vadd.f32 %v1958, %v2055
        %2088 = vset.pattern.permute.xlu0 14
        %2089 = vperm.xlu0 %2088, %v328
        %v2090 = vpop.permute.xlu0 %2089
        %2092 = vset.pattern.permute.xlu0 14
        %2093 = vperm.xlu0 %2092, %v329
        %v2094 = vpop.permute.xlu0 %2093
        %v2096 = vmul.f32 %v2090, %v401
        %v2097 = vmul.f32 %v2090, %v402
        %v2098 = vmul.f32 %v2090, %v403
        %v2099 = vmul.f32 %v2090, %v404
        %v2100 = vmul.f32 %v2090, %v405
        %v2101 = vmul.f32 %v2090, %v406
        %v2102 = vmul.f32 %v2090, %v407
        %v2103 = vmul.f32 %v2090, %v408
        %v2104 = vmul.f32 %v2090, %v409
        %v2105 = vmul.f32 %v2094, %v401
        %v2106 = vmul.f32 %v2094, %v402
        %v2107 = vmul.f32 %v2094, %v403
        %v2108 = vmul.f32 %v2094, %v404
        %v2109 = vmul.f32 %v2094, %v405
        %v2110 = vmul.f32 %v2094, %v406
        %v2111 = vmul.f32 %v2094, %v407
        %v2112 = vmul.f32 %v2094, %v408
        %v2113 = vmul.f32 %v2094, %v409
        %2132 = vrot.lane.b32.xlu0 %v2096, 60
        %v2133 = vpop.permute.xlu0 %2132
        %2134 = vrot.lane.b32.xlu0 %v2097, 60
        %v2135 = vpop.permute.xlu0 %2134
        %2136 = vrot.lane.b32.xlu0 %v2098, 60
        %v2137 = vpop.permute.xlu0 %2136
        %2138 = vrot.lane.b32.xlu0 %v2099, 60
        %v2139 = vpop.permute.xlu0 %2138
        %2140 = vrot.lane.b32.xlu0 %v2100, 60
        %v2141 = vpop.permute.xlu0 %2140
        %2142 = vrot.lane.b32.xlu0 %v2101, 60
        %v2143 = vpop.permute.xlu0 %2142
        %2144 = vrot.lane.b32.xlu0 %v2102, 60
        %v2145 = vpop.permute.xlu0 %2144
        %2146 = vrot.lane.b32.xlu0 %v2103, 60
        %v2147 = vpop.permute.xlu0 %2146
        %2148 = vrot.lane.b32.xlu0 %v2104, 60
        %v2149 = vpop.permute.xlu0 %2148
        %2150 = vrot.lane.b32.xlu0 %v2105, 60
        %v2151 = vpop.permute.xlu0 %2150
        %2152 = vrot.lane.b32.xlu0 %v2106, 60
        %v2153 = vpop.permute.xlu0 %2152
        %2154 = vrot.lane.b32.xlu0 %v2107, 60
        %v2155 = vpop.permute.xlu0 %2154
        %2156 = vrot.lane.b32.xlu0 %v2108, 60
        %v2157 = vpop.permute.xlu0 %2156
        %2158 = vrot.lane.b32.xlu0 %v2109, 60
        %v2159 = vpop.permute.xlu0 %2158
        %2160 = vrot.lane.b32.xlu0 %v2110, 60
        %v2161 = vpop.permute.xlu0 %2160
        %2162 = vrot.lane.b32.xlu0 %v2111, 60
        %v2163 = vpop.permute.xlu0 %2162
        %2164 = vrot.lane.b32.xlu0 %v2112, 60
        %v2165 = vpop.permute.xlu0 %2164
        %2166 = vrot.lane.b32.xlu0 %v2113, 60
        %v2167 = vpop.permute.xlu0 %2166
        %vm2168 = vcmask 490496
        %v2169 = vsel %vm2168, %v2133, %v2135
        %v2170 = vsel %vm2168, %v2135, %v2137
        %v2171 = vsel %vm2168, %v2137, %v2139
        %v2172 = vsel %vm2168, %v2139, %v2141
        %v2173 = vsel %vm2168, %v2141, %v2143
        %v2174 = vsel %vm2168, %v2143, %v2145
        %v2175 = vsel %vm2168, %v2145, %v2147
        %v2176 = vsel %vm2168, %v2147, %v2149
        %v2177 = vsel %vm2168, %v2151, %v2153
        %v2178 = vsel %vm2168, %v2153, %v2155
        %v2179 = vsel %vm2168, %v2155, %v2157
        %v2180 = vsel %vm2168, %v2157, %v2159
        %v2181 = vsel %vm2168, %v2159, %v2161
        %v2182 = vsel %vm2168, %v2161, %v2163
        %v2183 = vsel %vm2168, %v2163, %v2165
        %v2184 = vsel %vm2168, %v2165, %v2167
        %v2201 = vadd.f32 %v2072, %v2169
        %v2202 = vadd.f32 %v2073, %v2170
        %v2203 = vadd.f32 %v2074, %v2171
        %v2204 = vadd.f32 %v2075, %v2172
        %v2205 = vadd.f32 %v2076, %v2173
        %v2206 = vadd.f32 %v2077, %v2174
        %v2207 = vadd.f32 %v2078, %v2175
        %v2208 = vadd.f32 %v2079, %v2176
        %v2209 = vadd.f32 %v2080, %v2177
        %v2210 = vadd.f32 %v2081, %v2178
        %v2211 = vadd.f32 %v2082, %v2179
        %v2212 = vadd.f32 %v2083, %v2180
        %v2213 = vadd.f32 %v2084, %v2181
        %v2214 = vadd.f32 %v2085, %v2182
        %v2215 = vadd.f32 %v2086, %v2183
        %v2216 = vadd.f32 %v2087, %v2184
        %2217 = vset.pattern.permute.xlu0 15
        %2218 = vperm.xlu0 %2217, %v328
        %v2219 = vpop.permute.xlu0 %2218
        %2221 = vset.pattern.permute.xlu0 15
        %2222 = vperm.xlu0 %2221, %v329
        %v2223 = vpop.permute.xlu0 %2222
        %v2225 = vmul.f32 %v2219, %v401
        %v2226 = vmul.f32 %v2219, %v402
        %v2227 = vmul.f32 %v2219, %v403
        %v2228 = vmul.f32 %v2219, %v404
        %v2229 = vmul.f32 %v2219, %v405
        %v2230 = vmul.f32 %v2219, %v406
        %v2231 = vmul.f32 %v2219, %v407
        %v2232 = vmul.f32 %v2219, %v408
        %v2233 = vmul.f32 %v2219, %v409
        %v2234 = vmul.f32 %v2223, %v401
        %v2235 = vmul.f32 %v2223, %v402
        %v2236 = vmul.f32 %v2223, %v403
        %v2237 = vmul.f32 %v2223, %v404
        %v2238 = vmul.f32 %v2223, %v405
        %v2239 = vmul.f32 %v2223, %v406
        %v2240 = vmul.f32 %v2223, %v407
        %v2241 = vmul.f32 %v2223, %v408
        %v2242 = vmul.f32 %v2223, %v409
        %2261 = vrot.lane.b32.xlu0 %v2225, 32
        %v2262 = vpop.permute.xlu0 %2261
        %2263 = vrot.lane.b32.xlu0 %v2226, 32
        %v2264 = vpop.permute.xlu0 %2263
        %2265 = vrot.lane.b32.xlu0 %v2227, 32
        %v2266 = vpop.permute.xlu0 %2265
        %2267 = vrot.lane.b32.xlu0 %v2228, 32
        %v2268 = vpop.permute.xlu0 %2267
        %2269 = vrot.lane.b32.xlu0 %v2229, 32
        %v2270 = vpop.permute.xlu0 %2269
        %2271 = vrot.lane.b32.xlu0 %v2230, 32
        %v2272 = vpop.permute.xlu0 %2271
        %2273 = vrot.lane.b32.xlu0 %v2231, 32
        %v2274 = vpop.permute.xlu0 %2273
        %2275 = vrot.lane.b32.xlu0 %v2232, 32
        %v2276 = vpop.permute.xlu0 %2275
        %2277 = vrot.lane.b32.xlu0 %v2233, 32
        %v2278 = vpop.permute.xlu0 %2277
        %2279 = vrot.lane.b32.xlu0 %v2234, 32
        %v2280 = vpop.permute.xlu0 %2279
        %2281 = vrot.lane.b32.xlu0 %v2235, 32
        %v2282 = vpop.permute.xlu0 %2281
        %2283 = vrot.lane.b32.xlu0 %v2236, 32
        %v2284 = vpop.permute.xlu0 %2283
        %2285 = vrot.lane.b32.xlu0 %v2237, 32
        %v2286 = vpop.permute.xlu0 %2285
        %2287 = vrot.lane.b32.xlu0 %v2238, 32
        %v2288 = vpop.permute.xlu0 %2287
        %2289 = vrot.lane.b32.xlu0 %v2239, 32
        %v2290 = vpop.permute.xlu0 %2289
        %2291 = vrot.lane.b32.xlu0 %v2240, 32
        %v2292 = vpop.permute.xlu0 %2291
        %2293 = vrot.lane.b32.xlu0 %v2241, 32
        %v2294 = vpop.permute.xlu0 %2293
        %2295 = vrot.lane.b32.xlu0 %v2242, 32
        %v2296 = vpop.permute.xlu0 %2295
        %vm2297 = vcmask 261120
        %v2298 = vsel %vm2297, %v2262, %v2264
        %v2299 = vsel %vm2297, %v2264, %v2266
        %v2300 = vsel %vm2297, %v2266, %v2268
        %v2301 = vsel %vm2297, %v2268, %v2270
        %v2302 = vsel %vm2297, %v2270, %v2272
        %v2303 = vsel %vm2297, %v2272, %v2274
        %v2304 = vsel %vm2297, %v2274, %v2276
        %v2305 = vsel %vm2297, %v2276, %v2278
        %v2306 = vsel %vm2297, %v2280, %v2282
        %v2307 = vsel %vm2297, %v2282, %v2284
        %v2308 = vsel %vm2297, %v2284, %v2286
        %v2309 = vsel %vm2297, %v2286, %v2288
        %v2310 = vsel %vm2297, %v2288, %v2290
        %v2311 = vsel %vm2297, %v2290, %v2292
        %v2312 = vsel %vm2297, %v2292, %v2294
        %v2313 = vsel %vm2297, %v2294, %v2296
        %v2330 = vadd.f32 %v2201, %v2298
        %v2331 = vadd.f32 %v2202, %v2299
        %v2332 = vadd.f32 %v2203, %v2300
        %v2333 = vadd.f32 %v2204, %v2301
        %v2334 = vadd.f32 %v2205, %v2302
        %v2335 = vadd.f32 %v2206, %v2303
        %v2336 = vadd.f32 %v2207, %v2304
        %v2337 = vadd.f32 %v2208, %v2305
        %v2338 = vadd.f32 %v2209, %v2306
        %v2339 = vadd.f32 %v2210, %v2307
        %v2340 = vadd.f32 %v2211, %v2308
        %v2341 = vadd.f32 %v2212, %v2309
        %v2342 = vadd.f32 %v2213, %v2310
        %v2343 = vadd.f32 %v2214, %v2311
        %v2344 = vadd.f32 %v2215, %v2312
        %v2345 = vadd.f32 %v2216, %v2313
        %2346 = vset.pattern.permute.xlu0 16
        %2347 = vperm.xlu0 %2346, %v328
        %v2348 = vpop.permute.xlu0 %2347
        %2350 = vset.pattern.permute.xlu0 16
        %2351 = vperm.xlu0 %2350, %v329
        %v2352 = vpop.permute.xlu0 %2351
        %v2354 = vmul.f32 %v2348, %v401
        %v2355 = vmul.f32 %v2348, %v402
        %v2356 = vmul.f32 %v2348, %v403
        %v2357 = vmul.f32 %v2348, %v404
        %v2358 = vmul.f32 %v2348, %v405
        %v2359 = vmul.f32 %v2348, %v406
        %v2360 = vmul.f32 %v2348, %v407
        %v2361 = vmul.f32 %v2348, %v408
        %v2362 = vmul.f32 %v2348, %v409
        %v2363 = vmul.f32 %v2352, %v401
        %v2364 = vmul.f32 %v2352, %v402
        %v2365 = vmul.f32 %v2352, %v403
        %v2366 = vmul.f32 %v2352, %v404
        %v2367 = vmul.f32 %v2352, %v405
        %v2368 = vmul.f32 %v2352, %v406
        %v2369 = vmul.f32 %v2352, %v407
        %v2370 = vmul.f32 %v2352, %v408
        %v2371 = vmul.f32 %v2352, %v409
        %2390 = vrot.lane.b32.xlu0 %v2354, 31
        %v2391 = vpop.permute.xlu0 %2390
        %2392 = vrot.lane.b32.xlu0 %v2355, 31
        %v2393 = vpop.permute.xlu0 %2392
        %2394 = vrot.lane.b32.xlu0 %v2356, 31
        %v2395 = vpop.permute.xlu0 %2394
        %2396 = vrot.lane.b32.xlu0 %v2357, 31
        %v2397 = vpop.permute.xlu0 %2396
        %2398 = vrot.lane.b32.xlu0 %v2358, 31
        %v2399 = vpop.permute.xlu0 %2398
        %2400 = vrot.lane.b32.xlu0 %v2359, 31
        %v2401 = vpop.permute.xlu0 %2400
        %2402 = vrot.lane.b32.xlu0 %v2360, 31
        %v2403 = vpop.permute.xlu0 %2402
        %2404 = vrot.lane.b32.xlu0 %v2361, 31
        %v2405 = vpop.permute.xlu0 %2404
        %2406 = vrot.lane.b32.xlu0 %v2362, 31
        %v2407 = vpop.permute.xlu0 %2406
        %2408 = vrot.lane.b32.xlu0 %v2363, 31
        %v2409 = vpop.permute.xlu0 %2408
        %2410 = vrot.lane.b32.xlu0 %v2364, 31
        %v2411 = vpop.permute.xlu0 %2410
        %2412 = vrot.lane.b32.xlu0 %v2365, 31
        %v2413 = vpop.permute.xlu0 %2412
        %2414 = vrot.lane.b32.xlu0 %v2366, 31
        %v2415 = vpop.permute.xlu0 %2414
        %2416 = vrot.lane.b32.xlu0 %v2367, 31
        %v2417 = vpop.permute.xlu0 %2416
        %2418 = vrot.lane.b32.xlu0 %v2368, 31
        %v2419 = vpop.permute.xlu0 %2418
        %2420 = vrot.lane.b32.xlu0 %v2369, 31
        %v2421 = vpop.permute.xlu0 %2420
        %2422 = vrot.lane.b32.xlu0 %v2370, 31
        %v2423 = vpop.permute.xlu0 %2422
        %2424 = vrot.lane.b32.xlu0 %v2371, 31
        %v2425 = vpop.permute.xlu0 %2424
        %vm2426 = vcmask 252928
        %v2427 = vsel %vm2426, %v2391, %v2393
        %v2428 = vsel %vm2426, %v2393, %v2395
        %v2429 = vsel %vm2426, %v2395, %v2397
        %v2430 = vsel %vm2426, %v2397, %v2399
        %v2431 = vsel %vm2426, %v2399, %v2401
        %v2432 = vsel %vm2426, %v2401, %v2403
        %v2433 = vsel %vm2426, %v2403, %v2405
        %v2434 = vsel %vm2426, %v2405, %v2407
        %v2435 = vsel %vm2426, %v2409, %v2411
        %v2436 = vsel %vm2426, %v2411, %v2413
        %v2437 = vsel %vm2426, %v2413, %v2415
        %v2438 = vsel %vm2426, %v2415, %v2417
        %v2439 = vsel %vm2426, %v2417, %v2419
        %v2440 = vsel %vm2426, %v2419, %v2421
        %v2441 = vsel %vm2426, %v2421, %v2423
        %v2442 = vsel %vm2426, %v2423, %v2425
        %v2459 = vadd.f32 %v2330, %v2427
        %v2460 = vadd.f32 %v2331, %v2428
        %v2461 = vadd.f32 %v2332, %v2429
        %v2462 = vadd.f32 %v2333, %v2430
        %v2463 = vadd.f32 %v2334, %v2431
        %v2464 = vadd.f32 %v2335, %v2432
        %v2465 = vadd.f32 %v2336, %v2433
        %v2466 = vadd.f32 %v2337, %v2434
        %v2467 = vadd.f32 %v2338, %v2435
        %v2468 = vadd.f32 %v2339, %v2436
        %v2469 = vadd.f32 %v2340, %v2437
        %v2470 = vadd.f32 %v2341, %v2438
        %v2471 = vadd.f32 %v2342, %v2439
        %v2472 = vadd.f32 %v2343, %v2440
        %v2473 = vadd.f32 %v2344, %v2441
        %v2474 = vadd.f32 %v2345, %v2442
        %2475 = vset.pattern.permute.xlu0 17
        %2476 = vperm.xlu0 %2475, %v328
        %v2477 = vpop.permute.xlu0 %2476
        %2479 = vset.pattern.permute.xlu0 17
        %2480 = vperm.xlu0 %2479, %v329
        %v2481 = vpop.permute.xlu0 %2480
        %v2483 = vmul.f32 %v2477, %v401
        %v2484 = vmul.f32 %v2477, %v402
        %v2485 = vmul.f32 %v2477, %v403
        %v2486 = vmul.f32 %v2477, %v404
        %v2487 = vmul.f32 %v2477, %v405
        %v2488 = vmul.f32 %v2477, %v406
        %v2489 = vmul.f32 %v2477, %v407
        %v2490 = vmul.f32 %v2477, %v408
        %v2491 = vmul.f32 %v2477, %v409
        %v2492 = vmul.f32 %v2481, %v401
        %v2493 = vmul.f32 %v2481, %v402
        %v2494 = vmul.f32 %v2481, %v403
        %v2495 = vmul.f32 %v2481, %v404
        %v2496 = vmul.f32 %v2481, %v405
        %v2497 = vmul.f32 %v2481, %v406
        %v2498 = vmul.f32 %v2481, %v407
        %v2499 = vmul.f32 %v2481, %v408
        %v2500 = vmul.f32 %v2481, %v409
        %2519 = vrot.lane.b32.xlu0 %v2483, 30
        %v2520 = vpop.permute.xlu0 %2519
        %2521 = vrot.lane.b32.xlu0 %v2484, 30
        %v2522 = vpop.permute.xlu0 %2521
        %2523 = vrot.lane.b32.xlu0 %v2485, 30
        %v2524 = vpop.permute.xlu0 %2523
        %2525 = vrot.lane.b32.xlu0 %v2486, 30
        %v2526 = vpop.permute.xlu0 %2525
        %2527 = vrot.lane.b32.xlu0 %v2487, 30
        %v2528 = vpop.permute.xlu0 %2527
        %2529 = vrot.lane.b32.xlu0 %v2488, 30
        %v2530 = vpop.permute.xlu0 %2529
        %2531 = vrot.lane.b32.xlu0 %v2489, 30
        %v2532 = vpop.permute.xlu0 %2531
        %2533 = vrot.lane.b32.xlu0 %v2490, 30
        %v2534 = vpop.permute.xlu0 %2533
        %2535 = vrot.lane.b32.xlu0 %v2491, 30
        %v2536 = vpop.permute.xlu0 %2535
        %2537 = vrot.lane.b32.xlu0 %v2492, 30
        %v2538 = vpop.permute.xlu0 %2537
        %2539 = vrot.lane.b32.xlu0 %v2493, 30
        %v2540 = vpop.permute.xlu0 %2539
        %2541 = vrot.lane.b32.xlu0 %v2494, 30
        %v2542 = vpop.permute.xlu0 %2541
        %2543 = vrot.lane.b32.xlu0 %v2495, 30
        %v2544 = vpop.permute.xlu0 %2543
        %2545 = vrot.lane.b32.xlu0 %v2496, 30
        %v2546 = vpop.permute.xlu0 %2545
        %2547 = vrot.lane.b32.xlu0 %v2497, 30
        %v2548 = vpop.permute.xlu0 %2547
        %2549 = vrot.lane.b32.xlu0 %v2498, 30
        %v2550 = vpop.permute.xlu0 %2549
        %2551 = vrot.lane.b32.xlu0 %v2499, 30
        %v2552 = vpop.permute.xlu0 %2551
        %2553 = vrot.lane.b32.xlu0 %v2500, 30
        %v2554 = vpop.permute.xlu0 %2553
        %vm2555 = vcmask 244736
        %v2556 = vsel %vm2555, %v2520, %v2522
        %v2557 = vsel %vm2555, %v2522, %v2524
        %v2558 = vsel %vm2555, %v2524, %v2526
        %v2559 = vsel %vm2555, %v2526, %v2528
        %v2560 = vsel %vm2555, %v2528, %v2530
        %v2561 = vsel %vm2555, %v2530, %v2532
        %v2562 = vsel %vm2555, %v2532, %v2534
        %v2563 = vsel %vm2555, %v2534, %v2536
        %v2564 = vsel %vm2555, %v2538, %v2540
        %v2565 = vsel %vm2555, %v2540, %v2542
        %v2566 = vsel %vm2555, %v2542, %v2544
        %v2567 = vsel %vm2555, %v2544, %v2546
        %v2568 = vsel %vm2555, %v2546, %v2548
        %v2569 = vsel %vm2555, %v2548, %v2550
        %v2570 = vsel %vm2555, %v2550, %v2552
        %v2571 = vsel %vm2555, %v2552, %v2554
        %v2588 = vadd.f32 %v2459, %v2556
        %v2589 = vadd.f32 %v2460, %v2557
        %v2590 = vadd.f32 %v2461, %v2558
        %v2591 = vadd.f32 %v2462, %v2559
        %v2592 = vadd.f32 %v2463, %v2560
        %v2593 = vadd.f32 %v2464, %v2561
        %v2594 = vadd.f32 %v2465, %v2562
        %v2595 = vadd.f32 %v2466, %v2563
        %v2596 = vadd.f32 %v2467, %v2564
        %v2597 = vadd.f32 %v2468, %v2565
        %v2598 = vadd.f32 %v2469, %v2566
        %v2599 = vadd.f32 %v2470, %v2567
        %v2600 = vadd.f32 %v2471, %v2568
        %v2601 = vadd.f32 %v2472, %v2569
        %v2602 = vadd.f32 %v2473, %v2570
        %v2603 = vadd.f32 %v2474, %v2571
        %2604 = vset.pattern.permute.xlu0 18
        %2605 = vperm.xlu0 %2604, %v328
        %v2606 = vpop.permute.xlu0 %2605
        %2608 = vset.pattern.permute.xlu0 18
        %2609 = vperm.xlu0 %2608, %v329
        %v2610 = vpop.permute.xlu0 %2609
        %v2612 = vmul.f32 %v2606, %v401
        %v2613 = vmul.f32 %v2606, %v402
        %v2614 = vmul.f32 %v2606, %v403
        %v2615 = vmul.f32 %v2606, %v404
        %v2616 = vmul.f32 %v2606, %v405
        %v2617 = vmul.f32 %v2606, %v406
        %v2618 = vmul.f32 %v2606, %v407
        %v2619 = vmul.f32 %v2606, %v408
        %v2620 = vmul.f32 %v2606, %v409
        %v2621 = vmul.f32 %v2610, %v401
        %v2622 = vmul.f32 %v2610, %v402
        %v2623 = vmul.f32 %v2610, %v403
        %v2624 = vmul.f32 %v2610, %v404
        %v2625 = vmul.f32 %v2610, %v405
        %v2626 = vmul.f32 %v2610, %v406
        %v2627 = vmul.f32 %v2610, %v407
        %v2628 = vmul.f32 %v2610, %v408
        %v2629 = vmul.f32 %v2610, %v409
        %2648 = vrot.lane.b32.xlu0 %v2612, 29
        %v2649 = vpop.permute.xlu0 %2648
        %2650 = vrot.lane.b32.xlu0 %v2613, 29
        %v2651 = vpop.permute.xlu0 %2650
        %2652 = vrot.lane.b32.xlu0 %v2614, 29
        %v2653 = vpop.permute.xlu0 %2652
        %2654 = vrot.lane.b32.xlu0 %v2615, 29
        %v2655 = vpop.permute.xlu0 %2654
        %2656 = vrot.lane.b32.xlu0 %v2616, 29
        %v2657 = vpop.permute.xlu0 %2656
        %2658 = vrot.lane.b32.xlu0 %v2617, 29
        %v2659 = vpop.permute.xlu0 %2658
        %2660 = vrot.lane.b32.xlu0 %v2618, 29
        %v2661 = vpop.permute.xlu0 %2660
        %2662 = vrot.lane.b32.xlu0 %v2619, 29
        %v2663 = vpop.permute.xlu0 %2662
        %2664 = vrot.lane.b32.xlu0 %v2620, 29
        %v2665 = vpop.permute.xlu0 %2664
        %2666 = vrot.lane.b32.xlu0 %v2621, 29
        %v2667 = vpop.permute.xlu0 %2666
        %2668 = vrot.lane.b32.xlu0 %v2622, 29
        %v2669 = vpop.permute.xlu0 %2668
        %2670 = vrot.lane.b32.xlu0 %v2623, 29
        %v2671 = vpop.permute.xlu0 %2670
        %2672 = vrot.lane.b32.xlu0 %v2624, 29
        %v2673 = vpop.permute.xlu0 %2672
        %2674 = vrot.lane.b32.xlu0 %v2625, 29
        %v2675 = vpop.permute.xlu0 %2674
        %2676 = vrot.lane.b32.xlu0 %v2626, 29
        %v2677 = vpop.permute.xlu0 %2676
        %2678 = vrot.lane.b32.xlu0 %v2627, 29
        %v2679 = vpop.permute.xlu0 %2678
        %2680 = vrot.lane.b32.xlu0 %v2628, 29
        %v2681 = vpop.permute.xlu0 %2680
        %2682 = vrot.lane.b32.xlu0 %v2629, 29
        %v2683 = vpop.permute.xlu0 %2682
        %vm2684 = vcmask 236544
        %v2685 = vsel %vm2684, %v2649, %v2651
        %v2686 = vsel %vm2684, %v2651, %v2653
        %v2687 = vsel %vm2684, %v2653, %v2655
        %v2688 = vsel %vm2684, %v2655, %v2657
        %v2689 = vsel %vm2684, %v2657, %v2659
        %v2690 = vsel %vm2684, %v2659, %v2661
        %v2691 = vsel %vm2684, %v2661, %v2663
        %v2692 = vsel %vm2684, %v2663, %v2665
        %v2693 = vsel %vm2684, %v2667, %v2669
        %v2694 = vsel %vm2684, %v2669, %v2671
        %v2695 = vsel %vm2684, %v2671, %v2673
        %v2696 = vsel %vm2684, %v2673, %v2675
        %v2697 = vsel %vm2684, %v2675, %v2677
        %v2698 = vsel %vm2684, %v2677, %v2679
        %v2699 = vsel %vm2684, %v2679, %v2681
        %v2700 = vsel %vm2684, %v2681, %v2683
        %v2717 = vadd.f32 %v2588, %v2685
        %v2718 = vadd.f32 %v2589, %v2686
        %v2719 = vadd.f32 %v2590, %v2687
        %v2720 = vadd.f32 %v2591, %v2688
        %v2721 = vadd.f32 %v2592, %v2689
        %v2722 = vadd.f32 %v2593, %v2690
        %v2723 = vadd.f32 %v2594, %v2691
        %v2724 = vadd.f32 %v2595, %v2692
        %v2725 = vadd.f32 %v2596, %v2693
        %v2726 = vadd.f32 %v2597, %v2694
        %v2727 = vadd.f32 %v2598, %v2695
        %v2728 = vadd.f32 %v2599, %v2696
        %v2729 = vadd.f32 %v2600, %v2697
        %v2730 = vadd.f32 %v2601, %v2698
        %v2731 = vadd.f32 %v2602, %v2699
        %v2732 = vadd.f32 %v2603, %v2700
        %2733 = vset.pattern.permute.xlu0 19
        %2734 = vperm.xlu0 %2733, %v328
        %v2735 = vpop.permute.xlu0 %2734
        %2737 = vset.pattern.permute.xlu0 19
        %2738 = vperm.xlu0 %2737, %v329
        %v2739 = vpop.permute.xlu0 %2738
        %v2741 = vmul.f32 %v2735, %v401
        %v2742 = vmul.f32 %v2735, %v402
        %v2743 = vmul.f32 %v2735, %v403
        %v2744 = vmul.f32 %v2735, %v404
        %v2745 = vmul.f32 %v2735, %v405
        %v2746 = vmul.f32 %v2735, %v406
        %v2747 = vmul.f32 %v2735, %v407
        %v2748 = vmul.f32 %v2735, %v408
        %v2749 = vmul.f32 %v2735, %v409
        %v2750 = vmul.f32 %v2739, %v401
        %v2751 = vmul.f32 %v2739, %v402
        %v2752 = vmul.f32 %v2739, %v403
        %v2753 = vmul.f32 %v2739, %v404
        %v2754 = vmul.f32 %v2739, %v405
        %v2755 = vmul.f32 %v2739, %v406
        %v2756 = vmul.f32 %v2739, %v407
        %v2757 = vmul.f32 %v2739, %v408
        %v2758 = vmul.f32 %v2739, %v409
        %2777 = vrot.lane.b32.xlu0 %v2741, 28
        %v2778 = vpop.permute.xlu0 %2777
        %2779 = vrot.lane.b32.xlu0 %v2742, 28
        %v2780 = vpop.permute.xlu0 %2779
        %2781 = vrot.lane.b32.xlu0 %v2743, 28
        %v2782 = vpop.permute.xlu0 %2781
        %2783 = vrot.lane.b32.xlu0 %v2744, 28
        %v2784 = vpop.permute.xlu0 %2783
        %2785 = vrot.lane.b32.xlu0 %v2745, 28
        %v2786 = vpop.permute.xlu0 %2785
        %2787 = vrot.lane.b32.xlu0 %v2746, 28
        %v2788 = vpop.permute.xlu0 %2787
        %2789 = vrot.lane.b32.xlu0 %v2747, 28
        %v2790 = vpop.permute.xlu0 %2789
        %2791 = vrot.lane.b32.xlu0 %v2748, 28
        %v2792 = vpop.permute.xlu0 %2791
        %2793 = vrot.lane.b32.xlu0 %v2749, 28
        %v2794 = vpop.permute.xlu0 %2793
        %2795 = vrot.lane.b32.xlu0 %v2750, 28
        %v2796 = vpop.permute.xlu0 %2795
        %2797 = vrot.lane.b32.xlu0 %v2751, 28
        %v2798 = vpop.permute.xlu0 %2797
        %2799 = vrot.lane.b32.xlu0 %v2752, 28
        %v2800 = vpop.permute.xlu0 %2799
        %2801 = vrot.lane.b32.xlu0 %v2753, 28
        %v2802 = vpop.permute.xlu0 %2801
        %2803 = vrot.lane.b32.xlu0 %v2754, 28
        %v2804 = vpop.permute.xlu0 %2803
        %2805 = vrot.lane.b32.xlu0 %v2755, 28
        %v2806 = vpop.permute.xlu0 %2805
        %2807 = vrot.lane.b32.xlu0 %v2756, 28
        %v2808 = vpop.permute.xlu0 %2807
        %2809 = vrot.lane.b32.xlu0 %v2757, 28
        %v2810 = vpop.permute.xlu0 %2809
        %2811 = vrot.lane.b32.xlu0 %v2758, 28
        %v2812 = vpop.permute.xlu0 %2811
        %vm2813 = vcmask 228352
        %v2814 = vsel %vm2813, %v2778, %v2780
        %v2815 = vsel %vm2813, %v2780, %v2782
        %v2816 = vsel %vm2813, %v2782, %v2784
        %v2817 = vsel %vm2813, %v2784, %v2786
        %v2818 = vsel %vm2813, %v2786, %v2788
        %v2819 = vsel %vm2813, %v2788, %v2790
        %v2820 = vsel %vm2813, %v2790, %v2792
        %v2821 = vsel %vm2813, %v2792, %v2794
        %v2822 = vsel %vm2813, %v2796, %v2798
        %v2823 = vsel %vm2813, %v2798, %v2800
        %v2824 = vsel %vm2813, %v2800, %v2802
        %v2825 = vsel %vm2813, %v2802, %v2804
        %v2826 = vsel %vm2813, %v2804, %v2806
        %v2827 = vsel %vm2813, %v2806, %v2808
        %v2828 = vsel %vm2813, %v2808, %v2810
        %v2829 = vsel %vm2813, %v2810, %v2812
        %v2846 = vadd.f32 %v2717, %v2814
        %v2847 = vadd.f32 %v2718, %v2815
        %v2848 = vadd.f32 %v2719, %v2816
        %v2849 = vadd.f32 %v2720, %v2817
        %v2850 = vadd.f32 %v2721, %v2818
        %v2851 = vadd.f32 %v2722, %v2819
        %v2852 = vadd.f32 %v2723, %v2820
        %v2853 = vadd.f32 %v2724, %v2821
        %v2854 = vadd.f32 %v2725, %v2822
        %v2855 = vadd.f32 %v2726, %v2823
        %v2856 = vadd.f32 %v2727, %v2824
        %v2857 = vadd.f32 %v2728, %v2825
        %v2858 = vadd.f32 %v2729, %v2826
        %v2859 = vadd.f32 %v2730, %v2827
        %v2860 = vadd.f32 %v2731, %v2828
        %v2861 = vadd.f32 %v2732, %v2829
        %v2862 = vld [vmem:[%s326 + $0x1] sm:$0xff]
        %2863 = vset.pattern.permute.xlu0 20
        %2864 = vperm.xlu0 %2863, %v328
        %v2865 = vpop.permute.xlu0 %2864
        %2867 = vset.pattern.permute.xlu0 20
        %2868 = vperm.xlu0 %2867, %v329
        %v2869 = vpop.permute.xlu0 %2868
        %v2872 = vperm.slane %v2862, 0
        %v2873 = vperm.slane %v2862, 1
        %v2874 = vperm.slane %v2862, 2
        %v2875 = vperm.slane %v2862, 3
        %v2876 = vperm.slane %v2862, 4
        %v2877 = vperm.slane %v2862, 5
        %v2878 = vperm.slane %v2862, 6
        %v2879 = vperm.slane %v2862, 7
        %v2888 = vmul.f32 %v2865, %v2872
        %v2889 = vmul.f32 %v2865, %v2873
        %v2890 = vmul.f32 %v2865, %v2874
        %v2891 = vmul.f32 %v2865, %v2875
        %v2892 = vmul.f32 %v2865, %v2876
        %v2893 = vmul.f32 %v2865, %v2877
        %v2894 = vmul.f32 %v2865, %v2878
        %v2895 = vmul.f32 %v2865, %v2879
        %v2896 = vmul.f32 %v2869, %v2872
        %v2897 = vmul.f32 %v2869, %v2873
        %v2898 = vmul.f32 %v2869, %v2874
        %v2899 = vmul.f32 %v2869, %v2875
        %v2900 = vmul.f32 %v2869, %v2876
        %v2901 = vmul.f32 %v2869, %v2877
        %v2902 = vmul.f32 %v2869, %v2878
        %v2903 = vmul.f32 %v2869, %v2879
        %v2904 = vadd.f32 %v2846, %v2888
        %v2905 = vadd.f32 %v2847, %v2889
        %v2906 = vadd.f32 %v2848, %v2890
        %v2907 = vadd.f32 %v2849, %v2891
        %v2908 = vadd.f32 %v2850, %v2892
        %v2909 = vadd.f32 %v2851, %v2893
        %v2910 = vadd.f32 %v2852, %v2894
        %v2911 = vadd.f32 %v2853, %v2895
        %v2912 = vadd.f32 %v2854, %v2896
        %v2913 = vadd.f32 %v2855, %v2897
        %v2914 = vadd.f32 %v2856, %v2898
        %v2915 = vadd.f32 %v2857, %v2899
        %v2916 = vadd.f32 %v2858, %v2900
        %v2917 = vadd.f32 %v2859, %v2901
        %v2918 = vadd.f32 %v2860, %v2902
        %v2919 = vadd.f32 %v2861, %v2903
        %v2920 = vld [vmem:[%s326 + $0x1] sm:$0xff]
        %v2921 = vld [vmem:[%s326 + $0x9] sm:$0x1]
        %2922 = vset.pattern.permute.xlu0 21
        %2923 = vperm.xlu0 %2922, %v328
        %v2924 = vpop.permute.xlu0 %2923
        %2926 = vset.pattern.permute.xlu0 21
        %2927 = vperm.xlu0 %2926, %v329
        %v2928 = vpop.permute.xlu0 %2927
        %v2932 = vperm.slane %v2920, 0
        %v2933 = vperm.slane %v2920, 1
        %v2934 = vperm.slane %v2920, 2
        %v2935 = vperm.slane %v2920, 3
        %v2936 = vperm.slane %v2920, 4
        %v2937 = vperm.slane %v2920, 5
        %v2938 = vperm.slane %v2920, 6
        %v2939 = vperm.slane %v2920, 7
        %v2940 = vperm.slane %v2921, 0
        %v2950 = vmul.f32 %v2924, %v2932
        %v2951 = vmul.f32 %v2924, %v2933
        %v2952 = vmul.f32 %v2924, %v2934
        %v2953 = vmul.f32 %v2924, %v2935
        %v2954 = vmul.f32 %v2924, %v2936
        %v2955 = vmul.f32 %v2924, %v2937
        %v2956 = vmul.f32 %v2924, %v2938
        %v2957 = vmul.f32 %v2924, %v2939
        %v2958 = vmul.f32 %v2924, %v2940
        %v2959 = vmul.f32 %v2928, %v2932
        %v2960 = vmul.f32 %v2928, %v2933
        %v2961 = vmul.f32 %v2928, %v2934
        %v2962 = vmul.f32 %v2928, %v2935
        %v2963 = vmul.f32 %v2928, %v2936
        %v2964 = vmul.f32 %v2928, %v2937
        %v2965 = vmul.f32 %v2928, %v2938
        %v2966 = vmul.f32 %v2928, %v2939
        %v2967 = vmul.f32 %v2928, %v2940
        %2986 = vrot.lane.b32.xlu0 %v2950, 127
        %v2987 = vpop.permute.xlu0 %2986
        %2988 = vrot.lane.b32.xlu0 %v2951, 127
        %v2989 = vpop.permute.xlu0 %2988
        %2990 = vrot.lane.b32.xlu0 %v2952, 127
        %v2991 = vpop.permute.xlu0 %2990
        %2992 = vrot.lane.b32.xlu0 %v2953, 127
        %v2993 = vpop.permute.xlu0 %2992
        %2994 = vrot.lane.b32.xlu0 %v2954, 127
        %v2995 = vpop.permute.xlu0 %2994
        %2996 = vrot.lane.b32.xlu0 %v2955, 127
        %v2997 = vpop.permute.xlu0 %2996
        %2998 = vrot.lane.b32.xlu0 %v2956, 127
        %v2999 = vpop.permute.xlu0 %2998
        %3000 = vrot.lane.b32.xlu0 %v2957, 127
        %v3001 = vpop.permute.xlu0 %3000
        %3002 = vrot.lane.b32.xlu0 %v2958, 127
        %v3003 = vpop.permute.xlu0 %3002
        %3004 = vrot.lane.b32.xlu0 %v2959, 127
        %v3005 = vpop.permute.xlu0 %3004
        %3006 = vrot.lane.b32.xlu0 %v2960, 127
        %v3007 = vpop.permute.xlu0 %3006
        %3008 = vrot.lane.b32.xlu0 %v2961, 127
        %v3009 = vpop.permute.xlu0 %3008
        %3010 = vrot.lane.b32.xlu0 %v2962, 127
        %v3011 = vpop.permute.xlu0 %3010
        %3012 = vrot.lane.b32.xlu0 %v2963, 127
        %v3013 = vpop.permute.xlu0 %3012
        %3014 = vrot.lane.b32.xlu0 %v2964, 127
        %v3015 = vpop.permute.xlu0 %3014
        %3016 = vrot.lane.b32.xlu0 %v2965, 127
        %v3017 = vpop.permute.xlu0 %3016
        %3018 = vrot.lane.b32.xlu0 %v2966, 127
        %v3019 = vpop.permute.xlu0 %3018
        %3020 = vrot.lane.b32.xlu0 %v2967, 127
        %v3021 = vpop.permute.xlu0 %3020
        %v3022 = vsel %vm491, %v2987, %v2989
        %v3023 = vsel %vm491, %v2989, %v2991
        %v3024 = vsel %vm491, %v2991, %v2993
        %v3025 = vsel %vm491, %v2993, %v2995
        %v3026 = vsel %vm491, %v2995, %v2997
        %v3027 = vsel %vm491, %v2997, %v2999
        %v3028 = vsel %vm491, %v2999, %v3001
        %v3029 = vsel %vm491, %v3001, %v3003
        %v3030 = vsel %vm491, %v3005, %v3007
        %v3031 = vsel %vm491, %v3007, %v3009
        %v3032 = vsel %vm491, %v3009, %v3011
        %v3033 = vsel %vm491, %v3011, %v3013
        %v3034 = vsel %vm491, %v3013, %v3015
        %v3035 = vsel %vm491, %v3015, %v3017
        %v3036 = vsel %vm491, %v3017, %v3019
        %v3037 = vsel %vm491, %v3019, %v3021
        %v3054 = vadd.f32 %v2904, %v3022
        %v3055 = vadd.f32 %v2905, %v3023
        %v3056 = vadd.f32 %v2906, %v3024
        %v3057 = vadd.f32 %v2907, %v3025
        %v3058 = vadd.f32 %v2908, %v3026
        %v3059 = vadd.f32 %v2909, %v3027
        %v3060 = vadd.f32 %v2910, %v3028
        %v3061 = vadd.f32 %v2911, %v3029
        %v3062 = vadd.f32 %v2912, %v3030
        %v3063 = vadd.f32 %v2913, %v3031
        %v3064 = vadd.f32 %v2914, %v3032
        %v3065 = vadd.f32 %v2915, %v3033
        %v3066 = vadd.f32 %v2916, %v3034
        %v3067 = vadd.f32 %v2917, %v3035
        %v3068 = vadd.f32 %v2918, %v3036
        %v3069 = vadd.f32 %v2919, %v3037
        %3070 = vset.pattern.permute.xlu0 22
        %3071 = vperm.xlu0 %3070, %v328
        %v3072 = vpop.permute.xlu0 %3071
        %3074 = vset.pattern.permute.xlu0 22
        %3075 = vperm.xlu0 %3074, %v329
        %v3076 = vpop.permute.xlu0 %3075
        %v3078 = vmul.f32 %v3072, %v2932
        %v3079 = vmul.f32 %v3072, %v2933
        %v3080 = vmul.f32 %v3072, %v2934
        %v3081 = vmul.f32 %v3072, %v2935
        %v3082 = vmul.f32 %v3072, %v2936
        %v3083 = vmul.f32 %v3072, %v2937
        %v3084 = vmul.f32 %v3072, %v2938
        %v3085 = vmul.f32 %v3072, %v2939
        %v3086 = vmul.f32 %v3072, %v2940
        %v3087 = vmul.f32 %v3076, %v2932
        %v3088 = vmul.f32 %v3076, %v2933
        %v3089 = vmul.f32 %v3076, %v2934
        %v3090 = vmul.f32 %v3076, %v2935
        %v3091 = vmul.f32 %v3076, %v2936
        %v3092 = vmul.f32 %v3076, %v2937
        %v3093 = vmul.f32 %v3076, %v2938
        %v3094 = vmul.f32 %v3076, %v2939
        %v3095 = vmul.f32 %v3076, %v2940
        %3114 = vrot.lane.b32.xlu0 %v3078, 126
        %v3115 = vpop.permute.xlu0 %3114
        %3116 = vrot.lane.b32.xlu0 %v3079, 126
        %v3117 = vpop.permute.xlu0 %3116
        %3118 = vrot.lane.b32.xlu0 %v3080, 126
        %v3119 = vpop.permute.xlu0 %3118
        %3120 = vrot.lane.b32.xlu0 %v3081, 126
        %v3121 = vpop.permute.xlu0 %3120
        %3122 = vrot.lane.b32.xlu0 %v3082, 126
        %v3123 = vpop.permute.xlu0 %3122
        %3124 = vrot.lane.b32.xlu0 %v3083, 126
        %v3125 = vpop.permute.xlu0 %3124
        %3126 = vrot.lane.b32.xlu0 %v3084, 126
        %v3127 = vpop.permute.xlu0 %3126
        %3128 = vrot.lane.b32.xlu0 %v3085, 126
        %v3129 = vpop.permute.xlu0 %3128
        %3130 = vrot.lane.b32.xlu0 %v3086, 126
        %v3131 = vpop.permute.xlu0 %3130
        %3132 = vrot.lane.b32.xlu0 %v3087, 126
        %v3133 = vpop.permute.xlu0 %3132
        %3134 = vrot.lane.b32.xlu0 %v3088, 126
        %v3135 = vpop.permute.xlu0 %3134
        %3136 = vrot.lane.b32.xlu0 %v3089, 126
        %v3137 = vpop.permute.xlu0 %3136
        %3138 = vrot.lane.b32.xlu0 %v3090, 126
        %v3139 = vpop.permute.xlu0 %3138
        %3140 = vrot.lane.b32.xlu0 %v3091, 126
        %v3141 = vpop.permute.xlu0 %3140
        %3142 = vrot.lane.b32.xlu0 %v3092, 126
        %v3143 = vpop.permute.xlu0 %3142
        %3144 = vrot.lane.b32.xlu0 %v3093, 126
        %v3145 = vpop.permute.xlu0 %3144
        %3146 = vrot.lane.b32.xlu0 %v3094, 126
        %v3147 = vpop.permute.xlu0 %3146
        %3148 = vrot.lane.b32.xlu0 %v3095, 126
        %v3149 = vpop.permute.xlu0 %3148
        %v3150 = vsel %vm620, %v3115, %v3117
        %v3151 = vsel %vm620, %v3117, %v3119
        %v3152 = vsel %vm620, %v3119, %v3121
        %v3153 = vsel %vm620, %v3121, %v3123
        %v3154 = vsel %vm620, %v3123, %v3125
        %v3155 = vsel %vm620, %v3125, %v3127
        %v3156 = vsel %vm620, %v3127, %v3129
        %v3157 = vsel %vm620, %v3129, %v3131
        %v3158 = vsel %vm620, %v3133, %v3135
        %v3159 = vsel %vm620, %v3135, %v3137
        %v3160 = vsel %vm620, %v3137, %v3139
        %v3161 = vsel %vm620, %v3139, %v3141
        %v3162 = vsel %vm620, %v3141, %v3143
        %v3163 = vsel %vm620, %v3143, %v3145
        %v3164 = vsel %vm620, %v3145, %v3147
        %v3165 = vsel %vm620, %v3147, %v3149
        %v3182 = vadd.f32 %v3054, %v3150
        %v3183 = vadd.f32 %v3055, %v3151
        %v3184 = vadd.f32 %v3056, %v3152
        %v3185 = vadd.f32 %v3057, %v3153
        %v3186 = vadd.f32 %v3058, %v3154
        %v3187 = vadd.f32 %v3059, %v3155
        %v3188 = vadd.f32 %v3060, %v3156
        %v3189 = vadd.f32 %v3061, %v3157
        %v3190 = vadd.f32 %v3062, %v3158
        %v3191 = vadd.f32 %v3063, %v3159
        %v3192 = vadd.f32 %v3064, %v3160
        %v3193 = vadd.f32 %v3065, %v3161
        %v3194 = vadd.f32 %v3066, %v3162
        %v3195 = vadd.f32 %v3067, %v3163
        %v3196 = vadd.f32 %v3068, %v3164
        %v3197 = vadd.f32 %v3069, %v3165
        %3198 = vset.pattern.permute.xlu0 23
        %3199 = vperm.xlu0 %3198, %v328
        %v3200 = vpop.permute.xlu0 %3199
        %3202 = vset.pattern.permute.xlu0 23
        %3203 = vperm.xlu0 %3202, %v329
        %v3204 = vpop.permute.xlu0 %3203
        %v3206 = vmul.f32 %v3200, %v2932
        %v3207 = vmul.f32 %v3200, %v2933
        %v3208 = vmul.f32 %v3200, %v2934
        %v3209 = vmul.f32 %v3200, %v2935
        %v3210 = vmul.f32 %v3200, %v2936
        %v3211 = vmul.f32 %v3200, %v2937
        %v3212 = vmul.f32 %v3200, %v2938
        %v3213 = vmul.f32 %v3200, %v2939
        %v3214 = vmul.f32 %v3200, %v2940
        %v3215 = vmul.f32 %v3204, %v2932
        %v3216 = vmul.f32 %v3204, %v2933
        %v3217 = vmul.f32 %v3204, %v2934
        %v3218 = vmul.f32 %v3204, %v2935
        %v3219 = vmul.f32 %v3204, %v2936
        %v3220 = vmul.f32 %v3204, %v2937
        %v3221 = vmul.f32 %v3204, %v2938
        %v3222 = vmul.f32 %v3204, %v2939
        %v3223 = vmul.f32 %v3204, %v2940
        %3242 = vrot.lane.b32.xlu0 %v3206, 125
        %v3243 = vpop.permute.xlu0 %3242
        %3244 = vrot.lane.b32.xlu0 %v3207, 125
        %v3245 = vpop.permute.xlu0 %3244
        %3246 = vrot.lane.b32.xlu0 %v3208, 125
        %v3247 = vpop.permute.xlu0 %3246
        %3248 = vrot.lane.b32.xlu0 %v3209, 125
        %v3249 = vpop.permute.xlu0 %3248
        %3250 = vrot.lane.b32.xlu0 %v3210, 125
        %v3251 = vpop.permute.xlu0 %3250
        %3252 = vrot.lane.b32.xlu0 %v3211, 125
        %v3253 = vpop.permute.xlu0 %3252
        %3254 = vrot.lane.b32.xlu0 %v3212, 125
        %v3255 = vpop.permute.xlu0 %3254
        %3256 = vrot.lane.b32.xlu0 %v3213, 125
        %v3257 = vpop.permute.xlu0 %3256
        %3258 = vrot.lane.b32.xlu0 %v3214, 125
        %v3259 = vpop.permute.xlu0 %3258
        %3260 = vrot.lane.b32.xlu0 %v3215, 125
        %v3261 = vpop.permute.xlu0 %3260
        %3262 = vrot.lane.b32.xlu0 %v3216, 125
        %v3263 = vpop.permute.xlu0 %3262
        %3264 = vrot.lane.b32.xlu0 %v3217, 125
        %v3265 = vpop.permute.xlu0 %3264
        %3266 = vrot.lane.b32.xlu0 %v3218, 125
        %v3267 = vpop.permute.xlu0 %3266
        %3268 = vrot.lane.b32.xlu0 %v3219, 125
        %v3269 = vpop.permute.xlu0 %3268
        %3270 = vrot.lane.b32.xlu0 %v3220, 125
        %v3271 = vpop.permute.xlu0 %3270
        %3272 = vrot.lane.b32.xlu0 %v3221, 125
        %v3273 = vpop.permute.xlu0 %3272
        %3274 = vrot.lane.b32.xlu0 %v3222, 125
        %v3275 = vpop.permute.xlu0 %3274
        %3276 = vrot.lane.b32.xlu0 %v3223, 125
        %v3277 = vpop.permute.xlu0 %3276
        %v3278 = vsel %vm749, %v3243, %v3245
        %v3279 = vsel %vm749, %v3245, %v3247
        %v3280 = vsel %vm749, %v3247, %v3249
        %v3281 = vsel %vm749, %v3249, %v3251
        %v3282 = vsel %vm749, %v3251, %v3253
        %v3283 = vsel %vm749, %v3253, %v3255
        %v3284 = vsel %vm749, %v3255, %v3257
        %v3285 = vsel %vm749, %v3257, %v3259
        %v3286 = vsel %vm749, %v3261, %v3263
        %v3287 = vsel %vm749, %v3263, %v3265
        %v3288 = vsel %vm749, %v3265, %v3267
        %v3289 = vsel %vm749, %v3267, %v3269
        %v3290 = vsel %vm749, %v3269, %v3271
        %v3291 = vsel %vm749, %v3271, %v3273
        %v3292 = vsel %vm749, %v3273, %v3275
        %v3293 = vsel %vm749, %v3275, %v3277
        %v3310 = vadd.f32 %v3182, %v3278
        %v3311 = vadd.f32 %v3183, %v3279
        %v3312 = vadd.f32 %v3184, %v3280
        %v3313 = vadd.f32 %v3185, %v3281
        %v3314 = vadd.f32 %v3186, %v3282
        %v3315 = vadd.f32 %v3187, %v3283
        %v3316 = vadd.f32 %v3188, %v3284
        %v3317 = vadd.f32 %v3189, %v3285
        %v3318 = vadd.f32 %v3190, %v3286
        %v3319 = vadd.f32 %v3191, %v3287
        %v3320 = vadd.f32 %v3192, %v3288
        %v3321 = vadd.f32 %v3193, %v3289
        %v3322 = vadd.f32 %v3194, %v3290
        %v3323 = vadd.f32 %v3195, %v3291
        %v3324 = vadd.f32 %v3196, %v3292
        %v3325 = vadd.f32 %v3197, %v3293
        %3326 = vset.pattern.permute.xlu0 24
        %3327 = vperm.xlu0 %3326, %v328
        %v3328 = vpop.permute.xlu0 %3327
        %3330 = vset.pattern.permute.xlu0 24
        %3331 = vperm.xlu0 %3330, %v329
        %v3332 = vpop.permute.xlu0 %3331
        %v3334 = vmul.f32 %v3328, %v2932
        %v3335 = vmul.f32 %v3328, %v2933
        %v3336 = vmul.f32 %v3328, %v2934
        %v3337 = vmul.f32 %v3328, %v2935
        %v3338 = vmul.f32 %v3328, %v2936
        %v3339 = vmul.f32 %v3328, %v2937
        %v3340 = vmul.f32 %v3328, %v2938
        %v3341 = vmul.f32 %v3328, %v2939
        %v3342 = vmul.f32 %v3328, %v2940
        %v3343 = vmul.f32 %v3332, %v2932
        %v3344 = vmul.f32 %v3332, %v2933
        %v3345 = vmul.f32 %v3332, %v2934
        %v3346 = vmul.f32 %v3332, %v2935
        %v3347 = vmul.f32 %v3332, %v2936
        %v3348 = vmul.f32 %v3332, %v2937
        %v3349 = vmul.f32 %v3332, %v2938
        %v3350 = vmul.f32 %v3332, %v2939
        %v3351 = vmul.f32 %v3332, %v2940
        %3370 = vrot.lane.b32.xlu0 %v3334, 124
        %v3371 = vpop.permute.xlu0 %3370
        %3372 = vrot.lane.b32.xlu0 %v3335, 124
        %v3373 = vpop.permute.xlu0 %3372
        %3374 = vrot.lane.b32.xlu0 %v3336, 124
        %v3375 = vpop.permute.xlu0 %3374
        %3376 = vrot.lane.b32.xlu0 %v3337, 124
        %v3377 = vpop.permute.xlu0 %3376
        %3378 = vrot.lane.b32.xlu0 %v3338, 124
        %v3379 = vpop.permute.xlu0 %3378
        %3380 = vrot.lane.b32.xlu0 %v3339, 124
        %v3381 = vpop.permute.xlu0 %3380
        %3382 = vrot.lane.b32.xlu0 %v3340, 124
        %v3383 = vpop.permute.xlu0 %3382
        %3384 = vrot.lane.b32.xlu0 %v3341, 124
        %v3385 = vpop.permute.xlu0 %3384
        %3386 = vrot.lane.b32.xlu0 %v3342, 124
        %v3387 = vpop.permute.xlu0 %3386
        %3388 = vrot.lane.b32.xlu0 %v3343, 124
        %v3389 = vpop.permute.xlu0 %3388
        %3390 = vrot.lane.b32.xlu0 %v3344, 124
        %v3391 = vpop.permute.xlu0 %3390
        %3392 = vrot.lane.b32.xlu0 %v3345, 124
        %v3393 = vpop.permute.xlu0 %3392
        %3394 = vrot.lane.b32.xlu0 %v3346, 124
        %v3395 = vpop.permute.xlu0 %3394
        %3396 = vrot.lane.b32.xlu0 %v3347, 124
        %v3397 = vpop.permute.xlu0 %3396
        %3398 = vrot.lane.b32.xlu0 %v3348, 124
        %v3399 = vpop.permute.xlu0 %3398
        %3400 = vrot.lane.b32.xlu0 %v3349, 124
        %v3401 = vpop.permute.xlu0 %3400
        %3402 = vrot.lane.b32.xlu0 %v3350, 124
        %v3403 = vpop.permute.xlu0 %3402
        %3404 = vrot.lane.b32.xlu0 %v3351, 124
        %v3405 = vpop.permute.xlu0 %3404
        %v3406 = vsel %vm878, %v3371, %v3373
        %v3407 = vsel %vm878, %v3373, %v3375
        %v3408 = vsel %vm878, %v3375, %v3377
        %v3409 = vsel %vm878, %v3377, %v3379
        %v3410 = vsel %vm878, %v3379, %v3381
        %v3411 = vsel %vm878, %v3381, %v3383
        %v3412 = vsel %vm878, %v3383, %v3385
        %v3413 = vsel %vm878, %v3385, %v3387
        %v3414 = vsel %vm878, %v3389, %v3391
        %v3415 = vsel %vm878, %v3391, %v3393
        %v3416 = vsel %vm878, %v3393, %v3395
        %v3417 = vsel %vm878, %v3395, %v3397
        %v3418 = vsel %vm878, %v3397, %v3399
        %v3419 = vsel %vm878, %v3399, %v3401
        %v3420 = vsel %vm878, %v3401, %v3403
        %v3421 = vsel %vm878, %v3403, %v3405
        %v3438 = vadd.f32 %v3310, %v3406
        %v3439 = vadd.f32 %v3311, %v3407
        %v3440 = vadd.f32 %v3312, %v3408
        %v3441 = vadd.f32 %v3313, %v3409
        %v3442 = vadd.f32 %v3314, %v3410
        %v3443 = vadd.f32 %v3315, %v3411
        %v3444 = vadd.f32 %v3316, %v3412
        %v3445 = vadd.f32 %v3317, %v3413
        %v3446 = vadd.f32 %v3318, %v3414
        %v3447 = vadd.f32 %v3319, %v3415
        %v3448 = vadd.f32 %v3320, %v3416
        %v3449 = vadd.f32 %v3321, %v3417
        %v3450 = vadd.f32 %v3322, %v3418
        %v3451 = vadd.f32 %v3323, %v3419
        %v3452 = vadd.f32 %v3324, %v3420
        %v3453 = vadd.f32 %v3325, %v3421
        %v3454 = vld [vmem:[%s2] sm:$0xff]
        %v3455 = vld [vmem:[%s2 + $0x8] sm:$0xff]
        %3457 = vset.pattern.permute.xlu0 0
        %3458 = vperm.xlu0 %3457, %v3454
        %v3459 = vpop.permute.xlu0 %3458
        %3462 = vset.pattern.permute.xlu0 0
        %3463 = vperm.xlu0 %3462, %v3455
        %v3464 = vpop.permute.xlu0 %3463
        %v3466 = vadd.f32 %v3438, %v3459
        %v3467 = vadd.f32 %v3439, %v3459
        %v3468 = vadd.f32 %v3440, %v3459
        %v3469 = vadd.f32 %v3441, %v3459
        %v3470 = vadd.f32 %v3442, %v3459
        %v3471 = vadd.f32 %v3443, %v3459
        %v3472 = vadd.f32 %v3444, %v3459
        %v3473 = vadd.f32 %v3445, %v3459
        %v3474 = vadd.f32 %v3446, %v3464
        %v3475 = vadd.f32 %v3447, %v3464
        %v3476 = vadd.f32 %v3448, %v3464
        %v3477 = vadd.f32 %v3449, %v3464
        %v3478 = vadd.f32 %v3450, %v3464
        %v3479 = vadd.f32 %v3451, %v3464
        %v3480 = vadd.f32 %v3452, %v3464
        %v3481 = vadd.f32 %v3453, %v3464
        %v3482 = vmax.f32 %v3466, 0.0
        %v3483 = vmax.f32 %v3467, 0.0
        %v3484 = vmax.f32 %v3468, 0.0
        %v3485 = vmax.f32 %v3469, 0.0
        %v3486 = vmax.f32 %v3470, 0.0
        %v3487 = vmax.f32 %v3471, 0.0
        %v3488 = vmax.f32 %v3472, 0.0
        %v3489 = vmax.f32 %v3473, 0.0
        %v3490 = vmax.f32 %v3474, 0.0
        %v3491 = vmax.f32 %v3475, 0.0
        %v3492 = vmax.f32 %v3476, 0.0
        %v3493 = vmax.f32 %v3477, 0.0
        %v3494 = vmax.f32 %v3478, 0.0
        %v3495 = vmax.f32 %v3479, 0.0
        %v3496 = vmax.f32 %v3480, 0.0
        %v3497 = vmax.f32 %v3481, 0.0
        %3514 = vrot.lane.b32.xlu0 %v3482, 127
        %v3515 = vpop.permute.xlu0 %3514
        %3516 = vrot.lane.b32.xlu0 %v3483, 127
        %v3517 = vpop.permute.xlu0 %3516
        %3518 = vrot.lane.b32.xlu0 %v3484, 127
        %v3519 = vpop.permute.xlu0 %3518
        %3520 = vrot.lane.b32.xlu0 %v3485, 127
        %v3521 = vpop.permute.xlu0 %3520
        %3522 = vrot.lane.b32.xlu0 %v3486, 127
        %v3523 = vpop.permute.xlu0 %3522
        %3524 = vrot.lane.b32.xlu0 %v3487, 127
        %v3525 = vpop.permute.xlu0 %3524
        %3526 = vrot.lane.b32.xlu0 %v3488, 127
        %v3527 = vpop.permute.xlu0 %3526
        %3528 = vrot.lane.b32.xlu0 %v3489, 127
        %v3529 = vpop.permute.xlu0 %3528
        %3530 = vrot.lane.b32.xlu0 %v3490, 127
        %v3531 = vpop.permute.xlu0 %3530
        %3532 = vrot.lane.b32.xlu0 %v3491, 127
        %v3533 = vpop.permute.xlu0 %3532
        %3534 = vrot.lane.b32.xlu0 %v3492, 127
        %v3535 = vpop.permute.xlu0 %3534
        %3536 = vrot.lane.b32.xlu0 %v3493, 127
        %v3537 = vpop.permute.xlu0 %3536
        %3538 = vrot.lane.b32.xlu0 %v3494, 127
        %v3539 = vpop.permute.xlu0 %3538
        %3540 = vrot.lane.b32.xlu0 %v3495, 127
        %v3541 = vpop.permute.xlu0 %3540
        %3542 = vrot.lane.b32.xlu0 %v3496, 127
        %v3543 = vpop.permute.xlu0 %3542
        %3544 = vrot.lane.b32.xlu0 %v3497, 127
        %v3545 = vpop.permute.xlu0 %3544
        %v3546 = vsel %vm491, %v3515, %v3517
        %v3547 = vsel %vm491, %v3517, %v3519
        %v3548 = vsel %vm491, %v3519, %v3521
        %v3549 = vsel %vm491, %v3521, %v3523
        %v3550 = vsel %vm491, %v3523, %v3525
        %v3551 = vsel %vm491, %v3525, %v3527
        %v3552 = vsel %vm491, %v3527, %v3529
        %v3553 = vsel %vm491, %v3531, %v3533
        %v3554 = vsel %vm491, %v3533, %v3535
        %v3555 = vsel %vm491, %v3535, %v3537
        %v3556 = vsel %vm491, %v3537, %v3539
        %v3557 = vsel %vm491, %v3539, %v3541
        %v3558 = vsel %vm491, %v3541, %v3543
        %v3559 = vsel %vm491, %v3543, %v3545
        %v3576 = vmax.f32 %v3482, %v3546
        %v3577 = vmax.f32 %v3483, %v3547
        %v3578 = vmax.f32 %v3484, %v3548
        %v3579 = vmax.f32 %v3485, %v3549
        %v3580 = vmax.f32 %v3486, %v3550
        %v3581 = vmax.f32 %v3487, %v3551
        %v3582 = vmax.f32 %v3488, %v3552
        %v3583 = vmax.f32 %v3489, %v3529
        %v3584 = vmax.f32 %v3490, %v3553
        %v3585 = vmax.f32 %v3491, %v3554
        %v3586 = vmax.f32 %v3492, %v3555
        %v3587 = vmax.f32 %v3493, %v3556
        %v3588 = vmax.f32 %v3494, %v3557
        %v3589 = vmax.f32 %v3495, %v3558
        %v3590 = vmax.f32 %v3496, %v3559
        %v3591 = vmax.f32 %v3497, %v3545
        %3608 = vrot.lane.b32.xlu0 %v3576, 96
        %v3609 = vpop.permute.xlu0 %3608
        %3610 = vrot.lane.b32.xlu0 %v3577, 96
        %v3611 = vpop.permute.xlu0 %3610
        %3612 = vrot.lane.b32.xlu0 %v3578, 96
        %v3613 = vpop.permute.xlu0 %3612
        %3614 = vrot.lane.b32.xlu0 %v3579, 96
        %v3615 = vpop.permute.xlu0 %3614
        %3616 = vrot.lane.b32.xlu0 %v3580, 96
        %v3617 = vpop.permute.xlu0 %3616
        %3618 = vrot.lane.b32.xlu0 %v3581, 96
        %v3619 = vpop.permute.xlu0 %3618
        %3620 = vrot.lane.b32.xlu0 %v3582, 96
        %v3621 = vpop.permute.xlu0 %3620
        %3622 = vrot.lane.b32.xlu0 %v3583, 96
        %v3623 = vpop.permute.xlu0 %3622
        %3624 = vrot.lane.b32.xlu0 %v3584, 96
        %v3625 = vpop.permute.xlu0 %3624
        %3626 = vrot.lane.b32.xlu0 %v3585, 96
        %v3627 = vpop.permute.xlu0 %3626
        %3628 = vrot.lane.b32.xlu0 %v3586, 96
        %v3629 = vpop.permute.xlu0 %3628
        %3630 = vrot.lane.b32.xlu0 %v3587, 96
        %v3631 = vpop.permute.xlu0 %3630
        %3632 = vrot.lane.b32.xlu0 %v3588, 96
        %v3633 = vpop.permute.xlu0 %3632
        %3634 = vrot.lane.b32.xlu0 %v3589, 96
        %v3635 = vpop.permute.xlu0 %3634
        %3636 = vrot.lane.b32.xlu0 %v3590, 96
        %v3637 = vpop.permute.xlu0 %3636
        %3638 = vrot.lane.b32.xlu0 %v3591, 96
        %v3639 = vpop.permute.xlu0 %3638
        %v3640 = vsel %vm1007, %v3609, %v3611
        %v3641 = vsel %vm1007, %v3611, %v3613
        %v3642 = vsel %vm1007, %v3613, %v3615
        %v3643 = vsel %vm1007, %v3615, %v3617
        %v3644 = vsel %vm1007, %v3617, %v3619
        %v3645 = vsel %vm1007, %v3619, %v3621
        %v3646 = vsel %vm1007, %v3621, %v3623
        %v3647 = vsel %vm1007, %v3625, %v3627
        %v3648 = vsel %vm1007, %v3627, %v3629
        %v3649 = vsel %vm1007, %v3629, %v3631
        %v3650 = vsel %vm1007, %v3631, %v3633
        %v3651 = vsel %vm1007, %v3633, %v3635
        %v3652 = vsel %vm1007, %v3635, %v3637
        %v3653 = vsel %vm1007, %v3637, %v3639
        %v3670 = vmax.f32 %v3576, %v3640
        %v3671 = vmax.f32 %v3577, %v3641
        %v3672 = vmax.f32 %v3578, %v3642
        %v3673 = vmax.f32 %v3579, %v3643
        %v3674 = vmax.f32 %v3580, %v3644
        %v3675 = vmax.f32 %v3581, %v3645
        %v3676 = vmax.f32 %v3582, %v3646
        %v3677 = vmax.f32 %v3583, %v3623
        %v3678 = vmax.f32 %v3584, %v3647
        %v3679 = vmax.f32 %v3585, %v3648
        %v3680 = vmax.f32 %v3586, %v3649
        %v3681 = vmax.f32 %v3587, %v3650
        %v3682 = vmax.f32 %v3588, %v3651
        %v3683 = vmax.f32 %v3589, %v3652
        %v3684 = vmax.f32 %v3590, %v3653
        %v3685 = vmax.f32 %v3591, %v3639
        %v3686 = vld [vmem:[%s5] sm:$0xff]
        %v3687 = vld [vmem:[%s5 + $0x8] sm:$0xff]
        %v3688 = vld [vmem:[%s5 + $0x10] sm:$0xff]
        %v3689 = vld [vmem:[%s5 + $0x18] sm:$0xff]
        %v3690 = vld [vmem:[%s5 + $0x20] sm:$0xff]
        %v3691 = vld [vmem:[%s5 + $0x28] sm:$0xff]
        %v3692 = vld [vmem:[%s5 + $0x30] sm:$0xff]
        %v3693 = vld [vmem:[%s5 + $0x38] sm:$0xff]
        %v3694 = vld [vmem:[%s5 + $0x40] sm:$0xff]
        %v3695 = vld [vmem:[%s5 + $0x48] sm:$0xff]
        %v3696 = vld [vmem:[%s5 + $0x50] sm:$0xff]
        %v3697 = vld [vmem:[%s5 + $0x58] sm:$0xff]
        %v3698 = vld [vmem:[%s5 + $0x60] sm:$0xff]
        %v3699 = vld [vmem:[%s5 + $0x68] sm:$0xff]
        %v3700 = vld [vmem:[%s5 + $0x70] sm:$0xff]
        %v3701 = vld [vmem:[%s5 + $0x78] sm:$0xff]
        %v3702 = vld [vmem:[%s5 + $0x80] sm:$0xff]
        %v3703 = vld [vmem:[%s5 + $0x88] sm:$0xff]
        %v3704 = vld [vmem:[%s5 + $0x90] sm:$0xff]
        %v3705 = vld [vmem:[%s5 + $0x98] sm:$0xff]
        %v3706 = vld [vmem:[%s5 + $0xa0] sm:$0xff]
        %v3707 = vld [vmem:[%s5 + $0xa8] sm:$0xff]
        %v3708 = vld [vmem:[%s5 + $0xb0] sm:$0xff]
        %v3709 = vld [vmem:[%s5 + $0xb8] sm:$0xff]
        %v3710 = vld [vmem:[%s5 + $0xc0] sm:$0xff]
        %v3711 = vld [vmem:[%s5 + $0xc8] sm:$0xff]
        %v3712 = vld [vmem:[%s5 + $0xd0] sm:$0xff]
        %v3713 = vld [vmem:[%s5 + $0xd8] sm:$0xff]
        %v3714 = vld [vmem:[%s5 + $0xe0] sm:$0xff]
        %v3715 = vld [vmem:[%s5 + $0xe8] sm:$0xff]
        %v3716 = vld [vmem:[%s5 + $0xf0] sm:$0xff]
        %v3717 = vld [vmem:[%s5 + $0xf8] sm:$0xff]
        %v3718 = vld [vmem:[%s5 + $0x100] sm:$0xff]
        %v3719 = vld [vmem:[%s5 + $0x108] sm:$0xff]
        %v3720 = vld [vmem:[%s5 + $0x110] sm:$0xff]
        %v3721 = vld [vmem:[%s5 + $0x118] sm:$0xff]
        %v3722 = vld [vmem:[%s5 + $0x120] sm:$0xff]
        %v3723 = vld [vmem:[%s5 + $0x128] sm:$0xff]
        %v3724 = vld [vmem:[%s5 + $0x130] sm:$0xff]
        %v3725 = vld [vmem:[%s5 + $0x138] sm:$0xff]
        %v3726 = vld [vmem:[%s5 + $0x140] sm:$0xff]
        %v3727 = vld [vmem:[%s5 + $0x148] sm:$0xff]
        %v3728 = vld [vmem:[%s5 + $0x150] sm:$0xff]
        %v3729 = vld [vmem:[%s5 + $0x158] sm:$0xff]
        %v3730 = vld [vmem:[%s5 + $0x160] sm:$0xff]
        %v3731 = vld [vmem:[%s5 + $0x168] sm:$0xff]
        %v3732 = vld [vmem:[%s5 + $0x170] sm:$0xff]
        %v3733 = vld [vmem:[%s5 + $0x178] sm:$0xff]
        %v3734 = vld [vmem:[%s5 + $0x180] sm:$0xff]
        %v3735 = vld [vmem:[%s5 + $0x188] sm:$0xff]
        %v3736 = vld [vmem:[%s5 + $0x190] sm:$0xff]
        %v3737 = vld [vmem:[%s5 + $0x198] sm:$0xff]
        %v3738 = vld [vmem:[%s5 + $0x1a0] sm:$0xff]
        %v3739 = vld [vmem:[%s5 + $0x1a8] sm:$0xff]
        %v3740 = vld [vmem:[%s5 + $0x1b0] sm:$0xff]
        %v3741 = vld [vmem:[%s5 + $0x1b8] sm:$0xff]
        %v3742 = vld [vmem:[%s5 + $0x1c0] sm:$0xff]
        %v3743 = vld [vmem:[%s5 + $0x1c8] sm:$0xff]
        %v3744 = vld [vmem:[%s5 + $0x1d0] sm:$0xff]
        %v3745 = vld [vmem:[%s5 + $0x1d8] sm:$0xff]
        %v3746 = vld [vmem:[%s5 + $0x1e0] sm:$0xff]
        %v3747 = vld [vmem:[%s5 + $0x1e8] sm:$0xff]
        %v3748 = vld [vmem:[%s5 + $0x1f0] sm:$0xff]
        %v3749 = vld [vmem:[%s5 + $0x1f8] sm:$0xff]
        %v3750 = vld [vmem:[%s5 + $0x200] sm:$0xff]
        %v3751 = vld [vmem:[%s5 + $0x208] sm:$0xff]
        %v3752 = vld [vmem:[%s5 + $0x210] sm:$0xff]
        %v3753 = vld [vmem:[%s5 + $0x218] sm:$0xff]
        %v3754 = vld [vmem:[%s5 + $0x220] sm:$0xff]
        %v3755 = vld [vmem:[%s5 + $0x228] sm:$0xff]
        %v3756 = vld [vmem:[%s5 + $0x230] sm:$0xff]
        %v3757 = vld [vmem:[%s5 + $0x238] sm:$0xff]
        %v3758 = vld [vmem:[%s5 + $0x240] sm:$0xff]
        %v3759 = vld [vmem:[%s5 + $0x248] sm:$0xff]
        %v3760 = vld [vmem:[%s5 + $0x250] sm:$0xff]
        %v3761 = vld [vmem:[%s5 + $0x258] sm:$0xff]
        %v3762 = vld [vmem:[%s5 + $0x260] sm:$0xff]
        %v3763 = vld [vmem:[%s5 + $0x268] sm:$0xff]
        %v3764 = vld [vmem:[%s5 + $0x270] sm:$0xff]
        %v3765 = vld [vmem:[%s5 + $0x278] sm:$0xff]
        %v3766 = vld [vmem:[%s5 + $0x280] sm:$0xff]
        %v3767 = vld [vmem:[%s5 + $0x288] sm:$0xff]
        %v3768 = vld [vmem:[%s5 + $0x290] sm:$0xff]
        %v3769 = vld [vmem:[%s5 + $0x298] sm:$0xff]
        %v3770 = vld [vmem:[%s5 + $0x2a0] sm:$0xff]
        %v3771 = vld [vmem:[%s5 + $0x2a8] sm:$0xff]
        %v3772 = vld [vmem:[%s5 + $0x2b0] sm:$0xff]
        %v3773 = vld [vmem:[%s5 + $0x2b8] sm:$0xff]
        %v3774 = vld [vmem:[%s5 + $0x2c0] sm:$0xff]
        %v3775 = vld [vmem:[%s5 + $0x2c8] sm:$0xff]
        %v3776 = vld [vmem:[%s5 + $0x2d0] sm:$0xff]
        %v3777 = vld [vmem:[%s5 + $0x2d8] sm:$0xff]
        %v3778 = vld [vmem:[%s5 + $0x2e0] sm:$0xff]
        %v3779 = vld [vmem:[%s5 + $0x2e8] sm:$0xff]
        %v3780 = vld [vmem:[%s5 + $0x2f0] sm:$0xff]
        %v3781 = vld [vmem:[%s5 + $0x2f8] sm:$0xff]
        %v3782 = vld [vmem:[%s5 + $0x300] sm:$0xff]
        %v3783 = vld [vmem:[%s5 + $0x308] sm:$0xff]
        %v3784 = vld [vmem:[%s5 + $0x310] sm:$0xff]
        %v3785 = vld [vmem:[%s5 + $0x318] sm:$0xff]
        %v3786 = vld [vmem:[%s5 + $0x320] sm:$0xff]
        %v3787 = vld [vmem:[%s5 + $0x328] sm:$0xff]
        %v3788 = vld [vmem:[%s5 + $0x330] sm:$0xff]
        %v3789 = vld [vmem:[%s5 + $0x338] sm:$0xff]
        %v3790 = vld [vmem:[%s5 + $0x340] sm:$0xff]
        %v3791 = vld [vmem:[%s5 + $0x348] sm:$0xff]
        %v3792 = vld [vmem:[%s5 + $0x350] sm:$0xff]
        %v3793 = vld [vmem:[%s5 + $0x358] sm:$0xff]
        %v3794 = vld [vmem:[%s5 + $0x360] sm:$0xff]
        %v3795 = vld [vmem:[%s5 + $0x368] sm:$0xff]
        %v3796 = vld [vmem:[%s5 + $0x370] sm:$0xff]
        %v3797 = vld [vmem:[%s5 + $0x378] sm:$0xff]
        %v3798 = vld [vmem:[%s5 + $0x380] sm:$0xff]
        %v3799 = vld [vmem:[%s5 + $0x388] sm:$0xff]
        %v3800 = vld [vmem:[%s5 + $0x390] sm:$0xff]
        %v3801 = vld [vmem:[%s5 + $0x398] sm:$0xff]
        %v3802 = vld [vmem:[%s5 + $0x3a0] sm:$0xff]
        %v3803 = vld [vmem:[%s5 + $0x3a8] sm:$0xff]
        %v3804 = vld [vmem:[%s5 + $0x3b0] sm:$0xff]
        %v3805 = vld [vmem:[%s5 + $0x3b8] sm:$0xff]
        %v3806 = vld [vmem:[%s5 + $0x3c0] sm:$0xff]
        %v3807 = vld [vmem:[%s5 + $0x3c8] sm:$0xff]
        %v3808 = vld [vmem:[%s5 + $0x3d0] sm:$0xff]
        %v3809 = vld [vmem:[%s5 + $0x3d8] sm:$0xff]
        %v3810 = vld [vmem:[%s5 + $0x3e0] sm:$0xff]
        %v3811 = vld [vmem:[%s5 + $0x3e8] sm:$0xff]
        %v3812 = vld [vmem:[%s5 + $0x3f0] sm:$0xff]
        %v3813 = vld [vmem:[%s5 + $0x3f8] sm:$0xff]
        %v3814 = vld [vmem:[%s5 + $0x400] sm:$0xff]
        %v3815 = vld [vmem:[%s5 + $0x408] sm:$0xff]
        %v3816 = vld [vmem:[%s5 + $0x410] sm:$0xff]
        %v3817 = vld [vmem:[%s5 + $0x418] sm:$0xff]
        %v3818 = vld [vmem:[%s5 + $0x420] sm:$0xff]
        %v3819 = vld [vmem:[%s5 + $0x428] sm:$0xff]
        %v3820 = vld [vmem:[%s5 + $0x430] sm:$0xff]
        %v3821 = vld [vmem:[%s5 + $0x438] sm:$0xff]
        %v3822 = vld [vmem:[%s5 + $0x440] sm:$0xff]
        %v3823 = vld [vmem:[%s5 + $0x448] sm:$0xff]
        %v3824 = vld [vmem:[%s5 + $0x450] sm:$0xff]
        %v3825 = vld [vmem:[%s5 + $0x458] sm:$0xff]
        %v3826 = vld [vmem:[%s5 + $0x460] sm:$0xff]
        %v3827 = vld [vmem:[%s5 + $0x468] sm:$0xff]
        %v3828 = vld [vmem:[%s5 + $0x470] sm:$0xff]
        %v3829 = vld [vmem:[%s5 + $0x478] sm:$0xff]
        %v3830 = vld [vmem:[%s5 + $0x480] sm:$0xff]
        %v3831 = vld [vmem:[%s5 + $0x488] sm:$0xff]
        %v3832 = vld [vmem:[%s5 + $0x490] sm:$0xff]
        %v3833 = vld [vmem:[%s5 + $0x498] sm:$0xff]
        %v3834 = vld [vmem:[%s5 + $0x4a0] sm:$0xff]
        %v3835 = vld [vmem:[%s5 + $0x4a8] sm:$0xff]
        %v3836 = vld [vmem:[%s5 + $0x4b0] sm:$0xff]
        %v3837 = vld [vmem:[%s5 + $0x4b8] sm:$0xff]
        %v3838 = vld [vmem:[%s5 + $0x4c0] sm:$0xff]
        %v3839 = vld [vmem:[%s5 + $0x4c8] sm:$0xff]
        %v3840 = vld [vmem:[%s5 + $0x4d0] sm:$0xff]
        %v3841 = vld [vmem:[%s5 + $0x4d8] sm:$0xff]
        %v3842 = vld [vmem:[%s5 + $0x4e0] sm:$0xff]
        %v3843 = vld [vmem:[%s5 + $0x4e8] sm:$0xff]
        %v3844 = vld [vmem:[%s5 + $0x4f0] sm:$0xff]
        %v3845 = vld [vmem:[%s5 + $0x4f8] sm:$0xff]
        %v3846 = vld [vmem:[%s5 + $0x500] sm:$0xff]
        %v3847 = vld [vmem:[%s5 + $0x508] sm:$0xff]
        %v3848 = vld [vmem:[%s5 + $0x510] sm:$0xff]
        %v3849 = vld [vmem:[%s5 + $0x518] sm:$0xff]
        %v3850 = vld [vmem:[%s5 + $0x520] sm:$0xff]
        %v3851 = vld [vmem:[%s5 + $0x528] sm:$0xff]
        %v3852 = vld [vmem:[%s5 + $0x530] sm:$0xff]
        %v3853 = vld [vmem:[%s5 + $0x538] sm:$0xff]
        %v3854 = vld [vmem:[%s5 + $0x540] sm:$0xff]
        %v3855 = vld [vmem:[%s5 + $0x548] sm:$0xff]
        %v3856 = vld [vmem:[%s5 + $0x550] sm:$0xff]
        %v3857 = vld [vmem:[%s5 + $0x558] sm:$0xff]
        %v3858 = vld [vmem:[%s5 + $0x560] sm:$0xff]
        %v3859 = vld [vmem:[%s5 + $0x568] sm:$0xff]
        %v3860 = vld [vmem:[%s5 + $0x570] sm:$0xff]
        %v3861 = vld [vmem:[%s5 + $0x578] sm:$0xff]
        %v3862 = vld [vmem:[%s5 + $0x580] sm:$0xff]
        %v3863 = vld [vmem:[%s5 + $0x588] sm:$0xff]
        %v3864 = vld [vmem:[%s5 + $0x590] sm:$0xff]
        %v3865 = vld [vmem:[%s5 + $0x598] sm:$0xff]
        %v3866 = vld [vmem:[%s5 + $0x5a0] sm:$0xff]
        %v3867 = vld [vmem:[%s5 + $0x5a8] sm:$0xff]
        %v3868 = vld [vmem:[%s5 + $0x5b0] sm:$0xff]
        %v3869 = vld [vmem:[%s5 + $0x5b8] sm:$0xff]
        %v3870 = vld [vmem:[%s5 + $0x5c0] sm:$0xff]
        %v3871 = vld [vmem:[%s5 + $0x5c8] sm:$0xff]
        %v3872 = vld [vmem:[%s5 + $0x5d0] sm:$0xff]
        %v3873 = vld [vmem:[%s5 + $0x5d8] sm:$0xff]
        %v3874 = vld [vmem:[%s5 + $0x5e0] sm:$0xff]
        %v3875 = vld [vmem:[%s5 + $0x5e8] sm:$0xff]
        %v3876 = vld [vmem:[%s5 + $0x5f0] sm:$0xff]
        %v3877 = vld [vmem:[%s5 + $0x5f8] sm:$0xff]
        %v3878 = vld [vmem:[%s5 + $0x600] sm:$0xff]
        %v3879 = vld [vmem:[%s5 + $0x608] sm:$0xff]
        %v3880 = vld [vmem:[%s5 + $0x610] sm:$0xff]
        %v3881 = vld [vmem:[%s5 + $0x618] sm:$0xff]
        %v3882 = vld [vmem:[%s5 + $0x620] sm:$0xff]
        %v3883 = vld [vmem:[%s5 + $0x628] sm:$0xff]
        %v3884 = vld [vmem:[%s5 + $0x630] sm:$0xff]
        %v3885 = vld [vmem:[%s5 + $0x638] sm:$0xff]
        %v3886 = vld [vmem:[%s5 + $0x640] sm:$0xff]
        %v3887 = vld [vmem:[%s5 + $0x648] sm:$0xff]
        %v3888 = vld [vmem:[%s5 + $0x650] sm:$0xff]
        %v3889 = vld [vmem:[%s5 + $0x658] sm:$0xff]
        %v3890 = vld [vmem:[%s5 + $0x660] sm:$0xff]
        %v3891 = vld [vmem:[%s5 + $0x668] sm:$0xff]
        %v3892 = vld [vmem:[%s5 + $0x670] sm:$0xff]
        %v3893 = vld [vmem:[%s5 + $0x678] sm:$0xff]
        %v3894 = vld [vmem:[%s5 + $0x680] sm:$0xff]
        %v3895 = vld [vmem:[%s5 + $0x688] sm:$0xff]
        %v3896 = vld [vmem:[%s5 + $0x690] sm:$0xff]
        %v3897 = vld [vmem:[%s5 + $0x698] sm:$0xff]
        %v3898 = vld [vmem:[%s5 + $0x6a0] sm:$0xff]
        %v3899 = vld [vmem:[%s5 + $0x6a8] sm:$0xff]
        %v3900 = vld [vmem:[%s5 + $0x6b0] sm:$0xff]
        %v3901 = vld [vmem:[%s5 + $0x6b8] sm:$0xff]
        %v3902 = vld [vmem:[%s5 + $0x6c0] sm:$0xff]
        %v3903 = vld [vmem:[%s5 + $0x6c8] sm:$0xff]
        %v3904 = vld [vmem:[%s5 + $0x6d0] sm:$0xff]
        %v3905 = vld [vmem:[%s5 + $0x6d8] sm:$0xff]
        %v3906 = vld [vmem:[%s5 + $0x6e0] sm:$0xff]
        %v3907 = vld [vmem:[%s5 + $0x6e8] sm:$0xff]
        %v3908 = vld [vmem:[%s5 + $0x6f0] sm:$0xff]
        %v3909 = vld [vmem:[%s5 + $0x6f8] sm:$0xff]
        %v3910 = vld [vmem:[%s5 + $0x700] sm:$0xff]
        %v3911 = vld [vmem:[%s5 + $0x708] sm:$0xff]
        %v3912 = vld [vmem:[%s5 + $0x710] sm:$0xff]
        %v3913 = vld [vmem:[%s5 + $0x718] sm:$0xff]
        %v3914 = vld [vmem:[%s5 + $0x720] sm:$0xff]
        %v3915 = vld [vmem:[%s5 + $0x728] sm:$0xff]
        %v3916 = vld [vmem:[%s5 + $0x730] sm:$0xff]
        %v3917 = vld [vmem:[%s5 + $0x738] sm:$0xff]
        %v3918 = vld [vmem:[%s5 + $0x740] sm:$0xff]
        %v3919 = vld [vmem:[%s5 + $0x748] sm:$0xff]
        %v3920 = vld [vmem:[%s5 + $0x750] sm:$0xff]
        %v3921 = vld [vmem:[%s5 + $0x758] sm:$0xff]
        %v3922 = vld [vmem:[%s5 + $0x760] sm:$0xff]
        %v3923 = vld [vmem:[%s5 + $0x768] sm:$0xff]
        %v3924 = vld [vmem:[%s5 + $0x770] sm:$0xff]
        %v3925 = vld [vmem:[%s5 + $0x778] sm:$0xff]
        %v3926 = vld [vmem:[%s5 + $0x780] sm:$0xff]
        %v3927 = vld [vmem:[%s5 + $0x788] sm:$0xff]
        %v3928 = vld [vmem:[%s5 + $0x790] sm:$0xff]
        %v3929 = vld [vmem:[%s5 + $0x798] sm:$0xff]
        %v3930 = vld [vmem:[%s5 + $0x7a0] sm:$0xff]
        %v3931 = vld [vmem:[%s5 + $0x7a8] sm:$0xff]
        %v3932 = vld [vmem:[%s5 + $0x7b0] sm:$0xff]
        %v3933 = vld [vmem:[%s5 + $0x7b8] sm:$0xff]
        %v3934 = vld [vmem:[%s5 + $0x7c0] sm:$0xff]
        %v3935 = vld [vmem:[%s5 + $0x7c8] sm:$0xff]
        %v3936 = vld [vmem:[%s5 + $0x7d0] sm:$0xff]
        %v3937 = vld [vmem:[%s5 + $0x7d8] sm:$0xff]
        %v3938 = vld [vmem:[%s5 + $0x7e0] sm:$0xff]
        %v3939 = vld [vmem:[%s5 + $0x7e8] sm:$0xff]
        %v3940 = vld [vmem:[%s5 + $0x7f0] sm:$0xff]
        %v3941 = vld [vmem:[%s5 + $0x7f8] sm:$0xff]
        %v3942 = vld [vmem:[%s5 + $0x800] sm:$0xff]
        %v3943 = vld [vmem:[%s5 + $0x808] sm:$0xff]
        %v3944 = vld [vmem:[%s5 + $0x810] sm:$0xff]
        %v3945 = vld [vmem:[%s5 + $0x818] sm:$0xff]
        %v3946 = vld [vmem:[%s5 + $0x820] sm:$0xff]
        %v3947 = vld [vmem:[%s5 + $0x828] sm:$0xff]
        %v3948 = vld [vmem:[%s5 + $0x830] sm:$0xff]
        %v3949 = vld [vmem:[%s5 + $0x838] sm:$0xff]
        %v3950 = vld [vmem:[%s5 + $0x840] sm:$0xff]
        %v3951 = vld [vmem:[%s5 + $0x848] sm:$0xff]
        %v3952 = vld [vmem:[%s5 + $0x850] sm:$0xff]
        %v3953 = vld [vmem:[%s5 + $0x858] sm:$0xff]
        %v3954 = vld [vmem:[%s5 + $0x860] sm:$0xff]
        %v3955 = vld [vmem:[%s5 + $0x868] sm:$0xff]
        %v3956 = vld [vmem:[%s5 + $0x870] sm:$0xff]
        %v3957 = vld [vmem:[%s5 + $0x878] sm:$0xff]
        %v3958 = vld [vmem:[%s5 + $0x880] sm:$0xff]
        %v3959 = vld [vmem:[%s5 + $0x888] sm:$0xff]
        %v3960 = vld [vmem:[%s5 + $0x890] sm:$0xff]
        %v3961 = vld [vmem:[%s5 + $0x898] sm:$0xff]
        %v3962 = vld [vmem:[%s5 + $0x8a0] sm:$0xff]
        %v3963 = vld [vmem:[%s5 + $0x8a8] sm:$0xff]
        %v3964 = vld [vmem:[%s5 + $0x8b0] sm:$0xff]
        %v3965 = vld [vmem:[%s5 + $0x8b8] sm:$0xff]
        %v3966 = vld [vmem:[%s5 + $0x8c0] sm:$0xff]
        %v3967 = vld [vmem:[%s5 + $0x8c8] sm:$0xff]
        %v3968 = vld [vmem:[%s5 + $0x8d0] sm:$0xff]
        %v3969 = vld [vmem:[%s5 + $0x8d8] sm:$0xff]
        %v3970 = vld [vmem:[%s5 + $0x8e0] sm:$0xff]
        %v3971 = vld [vmem:[%s5 + $0x8e8] sm:$0xff]
        %v3972 = vld [vmem:[%s5 + $0x8f0] sm:$0xff]
        %v3973 = vld [vmem:[%s5 + $0x8f8] sm:$0xff]
        %v3974 = vld [vmem:[%s5 + $0x900] sm:$0xff]
        %v3975 = vld [vmem:[%s5 + $0x908] sm:$0xff]
        %v3976 = vld [vmem:[%s5 + $0x910] sm:$0xff]
        %v3977 = vld [vmem:[%s5 + $0x918] sm:$0xff]
        %v3978 = vld [vmem:[%s5 + $0x920] sm:$0xff]
        %v3979 = vld [vmem:[%s5 + $0x928] sm:$0xff]
        %v3980 = vld [vmem:[%s5 + $0x930] sm:$0xff]
        %v3981 = vld [vmem:[%s5 + $0x938] sm:$0xff]
        %v3982 = vld [vmem:[%s5 + $0x940] sm:$0xff]
        %v3983 = vld [vmem:[%s5 + $0x948] sm:$0xff]
        %v3984 = vld [vmem:[%s5 + $0x950] sm:$0xff]
        %v3985 = vld [vmem:[%s5 + $0x958] sm:$0xff]
        %v3986 = vld [vmem:[%s5 + $0x960] sm:$0xff]
        %v3987 = vld [vmem:[%s5 + $0x968] sm:$0xff]
        %v3988 = vld [vmem:[%s5 + $0x970] sm:$0xff]
        %v3989 = vld [vmem:[%s5 + $0x978] sm:$0xff]
        %v3990 = vld [vmem:[%s5 + $0x980] sm:$0xff]
        %v3991 = vld [vmem:[%s5 + $0x988] sm:$0xff]
        %v3992 = vld [vmem:[%s5 + $0x990] sm:$0xff]
        %v3993 = vld [vmem:[%s5 + $0x998] sm:$0xff]
        %v3994 = vld [vmem:[%s5 + $0x9a0] sm:$0xff]
        %v3995 = vld [vmem:[%s5 + $0x9a8] sm:$0xff]
        %v3996 = vld [vmem:[%s5 + $0x9b0] sm:$0xff]
        %v3997 = vld [vmem:[%s5 + $0x9b8] sm:$0xff]
        %v3998 = vld [vmem:[%s5 + $0x9c0] sm:$0xff]
        %v3999 = vld [vmem:[%s5 + $0x9c8] sm:$0xff]
        %v4000 = vld [vmem:[%s5 + $0x9d0] sm:$0xff]
        %v4001 = vld [vmem:[%s5 + $0x9d8] sm:$0xff]
        %v4002 = vld [vmem:[%s5 + $0x9e0] sm:$0xff]
        %v4003 = vld [vmem:[%s5 + $0x9e8] sm:$0xff]
        %v4004 = vld [vmem:[%s5 + $0x9f0] sm:$0xff]
        %v4005 = vld [vmem:[%s5 + $0x9f8] sm:$0xff]
        %v4006 = vld [vmem:[%s5 + $0xa00] sm:$0xff]
        %v4007 = vld [vmem:[%s5 + $0xa08] sm:$0xff]
        %v4008 = vld [vmem:[%s5 + $0xa10] sm:$0xff]
        %v4009 = vld [vmem:[%s5 + $0xa18] sm:$0xff]
        %v4010 = vld [vmem:[%s5 + $0xa20] sm:$0xff]
        %v4011 = vld [vmem:[%s5 + $0xa28] sm:$0xff]
        %v4012 = vld [vmem:[%s5 + $0xa30] sm:$0xff]
        %v4013 = vld [vmem:[%s5 + $0xa38] sm:$0xff]
        %v4014 = vld [vmem:[%s5 + $0xa40] sm:$0xff]
        %v4015 = vld [vmem:[%s5 + $0xa48] sm:$0xff]
        %v4016 = vld [vmem:[%s5 + $0xa50] sm:$0xff]
        %v4017 = vld [vmem:[%s5 + $0xa58] sm:$0xff]
        %v4018 = vld [vmem:[%s5 + $0xa60] sm:$0xff]
        %v4019 = vld [vmem:[%s5 + $0xa68] sm:$0xff]
        %v4020 = vld [vmem:[%s5 + $0xa70] sm:$0xff]
        %v4021 = vld [vmem:[%s5 + $0xa78] sm:$0xff]
        %v4022 = vld [vmem:[%s5 + $0xa80] sm:$0xff]
        %v4023 = vld [vmem:[%s5 + $0xa88] sm:$0xff]
        %v4024 = vld [vmem:[%s5 + $0xa90] sm:$0xff]
        %v4025 = vld [vmem:[%s5 + $0xa98] sm:$0xff]
        %v4026 = vld [vmem:[%s5 + $0xaa0] sm:$0xff]
        %v4027 = vld [vmem:[%s5 + $0xaa8] sm:$0xff]
        %v4028 = vld [vmem:[%s5 + $0xab0] sm:$0xff]
        %v4029 = vld [vmem:[%s5 + $0xab8] sm:$0xff]
        %v4030 = vld [vmem:[%s5 + $0xac0] sm:$0xff]
        %v4031 = vld [vmem:[%s5 + $0xac8] sm:$0xff]
        %v4032 = vld [vmem:[%s5 + $0xad0] sm:$0xff]
        %v4033 = vld [vmem:[%s5 + $0xad8] sm:$0xff]
        %v4034 = vld [vmem:[%s5 + $0xae0] sm:$0xff]
        %v4035 = vld [vmem:[%s5 + $0xae8] sm:$0xff]
        %v4036 = vld [vmem:[%s5 + $0xaf0] sm:$0xff]
        %v4037 = vld [vmem:[%s5 + $0xaf8] sm:$0xff]
        %v4038 = vld [vmem:[%s5 + $0xb00] sm:$0xff]
        %v4039 = vld [vmem:[%s5 + $0xb08] sm:$0xff]
        %v4040 = vld [vmem:[%s5 + $0xb10] sm:$0xff]
        %v4041 = vld [vmem:[%s5 + $0xb18] sm:$0xff]
        %v4042 = vld [vmem:[%s5 + $0xb20] sm:$0xff]
        %v4043 = vld [vmem:[%s5 + $0xb28] sm:$0xff]
        %v4044 = vld [vmem:[%s5 + $0xb30] sm:$0xff]
        %v4045 = vld [vmem:[%s5 + $0xb38] sm:$0xff]
        %v4046 = vld [vmem:[%s5 + $0xb40] sm:$0xff]
        %v4047 = vld [vmem:[%s5 + $0xb48] sm:$0xff]
        %v4048 = vld [vmem:[%s5 + $0xb50] sm:$0xff]
        %v4049 = vld [vmem:[%s5 + $0xb58] sm:$0xff]
        %v4050 = vld [vmem:[%s5 + $0xb60] sm:$0xff]
        %v4051 = vld [vmem:[%s5 + $0xb68] sm:$0xff]
        %v4052 = vld [vmem:[%s5 + $0xb70] sm:$0xff]
        %v4053 = vld [vmem:[%s5 + $0xb78] sm:$0xff]
        %v4054 = vld [vmem:[%s5 + $0xb80] sm:$0xff]
        %v4055 = vld [vmem:[%s5 + $0xb88] sm:$0xff]
        %v4056 = vld [vmem:[%s5 + $0xb90] sm:$0xff]
        %v4057 = vld [vmem:[%s5 + $0xb98] sm:$0xff]
        %v4058 = vld [vmem:[%s5 + $0xba0] sm:$0xff]
        %v4059 = vld [vmem:[%s5 + $0xba8] sm:$0xff]
        %v4060 = vld [vmem:[%s5 + $0xbb0] sm:$0xff]
        %v4061 = vld [vmem:[%s5 + $0xbb8] sm:$0xff]
        %v4062 = vld [vmem:[%s5 + $0xbc0] sm:$0xff]
        %v4063 = vld [vmem:[%s5 + $0xbc8] sm:$0xff]
        %v4064 = vld [vmem:[%s5 + $0xbd0] sm:$0xff]
        %v4065 = vld [vmem:[%s5 + $0xbd8] sm:$0xff]
        %v4066 = vld [vmem:[%s5 + $0xbe0] sm:$0xff]
        %v4067 = vld [vmem:[%s5 + $0xbe8] sm:$0xff]
        %v4068 = vld [vmem:[%s5 + $0xbf0] sm:$0xff]
        %v4069 = vld [vmem:[%s5 + $0xbf8] sm:$0xff]
        %v4070 = vld [vmem:[%s5 + $0xc00] sm:$0xff]
        %v4071 = vld [vmem:[%s5 + $0xc08] sm:$0xff]
        %v4072 = vld [vmem:[%s5 + $0xc10] sm:$0xff]
        %v4073 = vld [vmem:[%s5 + $0xc18] sm:$0xff]
        %v4074 = vld [vmem:[%s5 + $0xc20] sm:$0xff]
        %v4075 = vld [vmem:[%s5 + $0xc28] sm:$0xff]
        %v4076 = vld [vmem:[%s5 + $0xc30] sm:$0xff]
        %v4077 = vld [vmem:[%s5 + $0xc38] sm:$0xff]
        %v4078 = vld [vmem:[%s5 + $0xc40] sm:$0xff]
        %v4079 = vld [vmem:[%s5 + $0xc48] sm:$0xff]
        %v4080 = vld [vmem:[%s5 + $0xc50] sm:$0xff]
        %v4081 = vld [vmem:[%s5 + $0xc58] sm:$0xff]
        %v4082 = vld [vmem:[%s5 + $0xc60] sm:$0xff]
        %v4083 = vld [vmem:[%s5 + $0xc68] sm:$0xff]
        %v4084 = vld [vmem:[%s5 + $0xc70] sm:$0xff]
        %v4085 = vld [vmem:[%s5 + $0xc78] sm:$0xff]
        %v4086 = vld [vmem:[%s5 + $0xc80] sm:$0xff]
        %v4087 = vld [vmem:[%s5 + $0xc88] sm:$0xff]
        %v4088 = vld [vmem:[%s5 + $0xc90] sm:$0xff]
        %v4089 = vld [vmem:[%s5 + $0xc98] sm:$0xff]
        %v4090 = vld [vmem:[%s5 + $0xca0] sm:$0xff]
        %v4091 = vld [vmem:[%s5 + $0xca8] sm:$0xff]
        %v4092 = vld [vmem:[%s5 + $0xcb0] sm:$0xff]
        %v4093 = vld [vmem:[%s5 + $0xcb8] sm:$0xff]
        %v4094 = vld [vmem:[%s5 + $0xcc0] sm:$0xff]
        %v4095 = vld [vmem:[%s5 + $0xcc8] sm:$0xff]
        %v4096 = vld [vmem:[%s5 + $0xcd0] sm:$0xff]
        %v4097 = vld [vmem:[%s5 + $0xcd8] sm:$0xff]
        %v4098 = vld [vmem:[%s5 + $0xce0] sm:$0xff]
        %v4099 = vld [vmem:[%s5 + $0xce8] sm:$0xff]
        %v4100 = vld [vmem:[%s5 + $0xcf0] sm:$0xff]
        %v4101 = vld [vmem:[%s5 + $0xcf8] sm:$0xff]
        %v4102 = vld [vmem:[%s5 + $0xd00] sm:$0xff]
        %v4103 = vld [vmem:[%s5 + $0xd08] sm:$0xff]
        %v4104 = vld [vmem:[%s5 + $0xd10] sm:$0xff]
        %v4105 = vld [vmem:[%s5 + $0xd18] sm:$0xff]
        %v4106 = vld [vmem:[%s5 + $0xd20] sm:$0xff]
        %v4107 = vld [vmem:[%s5 + $0xd28] sm:$0xff]
        %v4108 = vld [vmem:[%s5 + $0xd30] sm:$0xff]
        %v4109 = vld [vmem:[%s5 + $0xd38] sm:$0xff]
        %v4110 = vld [vmem:[%s5 + $0xd40] sm:$0xff]
        %v4111 = vld [vmem:[%s5 + $0xd48] sm:$0xff]
        %v4112 = vld [vmem:[%s5 + $0xd50] sm:$0xff]
        %v4113 = vld [vmem:[%s5 + $0xd58] sm:$0xff]
        %v4114 = vld [vmem:[%s5 + $0xd60] sm:$0xff]
        %v4115 = vld [vmem:[%s5 + $0xd68] sm:$0xff]
        %v4116 = vld [vmem:[%s5 + $0xd70] sm:$0xff]
        %v4117 = vld [vmem:[%s5 + $0xd78] sm:$0xff]
        %v4118 = vld [vmem:[%s5 + $0xd80] sm:$0xff]
        %v4119 = vld [vmem:[%s5 + $0xd88] sm:$0xff]
        %v4120 = vld [vmem:[%s5 + $0xd90] sm:$0xff]
        %v4121 = vld [vmem:[%s5 + $0xd98] sm:$0xff]
        %v4122 = vld [vmem:[%s5 + $0xda0] sm:$0xff]
        %v4123 = vld [vmem:[%s5 + $0xda8] sm:$0xff]
        %v4124 = vld [vmem:[%s5 + $0xdb0] sm:$0xff]
        %v4125 = vld [vmem:[%s5 + $0xdb8] sm:$0xff]
        %v4126 = vld [vmem:[%s5 + $0xdc0] sm:$0xff]
        %v4127 = vld [vmem:[%s5 + $0xdc8] sm:$0xff]
        %v4128 = vld [vmem:[%s5 + $0xdd0] sm:$0xff]
        %v4129 = vld [vmem:[%s5 + $0xdd8] sm:$0xff]
        %v4130 = vld [vmem:[%s5 + $0xde0] sm:$0xff]
        %v4131 = vld [vmem:[%s5 + $0xde8] sm:$0xff]
        %v4132 = vld [vmem:[%s5 + $0xdf0] sm:$0xff]
        %v4133 = vld [vmem:[%s5 + $0xdf8] sm:$0xff]
        %v4134 = vld [vmem:[%s5 + $0xe00] sm:$0xff]
        %v4135 = vld [vmem:[%s5 + $0xe08] sm:$0xff]
        %v4136 = vld [vmem:[%s5 + $0xe10] sm:$0xff]
        %v4137 = vld [vmem:[%s5 + $0xe18] sm:$0xff]
        %v4138 = vld [vmem:[%s5 + $0xe20] sm:$0xff]
        %v4139 = vld [vmem:[%s5 + $0xe28] sm:$0xff]
        %v4140 = vld [vmem:[%s5 + $0xe30] sm:$0xff]
        %v4141 = vld [vmem:[%s5 + $0xe38] sm:$0xff]
        %v4142 = vld [vmem:[%s5 + $0xe40] sm:$0xff]
        %v4143 = vld [vmem:[%s5 + $0xe48] sm:$0xff]
        %v4144 = vld [vmem:[%s5 + $0xe50] sm:$0xff]
        %v4145 = vld [vmem:[%s5 + $0xe58] sm:$0xff]
        %v4146 = vld [vmem:[%s5 + $0xe60] sm:$0xff]
        %v4147 = vld [vmem:[%s5 + $0xe68] sm:$0xff]
        %v4148 = vld [vmem:[%s5 + $0xe70] sm:$0xff]
        %v4149 = vld [vmem:[%s5 + $0xe78] sm:$0xff]
        %v4150 = vld [vmem:[%s5 + $0xe80] sm:$0xff]
        %v4151 = vld [vmem:[%s5 + $0xe88] sm:$0xff]
        %v4152 = vld [vmem:[%s5 + $0xe90] sm:$0xff]
        %v4153 = vld [vmem:[%s5 + $0xe98] sm:$0xff]
        %v4154 = vld [vmem:[%s5 + $0xea0] sm:$0xff]
        %v4155 = vld [vmem:[%s5 + $0xea8] sm:$0xff]
        %v4156 = vld [vmem:[%s5 + $0xeb0] sm:$0xff]
        %v4157 = vld [vmem:[%s5 + $0xeb8] sm:$0xff]
        %v4158 = vld [vmem:[%s5 + $0xec0] sm:$0xff]
        %v4159 = vld [vmem:[%s5 + $0xec8] sm:$0xff]
        %v4160 = vld [vmem:[%s5 + $0xed0] sm:$0xff]
        %v4161 = vld [vmem:[%s5 + $0xed8] sm:$0xff]
        %v4162 = vld [vmem:[%s5 + $0xee0] sm:$0xff]
        %v4163 = vld [vmem:[%s5 + $0xee8] sm:$0xff]
        %v4164 = vld [vmem:[%s5 + $0xef0] sm:$0xff]
        %v4165 = vld [vmem:[%s5 + $0xef8] sm:$0xff]
        %v4166 = vld [vmem:[%s5 + $0xf00] sm:$0xff]
        %v4167 = vld [vmem:[%s5 + $0xf08] sm:$0xff]
        %v4168 = vld [vmem:[%s5 + $0xf10] sm:$0xff]
        %v4169 = vld [vmem:[%s5 + $0xf18] sm:$0xff]
        %v4170 = vld [vmem:[%s5 + $0xf20] sm:$0xff]
        %v4171 = vld [vmem:[%s5 + $0xf28] sm:$0xff]
        %v4172 = vld [vmem:[%s5 + $0xf30] sm:$0xff]
        %v4173 = vld [vmem:[%s5 + $0xf38] sm:$0xff]
        %v4174 = vld [vmem:[%s5 + $0xf40] sm:$0xff]
        %v4175 = vld [vmem:[%s5 + $0xf48] sm:$0xff]
        %v4176 = vld [vmem:[%s5 + $0xf50] sm:$0xff]
        %v4177 = vld [vmem:[%s5 + $0xf58] sm:$0xff]
        %v4178 = vld [vmem:[%s5 + $0xf60] sm:$0x7f]
        %v4179 = vld [vmem:[%s5 + $0xf68] sm:$0x7f]
        %v4180 = vld [vmem:[%s5 + $0xf70] sm:$0x7f]
        %v4181 = vld [vmem:[%s5 + $0xf78] sm:$0x7f]
        %v4183 = vsel %vm1136, %v3677, 0
        %v4186 = vsel %vm1136, %v3685, 0
        %vm4188 = vcmask 1046528
        %v4190 = vsel %vm4188, %v4178, 0
        %v4193 = vsel %vm4188, %v4179, 0
        %v4196 = vsel %vm4188, %v4180, 0
        %v4199 = vsel %vm4188, %v4181, 0
        %4201 = vmatpush.msra.mxu0 %v3746
        %4202 = vmatpush.msra.mxu0 %v3742
        %4203 = vmatpush.msra.mxu0 %v3738
        %4204 = vmatpush.msra.mxu0 %v3734
        %4205 = vmatpush.msra.mxu0 %v3730
        %4206 = vmatpush.msra.mxu0 %v3726
        %4207 = vmatpush.msra.mxu0 %v3722
        %4208 = vmatpush.msra.mxu0 %v3718
        %4209 = vmatpush.msra.mxu0 %v3714
        %4210 = vmatpush.msra.mxu0 %v3710
        %4211 = vmatpush.msra.mxu0 %v3706
        %4212 = vmatpush.msra.mxu0 %v3702
        %4213 = vmatpush.msra.mxu0 %v3698
        %4214 = vmatpush.msra.mxu0 %v3694
        %4215 = vmatpush.msra.mxu0 %v3690
        %4216 = vmatpush.msra.mxu0 %v3686
        %4217 = vmatmul.f32.gmra.mxu0 %v3670
        %v4218 = vpop.f32.mrf.mxu0
        %v4219 = vadd.f32 0.0, %v4218
        %4220 = vmatmul.f32.gmra.mxu0 %v3678
        %v4221 = vpop.f32.mrf.mxu0
        %v4222 = vadd.f32 0.0, %v4221
        %4223 = vdwg.mxu0
        %4224 = vmatpush.msra.mxu0 %v3810
        %4225 = vmatpush.msra.mxu0 %v3806
        %4226 = vmatpush.msra.mxu0 %v3802
        %4227 = vmatpush.msra.mxu0 %v3798
        %4228 = vmatpush.msra.mxu0 %v3794
        %4229 = vmatpush.msra.mxu0 %v3790
        %4230 = vmatpush.msra.mxu0 %v3786
        %4231 = vmatpush.msra.mxu0 %v3782
        %4232 = vmatpush.msra.mxu0 %v3778
        %4233 = vmatpush.msra.mxu0 %v3774
        %4234 = vmatpush.msra.mxu0 %v3770
        %4235 = vmatpush.msra.mxu0 %v3766
        %4236 = vmatpush.msra.mxu0 %v3762
        %4237 = vmatpush.msra.mxu0 %v3758
        %4238 = vmatpush.msra.mxu0 %v3754
        %4239 = vmatpush.msra.mxu0 %v3750
        %4240 = vmatmul.f32.gmra.mxu0 %v3671
        %v4241 = vpop.f32.mrf.mxu0
        %v4242 = vadd.f32 %v4219, %v4241
        %4243 = vmatmul.f32.gmra.mxu0 %v3679
        %v4244 = vpop.f32.mrf.mxu0
        %v4245 = vadd.f32 %v4222, %v4244
        %4246 = vdwg.mxu0
        %4247 = vmatpush.msra.mxu0 %v3874
        %4248 = vmatpush.msra.mxu0 %v3870
        %4249 = vmatpush.msra.mxu0 %v3866
        %4250 = vmatpush.msra.mxu0 %v3862
        %4251 = vmatpush.msra.mxu0 %v3858
        %4252 = vmatpush.msra.mxu0 %v3854
        %4253 = vmatpush.msra.mxu0 %v3850
        %4254 = vmatpush.msra.mxu0 %v3846
        %4255 = vmatpush.msra.mxu0 %v3842
        %4256 = vmatpush.msra.mxu0 %v3838
        %4257 = vmatpush.msra.mxu0 %v3834
        %4258 = vmatpush.msra.mxu0 %v3830
        %4259 = vmatpush.msra.mxu0 %v3826
        %4260 = vmatpush.msra.mxu0 %v3822
        %4261 = vmatpush.msra.mxu0 %v3818
        %4262 = vmatpush.msra.mxu0 %v3814
        %4263 = vmatmul.f32.gmra.mxu0 %v3672
        %v4264 = vpop.f32.mrf.mxu0
        %v4265 = vadd.f32 %v4242, %v4264
        %4266 = vmatmul.f32.gmra.mxu0 %v3680
        %v4267 = vpop.f32.mrf.mxu0
        %v4268 = vadd.f32 %v4245, %v4267
        %4269 = vdwg.mxu0
        %4270 = vmatpush.msra.mxu0 %v3938
        %4271 = vmatpush.msra.mxu0 %v3934
        %4272 = vmatpush.msra.mxu0 %v3930
        %4273 = vmatpush.msra.mxu0 %v3926
        %4274 = vmatpush.msra.mxu0 %v3922
        %4275 = vmatpush.msra.mxu0 %v3918
        %4276 = vmatpush.msra.mxu0 %v3914
        %4277 = vmatpush.msra.mxu0 %v3910
        %4278 = vmatpush.msra.mxu0 %v3906
        %4279 = vmatpush.msra.mxu0 %v3902
        %4280 = vmatpush.msra.mxu0 %v3898
        %4281 = vmatpush.msra.mxu0 %v3894
        %4282 = vmatpush.msra.mxu0 %v3890
        %4283 = vmatpush.msra.mxu0 %v3886
        %4284 = vmatpush.msra.mxu0 %v3882
        %4285 = vmatpush.msra.mxu0 %v3878
        %4286 = vmatmul.f32.gmra.mxu0 %v3673
        %v4287 = vpop.f32.mrf.mxu0
        %v4288 = vadd.f32 %v4265, %v4287
        %4289 = vmatmul.f32.gmra.mxu0 %v3681
        %v4290 = vpop.f32.mrf.mxu0
        %v4291 = vadd.f32 %v4268, %v4290
        %4292 = vdwg.mxu0
        %4293 = vmatpush.msra.mxu0 %v4002
        %4294 = vmatpush.msra.mxu0 %v3998
        %4295 = vmatpush.msra.mxu0 %v3994
        %4296 = vmatpush.msra.mxu0 %v3990
        %4297 = vmatpush.msra.mxu0 %v3986
        %4298 = vmatpush.msra.mxu0 %v3982
        %4299 = vmatpush.msra.mxu0 %v3978
        %4300 = vmatpush.msra.mxu0 %v3974
        %4301 = vmatpush.msra.mxu0 %v3970
        %4302 = vmatpush.msra.mxu0 %v3966
        %4303 = vmatpush.msra.mxu0 %v3962
        %4304 = vmatpush.msra.mxu0 %v3958
        %4305 = vmatpush.msra.mxu0 %v3954
        %4306 = vmatpush.msra.mxu0 %v3950
        %4307 = vmatpush.msra.mxu0 %v3946
        %4308 = vmatpush.msra.mxu0 %v3942
        %4309 = vmatmul.f32.gmra.mxu0 %v3674
        %v4310 = vpop.f32.mrf.mxu0
        %v4311 = vadd.f32 %v4288, %v4310
        %4312 = vmatmul.f32.gmra.mxu0 %v3682
        %v4313 = vpop.f32.mrf.mxu0
        %v4314 = vadd.f32 %v4291, %v4313
        %4315 = vdwg.mxu0
        %4316 = vmatpush.msra.mxu0 %v4066
        %4317 = vmatpush.msra.mxu0 %v4062
        %4318 = vmatpush.msra.mxu0 %v4058
        %4319 = vmatpush.msra.mxu0 %v4054
        %4320 = vmatpush.msra.mxu0 %v4050
        %4321 = vmatpush.msra.mxu0 %v4046
        %4322 = vmatpush.msra.mxu0 %v4042
        %4323 = vmatpush.msra.mxu0 %v4038
        %4324 = vmatpush.msra.mxu0 %v4034
        %4325 = vmatpush.msra.mxu0 %v4030
        %4326 = vmatpush.msra.mxu0 %v4026
        %4327 = vmatpush.msra.mxu0 %v4022
        %4328 = vmatpush.msra.mxu0 %v4018
        %4329 = vmatpush.msra.mxu0 %v4014
        %4330 = vmatpush.msra.mxu0 %v4010
        %4331 = vmatpush.msra.mxu0 %v4006
        %4332 = vmatmul.f32.gmra.mxu0 %v3675
        %v4333 = vpop.f32.mrf.mxu0
        %v4334 = vadd.f32 %v4311, %v4333
        %4335 = vmatmul.f32.gmra.mxu0 %v3683
        %v4336 = vpop.f32.mrf.mxu0
        %v4337 = vadd.f32 %v4314, %v4336
        %4338 = vdwg.mxu0
        %4339 = vmatpush.msra.mxu0 %v4130
        %4340 = vmatpush.msra.mxu0 %v4126
        %4341 = vmatpush.msra.mxu0 %v4122
        %4342 = vmatpush.msra.mxu0 %v4118
        %4343 = vmatpush.msra.mxu0 %v4114
        %4344 = vmatpush.msra.mxu0 %v4110
        %4345 = vmatpush.msra.mxu0 %v4106
        %4346 = vmatpush.msra.mxu0 %v4102
        %4347 = vmatpush.msra.mxu0 %v4098
        %4348 = vmatpush.msra.mxu0 %v4094
        %4349 = vmatpush.msra.mxu0 %v4090
        %4350 = vmatpush.msra.mxu0 %v4086
        %4351 = vmatpush.msra.mxu0 %v4082
        %4352 = vmatpush.msra.mxu0 %v4078
        %4353 = vmatpush.msra.mxu0 %v4074
        %4354 = vmatpush.msra.mxu0 %v4070
        %4355 = vmatmul.f32.gmra.mxu0 %v3676
        %v4356 = vpop.f32.mrf.mxu0
        %v4357 = vadd.f32 %v4334, %v4356
        %4358 = vmatmul.f32.gmra.mxu0 %v3684
        %v4359 = vpop.f32.mrf.mxu0
        %v4360 = vadd.f32 %v4337, %v4359
        %4361 = vdwg.mxu0
        %4362 = vmatpush.msra.mxu0 0.0
        %4363 = vmatpush.msra.mxu0 0.0
        %4364 = vmatpush.msra.mxu0 0.0
        %4365 = vmatpush.msra.mxu0 0.0
        %4366 = vmatpush.msra.mxu0 %v4190
        %4367 = vmatpush.msra.mxu0 %v4174
        %4368 = vmatpush.msra.mxu0 %v4170
        %4369 = vmatpush.msra.mxu0 %v4166
        %4370 = vmatpush.msra.mxu0 %v4162
        %4371 = vmatpush.msra.mxu0 %v4158
        %4372 = vmatpush.msra.mxu0 %v4154
        %4373 = vmatpush.msra.mxu0 %v4150
        %4374 = vmatpush.msra.mxu0 %v4146
        %4375 = vmatpush.msra.mxu0 %v4142
        %4376 = vmatpush.msra.mxu0 %v4138
        %4377 = vmatpush.msra.mxu0 %v4134
        %4378 = vmatmul.f32.gmra.mxu0 %v4183
        %v4379 = vpop.f32.mrf.mxu0
        %v4380 = vadd.f32 %v4357, %v4379
        %4381 = vmatmul.f32.gmra.mxu0 %v4186
        %v4382 = vpop.f32.mrf.mxu0
        %v4383 = vadd.f32 %v4360, %v4382
        %4384 = vdwg.mxu0
        %4385 = vmatpush.msra.mxu0 %v3747
        %4386 = vmatpush.msra.mxu0 %v3743
        %4387 = vmatpush.msra.mxu0 %v3739
        %4388 = vmatpush.msra.mxu0 %v3735
        %4389 = vmatpush.msra.mxu0 %v3731
        %4390 = vmatpush.msra.mxu0 %v3727
        %4391 = vmatpush.msra.mxu0 %v3723
        %4392 = vmatpush.msra.mxu0 %v3719
        %4393 = vmatpush.msra.mxu0 %v3715
        %4394 = vmatpush.msra.mxu0 %v3711
        %4395 = vmatpush.msra.mxu0 %v3707
        %4396 = vmatpush.msra.mxu0 %v3703
        %4397 = vmatpush.msra.mxu0 %v3699
        %4398 = vmatpush.msra.mxu0 %v3695
        %4399 = vmatpush.msra.mxu0 %v3691
        %4400 = vmatpush.msra.mxu0 %v3687
        %4401 = vmatmul.f32.gmra.mxu0 %v3670
        %v4402 = vpop.f32.mrf.mxu0
        %v4403 = vadd.f32 0.0, %v4402
        %4404 = vmatmul.f32.gmra.mxu0 %v3678
        %v4405 = vpop.f32.mrf.mxu0
        %v4406 = vadd.f32 0.0, %v4405
        %4407 = vdwg.mxu0
        %4408 = vmatpush.msra.mxu0 %v3811
        %4409 = vmatpush.msra.mxu0 %v3807
        %4410 = vmatpush.msra.mxu0 %v3803
        %4411 = vmatpush.msra.mxu0 %v3799
        %4412 = vmatpush.msra.mxu0 %v3795
        %4413 = vmatpush.msra.mxu0 %v3791
        %4414 = vmatpush.msra.mxu0 %v3787
        %4415 = vmatpush.msra.mxu0 %v3783
        %4416 = vmatpush.msra.mxu0 %v3779
        %4417 = vmatpush.msra.mxu0 %v3775
        %4418 = vmatpush.msra.mxu0 %v3771
        %4419 = vmatpush.msra.mxu0 %v3767
        %4420 = vmatpush.msra.mxu0 %v3763
        %4421 = vmatpush.msra.mxu0 %v3759
        %4422 = vmatpush.msra.mxu0 %v3755
        %4423 = vmatpush.msra.mxu0 %v3751
        %4424 = vmatmul.f32.gmra.mxu0 %v3671
        %v4425 = vpop.f32.mrf.mxu0
        %v4426 = vadd.f32 %v4403, %v4425
        %4427 = vmatmul.f32.gmra.mxu0 %v3679
        %v4428 = vpop.f32.mrf.mxu0
        %v4429 = vadd.f32 %v4406, %v4428
        %4430 = vdwg.mxu0
        %4431 = vmatpush.msra.mxu0 %v3875
        %4432 = vmatpush.msra.mxu0 %v3871
        %4433 = vmatpush.msra.mxu0 %v3867
        %4434 = vmatpush.msra.mxu0 %v3863
        %4435 = vmatpush.msra.mxu0 %v3859
        %4436 = vmatpush.msra.mxu0 %v3855
        %4437 = vmatpush.msra.mxu0 %v3851
        %4438 = vmatpush.msra.mxu0 %v3847
        %4439 = vmatpush.msra.mxu0 %v3843
        %4440 = vmatpush.msra.mxu0 %v3839
        %4441 = vmatpush.msra.mxu0 %v3835
        %4442 = vmatpush.msra.mxu0 %v3831
        %4443 = vmatpush.msra.mxu0 %v3827
        %4444 = vmatpush.msra.mxu0 %v3823
        %4445 = vmatpush.msra.mxu0 %v3819
        %4446 = vmatpush.msra.mxu0 %v3815
        %4447 = vmatmul.f32.gmra.mxu0 %v3672
        %v4448 = vpop.f32.mrf.mxu0
        %v4449 = vadd.f32 %v4426, %v4448
        %4450 = vmatmul.f32.gmra.mxu0 %v3680
        %v4451 = vpop.f32.mrf.mxu0
        %v4452 = vadd.f32 %v4429, %v4451
        %4453 = vdwg.mxu0
        %4454 = vmatpush.msra.mxu0 %v3939
        %4455 = vmatpush.msra.mxu0 %v3935
        %4456 = vmatpush.msra.mxu0 %v3931
        %4457 = vmatpush.msra.mxu0 %v3927
        %4458 = vmatpush.msra.mxu0 %v3923
        %4459 = vmatpush.msra.mxu0 %v3919
        %4460 = vmatpush.msra.mxu0 %v3915
        %4461 = vmatpush.msra.mxu0 %v3911
        %4462 = vmatpush.msra.mxu0 %v3907
        %4463 = vmatpush.msra.mxu0 %v3903
        %4464 = vmatpush.msra.mxu0 %v3899
        %4465 = vmatpush.msra.mxu0 %v3895
        %4466 = vmatpush.msra.mxu0 %v3891
        %4467 = vmatpush.msra.mxu0 %v3887
        %4468 = vmatpush.msra.mxu0 %v3883
        %4469 = vmatpush.msra.mxu0 %v3879
        %4470 = vmatmul.f32.gmra.mxu0 %v3673
        %v4471 = vpop.f32.mrf.mxu0
        %v4472 = vadd.f32 %v4449, %v4471
        %4473 = vmatmul.f32.gmra.mxu0 %v3681
        %v4474 = vpop.f32.mrf.mxu0
        %v4475 = vadd.f32 %v4452, %v4474
        %4476 = vdwg.mxu0
        %4477 = vmatpush.msra.mxu0 %v4003
        %4478 = vmatpush.msra.mxu0 %v3999
        %4479 = vmatpush.msra.mxu0 %v3995
        %4480 = vmatpush.msra.mxu0 %v3991
        %4481 = vmatpush.msra.mxu0 %v3987
        %4482 = vmatpush.msra.mxu0 %v3983
        %4483 = vmatpush.msra.mxu0 %v3979
        %4484 = vmatpush.msra.mxu0 %v3975
        %4485 = vmatpush.msra.mxu0 %v3971
        %4486 = vmatpush.msra.mxu0 %v3967
        %4487 = vmatpush.msra.mxu0 %v3963
        %4488 = vmatpush.msra.mxu0 %v3959
        %4489 = vmatpush.msra.mxu0 %v3955
        %4490 = vmatpush.msra.mxu0 %v3951
        %4491 = vmatpush.msra.mxu0 %v3947
        %4492 = vmatpush.msra.mxu0 %v3943
        %4493 = vmatmul.f32.gmra.mxu0 %v3674
        %v4494 = vpop.f32.mrf.mxu0
        %v4495 = vadd.f32 %v4472, %v4494
        %4496 = vmatmul.f32.gmra.mxu0 %v3682
        %v4497 = vpop.f32.mrf.mxu0
        %v4498 = vadd.f32 %v4475, %v4497
        %4499 = vdwg.mxu0
        %4500 = vmatpush.msra.mxu0 %v4067
        %4501 = vmatpush.msra.mxu0 %v4063
        %4502 = vmatpush.msra.mxu0 %v4059
        %4503 = vmatpush.msra.mxu0 %v4055
        %4504 = vmatpush.msra.mxu0 %v4051
        %4505 = vmatpush.msra.mxu0 %v4047
        %4506 = vmatpush.msra.mxu0 %v4043
        %4507 = vmatpush.msra.mxu0 %v4039
        %4508 = vmatpush.msra.mxu0 %v4035
        %4509 = vmatpush.msra.mxu0 %v4031
        %4510 = vmatpush.msra.mxu0 %v4027
        %4511 = vmatpush.msra.mxu0 %v4023
        %4512 = vmatpush.msra.mxu0 %v4019
        %4513 = vmatpush.msra.mxu0 %v4015
        %4514 = vmatpush.msra.mxu0 %v4011
        %4515 = vmatpush.msra.mxu0 %v4007
        %4516 = vmatmul.f32.gmra.mxu0 %v3675
        %v4517 = vpop.f32.mrf.mxu0
        %v4518 = vadd.f32 %v4495, %v4517
        %4519 = vmatmul.f32.gmra.mxu0 %v3683
        %v4520 = vpop.f32.mrf.mxu0
        %v4521 = vadd.f32 %v4498, %v4520
        %4522 = vdwg.mxu0
        %4523 = vmatpush.msra.mxu0 %v4131
        %4524 = vmatpush.msra.mxu0 %v4127
        %4525 = vmatpush.msra.mxu0 %v4123
        %4526 = vmatpush.msra.mxu0 %v4119
        %4527 = vmatpush.msra.mxu0 %v4115
        %4528 = vmatpush.msra.mxu0 %v4111
        %4529 = vmatpush.msra.mxu0 %v4107
        %4530 = vmatpush.msra.mxu0 %v4103
        %4531 = vmatpush.msra.mxu0 %v4099
        %4532 = vmatpush.msra.mxu0 %v4095
        %4533 = vmatpush.msra.mxu0 %v4091
        %4534 = vmatpush.msra.mxu0 %v4087
        %4535 = vmatpush.msra.mxu0 %v4083
        %4536 = vmatpush.msra.mxu0 %v4079
        %4537 = vmatpush.msra.mxu0 %v4075
        %4538 = vmatpush.msra.mxu0 %v4071
        %4539 = vmatmul.f32.gmra.mxu0 %v3676
        %v4540 = vpop.f32.mrf.mxu0
        %v4541 = vadd.f32 %v4518, %v4540
        %4542 = vmatmul.f32.gmra.mxu0 %v3684
        %v4543 = vpop.f32.mrf.mxu0
        %v4544 = vadd.f32 %v4521, %v4543
        %4545 = vdwg.mxu0
        %4546 = vmatpush.msra.mxu0 0.0
        %4547 = vmatpush.msra.mxu0 0.0
        %4548 = vmatpush.msra.mxu0 0.0
        %4549 = vmatpush.msra.mxu0 0.0
        %4550 = vmatpush.msra.mxu0 %v4193
        %4551 = vmatpush.msra.mxu0 %v4175
        %4552 = vmatpush.msra.mxu0 %v4171
        %4553 = vmatpush.msra.mxu0 %v4167
        %4554 = vmatpush.msra.mxu0 %v4163
        %4555 = vmatpush.msra.mxu0 %v4159
        %4556 = vmatpush.msra.mxu0 %v4155
        %4557 = vmatpush.msra.mxu0 %v4151
        %4558 = vmatpush.msra.mxu0 %v4147
        %4559 = vmatpush.msra.mxu0 %v4143
        %4560 = vmatpush.msra.mxu0 %v4139
        %4561 = vmatpush.msra.mxu0 %v4135
        %4562 = vmatmul.f32.gmra.mxu0 %v4183
        %v4563 = vpop.f32.mrf.mxu0
        %v4564 = vadd.f32 %v4541, %v4563
        %4565 = vmatmul.f32.gmra.mxu0 %v4186
        %v4566 = vpop.f32.mrf.mxu0
        %v4567 = vadd.f32 %v4544, %v4566
        %4568 = vdwg.mxu0
        %4569 = vmatpush.msra.mxu0 %v3748
        %4570 = vmatpush.msra.mxu0 %v3744
        %4571 = vmatpush.msra.mxu0 %v3740
        %4572 = vmatpush.msra.mxu0 %v3736
        %4573 = vmatpush.msra.mxu0 %v3732
        %4574 = vmatpush.msra.mxu0 %v3728
        %4575 = vmatpush.msra.mxu0 %v3724
        %4576 = vmatpush.msra.mxu0 %v3720
        %4577 = vmatpush.msra.mxu0 %v3716
        %4578 = vmatpush.msra.mxu0 %v3712
        %4579 = vmatpush.msra.mxu0 %v3708
        %4580 = vmatpush.msra.mxu0 %v3704
        %4581 = vmatpush.msra.mxu0 %v3700
        %4582 = vmatpush.msra.mxu0 %v3696
        %4583 = vmatpush.msra.mxu0 %v3692
        %4584 = vmatpush.msra.mxu0 %v3688
        %4585 = vmatmul.f32.gmra.mxu0 %v3670
        %v4586 = vpop.f32.mrf.mxu0
        %v4587 = vadd.f32 0.0, %v4586
        %4588 = vmatmul.f32.gmra.mxu0 %v3678
        %v4589 = vpop.f32.mrf.mxu0
        %v4590 = vadd.f32 0.0, %v4589
        %4591 = vdwg.mxu0
        %4592 = vmatpush.msra.mxu0 %v3812
        %4593 = vmatpush.msra.mxu0 %v3808
        %4594 = vmatpush.msra.mxu0 %v3804
        %4595 = vmatpush.msra.mxu0 %v3800
        %4596 = vmatpush.msra.mxu0 %v3796
        %4597 = vmatpush.msra.mxu0 %v3792
        %4598 = vmatpush.msra.mxu0 %v3788
        %4599 = vmatpush.msra.mxu0 %v3784
        %4600 = vmatpush.msra.mxu0 %v3780
        %4601 = vmatpush.msra.mxu0 %v3776
        %4602 = vmatpush.msra.mxu0 %v3772
        %4603 = vmatpush.msra.mxu0 %v3768
        %4604 = vmatpush.msra.mxu0 %v3764
        %4605 = vmatpush.msra.mxu0 %v3760
        %4606 = vmatpush.msra.mxu0 %v3756
        %4607 = vmatpush.msra.mxu0 %v3752
        %4608 = vmatmul.f32.gmra.mxu0 %v3671
        %v4609 = vpop.f32.mrf.mxu0
        %v4610 = vadd.f32 %v4587, %v4609
        %4611 = vmatmul.f32.gmra.mxu0 %v3679
        %v4612 = vpop.f32.mrf.mxu0
        %v4613 = vadd.f32 %v4590, %v4612
        %4614 = vdwg.mxu0
        %4615 = vmatpush.msra.mxu0 %v3876
        %4616 = vmatpush.msra.mxu0 %v3872
        %4617 = vmatpush.msra.mxu0 %v3868
        %4618 = vmatpush.msra.mxu0 %v3864
        %4619 = vmatpush.msra.mxu0 %v3860
        %4620 = vmatpush.msra.mxu0 %v3856
        %4621 = vmatpush.msra.mxu0 %v3852
        %4622 = vmatpush.msra.mxu0 %v3848
        %4623 = vmatpush.msra.mxu0 %v3844
        %4624 = vmatpush.msra.mxu0 %v3840
        %4625 = vmatpush.msra.mxu0 %v3836
        %4626 = vmatpush.msra.mxu0 %v3832
        %4627 = vmatpush.msra.mxu0 %v3828
        %4628 = vmatpush.msra.mxu0 %v3824
        %4629 = vmatpush.msra.mxu0 %v3820
        %4630 = vmatpush.msra.mxu0 %v3816
        %4631 = vmatmul.f32.gmra.mxu0 %v3672
        %v4632 = vpop.f32.mrf.mxu0
        %v4633 = vadd.f32 %v4610, %v4632
        %4634 = vmatmul.f32.gmra.mxu0 %v3680
        %v4635 = vpop.f32.mrf.mxu0
        %v4636 = vadd.f32 %v4613, %v4635
        %4637 = vdwg.mxu0
        %4638 = vmatpush.msra.mxu0 %v3940
        %4639 = vmatpush.msra.mxu0 %v3936
        %4640 = vmatpush.msra.mxu0 %v3932
        %4641 = vmatpush.msra.mxu0 %v3928
        %4642 = vmatpush.msra.mxu0 %v3924
        %4643 = vmatpush.msra.mxu0 %v3920
        %4644 = vmatpush.msra.mxu0 %v3916
        %4645 = vmatpush.msra.mxu0 %v3912
        %4646 = vmatpush.msra.mxu0 %v3908
        %4647 = vmatpush.msra.mxu0 %v3904
        %4648 = vmatpush.msra.mxu0 %v3900
        %4649 = vmatpush.msra.mxu0 %v3896
        %4650 = vmatpush.msra.mxu0 %v3892
        %4651 = vmatpush.msra.mxu0 %v3888
        %4652 = vmatpush.msra.mxu0 %v3884
        %4653 = vmatpush.msra.mxu0 %v3880
        %4654 = vmatmul.f32.gmra.mxu0 %v3673
        %v4655 = vpop.f32.mrf.mxu0
        %v4656 = vadd.f32 %v4633, %v4655
        %4657 = vmatmul.f32.gmra.mxu0 %v3681
        %v4658 = vpop.f32.mrf.mxu0
        %v4659 = vadd.f32 %v4636, %v4658
        %4660 = vdwg.mxu0
        %4661 = vmatpush.msra.mxu0 %v4004
        %4662 = vmatpush.msra.mxu0 %v4000
        %4663 = vmatpush.msra.mxu0 %v3996
        %4664 = vmatpush.msra.mxu0 %v3992
        %4665 = vmatpush.msra.mxu0 %v3988
        %4666 = vmatpush.msra.mxu0 %v3984
        %4667 = vmatpush.msra.mxu0 %v3980
        %4668 = vmatpush.msra.mxu0 %v3976
        %4669 = vmatpush.msra.mxu0 %v3972
        %4670 = vmatpush.msra.mxu0 %v3968
        %4671 = vmatpush.msra.mxu0 %v3964
        %4672 = vmatpush.msra.mxu0 %v3960
        %4673 = vmatpush.msra.mxu0 %v3956
        %4674 = vmatpush.msra.mxu0 %v3952
        %4675 = vmatpush.msra.mxu0 %v3948
        %4676 = vmatpush.msra.mxu0 %v3944
        %4677 = vmatmul.f32.gmra.mxu0 %v3674
        %v4678 = vpop.f32.mrf.mxu0
        %v4679 = vadd.f32 %v4656, %v4678
        %4680 = vmatmul.f32.gmra.mxu0 %v3682
        %v4681 = vpop.f32.mrf.mxu0
        %v4682 = vadd.f32 %v4659, %v4681
        %4683 = vdwg.mxu0
        %4684 = vmatpush.msra.mxu0 %v4068
        %4685 = vmatpush.msra.mxu0 %v4064
        %4686 = vmatpush.msra.mxu0 %v4060
        %4687 = vmatpush.msra.mxu0 %v4056
        %4688 = vmatpush.msra.mxu0 %v4052
        %4689 = vmatpush.msra.mxu0 %v4048
        %4690 = vmatpush.msra.mxu0 %v4044
        %4691 = vmatpush.msra.mxu0 %v4040
        %4692 = vmatpush.msra.mxu0 %v4036
        %4693 = vmatpush.msra.mxu0 %v4032
        %4694 = vmatpush.msra.mxu0 %v4028
        %4695 = vmatpush.msra.mxu0 %v4024
        %4696 = vmatpush.msra.mxu0 %v4020
        %4697 = vmatpush.msra.mxu0 %v4016
        %4698 = vmatpush.msra.mxu0 %v4012
        %4699 = vmatpush.msra.mxu0 %v4008
        %4700 = vmatmul.f32.gmra.mxu0 %v3675
        %v4701 = vpop.f32.mrf.mxu0
        %v4702 = vadd.f32 %v4679, %v4701
        %4703 = vmatmul.f32.gmra.mxu0 %v3683
        %v4704 = vpop.f32.mrf.mxu0
        %v4705 = vadd.f32 %v4682, %v4704
        %4706 = vdwg.mxu0
        %4707 = vmatpush.msra.mxu0 %v4132
        %4708 = vmatpush.msra.mxu0 %v4128
        %4709 = vmatpush.msra.mxu0 %v4124
        %4710 = vmatpush.msra.mxu0 %v4120
        %4711 = vmatpush.msra.mxu0 %v4116
        %4712 = vmatpush.msra.mxu0 %v4112
        %4713 = vmatpush.msra.mxu0 %v4108
        %4714 = vmatpush.msra.mxu0 %v4104
        %4715 = vmatpush.msra.mxu0 %v4100
        %4716 = vmatpush.msra.mxu0 %v4096
        %4717 = vmatpush.msra.mxu0 %v4092
        %4718 = vmatpush.msra.mxu0 %v4088
        %4719 = vmatpush.msra.mxu0 %v4084
        %4720 = vmatpush.msra.mxu0 %v4080
        %4721 = vmatpush.msra.mxu0 %v4076
        %4722 = vmatpush.msra.mxu0 %v4072
        %4723 = vmatmul.f32.gmra.mxu0 %v3676
        %v4724 = vpop.f32.mrf.mxu0
        %v4725 = vadd.f32 %v4702, %v4724
        %4726 = vmatmul.f32.gmra.mxu0 %v3684
        %v4727 = vpop.f32.mrf.mxu0
        %v4728 = vadd.f32 %v4705, %v4727
        %4729 = vdwg.mxu0
        %4730 = vmatpush.msra.mxu0 0.0
        %4731 = vmatpush.msra.mxu0 0.0
        %4732 = vmatpush.msra.mxu0 0.0
        %4733 = vmatpush.msra.mxu0 0.0
        %4734 = vmatpush.msra.mxu0 %v4196
        %4735 = vmatpush.msra.mxu0 %v4176
        %4736 = vmatpush.msra.mxu0 %v4172
        %4737 = vmatpush.msra.mxu0 %v4168
        %4738 = vmatpush.msra.mxu0 %v4164
        %4739 = vmatpush.msra.mxu0 %v4160
        %4740 = vmatpush.msra.mxu0 %v4156
        %4741 = vmatpush.msra.mxu0 %v4152
        %4742 = vmatpush.msra.mxu0 %v4148
        %4743 = vmatpush.msra.mxu0 %v4144
        %4744 = vmatpush.msra.mxu0 %v4140
        %4745 = vmatpush.msra.mxu0 %v4136
        %4746 = vmatmul.f32.gmra.mxu0 %v4183
        %v4747 = vpop.f32.mrf.mxu0
        %v4748 = vadd.f32 %v4725, %v4747
        %4749 = vmatmul.f32.gmra.mxu0 %v4186
        %v4750 = vpop.f32.mrf.mxu0
        %v4751 = vadd.f32 %v4728, %v4750
        %4752 = vdwg.mxu0
        %4753 = vmatpush.msra.mxu0 %v3749
        %4754 = vmatpush.msra.mxu0 %v3745
        %4755 = vmatpush.msra.mxu0 %v3741
        %4756 = vmatpush.msra.mxu0 %v3737
        %4757 = vmatpush.msra.mxu0 %v3733
        %4758 = vmatpush.msra.mxu0 %v3729
        %4759 = vmatpush.msra.mxu0 %v3725
        %4760 = vmatpush.msra.mxu0 %v3721
        %4761 = vmatpush.msra.mxu0 %v3717
        %4762 = vmatpush.msra.mxu0 %v3713
        %4763 = vmatpush.msra.mxu0 %v3709
        %4764 = vmatpush.msra.mxu0 %v3705
        %4765 = vmatpush.msra.mxu0 %v3701
        %4766 = vmatpush.msra.mxu0 %v3697
        %4767 = vmatpush.msra.mxu0 %v3693
        %4768 = vmatpush.msra.mxu0 %v3689
        %4769 = vmatmul.f32.gmra.mxu0 %v3670
        %v4770 = vpop.f32.mrf.mxu0
        %v4771 = vadd.f32 0.0, %v4770
        %4772 = vmatmul.f32.gmra.mxu0 %v3678
        %v4773 = vpop.f32.mrf.mxu0
        %v4774 = vadd.f32 0.0, %v4773
        %4775 = vdwg.mxu0
        %4776 = vmatpush.msra.mxu0 %v3813
        %4777 = vmatpush.msra.mxu0 %v3809
        %4778 = vmatpush.msra.mxu0 %v3805
        %4779 = vmatpush.msra.mxu0 %v3801
        %4780 = vmatpush.msra.mxu0 %v3797
        %4781 = vmatpush.msra.mxu0 %v3793
        %4782 = vmatpush.msra.mxu0 %v3789
        %4783 = vmatpush.msra.mxu0 %v3785
        %4784 = vmatpush.msra.mxu0 %v3781
        %4785 = vmatpush.msra.mxu0 %v3777
        %4786 = vmatpush.msra.mxu0 %v3773
        %4787 = vmatpush.msra.mxu0 %v3769
        %4788 = vmatpush.msra.mxu0 %v3765
        %4789 = vmatpush.msra.mxu0 %v3761
        %4790 = vmatpush.msra.mxu0 %v3757
        %4791 = vmatpush.msra.mxu0 %v3753
        %4792 = vmatmul.f32.gmra.mxu0 %v3671
        %v4793 = vpop.f32.mrf.mxu0
        %v4794 = vadd.f32 %v4771, %v4793
        %4795 = vmatmul.f32.gmra.mxu0 %v3679
        %v4796 = vpop.f32.mrf.mxu0
        %v4797 = vadd.f32 %v4774, %v4796
        %4798 = vdwg.mxu0
        %4799 = vmatpush.msra.mxu0 %v3877
        %4800 = vmatpush.msra.mxu0 %v3873
        %4801 = vmatpush.msra.mxu0 %v3869
        %4802 = vmatpush.msra.mxu0 %v3865
        %4803 = vmatpush.msra.mxu0 %v3861
        %4804 = vmatpush.msra.mxu0 %v3857
        %4805 = vmatpush.msra.mxu0 %v3853
        %4806 = vmatpush.msra.mxu0 %v3849
        %4807 = vmatpush.msra.mxu0 %v3845
        %4808 = vmatpush.msra.mxu0 %v3841
        %4809 = vmatpush.msra.mxu0 %v3837
        %4810 = vmatpush.msra.mxu0 %v3833
        %4811 = vmatpush.msra.mxu0 %v3829
        %4812 = vmatpush.msra.mxu0 %v3825
        %4813 = vmatpush.msra.mxu0 %v3821
        %4814 = vmatpush.msra.mxu0 %v3817
        %4815 = vmatmul.f32.gmra.mxu0 %v3672
        %v4816 = vpop.f32.mrf.mxu0
        %v4817 = vadd.f32 %v4794, %v4816
        %4818 = vmatmul.f32.gmra.mxu0 %v3680
        %v4819 = vpop.f32.mrf.mxu0
        %v4820 = vadd.f32 %v4797, %v4819
        %4821 = vdwg.mxu0
        %4822 = vmatpush.msra.mxu0 %v3941
        %4823 = vmatpush.msra.mxu0 %v3937
        %4824 = vmatpush.msra.mxu0 %v3933
        %4825 = vmatpush.msra.mxu0 %v3929
        %4826 = vmatpush.msra.mxu0 %v3925
        %4827 = vmatpush.msra.mxu0 %v3921
        %4828 = vmatpush.msra.mxu0 %v3917
        %4829 = vmatpush.msra.mxu0 %v3913
        %4830 = vmatpush.msra.mxu0 %v3909
        %4831 = vmatpush.msra.mxu0 %v3905
        %4832 = vmatpush.msra.mxu0 %v3901
        %4833 = vmatpush.msra.mxu0 %v3897
        %4834 = vmatpush.msra.mxu0 %v3893
        %4835 = vmatpush.msra.mxu0 %v3889
        %4836 = vmatpush.msra.mxu0 %v3885
        %4837 = vmatpush.msra.mxu0 %v3881
        %4838 = vmatmul.f32.gmra.mxu0 %v3673
        %v4839 = vpop.f32.mrf.mxu0
        %v4840 = vadd.f32 %v4817, %v4839
        %4841 = vmatmul.f32.gmra.mxu0 %v3681
        %v4842 = vpop.f32.mrf.mxu0
        %v4843 = vadd.f32 %v4820, %v4842
        %4844 = vdwg.mxu0
        %4845 = vmatpush.msra.mxu0 %v4005
        %4846 = vmatpush.msra.mxu0 %v4001
        %4847 = vmatpush.msra.mxu0 %v3997
        %4848 = vmatpush.msra.mxu0 %v3993
        %4849 = vmatpush.msra.mxu0 %v3989
        %4850 = vmatpush.msra.mxu0 %v3985
        %4851 = vmatpush.msra.mxu0 %v3981
        %4852 = vmatpush.msra.mxu0 %v3977
        %4853 = vmatpush.msra.mxu0 %v3973
        %4854 = vmatpush.msra.mxu0 %v3969
        %4855 = vmatpush.msra.mxu0 %v3965
        %4856 = vmatpush.msra.mxu0 %v3961
        %4857 = vmatpush.msra.mxu0 %v3957
        %4858 = vmatpush.msra.mxu0 %v3953
        %4859 = vmatpush.msra.mxu0 %v3949
        %4860 = vmatpush.msra.mxu0 %v3945
        %4861 = vmatmul.f32.gmra.mxu0 %v3674
        %v4862 = vpop.f32.mrf.mxu0
        %v4863 = vadd.f32 %v4840, %v4862
        %4864 = vmatmul.f32.gmra.mxu0 %v3682
        %v4865 = vpop.f32.mrf.mxu0
        %v4866 = vadd.f32 %v4843, %v4865
        %4867 = vdwg.mxu0
        %4868 = vmatpush.msra.mxu0 %v4069
        %4869 = vmatpush.msra.mxu0 %v4065
        %4870 = vmatpush.msra.mxu0 %v4061
        %4871 = vmatpush.msra.mxu0 %v4057
        %4872 = vmatpush.msra.mxu0 %v4053
        %4873 = vmatpush.msra.mxu0 %v4049
        %4874 = vmatpush.msra.mxu0 %v4045
        %4875 = vmatpush.msra.mxu0 %v4041
        %4876 = vmatpush.msra.mxu0 %v4037
        %4877 = vmatpush.msra.mxu0 %v4033
        %4878 = vmatpush.msra.mxu0 %v4029
        %4879 = vmatpush.msra.mxu0 %v4025
        %4880 = vmatpush.msra.mxu0 %v4021
        %4881 = vmatpush.msra.mxu0 %v4017
        %4882 = vmatpush.msra.mxu0 %v4013
        %4883 = vmatpush.msra.mxu0 %v4009
        %4884 = vmatmul.f32.gmra.mxu0 %v3675
        %v4885 = vpop.f32.mrf.mxu0
        %v4886 = vadd.f32 %v4863, %v4885
        %4887 = vmatmul.f32.gmra.mxu0 %v3683
        %v4888 = vpop.f32.mrf.mxu0
        %v4889 = vadd.f32 %v4866, %v4888
        %4890 = vdwg.mxu0
        %4891 = vmatpush.msra.mxu0 %v4133
        %4892 = vmatpush.msra.mxu0 %v4129
        %4893 = vmatpush.msra.mxu0 %v4125
        %4894 = vmatpush.msra.mxu0 %v4121
        %4895 = vmatpush.msra.mxu0 %v4117
        %4896 = vmatpush.msra.mxu0 %v4113
        %4897 = vmatpush.msra.mxu0 %v4109
        %4898 = vmatpush.msra.mxu0 %v4105
        %4899 = vmatpush.msra.mxu0 %v4101
        %4900 = vmatpush.msra.mxu0 %v4097
        %4901 = vmatpush.msra.mxu0 %v4093
        %4902 = vmatpush.msra.mxu0 %v4089
        %4903 = vmatpush.msra.mxu0 %v4085
        %4904 = vmatpush.msra.mxu0 %v4081
        %4905 = vmatpush.msra.mxu0 %v4077
        %4906 = vmatpush.msra.mxu0 %v4073
        %4907 = vmatmul.f32.gmra.mxu0 %v3676
        %v4908 = vpop.f32.mrf.mxu0
        %v4909 = vadd.f32 %v4886, %v4908
        %4910 = vmatmul.f32.gmra.mxu0 %v3684
        %v4911 = vpop.f32.mrf.mxu0
        %v4912 = vadd.f32 %v4889, %v4911
        %4913 = vdwg.mxu0
        %4914 = vmatpush.msra.mxu0 0.0
        %4915 = vmatpush.msra.mxu0 0.0
        %4916 = vmatpush.msra.mxu0 0.0
        %4917 = vmatpush.msra.mxu0 0.0
        %4918 = vmatpush.msra.mxu0 %v4199
        %4919 = vmatpush.msra.mxu0 %v4177
        %4920 = vmatpush.msra.mxu0 %v4173
        %4921 = vmatpush.msra.mxu0 %v4169
        %4922 = vmatpush.msra.mxu0 %v4165
        %4923 = vmatpush.msra.mxu0 %v4161
        %4924 = vmatpush.msra.mxu0 %v4157
        %4925 = vmatpush.msra.mxu0 %v4153
        %4926 = vmatpush.msra.mxu0 %v4149
        %4927 = vmatpush.msra.mxu0 %v4145
        %4928 = vmatpush.msra.mxu0 %v4141
        %4929 = vmatpush.msra.mxu0 %v4137
        %4930 = vmatmul.f32.gmra.mxu0 %v4183
        %v4931 = vpop.f32.mrf.mxu0
        %v4932 = vadd.f32 %v4909, %v4931
        %4933 = vmatmul.f32.gmra.mxu0 %v4186
        %v4934 = vpop.f32.mrf.mxu0
        %v4935 = vadd.f32 %v4912, %v4934
        %4936 = vdwg.mxu0
        %v4937 = vld [vmem:[%s3] sm:$0xff]
        %v4938 = vld [vmem:[%s3 + $0x8] sm:$0xff]
        %v4939 = vld [vmem:[%s3 + $0x10] sm:$0xff]
        %v4940 = vld [vmem:[%s3 + $0x18] sm:$0xff]
        %s4941 = scalar_lea.vmem %s3, 32
        %v4942 = vld [vmem:[%s4941] sm:$0xff]
        %v4943 = vld [vmem:[%s4941 + $0x8] sm:$0xff]
        %v4944 = vld [vmem:[%s4941 + $0x10] sm:$0xff]
        %v4945 = vld [vmem:[%s4941 + $0x18] sm:$0xff]
        %4952 = vrot.lane.b32.xlu0 %v4380, 127
        %v4953 = vpop.permute.xlu0 %4952
        %4954 = vrot.lane.b32.xlu0 %v4564, 127
        %v4955 = vpop.permute.xlu0 %4954
        %4956 = vrot.lane.b32.xlu0 %v4748, 127
        %v4957 = vpop.permute.xlu0 %4956
        %4958 = vrot.lane.b32.xlu0 %v4383, 127
        %v4959 = vpop.permute.xlu0 %4958
        %4960 = vrot.lane.b32.xlu0 %v4567, 127
        %v4961 = vpop.permute.xlu0 %4960
        %4962 = vrot.lane.b32.xlu0 %v4751, 127
        %v4963 = vpop.permute.xlu0 %4962
        %v4964 = vsel %vm491, %v4953, %v4955
        %v4965 = vsel %vm491, %v4955, %v4957
        %v4966 = vsel %vm491, %v4959, %v4961
        %v4967 = vsel %vm491, %v4961, %v4963
        %vm4974 = vcmask 130048
        %v4976 = vsel %vm4974, %v4942, 0
        %v4979 = vsel %vm4974, %v4943, 0
        %v4982 = vsel %vm4974, %v4944, 0
        %v4985 = vsel %vm4974, %v4945, 0
        %4987 = vmatpush.msra.mxu0 0.0
        %4988 = vmatpush.msra.mxu0 0.0
        %4989 = vmatpush.msra.mxu0 0.0
        %4990 = vmatpush.msra.mxu0 0.0
        %4991 = vmatpush.msra.mxu0 0.0
        %4992 = vmatpush.msra.mxu0 0.0
        %4993 = vmatpush.msra.mxu0 0.0
        %4994 = vmatpush.msra.mxu0 0.0
        %4995 = vmatpush.msra.mxu0 0.0
        %4996 = vmatpush.msra.mxu0 0.0
        %4997 = vmatpush.msra.mxu0 0.0
        %4998 = vmatpush.msra.mxu0 0.0
        %4999 = vmatpush.msra.mxu0 0.0
        %5000 = vmatpush.msra.mxu0 0.0
        %5001 = vmatpush.msra.mxu0 %v4966
        %5002 = vmatpush.msra.mxu0 %v4964
        %5003 = vmatmul.f32.gmra.mxu0 %v4976
        %v5004 = vpop.f32.mrf.mxu0
        %v5005 = vadd.f32 0.0, %v5004
        %5006 = vmatmul.f32.gmra.mxu0 %v4979
        %v5007 = vpop.f32.mrf.mxu0
        %v5008 = vadd.f32 0.0, %v5007
        %5009 = vmatmul.f32.gmra.mxu0 %v4982
        %v5010 = vpop.f32.mrf.mxu0
        %v5011 = vadd.f32 0.0, %v5010
        %5012 = vmatmul.f32.gmra.mxu0 %v4985
        %v5013 = vpop.f32.mrf.mxu0
        %v5014 = vadd.f32 0.0, %v5013
        %5015 = vdwg.mxu0
        %5016 = vmatpush.msra.mxu0 0.0
        %5017 = vmatpush.msra.mxu0 0.0
        %5018 = vmatpush.msra.mxu0 0.0
        %5019 = vmatpush.msra.mxu0 0.0
        %5020 = vmatpush.msra.mxu0 0.0
        %5021 = vmatpush.msra.mxu0 0.0
        %5022 = vmatpush.msra.mxu0 0.0
        %5023 = vmatpush.msra.mxu0 0.0
        %5024 = vmatpush.msra.mxu0 0.0
        %5025 = vmatpush.msra.mxu0 0.0
        %5026 = vmatpush.msra.mxu0 0.0
        %5027 = vmatpush.msra.mxu0 0.0
        %5028 = vmatpush.msra.mxu0 0.0
        %5029 = vmatpush.msra.mxu0 0.0
        %5030 = vmatpush.msra.mxu0 %v4967
        %5031 = vmatpush.msra.mxu0 %v4965
        %5032 = vmatmul.f32.gmra.mxu0 %v4976
        %v5033 = vpop.f32.mrf.mxu0
        %v5034 = vadd.f32 0.0, %v5033
        %5035 = vmatmul.f32.gmra.mxu0 %v4979
        %v5036 = vpop.f32.mrf.mxu0
        %v5037 = vadd.f32 0.0, %v5036
        %5038 = vmatmul.f32.gmra.mxu0 %v4982
        %v5039 = vpop.f32.mrf.mxu0
        %v5040 = vadd.f32 0.0, %v5039
        %5041 = vmatmul.f32.gmra.mxu0 %v4985
        %v5042 = vpop.f32.mrf.mxu0
        %v5043 = vadd.f32 0.0, %v5042
        %5044 = vdwg.mxu0
        %5045 = vmatpush.msra.mxu0 0.0
        %5046 = vmatpush.msra.mxu0 0.0
        %5047 = vmatpush.msra.mxu0 0.0
        %5048 = vmatpush.msra.mxu0 0.0
        %5049 = vmatpush.msra.mxu0 0.0
        %5050 = vmatpush.msra.mxu0 0.0
        %5051 = vmatpush.msra.mxu0 0.0
        %5052 = vmatpush.msra.mxu0 0.0
        %5053 = vmatpush.msra.mxu0 0.0
        %5054 = vmatpush.msra.mxu0 0.0
        %5055 = vmatpush.msra.mxu0 0.0
        %5056 = vmatpush.msra.mxu0 0.0
        %5057 = vmatpush.msra.mxu0 0.0
        %5058 = vmatpush.msra.mxu0 0.0
        %5059 = vmatpush.msra.mxu0 %v4963
        %5060 = vmatpush.msra.mxu0 %v4957
        %5061 = vmatmul.f32.gmra.mxu0 %v4976
        %v5062 = vpop.f32.mrf.mxu0
        %v5063 = vadd.f32 0.0, %v5062
        %5064 = vmatmul.f32.gmra.mxu0 %v4979
        %v5065 = vpop.f32.mrf.mxu0
        %v5066 = vadd.f32 0.0, %v5065
        %5067 = vmatmul.f32.gmra.mxu0 %v4982
        %v5068 = vpop.f32.mrf.mxu0
        %v5069 = vadd.f32 0.0, %v5068
        %5070 = vmatmul.f32.gmra.mxu0 %v4985
        %v5071 = vpop.f32.mrf.mxu0
        %v5072 = vadd.f32 0.0, %v5071
        %5073 = vdwg.mxu0
        %v5075 = vsel %vm4974, %v4937, 0
        %v5078 = vsel %vm4974, %v4938, 0
        %v5081 = vsel %vm4974, %v4939, 0
        %v5084 = vsel %vm4974, %v4940, 0
        %5086 = vmatpush.msra.mxu0 0.0
        %5087 = vmatpush.msra.mxu0 0.0
        %5088 = vmatpush.msra.mxu0 0.0
        %5089 = vmatpush.msra.mxu0 0.0
        %5090 = vmatpush.msra.mxu0 0.0
        %5091 = vmatpush.msra.mxu0 0.0
        %5092 = vmatpush.msra.mxu0 0.0
        %5093 = vmatpush.msra.mxu0 0.0
        %5094 = vmatpush.msra.mxu0 0.0
        %5095 = vmatpush.msra.mxu0 0.0
        %5096 = vmatpush.msra.mxu0 0.0
        %5097 = vmatpush.msra.mxu0 0.0
        %5098 = vmatpush.msra.mxu0 0.0
        %5099 = vmatpush.msra.mxu0 0.0
        %5100 = vmatpush.msra.mxu0 %v4383
        %5101 = vmatpush.msra.mxu0 %v4380
        %5102 = vmatmul.f32.gmra.mxu0 %v5075
        %v5103 = vpop.f32.mrf.mxu0
        %v5104 = vadd.f32 %v5005, %v5103
        %5105 = vmatmul.f32.gmra.mxu0 %v5078
        %v5106 = vpop.f32.mrf.mxu0
        %v5107 = vadd.f32 %v5008, %v5106
        %5108 = vmatmul.f32.gmra.mxu0 %v5081
        %v5109 = vpop.f32.mrf.mxu0
        %v5110 = vadd.f32 %v5011, %v5109
        %5111 = vmatmul.f32.gmra.mxu0 %v5084
        %v5112 = vpop.f32.mrf.mxu0
        %v5113 = vadd.f32 %v5014, %v5112
        %5114 = vdwg.mxu0
        %5115 = vmatpush.msra.mxu0 0.0
        %5116 = vmatpush.msra.mxu0 0.0
        %5117 = vmatpush.msra.mxu0 0.0
        %5118 = vmatpush.msra.mxu0 0.0
        %5119 = vmatpush.msra.mxu0 0.0
        %5120 = vmatpush.msra.mxu0 0.0
        %5121 = vmatpush.msra.mxu0 0.0
        %5122 = vmatpush.msra.mxu0 0.0
        %5123 = vmatpush.msra.mxu0 0.0
        %5124 = vmatpush.msra.mxu0 0.0
        %5125 = vmatpush.msra.mxu0 0.0
        %5126 = vmatpush.msra.mxu0 0.0
        %5127 = vmatpush.msra.mxu0 0.0
        %5128 = vmatpush.msra.mxu0 0.0
        %5129 = vmatpush.msra.mxu0 %v4567
        %5130 = vmatpush.msra.mxu0 %v4564
        %5131 = vmatmul.f32.gmra.mxu0 %v5075
        %v5132 = vpop.f32.mrf.mxu0
        %v5133 = vadd.f32 %v5034, %v5132
        %5134 = vmatmul.f32.gmra.mxu0 %v5078
        %v5135 = vpop.f32.mrf.mxu0
        %v5136 = vadd.f32 %v5037, %v5135
        %5137 = vmatmul.f32.gmra.mxu0 %v5081
        %v5138 = vpop.f32.mrf.mxu0
        %v5139 = vadd.f32 %v5040, %v5138
        %5140 = vmatmul.f32.gmra.mxu0 %v5084
        %v5141 = vpop.f32.mrf.mxu0
        %v5142 = vadd.f32 %v5043, %v5141
        %5143 = vdwg.mxu0
        %5144 = vmatpush.msra.mxu0 0.0
        %5145 = vmatpush.msra.mxu0 0.0
        %5146 = vmatpush.msra.mxu0 0.0
        %5147 = vmatpush.msra.mxu0 0.0
        %5148 = vmatpush.msra.mxu0 0.0
        %5149 = vmatpush.msra.mxu0 0.0
        %5150 = vmatpush.msra.mxu0 0.0
        %5151 = vmatpush.msra.mxu0 0.0
        %5152 = vmatpush.msra.mxu0 0.0
        %5153 = vmatpush.msra.mxu0 0.0
        %5154 = vmatpush.msra.mxu0 0.0
        %5155 = vmatpush.msra.mxu0 0.0
        %5156 = vmatpush.msra.mxu0 0.0
        %5157 = vmatpush.msra.mxu0 0.0
        %5158 = vmatpush.msra.mxu0 %v4751
        %5159 = vmatpush.msra.mxu0 %v4748
        %5160 = vmatmul.f32.gmra.mxu0 %v5075
        %v5161 = vpop.f32.mrf.mxu0
        %v5162 = vadd.f32 %v5063, %v5161
        %5163 = vmatmul.f32.gmra.mxu0 %v5078
        %v5164 = vpop.f32.mrf.mxu0
        %v5165 = vadd.f32 %v5066, %v5164
        %5166 = vmatmul.f32.gmra.mxu0 %v5081
        %v5167 = vpop.f32.mrf.mxu0
        %v5168 = vadd.f32 %v5069, %v5167
        %5169 = vmatmul.f32.gmra.mxu0 %v5084
        %v5170 = vpop.f32.mrf.mxu0
        %v5171 = vadd.f32 %v5072, %v5170
        %5172 = vdwg.mxu0
        %s5173 = scalar_lea.vmem %s3, 64
        %v5174 = vld [vmem:[%s5173] sm:$0xff]
        %v5175 = vld [vmem:[%s5173 + $0x8] sm:$0xff]
        %v5176 = vld [vmem:[%s5173 + $0x10] sm:$0xff]
        %v5177 = vld [vmem:[%s5173 + $0x18] sm:$0xff]
        %5178 = vrot.lane.b32.xlu0 %v4380, 126
        %v5179 = vpop.permute.xlu0 %5178
        %5180 = vrot.lane.b32.xlu0 %v4564, 126
        %v5181 = vpop.permute.xlu0 %5180
        %5182 = vrot.lane.b32.xlu0 %v4748, 126
        %v5183 = vpop.permute.xlu0 %5182
        %5184 = vrot.lane.b32.xlu0 %v4383, 126
        %v5185 = vpop.permute.xlu0 %5184
        %5186 = vrot.lane.b32.xlu0 %v4567, 126
        %v5187 = vpop.permute.xlu0 %5186
        %5188 = vrot.lane.b32.xlu0 %v4751, 126
        %v5189 = vpop.permute.xlu0 %5188
        %v5190 = vsel %vm620, %v5179, %v5181
        %v5191 = vsel %vm620, %v5181, %v5183
        %v5192 = vsel %vm620, %v5185, %v5187
        %v5193 = vsel %vm620, %v5187, %v5189
        %v5201 = vsel %vm4974, %v5174, 0
        %v5204 = vsel %vm4974, %v5175, 0
        %v5207 = vsel %vm4974, %v5176, 0
        %v5210 = vsel %vm4974, %v5177, 0
        %5212 = vmatpush.msra.mxu0 0.0
        %5213 = vmatpush.msra.mxu0 0.0
        %5214 = vmatpush.msra.mxu0 0.0
        %5215 = vmatpush.msra.mxu0 0.0
        %5216 = vmatpush.msra.mxu0 0.0
        %5217 = vmatpush.msra.mxu0 0.0
        %5218 = vmatpush.msra.mxu0 0.0
        %5219 = vmatpush.msra.mxu0 0.0
        %5220 = vmatpush.msra.mxu0 0.0
        %5221 = vmatpush.msra.mxu0 0.0
        %5222 = vmatpush.msra.mxu0 0.0
        %5223 = vmatpush.msra.mxu0 0.0
        %5224 = vmatpush.msra.mxu0 0.0
        %5225 = vmatpush.msra.mxu0 0.0
        %5226 = vmatpush.msra.mxu0 %v5192
        %5227 = vmatpush.msra.mxu0 %v5190
        %5228 = vmatmul.f32.gmra.mxu0 %v5201
        %v5229 = vpop.f32.mrf.mxu0
        %v5230 = vadd.f32 0.0, %v5229
        %5231 = vmatmul.f32.gmra.mxu0 %v5204
        %v5232 = vpop.f32.mrf.mxu0
        %v5233 = vadd.f32 0.0, %v5232
        %5234 = vmatmul.f32.gmra.mxu0 %v5207
        %v5235 = vpop.f32.mrf.mxu0
        %v5236 = vadd.f32 0.0, %v5235
        %5237 = vmatmul.f32.gmra.mxu0 %v5210
        %v5238 = vpop.f32.mrf.mxu0
        %v5239 = vadd.f32 0.0, %v5238
        %5240 = vdwg.mxu0
        %5241 = vmatpush.msra.mxu0 0.0
        %5242 = vmatpush.msra.mxu0 0.0
        %5243 = vmatpush.msra.mxu0 0.0
        %5244 = vmatpush.msra.mxu0 0.0
        %5245 = vmatpush.msra.mxu0 0.0
        %5246 = vmatpush.msra.mxu0 0.0
        %5247 = vmatpush.msra.mxu0 0.0
        %5248 = vmatpush.msra.mxu0 0.0
        %5249 = vmatpush.msra.mxu0 0.0
        %5250 = vmatpush.msra.mxu0 0.0
        %5251 = vmatpush.msra.mxu0 0.0
        %5252 = vmatpush.msra.mxu0 0.0
        %5253 = vmatpush.msra.mxu0 0.0
        %5254 = vmatpush.msra.mxu0 0.0
        %5255 = vmatpush.msra.mxu0 %v5193
        %5256 = vmatpush.msra.mxu0 %v5191
        %5257 = vmatmul.f32.gmra.mxu0 %v5201
        %v5258 = vpop.f32.mrf.mxu0
        %v5259 = vadd.f32 0.0, %v5258
        %5260 = vmatmul.f32.gmra.mxu0 %v5204
        %v5261 = vpop.f32.mrf.mxu0
        %v5262 = vadd.f32 0.0, %v5261
        %5263 = vmatmul.f32.gmra.mxu0 %v5207
        %v5264 = vpop.f32.mrf.mxu0
        %v5265 = vadd.f32 0.0, %v5264
        %5266 = vmatmul.f32.gmra.mxu0 %v5210
        %v5267 = vpop.f32.mrf.mxu0
        %v5268 = vadd.f32 0.0, %v5267
        %5269 = vdwg.mxu0
        %5270 = vmatpush.msra.mxu0 0.0
        %5271 = vmatpush.msra.mxu0 0.0
        %5272 = vmatpush.msra.mxu0 0.0
        %5273 = vmatpush.msra.mxu0 0.0
        %5274 = vmatpush.msra.mxu0 0.0
        %5275 = vmatpush.msra.mxu0 0.0
        %5276 = vmatpush.msra.mxu0 0.0
        %5277 = vmatpush.msra.mxu0 0.0
        %5278 = vmatpush.msra.mxu0 0.0
        %5279 = vmatpush.msra.mxu0 0.0
        %5280 = vmatpush.msra.mxu0 0.0
        %5281 = vmatpush.msra.mxu0 0.0
        %5282 = vmatpush.msra.mxu0 0.0
        %5283 = vmatpush.msra.mxu0 0.0
        %5284 = vmatpush.msra.mxu0 %v5189
        %5285 = vmatpush.msra.mxu0 %v5183
        %5286 = vmatmul.f32.gmra.mxu0 %v5201
        %v5287 = vpop.f32.mrf.mxu0
        %v5288 = vadd.f32 0.0, %v5287
        %5289 = vmatmul.f32.gmra.mxu0 %v5204
        %v5290 = vpop.f32.mrf.mxu0
        %v5291 = vadd.f32 0.0, %v5290
        %5292 = vmatmul.f32.gmra.mxu0 %v5207
        %v5293 = vpop.f32.mrf.mxu0
        %v5294 = vadd.f32 0.0, %v5293
        %5295 = vmatmul.f32.gmra.mxu0 %v5210
        %v5296 = vpop.f32.mrf.mxu0
        %v5297 = vadd.f32 0.0, %v5296
        %5298 = vdwg.mxu0
        %v5299 = vadd.f32 %v5104, %v5230
        %v5300 = vadd.f32 %v5133, %v5259
        %v5301 = vadd.f32 %v5162, %v5288
        %v5302 = vadd.f32 %v5107, %v5233
        %v5303 = vadd.f32 %v5136, %v5262
        %v5304 = vadd.f32 %v5165, %v5291
        %v5305 = vadd.f32 %v5110, %v5236
        %v5306 = vadd.f32 %v5139, %v5265
        %v5307 = vadd.f32 %v5168, %v5294
        %v5308 = vadd.f32 %v5113, %v5239
        %v5309 = vadd.f32 %v5142, %v5268
        %v5310 = vadd.f32 %v5171, %v5297
        %s5311 = scalar_lea.vmem %s3, 96
        %v5312 = vld [vmem:[%s5311] sm:$0xff]
        %v5313 = vld [vmem:[%s5311 + $0x8] sm:$0xff]
        %v5314 = vld [vmem:[%s5311 + $0x10] sm:$0xff]
        %v5315 = vld [vmem:[%s5311 + $0x18] sm:$0xff]
        %5316 = vrot.lane.b32.xlu0 %v4380, 125
        %v5317 = vpop.permute.xlu0 %5316
        %5318 = vrot.lane.b32.xlu0 %v4564, 125
        %v5319 = vpop.permute.xlu0 %5318
        %5320 = vrot.lane.b32.xlu0 %v4748, 125
        %v5321 = vpop.permute.xlu0 %5320
        %5322 = vrot.lane.b32.xlu0 %v4383, 125
        %v5323 = vpop.permute.xlu0 %5322
        %5324 = vrot.lane.b32.xlu0 %v4567, 125
        %v5325 = vpop.permute.xlu0 %5324
        %5326 = vrot.lane.b32.xlu0 %v4751, 125
        %v5327 = vpop.permute.xlu0 %5326
        %v5328 = vsel %vm749, %v5317, %v5319
        %v5329 = vsel %vm749, %v5319, %v5321
        %v5330 = vsel %vm749, %v5323, %v5325
        %v5331 = vsel %vm749, %v5325, %v5327
        %v5339 = vsel %vm4974, %v5312, 0
        %v5342 = vsel %vm4974, %v5313, 0
        %v5345 = vsel %vm4974, %v5314, 0
        %v5348 = vsel %vm4974, %v5315, 0
        %5350 = vmatpush.msra.mxu0 0.0
        %5351 = vmatpush.msra.mxu0 0.0
        %5352 = vmatpush.msra.mxu0 0.0
        %5353 = vmatpush.msra.mxu0 0.0
        %5354 = vmatpush.msra.mxu0 0.0
        %5355 = vmatpush.msra.mxu0 0.0
        %5356 = vmatpush.msra.mxu0 0.0
        %5357 = vmatpush.msra.mxu0 0.0
        %5358 = vmatpush.msra.mxu0 0.0
        %5359 = vmatpush.msra.mxu0 0.0
        %5360 = vmatpush.msra.mxu0 0.0
        %5361 = vmatpush.msra.mxu0 0.0
        %5362 = vmatpush.msra.mxu0 0.0
        %5363 = vmatpush.msra.mxu0 0.0
        %5364 = vmatpush.msra.mxu0 %v5330
        %5365 = vmatpush.msra.mxu0 %v5328
        %5366 = vmatmul.f32.gmra.mxu0 %v5339
        %v5367 = vpop.f32.mrf.mxu0
        %v5368 = vadd.f32 0.0, %v5367
        %5369 = vmatmul.f32.gmra.mxu0 %v5342
        %v5370 = vpop.f32.mrf.mxu0
        %v5371 = vadd.f32 0.0, %v5370
        %5372 = vmatmul.f32.gmra.mxu0 %v5345
        %v5373 = vpop.f32.mrf.mxu0
        %v5374 = vadd.f32 0.0, %v5373
        %5375 = vmatmul.f32.gmra.mxu0 %v5348
        %v5376 = vpop.f32.mrf.mxu0
        %v5377 = vadd.f32 0.0, %v5376
        %5378 = vdwg.mxu0
        %5379 = vmatpush.msra.mxu0 0.0
        %5380 = vmatpush.msra.mxu0 0.0
        %5381 = vmatpush.msra.mxu0 0.0
        %5382 = vmatpush.msra.mxu0 0.0
        %5383 = vmatpush.msra.mxu0 0.0
        %5384 = vmatpush.msra.mxu0 0.0
        %5385 = vmatpush.msra.mxu0 0.0
        %5386 = vmatpush.msra.mxu0 0.0
        %5387 = vmatpush.msra.mxu0 0.0
        %5388 = vmatpush.msra.mxu0 0.0
        %5389 = vmatpush.msra.mxu0 0.0
        %5390 = vmatpush.msra.mxu0 0.0
        %5391 = vmatpush.msra.mxu0 0.0
        %5392 = vmatpush.msra.mxu0 0.0
        %5393 = vmatpush.msra.mxu0 %v5331
        %5394 = vmatpush.msra.mxu0 %v5329
        %5395 = vmatmul.f32.gmra.mxu0 %v5339
        %v5396 = vpop.f32.mrf.mxu0
        %v5397 = vadd.f32 0.0, %v5396
        %5398 = vmatmul.f32.gmra.mxu0 %v5342
        %v5399 = vpop.f32.mrf.mxu0
        %v5400 = vadd.f32 0.0, %v5399
        %5401 = vmatmul.f32.gmra.mxu0 %v5345
        %v5402 = vpop.f32.mrf.mxu0
        %v5403 = vadd.f32 0.0, %v5402
        %5404 = vmatmul.f32.gmra.mxu0 %v5348
        %v5405 = vpop.f32.mrf.mxu0
        %v5406 = vadd.f32 0.0, %v5405
        %5407 = vdwg.mxu0
        %5408 = vmatpush.msra.mxu0 0.0
        %5409 = vmatpush.msra.mxu0 0.0
        %5410 = vmatpush.msra.mxu0 0.0
        %5411 = vmatpush.msra.mxu0 0.0
        %5412 = vmatpush.msra.mxu0 0.0
        %5413 = vmatpush.msra.mxu0 0.0
        %5414 = vmatpush.msra.mxu0 0.0
        %5415 = vmatpush.msra.mxu0 0.0
        %5416 = vmatpush.msra.mxu0 0.0
        %5417 = vmatpush.msra.mxu0 0.0
        %5418 = vmatpush.msra.mxu0 0.0
        %5419 = vmatpush.msra.mxu0 0.0
        %5420 = vmatpush.msra.mxu0 0.0
        %5421 = vmatpush.msra.mxu0 0.0
        %5422 = vmatpush.msra.mxu0 %v5327
        %5423 = vmatpush.msra.mxu0 %v5321
        %5424 = vmatmul.f32.gmra.mxu0 %v5339
        %v5425 = vpop.f32.mrf.mxu0
        %v5426 = vadd.f32 0.0, %v5425
        %5427 = vmatmul.f32.gmra.mxu0 %v5342
        %v5428 = vpop.f32.mrf.mxu0
        %v5429 = vadd.f32 0.0, %v5428
        %5430 = vmatmul.f32.gmra.mxu0 %v5345
        %v5431 = vpop.f32.mrf.mxu0
        %v5432 = vadd.f32 0.0, %v5431
        %5433 = vmatmul.f32.gmra.mxu0 %v5348
        %v5434 = vpop.f32.mrf.mxu0
        %v5435 = vadd.f32 0.0, %v5434
        %5436 = vdwg.mxu0
        %v5437 = vadd.f32 %v5299, %v5368
        %v5438 = vadd.f32 %v5300, %v5397
        %v5439 = vadd.f32 %v5301, %v5426
        %v5440 = vadd.f32 %v5302, %v5371
        %v5441 = vadd.f32 %v5303, %v5400
        %v5442 = vadd.f32 %v5304, %v5429
        %v5443 = vadd.f32 %v5305, %v5374
        %v5444 = vadd.f32 %v5306, %v5403
        %v5445 = vadd.f32 %v5307, %v5432
        %v5446 = vadd.f32 %v5308, %v5377
        %v5447 = vadd.f32 %v5309, %v5406
        %v5448 = vadd.f32 %v5310, %v5435
        %s5449 = scalar_lea.vmem %s3, 128
        %v5450 = vld [vmem:[%s5449] sm:$0xff]
        %v5451 = vld [vmem:[%s5449 + $0x8] sm:$0xff]
        %v5452 = vld [vmem:[%s5449 + $0x10] sm:$0xff]
        %v5453 = vld [vmem:[%s5449 + $0x18] sm:$0xff]
        %5454 = vrot.lane.b32.xlu0 %v4380, 124
        %v5455 = vpop.permute.xlu0 %5454
        %5456 = vrot.lane.b32.xlu0 %v4564, 124
        %v5457 = vpop.permute.xlu0 %5456
        %5458 = vrot.lane.b32.xlu0 %v4748, 124
        %v5459 = vpop.permute.xlu0 %5458
        %5460 = vrot.lane.b32.xlu0 %v4383, 124
        %v5461 = vpop.permute.xlu0 %5460
        %5462 = vrot.lane.b32.xlu0 %v4567, 124
        %v5463 = vpop.permute.xlu0 %5462
        %5464 = vrot.lane.b32.xlu0 %v4751, 124
        %v5465 = vpop.permute.xlu0 %5464
        %v5466 = vsel %vm878, %v5455, %v5457
        %v5467 = vsel %vm878, %v5457, %v5459
        %v5468 = vsel %vm878, %v5461, %v5463
        %v5469 = vsel %vm878, %v5463, %v5465
        %v5477 = vsel %vm4974, %v5450, 0
        %v5480 = vsel %vm4974, %v5451, 0
        %v5483 = vsel %vm4974, %v5452, 0
        %v5486 = vsel %vm4974, %v5453, 0
        %5488 = vmatpush.msra.mxu0 0.0
        %5489 = vmatpush.msra.mxu0 0.0
        %5490 = vmatpush.msra.mxu0 0.0
        %5491 = vmatpush.msra.mxu0 0.0
        %5492 = vmatpush.msra.mxu0 0.0
        %5493 = vmatpush.msra.mxu0 0.0
        %5494 = vmatpush.msra.mxu0 0.0
        %5495 = vmatpush.msra.mxu0 0.0
        %5496 = vmatpush.msra.mxu0 0.0
        %5497 = vmatpush.msra.mxu0 0.0
        %5498 = vmatpush.msra.mxu0 0.0
        %5499 = vmatpush.msra.mxu0 0.0
        %5500 = vmatpush.msra.mxu0 0.0
        %5501 = vmatpush.msra.mxu0 0.0
        %5502 = vmatpush.msra.mxu0 %v5468
        %5503 = vmatpush.msra.mxu0 %v5466
        %5504 = vmatmul.f32.gmra.mxu0 %v5477
        %v5505 = vpop.f32.mrf.mxu0
        %v5506 = vadd.f32 0.0, %v5505
        %5507 = vmatmul.f32.gmra.mxu0 %v5480
        %v5508 = vpop.f32.mrf.mxu0
        %v5509 = vadd.f32 0.0, %v5508
        %5510 = vmatmul.f32.gmra.mxu0 %v5483
        %v5511 = vpop.f32.mrf.mxu0
        %v5512 = vadd.f32 0.0, %v5511
        %5513 = vmatmul.f32.gmra.mxu0 %v5486
        %v5514 = vpop.f32.mrf.mxu0
        %v5515 = vadd.f32 0.0, %v5514
        %5516 = vdwg.mxu0
        %5517 = vmatpush.msra.mxu0 0.0
        %5518 = vmatpush.msra.mxu0 0.0
        %5519 = vmatpush.msra.mxu0 0.0
        %5520 = vmatpush.msra.mxu0 0.0
        %5521 = vmatpush.msra.mxu0 0.0
        %5522 = vmatpush.msra.mxu0 0.0
        %5523 = vmatpush.msra.mxu0 0.0
        %5524 = vmatpush.msra.mxu0 0.0
        %5525 = vmatpush.msra.mxu0 0.0
        %5526 = vmatpush.msra.mxu0 0.0
        %5527 = vmatpush.msra.mxu0 0.0
        %5528 = vmatpush.msra.mxu0 0.0
        %5529 = vmatpush.msra.mxu0 0.0
        %5530 = vmatpush.msra.mxu0 0.0
        %5531 = vmatpush.msra.mxu0 %v5469
        %5532 = vmatpush.msra.mxu0 %v5467
        %5533 = vmatmul.f32.gmra.mxu0 %v5477
        %v5534 = vpop.f32.mrf.mxu0
        %v5535 = vadd.f32 0.0, %v5534
        %5536 = vmatmul.f32.gmra.mxu0 %v5480
        %v5537 = vpop.f32.mrf.mxu0
        %v5538 = vadd.f32 0.0, %v5537
        %5539 = vmatmul.f32.gmra.mxu0 %v5483
        %v5540 = vpop.f32.mrf.mxu0
        %v5541 = vadd.f32 0.0, %v5540
        %5542 = vmatmul.f32.gmra.mxu0 %v5486
        %v5543 = vpop.f32.mrf.mxu0
        %v5544 = vadd.f32 0.0, %v5543
        %5545 = vdwg.mxu0
        %5546 = vmatpush.msra.mxu0 0.0
        %5547 = vmatpush.msra.mxu0 0.0
        %5548 = vmatpush.msra.mxu0 0.0
        %5549 = vmatpush.msra.mxu0 0.0
        %5550 = vmatpush.msra.mxu0 0.0
        %5551 = vmatpush.msra.mxu0 0.0
        %5552 = vmatpush.msra.mxu0 0.0
        %5553 = vmatpush.msra.mxu0 0.0
        %5554 = vmatpush.msra.mxu0 0.0
        %5555 = vmatpush.msra.mxu0 0.0
        %5556 = vmatpush.msra.mxu0 0.0
        %5557 = vmatpush.msra.mxu0 0.0
        %5558 = vmatpush.msra.mxu0 0.0
        %5559 = vmatpush.msra.mxu0 0.0
        %5560 = vmatpush.msra.mxu0 %v5465
        %5561 = vmatpush.msra.mxu0 %v5459
        %5562 = vmatmul.f32.gmra.mxu0 %v5477
        %v5563 = vpop.f32.mrf.mxu0
        %v5564 = vadd.f32 0.0, %v5563
        %5565 = vmatmul.f32.gmra.mxu0 %v5480
        %v5566 = vpop.f32.mrf.mxu0
        %v5567 = vadd.f32 0.0, %v5566
        %5568 = vmatmul.f32.gmra.mxu0 %v5483
        %v5569 = vpop.f32.mrf.mxu0
        %v5570 = vadd.f32 0.0, %v5569
        %5571 = vmatmul.f32.gmra.mxu0 %v5486
        %v5572 = vpop.f32.mrf.mxu0
        %v5573 = vadd.f32 0.0, %v5572
        %5574 = vdwg.mxu0
        %v5575 = vadd.f32 %v5437, %v5506
        %v5576 = vadd.f32 %v5438, %v5535
        %v5577 = vadd.f32 %v5439, %v5564
        %v5578 = vadd.f32 %v5440, %v5509
        %v5579 = vadd.f32 %v5441, %v5538
        %v5580 = vadd.f32 %v5442, %v5567
        %v5581 = vadd.f32 %v5443, %v5512
        %v5582 = vadd.f32 %v5444, %v5541
        %v5583 = vadd.f32 %v5445, %v5570
        %v5584 = vadd.f32 %v5446, %v5515
        %v5585 = vadd.f32 %v5447, %v5544
        %v5586 = vadd.f32 %v5448, %v5573
        %s5587 = scalar_lea.vmem %s3, 160
        %v5588 = vld [vmem:[%s5587] sm:$0xff]
        %v5589 = vld [vmem:[%s5587 + $0x8] sm:$0xff]
        %v5590 = vld [vmem:[%s5587 + $0x10] sm:$0xff]
        %v5591 = vld [vmem:[%s5587 + $0x18] sm:$0xff]
        %5592 = vrot.lane.b32.xlu0 %v4380, 110
        %v5593 = vpop.permute.xlu0 %5592
        %5594 = vrot.lane.b32.xlu0 %v4564, 110
        %v5595 = vpop.permute.xlu0 %5594
        %5596 = vrot.lane.b32.xlu0 %v4748, 110
        %v5597 = vpop.permute.xlu0 %5596
        %5598 = vrot.lane.b32.xlu0 %v4383, 110
        %v5599 = vpop.permute.xlu0 %5598
        %5600 = vrot.lane.b32.xlu0 %v4567, 110
        %v5601 = vpop.permute.xlu0 %5600
        %5602 = vrot.lane.b32.xlu0 %v4751, 110
        %v5603 = vpop.permute.xlu0 %5602
        %vm5604 = vcmask 900096
        %v5605 = vsel %vm5604, %v5593, %v5595
        %v5606 = vsel %vm5604, %v5595, %v5597
        %v5607 = vsel %vm5604, %v5599, %v5601
        %v5608 = vsel %vm5604, %v5601, %v5603
        %v5616 = vsel %vm4974, %v5588, 0
        %v5619 = vsel %vm4974, %v5589, 0
        %v5622 = vsel %vm4974, %v5590, 0
        %v5625 = vsel %vm4974, %v5591, 0
        %5627 = vmatpush.msra.mxu0 0.0
        %5628 = vmatpush.msra.mxu0 0.0
        %5629 = vmatpush.msra.mxu0 0.0
        %5630 = vmatpush.msra.mxu0 0.0
        %5631 = vmatpush.msra.mxu0 0.0
        %5632 = vmatpush.msra.mxu0 0.0
        %5633 = vmatpush.msra.mxu0 0.0
        %5634 = vmatpush.msra.mxu0 0.0
        %5635 = vmatpush.msra.mxu0 0.0
        %5636 = vmatpush.msra.mxu0 0.0
        %5637 = vmatpush.msra.mxu0 0.0
        %5638 = vmatpush.msra.mxu0 0.0
        %5639 = vmatpush.msra.mxu0 0.0
        %5640 = vmatpush.msra.mxu0 0.0
        %5641 = vmatpush.msra.mxu0 %v5607
        %5642 = vmatpush.msra.mxu0 %v5605
        %5643 = vmatmul.f32.gmra.mxu0 %v5616
        %v5644 = vpop.f32.mrf.mxu0
        %v5645 = vadd.f32 0.0, %v5644
        %5646 = vmatmul.f32.gmra.mxu0 %v5619
        %v5647 = vpop.f32.mrf.mxu0
        %v5648 = vadd.f32 0.0, %v5647
        %5649 = vmatmul.f32.gmra.mxu0 %v5622
        %v5650 = vpop.f32.mrf.mxu0
        %v5651 = vadd.f32 0.0, %v5650
        %5652 = vmatmul.f32.gmra.mxu0 %v5625
        %v5653 = vpop.f32.mrf.mxu0
        %v5654 = vadd.f32 0.0, %v5653
        %5655 = vdwg.mxu0
        %5656 = vmatpush.msra.mxu0 0.0
        %5657 = vmatpush.msra.mxu0 0.0
        %5658 = vmatpush.msra.mxu0 0.0
        %5659 = vmatpush.msra.mxu0 0.0
        %5660 = vmatpush.msra.mxu0 0.0
        %5661 = vmatpush.msra.mxu0 0.0
        %5662 = vmatpush.msra.mxu0 0.0
        %5663 = vmatpush.msra.mxu0 0.0
        %5664 = vmatpush.msra.mxu0 0.0
        %5665 = vmatpush.msra.mxu0 0.0
        %5666 = vmatpush.msra.mxu0 0.0
        %5667 = vmatpush.msra.mxu0 0.0
        %5668 = vmatpush.msra.mxu0 0.0
        %5669 = vmatpush.msra.mxu0 0.0
        %5670 = vmatpush.msra.mxu0 %v5608
        %5671 = vmatpush.msra.mxu0 %v5606
        %5672 = vmatmul.f32.gmra.mxu0 %v5616
        %v5673 = vpop.f32.mrf.mxu0
        %v5674 = vadd.f32 0.0, %v5673
        %5675 = vmatmul.f32.gmra.mxu0 %v5619
        %v5676 = vpop.f32.mrf.mxu0
        %v5677 = vadd.f32 0.0, %v5676
        %5678 = vmatmul.f32.gmra.mxu0 %v5622
        %v5679 = vpop.f32.mrf.mxu0
        %v5680 = vadd.f32 0.0, %v5679
        %5681 = vmatmul.f32.gmra.mxu0 %v5625
        %v5682 = vpop.f32.mrf.mxu0
        %v5683 = vadd.f32 0.0, %v5682
        %5684 = vdwg.mxu0
        %5685 = vmatpush.msra.mxu0 0.0
        %5686 = vmatpush.msra.mxu0 0.0
        %5687 = vmatpush.msra.mxu0 0.0
        %5688 = vmatpush.msra.mxu0 0.0
        %5689 = vmatpush.msra.mxu0 0.0
        %5690 = vmatpush.msra.mxu0 0.0
        %5691 = vmatpush.msra.mxu0 0.0
        %5692 = vmatpush.msra.mxu0 0.0
        %5693 = vmatpush.msra.mxu0 0.0
        %5694 = vmatpush.msra.mxu0 0.0
        %5695 = vmatpush.msra.mxu0 0.0
        %5696 = vmatpush.msra.mxu0 0.0
        %5697 = vmatpush.msra.mxu0 0.0
        %5698 = vmatpush.msra.mxu0 0.0
        %5699 = vmatpush.msra.mxu0 %v5603
        %5700 = vmatpush.msra.mxu0 %v5597
        %5701 = vmatmul.f32.gmra.mxu0 %v5616
        %v5702 = vpop.f32.mrf.mxu0
        %v5703 = vadd.f32 0.0, %v5702
        %5704 = vmatmul.f32.gmra.mxu0 %v5619
        %v5705 = vpop.f32.mrf.mxu0
        %v5706 = vadd.f32 0.0, %v5705
        %5707 = vmatmul.f32.gmra.mxu0 %v5622
        %v5708 = vpop.f32.mrf.mxu0
        %v5709 = vadd.f32 0.0, %v5708
        %5710 = vmatmul.f32.gmra.mxu0 %v5625
        %v5711 = vpop.f32.mrf.mxu0
        %v5712 = vadd.f32 0.0, %v5711
        %5713 = vdwg.mxu0
        %v5714 = vadd.f32 %v5575, %v5645
        %v5715 = vadd.f32 %v5576, %v5674
        %v5716 = vadd.f32 %v5577, %v5703
        %v5717 = vadd.f32 %v5578, %v5648
        %v5718 = vadd.f32 %v5579, %v5677
        %v5719 = vadd.f32 %v5580, %v5706
        %v5720 = vadd.f32 %v5581, %v5651
        %v5721 = vadd.f32 %v5582, %v5680
        %v5722 = vadd.f32 %v5583, %v5709
        %v5723 = vadd.f32 %v5584, %v5654
        %v5724 = vadd.f32 %v5585, %v5683
        %v5725 = vadd.f32 %v5586, %v5712
        %s5726 = scalar_lea.vmem %s3, 192
        %v5727 = vld [vmem:[%s5726] sm:$0xff]
        %v5728 = vld [vmem:[%s5726 + $0x8] sm:$0xff]
        %v5729 = vld [vmem:[%s5726 + $0x10] sm:$0xff]
        %v5730 = vld [vmem:[%s5726 + $0x18] sm:$0xff]
        %5731 = vrot.lane.b32.xlu0 %v4380, 109
        %v5732 = vpop.permute.xlu0 %5731
        %5733 = vrot.lane.b32.xlu0 %v4564, 109
        %v5734 = vpop.permute.xlu0 %5733
        %5735 = vrot.lane.b32.xlu0 %v4748, 109
        %v5736 = vpop.permute.xlu0 %5735
        %5737 = vrot.lane.b32.xlu0 %v4383, 109
        %v5738 = vpop.permute.xlu0 %5737
        %5739 = vrot.lane.b32.xlu0 %v4567, 109
        %v5740 = vpop.permute.xlu0 %5739
        %5741 = vrot.lane.b32.xlu0 %v4751, 109
        %v5742 = vpop.permute.xlu0 %5741
        %vm5743 = vcmask 891904
        %v5744 = vsel %vm5743, %v5732, %v5734
        %v5745 = vsel %vm5743, %v5734, %v5736
        %v5746 = vsel %vm5743, %v5738, %v5740
        %v5747 = vsel %vm5743, %v5740, %v5742
        %v5755 = vsel %vm4974, %v5727, 0
        %v5758 = vsel %vm4974, %v5728, 0
        %v5761 = vsel %vm4974, %v5729, 0
        %v5764 = vsel %vm4974, %v5730, 0
        %5766 = vmatpush.msra.mxu0 0.0
        %5767 = vmatpush.msra.mxu0 0.0
        %5768 = vmatpush.msra.mxu0 0.0
        %5769 = vmatpush.msra.mxu0 0.0
        %5770 = vmatpush.msra.mxu0 0.0
        %5771 = vmatpush.msra.mxu0 0.0
        %5772 = vmatpush.msra.mxu0 0.0
        %5773 = vmatpush.msra.mxu0 0.0
        %5774 = vmatpush.msra.mxu0 0.0
        %5775 = vmatpush.msra.mxu0 0.0
        %5776 = vmatpush.msra.mxu0 0.0
        %5777 = vmatpush.msra.mxu0 0.0
        %5778 = vmatpush.msra.mxu0 0.0
        %5779 = vmatpush.msra.mxu0 0.0
        %5780 = vmatpush.msra.mxu0 %v5746
        %5781 = vmatpush.msra.mxu0 %v5744
        %5782 = vmatmul.f32.gmra.mxu0 %v5755
        %v5783 = vpop.f32.mrf.mxu0
        %v5784 = vadd.f32 0.0, %v5783
        %5785 = vmatmul.f32.gmra.mxu0 %v5758
        %v5786 = vpop.f32.mrf.mxu0
        %v5787 = vadd.f32 0.0, %v5786
        %5788 = vmatmul.f32.gmra.mxu0 %v5761
        %v5789 = vpop.f32.mrf.mxu0
        %v5790 = vadd.f32 0.0, %v5789
        %5791 = vmatmul.f32.gmra.mxu0 %v5764
        %v5792 = vpop.f32.mrf.mxu0
        %v5793 = vadd.f32 0.0, %v5792
        %5794 = vdwg.mxu0
        %5795 = vmatpush.msra.mxu0 0.0
        %5796 = vmatpush.msra.mxu0 0.0
        %5797 = vmatpush.msra.mxu0 0.0
        %5798 = vmatpush.msra.mxu0 0.0
        %5799 = vmatpush.msra.mxu0 0.0
        %5800 = vmatpush.msra.mxu0 0.0
        %5801 = vmatpush.msra.mxu0 0.0
        %5802 = vmatpush.msra.mxu0 0.0
        %5803 = vmatpush.msra.mxu0 0.0
        %5804 = vmatpush.msra.mxu0 0.0
        %5805 = vmatpush.msra.mxu0 0.0
        %5806 = vmatpush.msra.mxu0 0.0
        %5807 = vmatpush.msra.mxu0 0.0
        %5808 = vmatpush.msra.mxu0 0.0
        %5809 = vmatpush.msra.mxu0 %v5747
        %5810 = vmatpush.msra.mxu0 %v5745
        %5811 = vmatmul.f32.gmra.mxu0 %v5755
        %v5812 = vpop.f32.mrf.mxu0
        %v5813 = vadd.f32 0.0, %v5812
        %5814 = vmatmul.f32.gmra.mxu0 %v5758
        %v5815 = vpop.f32.mrf.mxu0
        %v5816 = vadd.f32 0.0, %v5815
        %5817 = vmatmul.f32.gmra.mxu0 %v5761
        %v5818 = vpop.f32.mrf.mxu0
        %v5819 = vadd.f32 0.0, %v5818
        %5820 = vmatmul.f32.gmra.mxu0 %v5764
        %v5821 = vpop.f32.mrf.mxu0
        %v5822 = vadd.f32 0.0, %v5821
        %5823 = vdwg.mxu0
        %5824 = vmatpush.msra.mxu0 0.0
        %5825 = vmatpush.msra.mxu0 0.0
        %5826 = vmatpush.msra.mxu0 0.0
        %5827 = vmatpush.msra.mxu0 0.0
        %5828 = vmatpush.msra.mxu0 0.0
        %5829 = vmatpush.msra.mxu0 0.0
        %5830 = vmatpush.msra.mxu0 0.0
        %5831 = vmatpush.msra.mxu0 0.0
        %5832 = vmatpush.msra.mxu0 0.0
        %5833 = vmatpush.msra.mxu0 0.0
        %5834 = vmatpush.msra.mxu0 0.0
        %5835 = vmatpush.msra.mxu0 0.0
        %5836 = vmatpush.msra.mxu0 0.0
        %5837 = vmatpush.msra.mxu0 0.0
        %5838 = vmatpush.msra.mxu0 %v5742
        %5839 = vmatpush.msra.mxu0 %v5736
        %5840 = vmatmul.f32.gmra.mxu0 %v5755
        %v5841 = vpop.f32.mrf.mxu0
        %v5842 = vadd.f32 0.0, %v5841
        %5843 = vmatmul.f32.gmra.mxu0 %v5758
        %v5844 = vpop.f32.mrf.mxu0
        %v5845 = vadd.f32 0.0, %v5844
        %5846 = vmatmul.f32.gmra.mxu0 %v5761
        %v5847 = vpop.f32.mrf.mxu0
        %v5848 = vadd.f32 0.0, %v5847
        %5849 = vmatmul.f32.gmra.mxu0 %v5764
        %v5850 = vpop.f32.mrf.mxu0
        %v5851 = vadd.f32 0.0, %v5850
        %5852 = vdwg.mxu0
        %v5853 = vadd.f32 %v5714, %v5784
        %v5854 = vadd.f32 %v5715, %v5813
        %v5855 = vadd.f32 %v5716, %v5842
        %v5856 = vadd.f32 %v5717, %v5787
        %v5857 = vadd.f32 %v5718, %v5816
        %v5858 = vadd.f32 %v5719, %v5845
        %v5859 = vadd.f32 %v5720, %v5790
        %v5860 = vadd.f32 %v5721, %v5819
        %v5861 = vadd.f32 %v5722, %v5848
        %v5862 = vadd.f32 %v5723, %v5793
        %v5863 = vadd.f32 %v5724, %v5822
        %v5864 = vadd.f32 %v5725, %v5851
        %s5865 = scalar_lea.vmem %s3, 224
        %v5866 = vld [vmem:[%s5865] sm:$0xff]
        %v5867 = vld [vmem:[%s5865 + $0x8] sm:$0xff]
        %v5868 = vld [vmem:[%s5865 + $0x10] sm:$0xff]
        %v5869 = vld [vmem:[%s5865 + $0x18] sm:$0xff]
        %5870 = vrot.lane.b32.xlu0 %v4380, 108
        %v5871 = vpop.permute.xlu0 %5870
        %5872 = vrot.lane.b32.xlu0 %v4564, 108
        %v5873 = vpop.permute.xlu0 %5872
        %5874 = vrot.lane.b32.xlu0 %v4748, 108
        %v5875 = vpop.permute.xlu0 %5874
        %5876 = vrot.lane.b32.xlu0 %v4383, 108
        %v5877 = vpop.permute.xlu0 %5876
        %5878 = vrot.lane.b32.xlu0 %v4567, 108
        %v5879 = vpop.permute.xlu0 %5878
        %5880 = vrot.lane.b32.xlu0 %v4751, 108
        %v5881 = vpop.permute.xlu0 %5880
        %vm5882 = vcmask 883712
        %v5883 = vsel %vm5882, %v5871, %v5873
        %v5884 = vsel %vm5882, %v5873, %v5875
        %v5885 = vsel %vm5882, %v5877, %v5879
        %v5886 = vsel %vm5882, %v5879, %v5881
        %v5894 = vsel %vm4974, %v5866, 0
        %v5897 = vsel %vm4974, %v5867, 0
        %v5900 = vsel %vm4974, %v5868, 0
        %v5903 = vsel %vm4974, %v5869, 0
        %5905 = vmatpush.msra.mxu0 0.0
        %5906 = vmatpush.msra.mxu0 0.0
        %5907 = vmatpush.msra.mxu0 0.0
        %5908 = vmatpush.msra.mxu0 0.0
        %5909 = vmatpush.msra.mxu0 0.0
        %5910 = vmatpush.msra.mxu0 0.0
        %5911 = vmatpush.msra.mxu0 0.0
        %5912 = vmatpush.msra.mxu0 0.0
        %5913 = vmatpush.msra.mxu0 0.0
        %5914 = vmatpush.msra.mxu0 0.0
        %5915 = vmatpush.msra.mxu0 0.0
        %5916 = vmatpush.msra.mxu0 0.0
        %5917 = vmatpush.msra.mxu0 0.0
        %5918 = vmatpush.msra.mxu0 0.0
        %5919 = vmatpush.msra.mxu0 %v5885
        %5920 = vmatpush.msra.mxu0 %v5883
        %5921 = vmatmul.f32.gmra.mxu0 %v5894
        %v5922 = vpop.f32.mrf.mxu0
        %v5923 = vadd.f32 0.0, %v5922
        %5924 = vmatmul.f32.gmra.mxu0 %v5897
        %v5925 = vpop.f32.mrf.mxu0
        %v5926 = vadd.f32 0.0, %v5925
        %5927 = vmatmul.f32.gmra.mxu0 %v5900
        %v5928 = vpop.f32.mrf.mxu0
        %v5929 = vadd.f32 0.0, %v5928
        %5930 = vmatmul.f32.gmra.mxu0 %v5903
        %v5931 = vpop.f32.mrf.mxu0
        %v5932 = vadd.f32 0.0, %v5931
        %5933 = vdwg.mxu0
        %5934 = vmatpush.msra.mxu0 0.0
        %5935 = vmatpush.msra.mxu0 0.0
        %5936 = vmatpush.msra.mxu0 0.0
        %5937 = vmatpush.msra.mxu0 0.0
        %5938 = vmatpush.msra.mxu0 0.0
        %5939 = vmatpush.msra.mxu0 0.0
        %5940 = vmatpush.msra.mxu0 0.0
        %5941 = vmatpush.msra.mxu0 0.0
        %5942 = vmatpush.msra.mxu0 0.0
        %5943 = vmatpush.msra.mxu0 0.0
        %5944 = vmatpush.msra.mxu0 0.0
        %5945 = vmatpush.msra.mxu0 0.0
        %5946 = vmatpush.msra.mxu0 0.0
        %5947 = vmatpush.msra.mxu0 0.0
        %5948 = vmatpush.msra.mxu0 %v5886
        %5949 = vmatpush.msra.mxu0 %v5884
        %5950 = vmatmul.f32.gmra.mxu0 %v5894
        %v5951 = vpop.f32.mrf.mxu0
        %v5952 = vadd.f32 0.0, %v5951
        %5953 = vmatmul.f32.gmra.mxu0 %v5897
        %v5954 = vpop.f32.mrf.mxu0
        %v5955 = vadd.f32 0.0, %v5954
        %5956 = vmatmul.f32.gmra.mxu0 %v5900
        %v5957 = vpop.f32.mrf.mxu0
        %v5958 = vadd.f32 0.0, %v5957
        %5959 = vmatmul.f32.gmra.mxu0 %v5903
        %v5960 = vpop.f32.mrf.mxu0
        %v5961 = vadd.f32 0.0, %v5960
        %5962 = vdwg.mxu0
        %5963 = vmatpush.msra.mxu0 0.0
        %5964 = vmatpush.msra.mxu0 0.0
        %5965 = vmatpush.msra.mxu0 0.0
        %5966 = vmatpush.msra.mxu0 0.0
        %5967 = vmatpush.msra.mxu0 0.0
        %5968 = vmatpush.msra.mxu0 0.0
        %5969 = vmatpush.msra.mxu0 0.0
        %5970 = vmatpush.msra.mxu0 0.0
        %5971 = vmatpush.msra.mxu0 0.0
        %5972 = vmatpush.msra.mxu0 0.0
        %5973 = vmatpush.msra.mxu0 0.0
        %5974 = vmatpush.msra.mxu0 0.0
        %5975 = vmatpush.msra.mxu0 0.0
        %5976 = vmatpush.msra.mxu0 0.0
        %5977 = vmatpush.msra.mxu0 %v5881
        %5978 = vmatpush.msra.mxu0 %v5875
        %5979 = vmatmul.f32.gmra.mxu0 %v5894
        %v5980 = vpop.f32.mrf.mxu0
        %v5981 = vadd.f32 0.0, %v5980
        %5982 = vmatmul.f32.gmra.mxu0 %v5897
        %v5983 = vpop.f32.mrf.mxu0
        %v5984 = vadd.f32 0.0, %v5983
        %5985 = vmatmul.f32.gmra.mxu0 %v5900
        %v5986 = vpop.f32.mrf.mxu0
        %v5987 = vadd.f32 0.0, %v5986
        %5988 = vmatmul.f32.gmra.mxu0 %v5903
        %v5989 = vpop.f32.mrf.mxu0
        %v5990 = vadd.f32 0.0, %v5989
        %5991 = vdwg.mxu0
        %v5992 = vadd.f32 %v5853, %v5923
        %v5993 = vadd.f32 %v5854, %v5952
        %v5994 = vadd.f32 %v5855, %v5981
        %v5995 = vadd.f32 %v5856, %v5926
        %v5996 = vadd.f32 %v5857, %v5955
        %v5997 = vadd.f32 %v5858, %v5984
        %v5998 = vadd.f32 %v5859, %v5929
        %v5999 = vadd.f32 %v5860, %v5958
        %v6000 = vadd.f32 %v5861, %v5987
        %v6001 = vadd.f32 %v5862, %v5932
        %v6002 = vadd.f32 %v5863, %v5961
        %v6003 = vadd.f32 %v5864, %v5990
        %s6004 = scalar_lea.vmem %s3, 256
        %v6005 = vld [vmem:[%s6004] sm:$0xff]
        %v6006 = vld [vmem:[%s6004 + $0x8] sm:$0xff]
        %v6007 = vld [vmem:[%s6004 + $0x10] sm:$0xff]
        %v6008 = vld [vmem:[%s6004 + $0x18] sm:$0xff]
        %6009 = vrot.lane.b32.xlu0 %v4380, 107
        %v6010 = vpop.permute.xlu0 %6009
        %6011 = vrot.lane.b32.xlu0 %v4564, 107
        %v6012 = vpop.permute.xlu0 %6011
        %6013 = vrot.lane.b32.xlu0 %v4748, 107
        %v6014 = vpop.permute.xlu0 %6013
        %6015 = vrot.lane.b32.xlu0 %v4383, 107
        %v6016 = vpop.permute.xlu0 %6015
        %6017 = vrot.lane.b32.xlu0 %v4567, 107
        %v6018 = vpop.permute.xlu0 %6017
        %6019 = vrot.lane.b32.xlu0 %v4751, 107
        %v6020 = vpop.permute.xlu0 %6019
        %vm6021 = vcmask 875520
        %v6022 = vsel %vm6021, %v6010, %v6012
        %v6023 = vsel %vm6021, %v6012, %v6014
        %v6024 = vsel %vm6021, %v6016, %v6018
        %v6025 = vsel %vm6021, %v6018, %v6020
        %v6033 = vsel %vm4974, %v6005, 0
        %v6036 = vsel %vm4974, %v6006, 0
        %v6039 = vsel %vm4974, %v6007, 0
        %v6042 = vsel %vm4974, %v6008, 0
        %6044 = vmatpush.msra.mxu0 0.0
        %6045 = vmatpush.msra.mxu0 0.0
        %6046 = vmatpush.msra.mxu0 0.0
        %6047 = vmatpush.msra.mxu0 0.0
        %6048 = vmatpush.msra.mxu0 0.0
        %6049 = vmatpush.msra.mxu0 0.0
        %6050 = vmatpush.msra.mxu0 0.0
        %6051 = vmatpush.msra.mxu0 0.0
        %6052 = vmatpush.msra.mxu0 0.0
        %6053 = vmatpush.msra.mxu0 0.0
        %6054 = vmatpush.msra.mxu0 0.0
        %6055 = vmatpush.msra.mxu0 0.0
        %6056 = vmatpush.msra.mxu0 0.0
        %6057 = vmatpush.msra.mxu0 0.0
        %6058 = vmatpush.msra.mxu0 %v6024
        %6059 = vmatpush.msra.mxu0 %v6022
        %6060 = vmatmul.f32.gmra.mxu0 %v6033
        %v6061 = vpop.f32.mrf.mxu0
        %v6062 = vadd.f32 0.0, %v6061
        %6063 = vmatmul.f32.gmra.mxu0 %v6036
        %v6064 = vpop.f32.mrf.mxu0
        %v6065 = vadd.f32 0.0, %v6064
        %6066 = vmatmul.f32.gmra.mxu0 %v6039
        %v6067 = vpop.f32.mrf.mxu0
        %v6068 = vadd.f32 0.0, %v6067
        %6069 = vmatmul.f32.gmra.mxu0 %v6042
        %v6070 = vpop.f32.mrf.mxu0
        %v6071 = vadd.f32 0.0, %v6070
        %6072 = vdwg.mxu0
        %6073 = vmatpush.msra.mxu0 0.0
        %6074 = vmatpush.msra.mxu0 0.0
        %6075 = vmatpush.msra.mxu0 0.0
        %6076 = vmatpush.msra.mxu0 0.0
        %6077 = vmatpush.msra.mxu0 0.0
        %6078 = vmatpush.msra.mxu0 0.0
        %6079 = vmatpush.msra.mxu0 0.0
        %6080 = vmatpush.msra.mxu0 0.0
        %6081 = vmatpush.msra.mxu0 0.0
        %6082 = vmatpush.msra.mxu0 0.0
        %6083 = vmatpush.msra.mxu0 0.0
        %6084 = vmatpush.msra.mxu0 0.0
        %6085 = vmatpush.msra.mxu0 0.0
        %6086 = vmatpush.msra.mxu0 0.0
        %6087 = vmatpush.msra.mxu0 %v6025
        %6088 = vmatpush.msra.mxu0 %v6023
        %6089 = vmatmul.f32.gmra.mxu0 %v6033
        %v6090 = vpop.f32.mrf.mxu0
        %v6091 = vadd.f32 0.0, %v6090
        %6092 = vmatmul.f32.gmra.mxu0 %v6036
        %v6093 = vpop.f32.mrf.mxu0
        %v6094 = vadd.f32 0.0, %v6093
        %6095 = vmatmul.f32.gmra.mxu0 %v6039
        %v6096 = vpop.f32.mrf.mxu0
        %v6097 = vadd.f32 0.0, %v6096
        %6098 = vmatmul.f32.gmra.mxu0 %v6042
        %v6099 = vpop.f32.mrf.mxu0
        %v6100 = vadd.f32 0.0, %v6099
        %6101 = vdwg.mxu0
        %6102 = vmatpush.msra.mxu0 0.0
        %6103 = vmatpush.msra.mxu0 0.0
        %6104 = vmatpush.msra.mxu0 0.0
        %6105 = vmatpush.msra.mxu0 0.0
        %6106 = vmatpush.msra.mxu0 0.0
        %6107 = vmatpush.msra.mxu0 0.0
        %6108 = vmatpush.msra.mxu0 0.0
        %6109 = vmatpush.msra.mxu0 0.0
        %6110 = vmatpush.msra.mxu0 0.0
        %6111 = vmatpush.msra.mxu0 0.0
        %6112 = vmatpush.msra.mxu0 0.0
        %6113 = vmatpush.msra.mxu0 0.0
        %6114 = vmatpush.msra.mxu0 0.0
        %6115 = vmatpush.msra.mxu0 0.0
        %6116 = vmatpush.msra.mxu0 %v6020
        %6117 = vmatpush.msra.mxu0 %v6014
        %6118 = vmatmul.f32.gmra.mxu0 %v6033
        %v6119 = vpop.f32.mrf.mxu0
        %v6120 = vadd.f32 0.0, %v6119
        %6121 = vmatmul.f32.gmra.mxu0 %v6036
        %v6122 = vpop.f32.mrf.mxu0
        %v6123 = vadd.f32 0.0, %v6122
        %6124 = vmatmul.f32.gmra.mxu0 %v6039
        %v6125 = vpop.f32.mrf.mxu0
        %v6126 = vadd.f32 0.0, %v6125
        %6127 = vmatmul.f32.gmra.mxu0 %v6042
        %v6128 = vpop.f32.mrf.mxu0
        %v6129 = vadd.f32 0.0, %v6128
        %6130 = vdwg.mxu0
        %v6131 = vadd.f32 %v5992, %v6062
        %v6132 = vadd.f32 %v5993, %v6091
        %v6133 = vadd.f32 %v5994, %v6120
        %v6134 = vadd.f32 %v5995, %v6065
        %v6135 = vadd.f32 %v5996, %v6094
        %v6136 = vadd.f32 %v5997, %v6123
        %v6137 = vadd.f32 %v5998, %v6068
        %v6138 = vadd.f32 %v5999, %v6097
        %v6139 = vadd.f32 %v6000, %v6126
        %v6140 = vadd.f32 %v6001, %v6071
        %v6141 = vadd.f32 %v6002, %v6100
        %v6142 = vadd.f32 %v6003, %v6129
        %s6143 = scalar_lea.vmem %s3, 288
        %v6144 = vld [vmem:[%s6143] sm:$0xff]
        %v6145 = vld [vmem:[%s6143 + $0x8] sm:$0xff]
        %v6146 = vld [vmem:[%s6143 + $0x10] sm:$0xff]
        %v6147 = vld [vmem:[%s6143 + $0x18] sm:$0xff]
        %6148 = vrot.lane.b32.xlu0 %v4380, 106
        %v6149 = vpop.permute.xlu0 %6148
        %6150 = vrot.lane.b32.xlu0 %v4564, 106
        %v6151 = vpop.permute.xlu0 %6150
        %6152 = vrot.lane.b32.xlu0 %v4748, 106
        %v6153 = vpop.permute.xlu0 %6152
        %6154 = vrot.lane.b32.xlu0 %v4383, 106
        %v6155 = vpop.permute.xlu0 %6154
        %6156 = vrot.lane.b32.xlu0 %v4567, 106
        %v6157 = vpop.permute.xlu0 %6156
        %6158 = vrot.lane.b32.xlu0 %v4751, 106
        %v6159 = vpop.permute.xlu0 %6158
        %vm6160 = vcmask 867328
        %v6161 = vsel %vm6160, %v6149, %v6151
        %v6162 = vsel %vm6160, %v6151, %v6153
        %v6163 = vsel %vm6160, %v6155, %v6157
        %v6164 = vsel %vm6160, %v6157, %v6159
        %v6172 = vsel %vm4974, %v6144, 0
        %v6175 = vsel %vm4974, %v6145, 0
        %v6178 = vsel %vm4974, %v6146, 0
        %v6181 = vsel %vm4974, %v6147, 0
        %6183 = vmatpush.msra.mxu0 0.0
        %6184 = vmatpush.msra.mxu0 0.0
        %6185 = vmatpush.msra.mxu0 0.0
        %6186 = vmatpush.msra.mxu0 0.0
        %6187 = vmatpush.msra.mxu0 0.0
        %6188 = vmatpush.msra.mxu0 0.0
        %6189 = vmatpush.msra.mxu0 0.0
        %6190 = vmatpush.msra.mxu0 0.0
        %6191 = vmatpush.msra.mxu0 0.0
        %6192 = vmatpush.msra.mxu0 0.0
        %6193 = vmatpush.msra.mxu0 0.0
        %6194 = vmatpush.msra.mxu0 0.0
        %6195 = vmatpush.msra.mxu0 0.0
        %6196 = vmatpush.msra.mxu0 0.0
        %6197 = vmatpush.msra.mxu0 %v6163
        %6198 = vmatpush.msra.mxu0 %v6161
        %6199 = vmatmul.f32.gmra.mxu0 %v6172
        %v6200 = vpop.f32.mrf.mxu0
        %v6201 = vadd.f32 0.0, %v6200
        %6202 = vmatmul.f32.gmra.mxu0 %v6175
        %v6203 = vpop.f32.mrf.mxu0
        %v6204 = vadd.f32 0.0, %v6203
        %6205 = vmatmul.f32.gmra.mxu0 %v6178
        %v6206 = vpop.f32.mrf.mxu0
        %v6207 = vadd.f32 0.0, %v6206
        %6208 = vmatmul.f32.gmra.mxu0 %v6181
        %v6209 = vpop.f32.mrf.mxu0
        %v6210 = vadd.f32 0.0, %v6209
        %6211 = vdwg.mxu0
        %6212 = vmatpush.msra.mxu0 0.0
        %6213 = vmatpush.msra.mxu0 0.0
        %6214 = vmatpush.msra.mxu0 0.0
        %6215 = vmatpush.msra.mxu0 0.0
        %6216 = vmatpush.msra.mxu0 0.0
        %6217 = vmatpush.msra.mxu0 0.0
        %6218 = vmatpush.msra.mxu0 0.0
        %6219 = vmatpush.msra.mxu0 0.0
        %6220 = vmatpush.msra.mxu0 0.0
        %6221 = vmatpush.msra.mxu0 0.0
        %6222 = vmatpush.msra.mxu0 0.0
        %6223 = vmatpush.msra.mxu0 0.0
        %6224 = vmatpush.msra.mxu0 0.0
        %6225 = vmatpush.msra.mxu0 0.0
        %6226 = vmatpush.msra.mxu0 %v6164
        %6227 = vmatpush.msra.mxu0 %v6162
        %6228 = vmatmul.f32.gmra.mxu0 %v6172
        %v6229 = vpop.f32.mrf.mxu0
        %v6230 = vadd.f32 0.0, %v6229
        %6231 = vmatmul.f32.gmra.mxu0 %v6175
        %v6232 = vpop.f32.mrf.mxu0
        %v6233 = vadd.f32 0.0, %v6232
        %6234 = vmatmul.f32.gmra.mxu0 %v6178
        %v6235 = vpop.f32.mrf.mxu0
        %v6236 = vadd.f32 0.0, %v6235
        %6237 = vmatmul.f32.gmra.mxu0 %v6181
        %v6238 = vpop.f32.mrf.mxu0
        %v6239 = vadd.f32 0.0, %v6238
        %6240 = vdwg.mxu0
        %6241 = vmatpush.msra.mxu0 0.0
        %6242 = vmatpush.msra.mxu0 0.0
        %6243 = vmatpush.msra.mxu0 0.0
        %6244 = vmatpush.msra.mxu0 0.0
        %6245 = vmatpush.msra.mxu0 0.0
        %6246 = vmatpush.msra.mxu0 0.0
        %6247 = vmatpush.msra.mxu0 0.0
        %6248 = vmatpush.msra.mxu0 0.0
        %6249 = vmatpush.msra.mxu0 0.0
        %6250 = vmatpush.msra.mxu0 0.0
        %6251 = vmatpush.msra.mxu0 0.0
        %6252 = vmatpush.msra.mxu0 0.0
        %6253 = vmatpush.msra.mxu0 0.0
        %6254 = vmatpush.msra.mxu0 0.0
        %6255 = vmatpush.msra.mxu0 %v6159
        %6256 = vmatpush.msra.mxu0 %v6153
        %6257 = vmatmul.f32.gmra.mxu0 %v6172
        %v6258 = vpop.f32.mrf.mxu0
        %v6259 = vadd.f32 0.0, %v6258
        %6260 = vmatmul.f32.gmra.mxu0 %v6175
        %v6261 = vpop.f32.mrf.mxu0
        %v6262 = vadd.f32 0.0, %v6261
        %6263 = vmatmul.f32.gmra.mxu0 %v6178
        %v6264 = vpop.f32.mrf.mxu0
        %v6265 = vadd.f32 0.0, %v6264
        %6266 = vmatmul.f32.gmra.mxu0 %v6181
        %v6267 = vpop.f32.mrf.mxu0
        %v6268 = vadd.f32 0.0, %v6267
        %6269 = vdwg.mxu0
        %v6270 = vadd.f32 %v6131, %v6201
        %v6271 = vadd.f32 %v6132, %v6230
        %v6272 = vadd.f32 %v6133, %v6259
        %v6273 = vadd.f32 %v6134, %v6204
        %v6274 = vadd.f32 %v6135, %v6233
        %v6275 = vadd.f32 %v6136, %v6262
        %v6276 = vadd.f32 %v6137, %v6207
        %v6277 = vadd.f32 %v6138, %v6236
        %v6278 = vadd.f32 %v6139, %v6265
        %v6279 = vadd.f32 %v6140, %v6210
        %v6280 = vadd.f32 %v6141, %v6239
        %v6281 = vadd.f32 %v6142, %v6268
        %s6282 = scalar_lea.vmem %s3, 320
        %v6283 = vld [vmem:[%s6282] sm:$0xff]
        %v6284 = vld [vmem:[%s6282 + $0x8] sm:$0xff]
        %v6285 = vld [vmem:[%s6282 + $0x10] sm:$0xff]
        %v6286 = vld [vmem:[%s6282 + $0x18] sm:$0xff]
        %6287 = vrot.lane.b32.xlu0 %v4380, 92
        %v6288 = vpop.permute.xlu0 %6287
        %6289 = vrot.lane.b32.xlu0 %v4564, 92
        %v6290 = vpop.permute.xlu0 %6289
        %6291 = vrot.lane.b32.xlu0 %v4748, 92
        %v6292 = vpop.permute.xlu0 %6291
        %6293 = vrot.lane.b32.xlu0 %v4383, 92
        %v6294 = vpop.permute.xlu0 %6293
        %6295 = vrot.lane.b32.xlu0 %v4567, 92
        %v6296 = vpop.permute.xlu0 %6295
        %6297 = vrot.lane.b32.xlu0 %v4751, 92
        %v6298 = vpop.permute.xlu0 %6297
        %v6299 = vsel %vm1523, %v6288, %v6290
        %v6300 = vsel %vm1523, %v6290, %v6292
        %v6301 = vsel %vm1523, %v6294, %v6296
        %v6302 = vsel %vm1523, %v6296, %v6298
        %v6310 = vsel %vm4974, %v6283, 0
        %v6313 = vsel %vm4974, %v6284, 0
        %v6316 = vsel %vm4974, %v6285, 0
        %v6319 = vsel %vm4974, %v6286, 0
        %6321 = vmatpush.msra.mxu0 0.0
        %6322 = vmatpush.msra.mxu0 0.0
        %6323 = vmatpush.msra.mxu0 0.0
        %6324 = vmatpush.msra.mxu0 0.0
        %6325 = vmatpush.msra.mxu0 0.0
        %6326 = vmatpush.msra.mxu0 0.0
        %6327 = vmatpush.msra.mxu0 0.0
        %6328 = vmatpush.msra.mxu0 0.0
        %6329 = vmatpush.msra.mxu0 0.0
        %6330 = vmatpush.msra.mxu0 0.0
        %6331 = vmatpush.msra.mxu0 0.0
        %6332 = vmatpush.msra.mxu0 0.0
        %6333 = vmatpush.msra.mxu0 0.0
        %6334 = vmatpush.msra.mxu0 0.0
        %6335 = vmatpush.msra.mxu0 %v6301
        %6336 = vmatpush.msra.mxu0 %v6299
        %6337 = vmatmul.f32.gmra.mxu0 %v6310
        %v6338 = vpop.f32.mrf.mxu0
        %v6339 = vadd.f32 0.0, %v6338
        %6340 = vmatmul.f32.gmra.mxu0 %v6313
        %v6341 = vpop.f32.mrf.mxu0
        %v6342 = vadd.f32 0.0, %v6341
        %6343 = vmatmul.f32.gmra.mxu0 %v6316
        %v6344 = vpop.f32.mrf.mxu0
        %v6345 = vadd.f32 0.0, %v6344
        %6346 = vmatmul.f32.gmra.mxu0 %v6319
        %v6347 = vpop.f32.mrf.mxu0
        %v6348 = vadd.f32 0.0, %v6347
        %6349 = vdwg.mxu0
        %6350 = vmatpush.msra.mxu0 0.0
        %6351 = vmatpush.msra.mxu0 0.0
        %6352 = vmatpush.msra.mxu0 0.0
        %6353 = vmatpush.msra.mxu0 0.0
        %6354 = vmatpush.msra.mxu0 0.0
        %6355 = vmatpush.msra.mxu0 0.0
        %6356 = vmatpush.msra.mxu0 0.0
        %6357 = vmatpush.msra.mxu0 0.0
        %6358 = vmatpush.msra.mxu0 0.0
        %6359 = vmatpush.msra.mxu0 0.0
        %6360 = vmatpush.msra.mxu0 0.0
        %6361 = vmatpush.msra.mxu0 0.0
        %6362 = vmatpush.msra.mxu0 0.0
        %6363 = vmatpush.msra.mxu0 0.0
        %6364 = vmatpush.msra.mxu0 %v6302
        %6365 = vmatpush.msra.mxu0 %v6300
        %6366 = vmatmul.f32.gmra.mxu0 %v6310
        %v6367 = vpop.f32.mrf.mxu0
        %v6368 = vadd.f32 0.0, %v6367
        %6369 = vmatmul.f32.gmra.mxu0 %v6313
        %v6370 = vpop.f32.mrf.mxu0
        %v6371 = vadd.f32 0.0, %v6370
        %6372 = vmatmul.f32.gmra.mxu0 %v6316
        %v6373 = vpop.f32.mrf.mxu0
        %v6374 = vadd.f32 0.0, %v6373
        %6375 = vmatmul.f32.gmra.mxu0 %v6319
        %v6376 = vpop.f32.mrf.mxu0
        %v6377 = vadd.f32 0.0, %v6376
        %6378 = vdwg.mxu0
        %6379 = vmatpush.msra.mxu0 0.0
        %6380 = vmatpush.msra.mxu0 0.0
        %6381 = vmatpush.msra.mxu0 0.0
        %6382 = vmatpush.msra.mxu0 0.0
        %6383 = vmatpush.msra.mxu0 0.0
        %6384 = vmatpush.msra.mxu0 0.0
        %6385 = vmatpush.msra.mxu0 0.0
        %6386 = vmatpush.msra.mxu0 0.0
        %6387 = vmatpush.msra.mxu0 0.0
        %6388 = vmatpush.msra.mxu0 0.0
        %6389 = vmatpush.msra.mxu0 0.0
        %6390 = vmatpush.msra.mxu0 0.0
        %6391 = vmatpush.msra.mxu0 0.0
        %6392 = vmatpush.msra.mxu0 0.0
        %6393 = vmatpush.msra.mxu0 %v6298
        %6394 = vmatpush.msra.mxu0 %v6292
        %6395 = vmatmul.f32.gmra.mxu0 %v6310
        %v6396 = vpop.f32.mrf.mxu0
        %v6397 = vadd.f32 0.0, %v6396
        %6398 = vmatmul.f32.gmra.mxu0 %v6313
        %v6399 = vpop.f32.mrf.mxu0
        %v6400 = vadd.f32 0.0, %v6399
        %6401 = vmatmul.f32.gmra.mxu0 %v6316
        %v6402 = vpop.f32.mrf.mxu0
        %v6403 = vadd.f32 0.0, %v6402
        %6404 = vmatmul.f32.gmra.mxu0 %v6319
        %v6405 = vpop.f32.mrf.mxu0
        %v6406 = vadd.f32 0.0, %v6405
        %6407 = vdwg.mxu0
        %v6408 = vadd.f32 %v6270, %v6339
        %v6409 = vadd.f32 %v6271, %v6368
        %v6410 = vadd.f32 %v6272, %v6397
        %v6411 = vadd.f32 %v6273, %v6342
        %v6412 = vadd.f32 %v6274, %v6371
        %v6413 = vadd.f32 %v6275, %v6400
        %v6414 = vadd.f32 %v6276, %v6345
        %v6415 = vadd.f32 %v6277, %v6374
        %v6416 = vadd.f32 %v6278, %v6403
        %v6417 = vadd.f32 %v6279, %v6348
        %v6418 = vadd.f32 %v6280, %v6377
        %v6419 = vadd.f32 %v6281, %v6406
        %s6420 = scalar_lea.vmem %s3, 352
        %v6421 = vld [vmem:[%s6420] sm:$0xff]
        %v6422 = vld [vmem:[%s6420 + $0x8] sm:$0xff]
        %v6423 = vld [vmem:[%s6420 + $0x10] sm:$0xff]
        %v6424 = vld [vmem:[%s6420 + $0x18] sm:$0xff]
        %6425 = vrot.lane.b32.xlu0 %v4380, 91
        %v6426 = vpop.permute.xlu0 %6425
        %6427 = vrot.lane.b32.xlu0 %v4564, 91
        %v6428 = vpop.permute.xlu0 %6427
        %6429 = vrot.lane.b32.xlu0 %v4748, 91
        %v6430 = vpop.permute.xlu0 %6429
        %6431 = vrot.lane.b32.xlu0 %v4383, 91
        %v6432 = vpop.permute.xlu0 %6431
        %6433 = vrot.lane.b32.xlu0 %v4567, 91
        %v6434 = vpop.permute.xlu0 %6433
        %6435 = vrot.lane.b32.xlu0 %v4751, 91
        %v6436 = vpop.permute.xlu0 %6435
        %vm6437 = vcmask 744448
        %v6438 = vsel %vm6437, %v6426, %v6428
        %v6439 = vsel %vm6437, %v6428, %v6430
        %v6440 = vsel %vm6437, %v6432, %v6434
        %v6441 = vsel %vm6437, %v6434, %v6436
        %v6449 = vsel %vm4974, %v6421, 0
        %v6452 = vsel %vm4974, %v6422, 0
        %v6455 = vsel %vm4974, %v6423, 0
        %v6458 = vsel %vm4974, %v6424, 0
        %6460 = vmatpush.msra.mxu0 0.0
        %6461 = vmatpush.msra.mxu0 0.0
        %6462 = vmatpush.msra.mxu0 0.0
        %6463 = vmatpush.msra.mxu0 0.0
        %6464 = vmatpush.msra.mxu0 0.0
        %6465 = vmatpush.msra.mxu0 0.0
        %6466 = vmatpush.msra.mxu0 0.0
        %6467 = vmatpush.msra.mxu0 0.0
        %6468 = vmatpush.msra.mxu0 0.0
        %6469 = vmatpush.msra.mxu0 0.0
        %6470 = vmatpush.msra.mxu0 0.0
        %6471 = vmatpush.msra.mxu0 0.0
        %6472 = vmatpush.msra.mxu0 0.0
        %6473 = vmatpush.msra.mxu0 0.0
        %6474 = vmatpush.msra.mxu0 %v6440
        %6475 = vmatpush.msra.mxu0 %v6438
        %6476 = vmatmul.f32.gmra.mxu0 %v6449
        %v6477 = vpop.f32.mrf.mxu0
        %v6478 = vadd.f32 0.0, %v6477
        %6479 = vmatmul.f32.gmra.mxu0 %v6452
        %v6480 = vpop.f32.mrf.mxu0
        %v6481 = vadd.f32 0.0, %v6480
        %6482 = vmatmul.f32.gmra.mxu0 %v6455
        %v6483 = vpop.f32.mrf.mxu0
        %v6484 = vadd.f32 0.0, %v6483
        %6485 = vmatmul.f32.gmra.mxu0 %v6458
        %v6486 = vpop.f32.mrf.mxu0
        %v6487 = vadd.f32 0.0, %v6486
        %6488 = vdwg.mxu0
        %6489 = vmatpush.msra.mxu0 0.0
        %6490 = vmatpush.msra.mxu0 0.0
        %6491 = vmatpush.msra.mxu0 0.0
        %6492 = vmatpush.msra.mxu0 0.0
        %6493 = vmatpush.msra.mxu0 0.0
        %6494 = vmatpush.msra.mxu0 0.0
        %6495 = vmatpush.msra.mxu0 0.0
        %6496 = vmatpush.msra.mxu0 0.0
        %6497 = vmatpush.msra.mxu0 0.0
        %6498 = vmatpush.msra.mxu0 0.0
        %6499 = vmatpush.msra.mxu0 0.0
        %6500 = vmatpush.msra.mxu0 0.0
        %6501 = vmatpush.msra.mxu0 0.0
        %6502 = vmatpush.msra.mxu0 0.0
        %6503 = vmatpush.msra.mxu0 %v6441
        %6504 = vmatpush.msra.mxu0 %v6439
        %6505 = vmatmul.f32.gmra.mxu0 %v6449
        %v6506 = vpop.f32.mrf.mxu0
        %v6507 = vadd.f32 0.0, %v6506
        %6508 = vmatmul.f32.gmra.mxu0 %v6452
        %v6509 = vpop.f32.mrf.mxu0
        %v6510 = vadd.f32 0.0, %v6509
        %6511 = vmatmul.f32.gmra.mxu0 %v6455
        %v6512 = vpop.f32.mrf.mxu0
        %v6513 = vadd.f32 0.0, %v6512
        %6514 = vmatmul.f32.gmra.mxu0 %v6458
        %v6515 = vpop.f32.mrf.mxu0
        %v6516 = vadd.f32 0.0, %v6515
        %6517 = vdwg.mxu0
        %6518 = vmatpush.msra.mxu0 0.0
        %6519 = vmatpush.msra.mxu0 0.0
        %6520 = vmatpush.msra.mxu0 0.0
        %6521 = vmatpush.msra.mxu0 0.0
        %6522 = vmatpush.msra.mxu0 0.0
        %6523 = vmatpush.msra.mxu0 0.0
        %6524 = vmatpush.msra.mxu0 0.0
        %6525 = vmatpush.msra.mxu0 0.0
        %6526 = vmatpush.msra.mxu0 0.0
        %6527 = vmatpush.msra.mxu0 0.0
        %6528 = vmatpush.msra.mxu0 0.0
        %6529 = vmatpush.msra.mxu0 0.0
        %6530 = vmatpush.msra.mxu0 0.0
        %6531 = vmatpush.msra.mxu0 0.0
        %6532 = vmatpush.msra.mxu0 %v6436
        %6533 = vmatpush.msra.mxu0 %v6430
        %6534 = vmatmul.f32.gmra.mxu0 %v6449
        %v6535 = vpop.f32.mrf.mxu0
        %v6536 = vadd.f32 0.0, %v6535
        %6537 = vmatmul.f32.gmra.mxu0 %v6452
        %v6538 = vpop.f32.mrf.mxu0
        %v6539 = vadd.f32 0.0, %v6538
        %6540 = vmatmul.f32.gmra.mxu0 %v6455
        %v6541 = vpop.f32.mrf.mxu0
        %v6542 = vadd.f32 0.0, %v6541
        %6543 = vmatmul.f32.gmra.mxu0 %v6458
        %v6544 = vpop.f32.mrf.mxu0
        %v6545 = vadd.f32 0.0, %v6544
        %6546 = vdwg.mxu0
        %v6547 = vadd.f32 %v6408, %v6478
        %v6548 = vadd.f32 %v6409, %v6507
        %v6549 = vadd.f32 %v6410, %v6536
        %v6550 = vadd.f32 %v6411, %v6481
        %v6551 = vadd.f32 %v6412, %v6510
        %v6552 = vadd.f32 %v6413, %v6539
        %v6553 = vadd.f32 %v6414, %v6484
        %v6554 = vadd.f32 %v6415, %v6513
        %v6555 = vadd.f32 %v6416, %v6542
        %v6556 = vadd.f32 %v6417, %v6487
        %v6557 = vadd.f32 %v6418, %v6516
        %v6558 = vadd.f32 %v6419, %v6545
        %s6559 = scalar_lea.vmem %s3, 384
        %v6560 = vld [vmem:[%s6559] sm:$0xff]
        %v6561 = vld [vmem:[%s6559 + $0x8] sm:$0xff]
        %v6562 = vld [vmem:[%s6559 + $0x10] sm:$0xff]
        %v6563 = vld [vmem:[%s6559 + $0x18] sm:$0xff]
        %6564 = vrot.lane.b32.xlu0 %v4380, 90
        %v6565 = vpop.permute.xlu0 %6564
        %6566 = vrot.lane.b32.xlu0 %v4564, 90
        %v6567 = vpop.permute.xlu0 %6566
        %6568 = vrot.lane.b32.xlu0 %v4748, 90
        %v6569 = vpop.permute.xlu0 %6568
        %6570 = vrot.lane.b32.xlu0 %v4383, 90
        %v6571 = vpop.permute.xlu0 %6570
        %6572 = vrot.lane.b32.xlu0 %v4567, 90
        %v6573 = vpop.permute.xlu0 %6572
        %6574 = vrot.lane.b32.xlu0 %v4751, 90
        %v6575 = vpop.permute.xlu0 %6574
        %vm6576 = vcmask 736256
        %v6577 = vsel %vm6576, %v6565, %v6567
        %v6578 = vsel %vm6576, %v6567, %v6569
        %v6579 = vsel %vm6576, %v6571, %v6573
        %v6580 = vsel %vm6576, %v6573, %v6575
        %v6588 = vsel %vm4974, %v6560, 0
        %v6591 = vsel %vm4974, %v6561, 0
        %v6594 = vsel %vm4974, %v6562, 0
        %v6597 = vsel %vm4974, %v6563, 0
        %6599 = vmatpush.msra.mxu0 0.0
        %6600 = vmatpush.msra.mxu0 0.0
        %6601 = vmatpush.msra.mxu0 0.0
        %6602 = vmatpush.msra.mxu0 0.0
        %6603 = vmatpush.msra.mxu0 0.0
        %6604 = vmatpush.msra.mxu0 0.0
        %6605 = vmatpush.msra.mxu0 0.0
        %6606 = vmatpush.msra.mxu0 0.0
        %6607 = vmatpush.msra.mxu0 0.0
        %6608 = vmatpush.msra.mxu0 0.0
        %6609 = vmatpush.msra.mxu0 0.0
        %6610 = vmatpush.msra.mxu0 0.0
        %6611 = vmatpush.msra.mxu0 0.0
        %6612 = vmatpush.msra.mxu0 0.0
        %6613 = vmatpush.msra.mxu0 %v6579
        %6614 = vmatpush.msra.mxu0 %v6577
        %6615 = vmatmul.f32.gmra.mxu0 %v6588
        %v6616 = vpop.f32.mrf.mxu0
        %v6617 = vadd.f32 0.0, %v6616
        %6618 = vmatmul.f32.gmra.mxu0 %v6591
        %v6619 = vpop.f32.mrf.mxu0
        %v6620 = vadd.f32 0.0, %v6619
        %6621 = vmatmul.f32.gmra.mxu0 %v6594
        %v6622 = vpop.f32.mrf.mxu0
        %v6623 = vadd.f32 0.0, %v6622
        %6624 = vmatmul.f32.gmra.mxu0 %v6597
        %v6625 = vpop.f32.mrf.mxu0
        %v6626 = vadd.f32 0.0, %v6625
        %6627 = vdwg.mxu0
        %6628 = vmatpush.msra.mxu0 0.0
        %6629 = vmatpush.msra.mxu0 0.0
        %6630 = vmatpush.msra.mxu0 0.0
        %6631 = vmatpush.msra.mxu0 0.0
        %6632 = vmatpush.msra.mxu0 0.0
        %6633 = vmatpush.msra.mxu0 0.0
        %6634 = vmatpush.msra.mxu0 0.0
        %6635 = vmatpush.msra.mxu0 0.0
        %6636 = vmatpush.msra.mxu0 0.0
        %6637 = vmatpush.msra.mxu0 0.0
        %6638 = vmatpush.msra.mxu0 0.0
        %6639 = vmatpush.msra.mxu0 0.0
        %6640 = vmatpush.msra.mxu0 0.0
        %6641 = vmatpush.msra.mxu0 0.0
        %6642 = vmatpush.msra.mxu0 %v6580
        %6643 = vmatpush.msra.mxu0 %v6578
        %6644 = vmatmul.f32.gmra.mxu0 %v6588
        %v6645 = vpop.f32.mrf.mxu0
        %v6646 = vadd.f32 0.0, %v6645
        %6647 = vmatmul.f32.gmra.mxu0 %v6591
        %v6648 = vpop.f32.mrf.mxu0
        %v6649 = vadd.f32 0.0, %v6648
        %6650 = vmatmul.f32.gmra.mxu0 %v6594
        %v6651 = vpop.f32.mrf.mxu0
        %v6652 = vadd.f32 0.0, %v6651
        %6653 = vmatmul.f32.gmra.mxu0 %v6597
        %v6654 = vpop.f32.mrf.mxu0
        %v6655 = vadd.f32 0.0, %v6654
        %6656 = vdwg.mxu0
        %6657 = vmatpush.msra.mxu0 0.0
        %6658 = vmatpush.msra.mxu0 0.0
        %6659 = vmatpush.msra.mxu0 0.0
        %6660 = vmatpush.msra.mxu0 0.0
        %6661 = vmatpush.msra.mxu0 0.0
        %6662 = vmatpush.msra.mxu0 0.0
        %6663 = vmatpush.msra.mxu0 0.0
        %6664 = vmatpush.msra.mxu0 0.0
        %6665 = vmatpush.msra.mxu0 0.0
        %6666 = vmatpush.msra.mxu0 0.0
        %6667 = vmatpush.msra.mxu0 0.0
        %6668 = vmatpush.msra.mxu0 0.0
        %6669 = vmatpush.msra.mxu0 0.0
        %6670 = vmatpush.msra.mxu0 0.0
        %6671 = vmatpush.msra.mxu0 %v6575
        %6672 = vmatpush.msra.mxu0 %v6569
        %6673 = vmatmul.f32.gmra.mxu0 %v6588
        %v6674 = vpop.f32.mrf.mxu0
        %v6675 = vadd.f32 0.0, %v6674
        %6676 = vmatmul.f32.gmra.mxu0 %v6591
        %v6677 = vpop.f32.mrf.mxu0
        %v6678 = vadd.f32 0.0, %v6677
        %6679 = vmatmul.f32.gmra.mxu0 %v6594
        %v6680 = vpop.f32.mrf.mxu0
        %v6681 = vadd.f32 0.0, %v6680
        %6682 = vmatmul.f32.gmra.mxu0 %v6597
        %v6683 = vpop.f32.mrf.mxu0
        %v6684 = vadd.f32 0.0, %v6683
        %6685 = vdwg.mxu0
        %v6686 = vadd.f32 %v6547, %v6617
        %v6687 = vadd.f32 %v6548, %v6646
        %v6688 = vadd.f32 %v6549, %v6675
        %v6689 = vadd.f32 %v6550, %v6620
        %v6690 = vadd.f32 %v6551, %v6649
        %v6691 = vadd.f32 %v6552, %v6678
        %v6692 = vadd.f32 %v6553, %v6623
        %v6693 = vadd.f32 %v6554, %v6652
        %v6694 = vadd.f32 %v6555, %v6681
        %v6695 = vadd.f32 %v6556, %v6626
        %v6696 = vadd.f32 %v6557, %v6655
        %v6697 = vadd.f32 %v6558, %v6684
        %s6698 = scalar_lea.vmem %s3, 416
        %v6699 = vld [vmem:[%s6698] sm:$0xff]
        %v6700 = vld [vmem:[%s6698 + $0x8] sm:$0xff]
        %v6701 = vld [vmem:[%s6698 + $0x10] sm:$0xff]
        %v6702 = vld [vmem:[%s6698 + $0x18] sm:$0xff]
        %6703 = vrot.lane.b32.xlu0 %v4380, 89
        %v6704 = vpop.permute.xlu0 %6703
        %6705 = vrot.lane.b32.xlu0 %v4564, 89
        %v6706 = vpop.permute.xlu0 %6705
        %6707 = vrot.lane.b32.xlu0 %v4748, 89
        %v6708 = vpop.permute.xlu0 %6707
        %6709 = vrot.lane.b32.xlu0 %v4383, 89
        %v6710 = vpop.permute.xlu0 %6709
        %6711 = vrot.lane.b32.xlu0 %v4567, 89
        %v6712 = vpop.permute.xlu0 %6711
        %6713 = vrot.lane.b32.xlu0 %v4751, 89
        %v6714 = vpop.permute.xlu0 %6713
        %vm6715 = vcmask 728064
        %v6716 = vsel %vm6715, %v6704, %v6706
        %v6717 = vsel %vm6715, %v6706, %v6708
        %v6718 = vsel %vm6715, %v6710, %v6712
        %v6719 = vsel %vm6715, %v6712, %v6714
        %v6727 = vsel %vm4974, %v6699, 0
        %v6730 = vsel %vm4974, %v6700, 0
        %v6733 = vsel %vm4974, %v6701, 0
        %v6736 = vsel %vm4974, %v6702, 0
        %6738 = vmatpush.msra.mxu0 0.0
        %6739 = vmatpush.msra.mxu0 0.0
        %6740 = vmatpush.msra.mxu0 0.0
        %6741 = vmatpush.msra.mxu0 0.0
        %6742 = vmatpush.msra.mxu0 0.0
        %6743 = vmatpush.msra.mxu0 0.0
        %6744 = vmatpush.msra.mxu0 0.0
        %6745 = vmatpush.msra.mxu0 0.0
        %6746 = vmatpush.msra.mxu0 0.0
        %6747 = vmatpush.msra.mxu0 0.0
        %6748 = vmatpush.msra.mxu0 0.0
        %6749 = vmatpush.msra.mxu0 0.0
        %6750 = vmatpush.msra.mxu0 0.0
        %6751 = vmatpush.msra.mxu0 0.0
        %6752 = vmatpush.msra.mxu0 %v6718
        %6753 = vmatpush.msra.mxu0 %v6716
        %6754 = vmatmul.f32.gmra.mxu0 %v6727
        %v6755 = vpop.f32.mrf.mxu0
        %v6756 = vadd.f32 0.0, %v6755
        %6757 = vmatmul.f32.gmra.mxu0 %v6730
        %v6758 = vpop.f32.mrf.mxu0
        %v6759 = vadd.f32 0.0, %v6758
        %6760 = vmatmul.f32.gmra.mxu0 %v6733
        %v6761 = vpop.f32.mrf.mxu0
        %v6762 = vadd.f32 0.0, %v6761
        %6763 = vmatmul.f32.gmra.mxu0 %v6736
        %v6764 = vpop.f32.mrf.mxu0
        %v6765 = vadd.f32 0.0, %v6764
        %6766 = vdwg.mxu0
        %6767 = vmatpush.msra.mxu0 0.0
        %6768 = vmatpush.msra.mxu0 0.0
        %6769 = vmatpush.msra.mxu0 0.0
        %6770 = vmatpush.msra.mxu0 0.0
        %6771 = vmatpush.msra.mxu0 0.0
        %6772 = vmatpush.msra.mxu0 0.0
        %6773 = vmatpush.msra.mxu0 0.0
        %6774 = vmatpush.msra.mxu0 0.0
        %6775 = vmatpush.msra.mxu0 0.0
        %6776 = vmatpush.msra.mxu0 0.0
        %6777 = vmatpush.msra.mxu0 0.0
        %6778 = vmatpush.msra.mxu0 0.0
        %6779 = vmatpush.msra.mxu0 0.0
        %6780 = vmatpush.msra.mxu0 0.0
        %6781 = vmatpush.msra.mxu0 %v6719
        %6782 = vmatpush.msra.mxu0 %v6717
        %6783 = vmatmul.f32.gmra.mxu0 %v6727
        %v6784 = vpop.f32.mrf.mxu0
        %v6785 = vadd.f32 0.0, %v6784
        %6786 = vmatmul.f32.gmra.mxu0 %v6730
        %v6787 = vpop.f32.mrf.mxu0
        %v6788 = vadd.f32 0.0, %v6787
        %6789 = vmatmul.f32.gmra.mxu0 %v6733
        %v6790 = vpop.f32.mrf.mxu0
        %v6791 = vadd.f32 0.0, %v6790
        %6792 = vmatmul.f32.gmra.mxu0 %v6736
        %v6793 = vpop.f32.mrf.mxu0
        %v6794 = vadd.f32 0.0, %v6793
        %6795 = vdwg.mxu0
        %6796 = vmatpush.msra.mxu0 0.0
        %6797 = vmatpush.msra.mxu0 0.0
        %6798 = vmatpush.msra.mxu0 0.0
        %6799 = vmatpush.msra.mxu0 0.0
        %6800 = vmatpush.msra.mxu0 0.0
        %6801 = vmatpush.msra.mxu0 0.0
        %6802 = vmatpush.msra.mxu0 0.0
        %6803 = vmatpush.msra.mxu0 0.0
        %6804 = vmatpush.msra.mxu0 0.0
        %6805 = vmatpush.msra.mxu0 0.0
        %6806 = vmatpush.msra.mxu0 0.0
        %6807 = vmatpush.msra.mxu0 0.0
        %6808 = vmatpush.msra.mxu0 0.0
        %6809 = vmatpush.msra.mxu0 0.0
        %6810 = vmatpush.msra.mxu0 %v6714
        %6811 = vmatpush.msra.mxu0 %v6708
        %6812 = vmatmul.f32.gmra.mxu0 %v6727
        %v6813 = vpop.f32.mrf.mxu0
        %v6814 = vadd.f32 0.0, %v6813
        %6815 = vmatmul.f32.gmra.mxu0 %v6730
        %v6816 = vpop.f32.mrf.mxu0
        %v6817 = vadd.f32 0.0, %v6816
        %6818 = vmatmul.f32.gmra.mxu0 %v6733
        %v6819 = vpop.f32.mrf.mxu0
        %v6820 = vadd.f32 0.0, %v6819
        %6821 = vmatmul.f32.gmra.mxu0 %v6736
        %v6822 = vpop.f32.mrf.mxu0
        %v6823 = vadd.f32 0.0, %v6822
        %6824 = vdwg.mxu0
        %v6825 = vadd.f32 %v6686, %v6756
        %v6826 = vadd.f32 %v6687, %v6785
        %v6827 = vadd.f32 %v6688, %v6814
        %v6828 = vadd.f32 %v6689, %v6759
        %v6829 = vadd.f32 %v6690, %v6788
        %v6830 = vadd.f32 %v6691, %v6817
        %v6831 = vadd.f32 %v6692, %v6762
        %v6832 = vadd.f32 %v6693, %v6791
        %v6833 = vadd.f32 %v6694, %v6820
        %v6834 = vadd.f32 %v6695, %v6765
        %v6835 = vadd.f32 %v6696, %v6794
        %v6836 = vadd.f32 %v6697, %v6823
        %s6837 = scalar_lea.vmem %s3, 448
        %v6838 = vld [vmem:[%s6837] sm:$0xff]
        %v6839 = vld [vmem:[%s6837 + $0x8] sm:$0xff]
        %v6840 = vld [vmem:[%s6837 + $0x10] sm:$0xff]
        %v6841 = vld [vmem:[%s6837 + $0x18] sm:$0xff]
        %6842 = vrot.lane.b32.xlu0 %v4380, 88
        %v6843 = vpop.permute.xlu0 %6842
        %6844 = vrot.lane.b32.xlu0 %v4564, 88
        %v6845 = vpop.permute.xlu0 %6844
        %6846 = vrot.lane.b32.xlu0 %v4748, 88
        %v6847 = vpop.permute.xlu0 %6846
        %6848 = vrot.lane.b32.xlu0 %v4383, 88
        %v6849 = vpop.permute.xlu0 %6848
        %6850 = vrot.lane.b32.xlu0 %v4567, 88
        %v6851 = vpop.permute.xlu0 %6850
        %6852 = vrot.lane.b32.xlu0 %v4751, 88
        %v6853 = vpop.permute.xlu0 %6852
        %vm6854 = vcmask 719872
        %v6855 = vsel %vm6854, %v6843, %v6845
        %v6856 = vsel %vm6854, %v6845, %v6847
        %v6857 = vsel %vm6854, %v6849, %v6851
        %v6858 = vsel %vm6854, %v6851, %v6853
        %v6866 = vsel %vm4974, %v6838, 0
        %v6869 = vsel %vm4974, %v6839, 0
        %v6872 = vsel %vm4974, %v6840, 0
        %v6875 = vsel %vm4974, %v6841, 0
        %6877 = vmatpush.msra.mxu0 0.0
        %6878 = vmatpush.msra.mxu0 0.0
        %6879 = vmatpush.msra.mxu0 0.0
        %6880 = vmatpush.msra.mxu0 0.0
        %6881 = vmatpush.msra.mxu0 0.0
        %6882 = vmatpush.msra.mxu0 0.0
        %6883 = vmatpush.msra.mxu0 0.0
        %6884 = vmatpush.msra.mxu0 0.0
        %6885 = vmatpush.msra.mxu0 0.0
        %6886 = vmatpush.msra.mxu0 0.0
        %6887 = vmatpush.msra.mxu0 0.0
        %6888 = vmatpush.msra.mxu0 0.0
        %6889 = vmatpush.msra.mxu0 0.0
        %6890 = vmatpush.msra.mxu0 0.0
        %6891 = vmatpush.msra.mxu0 %v6857
        %6892 = vmatpush.msra.mxu0 %v6855
        %6893 = vmatmul.f32.gmra.mxu0 %v6866
        %v6894 = vpop.f32.mrf.mxu0
        %v6895 = vadd.f32 0.0, %v6894
        %6896 = vmatmul.f32.gmra.mxu0 %v6869
        %v6897 = vpop.f32.mrf.mxu0
        %v6898 = vadd.f32 0.0, %v6897
        %6899 = vmatmul.f32.gmra.mxu0 %v6872
        %v6900 = vpop.f32.mrf.mxu0
        %v6901 = vadd.f32 0.0, %v6900
        %6902 = vmatmul.f32.gmra.mxu0 %v6875
        %v6903 = vpop.f32.mrf.mxu0
        %v6904 = vadd.f32 0.0, %v6903
        %6905 = vdwg.mxu0
        %6906 = vmatpush.msra.mxu0 0.0
        %6907 = vmatpush.msra.mxu0 0.0
        %6908 = vmatpush.msra.mxu0 0.0
        %6909 = vmatpush.msra.mxu0 0.0
        %6910 = vmatpush.msra.mxu0 0.0
        %6911 = vmatpush.msra.mxu0 0.0
        %6912 = vmatpush.msra.mxu0 0.0
        %6913 = vmatpush.msra.mxu0 0.0
        %6914 = vmatpush.msra.mxu0 0.0
        %6915 = vmatpush.msra.mxu0 0.0
        %6916 = vmatpush.msra.mxu0 0.0
        %6917 = vmatpush.msra.mxu0 0.0
        %6918 = vmatpush.msra.mxu0 0.0
        %6919 = vmatpush.msra.mxu0 0.0
        %6920 = vmatpush.msra.mxu0 %v6858
        %6921 = vmatpush.msra.mxu0 %v6856
        %6922 = vmatmul.f32.gmra.mxu0 %v6866
        %v6923 = vpop.f32.mrf.mxu0
        %v6924 = vadd.f32 0.0, %v6923
        %6925 = vmatmul.f32.gmra.mxu0 %v6869
        %v6926 = vpop.f32.mrf.mxu0
        %v6927 = vadd.f32 0.0, %v6926
        %6928 = vmatmul.f32.gmra.mxu0 %v6872
        %v6929 = vpop.f32.mrf.mxu0
        %v6930 = vadd.f32 0.0, %v6929
        %6931 = vmatmul.f32.gmra.mxu0 %v6875
        %v6932 = vpop.f32.mrf.mxu0
        %v6933 = vadd.f32 0.0, %v6932
        %6934 = vdwg.mxu0
        %6935 = vmatpush.msra.mxu0 0.0
        %6936 = vmatpush.msra.mxu0 0.0
        %6937 = vmatpush.msra.mxu0 0.0
        %6938 = vmatpush.msra.mxu0 0.0
        %6939 = vmatpush.msra.mxu0 0.0
        %6940 = vmatpush.msra.mxu0 0.0
        %6941 = vmatpush.msra.mxu0 0.0
        %6942 = vmatpush.msra.mxu0 0.0
        %6943 = vmatpush.msra.mxu0 0.0
        %6944 = vmatpush.msra.mxu0 0.0
        %6945 = vmatpush.msra.mxu0 0.0
        %6946 = vmatpush.msra.mxu0 0.0
        %6947 = vmatpush.msra.mxu0 0.0
        %6948 = vmatpush.msra.mxu0 0.0
        %6949 = vmatpush.msra.mxu0 %v6853
        %6950 = vmatpush.msra.mxu0 %v6847
        %6951 = vmatmul.f32.gmra.mxu0 %v6866
        %v6952 = vpop.f32.mrf.mxu0
        %v6953 = vadd.f32 0.0, %v6952
        %6954 = vmatmul.f32.gmra.mxu0 %v6869
        %v6955 = vpop.f32.mrf.mxu0
        %v6956 = vadd.f32 0.0, %v6955
        %6957 = vmatmul.f32.gmra.mxu0 %v6872
        %v6958 = vpop.f32.mrf.mxu0
        %v6959 = vadd.f32 0.0, %v6958
        %6960 = vmatmul.f32.gmra.mxu0 %v6875
        %v6961 = vpop.f32.mrf.mxu0
        %v6962 = vadd.f32 0.0, %v6961
        %6963 = vdwg.mxu0
        %v6964 = vadd.f32 %v6825, %v6895
        %v6965 = vadd.f32 %v6826, %v6924
        %v6966 = vadd.f32 %v6827, %v6953
        %v6967 = vadd.f32 %v6828, %v6898
        %v6968 = vadd.f32 %v6829, %v6927
        %v6969 = vadd.f32 %v6830, %v6956
        %v6970 = vadd.f32 %v6831, %v6901
        %v6971 = vadd.f32 %v6832, %v6930
        %v6972 = vadd.f32 %v6833, %v6959
        %v6973 = vadd.f32 %v6834, %v6904
        %v6974 = vadd.f32 %v6835, %v6933
        %v6975 = vadd.f32 %v6836, %v6962
        %s6976 = scalar_lea.vmem %s3, 480
        %v6977 = vld [vmem:[%s6976] sm:$0xff]
        %v6978 = vld [vmem:[%s6976 + $0x8] sm:$0xff]
        %v6979 = vld [vmem:[%s6976 + $0x10] sm:$0xff]
        %v6980 = vld [vmem:[%s6976 + $0x18] sm:$0xff]
        %6981 = vrot.lane.b32.xlu0 %v4380, 74
        %v6982 = vpop.permute.xlu0 %6981
        %6983 = vrot.lane.b32.xlu0 %v4564, 74
        %v6984 = vpop.permute.xlu0 %6983
        %6985 = vrot.lane.b32.xlu0 %v4748, 74
        %v6986 = vpop.permute.xlu0 %6985
        %6987 = vrot.lane.b32.xlu0 %v4383, 74
        %v6988 = vpop.permute.xlu0 %6987
        %6989 = vrot.lane.b32.xlu0 %v4567, 74
        %v6990 = vpop.permute.xlu0 %6989
        %6991 = vrot.lane.b32.xlu0 %v4751, 74
        %v6992 = vpop.permute.xlu0 %6991
        %vm6993 = vcmask 605184
        %v6994 = vsel %vm6993, %v6982, %v6984
        %v6995 = vsel %vm6993, %v6984, %v6986
        %v6996 = vsel %vm6993, %v6988, %v6990
        %v6997 = vsel %vm6993, %v6990, %v6992
        %v7005 = vsel %vm4974, %v6977, 0
        %v7008 = vsel %vm4974, %v6978, 0
        %v7011 = vsel %vm4974, %v6979, 0
        %v7014 = vsel %vm4974, %v6980, 0
        %7016 = vmatpush.msra.mxu0 0.0
        %7017 = vmatpush.msra.mxu0 0.0
        %7018 = vmatpush.msra.mxu0 0.0
        %7019 = vmatpush.msra.mxu0 0.0
        %7020 = vmatpush.msra.mxu0 0.0
        %7021 = vmatpush.msra.mxu0 0.0
        %7022 = vmatpush.msra.mxu0 0.0
        %7023 = vmatpush.msra.mxu0 0.0
        %7024 = vmatpush.msra.mxu0 0.0
        %7025 = vmatpush.msra.mxu0 0.0
        %7026 = vmatpush.msra.mxu0 0.0
        %7027 = vmatpush.msra.mxu0 0.0
        %7028 = vmatpush.msra.mxu0 0.0
        %7029 = vmatpush.msra.mxu0 0.0
        %7030 = vmatpush.msra.mxu0 %v6996
        %7031 = vmatpush.msra.mxu0 %v6994
        %7032 = vmatmul.f32.gmra.mxu0 %v7005
        %v7033 = vpop.f32.mrf.mxu0
        %v7034 = vadd.f32 0.0, %v7033
        %7035 = vmatmul.f32.gmra.mxu0 %v7008
        %v7036 = vpop.f32.mrf.mxu0
        %v7037 = vadd.f32 0.0, %v7036
        %7038 = vmatmul.f32.gmra.mxu0 %v7011
        %v7039 = vpop.f32.mrf.mxu0
        %v7040 = vadd.f32 0.0, %v7039
        %7041 = vmatmul.f32.gmra.mxu0 %v7014
        %v7042 = vpop.f32.mrf.mxu0
        %v7043 = vadd.f32 0.0, %v7042
        %7044 = vdwg.mxu0
        %7045 = vmatpush.msra.mxu0 0.0
        %7046 = vmatpush.msra.mxu0 0.0
        %7047 = vmatpush.msra.mxu0 0.0
        %7048 = vmatpush.msra.mxu0 0.0
        %7049 = vmatpush.msra.mxu0 0.0
        %7050 = vmatpush.msra.mxu0 0.0
        %7051 = vmatpush.msra.mxu0 0.0
        %7052 = vmatpush.msra.mxu0 0.0
        %7053 = vmatpush.msra.mxu0 0.0
        %7054 = vmatpush.msra.mxu0 0.0
        %7055 = vmatpush.msra.mxu0 0.0
        %7056 = vmatpush.msra.mxu0 0.0
        %7057 = vmatpush.msra.mxu0 0.0
        %7058 = vmatpush.msra.mxu0 0.0
        %7059 = vmatpush.msra.mxu0 %v6997
        %7060 = vmatpush.msra.mxu0 %v6995
        %7061 = vmatmul.f32.gmra.mxu0 %v7005
        %v7062 = vpop.f32.mrf.mxu0
        %v7063 = vadd.f32 0.0, %v7062
        %7064 = vmatmul.f32.gmra.mxu0 %v7008
        %v7065 = vpop.f32.mrf.mxu0
        %v7066 = vadd.f32 0.0, %v7065
        %7067 = vmatmul.f32.gmra.mxu0 %v7011
        %v7068 = vpop.f32.mrf.mxu0
        %v7069 = vadd.f32 0.0, %v7068
        %7070 = vmatmul.f32.gmra.mxu0 %v7014
        %v7071 = vpop.f32.mrf.mxu0
        %v7072 = vadd.f32 0.0, %v7071
        %7073 = vdwg.mxu0
        %7074 = vmatpush.msra.mxu0 0.0
        %7075 = vmatpush.msra.mxu0 0.0
        %7076 = vmatpush.msra.mxu0 0.0
        %7077 = vmatpush.msra.mxu0 0.0
        %7078 = vmatpush.msra.mxu0 0.0
        %7079 = vmatpush.msra.mxu0 0.0
        %7080 = vmatpush.msra.mxu0 0.0
        %7081 = vmatpush.msra.mxu0 0.0
        %7082 = vmatpush.msra.mxu0 0.0
        %7083 = vmatpush.msra.mxu0 0.0
        %7084 = vmatpush.msra.mxu0 0.0
        %7085 = vmatpush.msra.mxu0 0.0
        %7086 = vmatpush.msra.mxu0 0.0
        %7087 = vmatpush.msra.mxu0 0.0
        %7088 = vmatpush.msra.mxu0 %v6992
        %7089 = vmatpush.msra.mxu0 %v6986
        %7090 = vmatmul.f32.gmra.mxu0 %v7005
        %v7091 = vpop.f32.mrf.mxu0
        %v7092 = vadd.f32 0.0, %v7091
        %7093 = vmatmul.f32.gmra.mxu0 %v7008
        %v7094 = vpop.f32.mrf.mxu0
        %v7095 = vadd.f32 0.0, %v7094
        %7096 = vmatmul.f32.gmra.mxu0 %v7011
        %v7097 = vpop.f32.mrf.mxu0
        %v7098 = vadd.f32 0.0, %v7097
        %7099 = vmatmul.f32.gmra.mxu0 %v7014
        %v7100 = vpop.f32.mrf.mxu0
        %v7101 = vadd.f32 0.0, %v7100
        %7102 = vdwg.mxu0
        %v7103 = vadd.f32 %v6964, %v7034
        %v7104 = vadd.f32 %v6965, %v7063
        %v7105 = vadd.f32 %v6966, %v7092
        %v7106 = vadd.f32 %v6967, %v7037
        %v7107 = vadd.f32 %v6968, %v7066
        %v7108 = vadd.f32 %v6969, %v7095
        %v7109 = vadd.f32 %v6970, %v7040
        %v7110 = vadd.f32 %v6971, %v7069
        %v7111 = vadd.f32 %v6972, %v7098
        %v7112 = vadd.f32 %v6973, %v7043
        %v7113 = vadd.f32 %v6974, %v7072
        %v7114 = vadd.f32 %v6975, %v7101
        %s7115 = scalar_lea.vmem %s3, 512
        %v7116 = vld [vmem:[%s7115] sm:$0xff]
        %v7117 = vld [vmem:[%s7115 + $0x8] sm:$0xff]
        %v7118 = vld [vmem:[%s7115 + $0x10] sm:$0xff]
        %v7119 = vld [vmem:[%s7115 + $0x18] sm:$0xff]
        %7120 = vrot.lane.b32.xlu0 %v4380, 73
        %v7121 = vpop.permute.xlu0 %7120
        %7122 = vrot.lane.b32.xlu0 %v4564, 73
        %v7123 = vpop.permute.xlu0 %7122
        %7124 = vrot.lane.b32.xlu0 %v4748, 73
        %v7125 = vpop.permute.xlu0 %7124
        %7126 = vrot.lane.b32.xlu0 %v4383, 73
        %v7127 = vpop.permute.xlu0 %7126
        %7128 = vrot.lane.b32.xlu0 %v4567, 73
        %v7129 = vpop.permute.xlu0 %7128
        %7130 = vrot.lane.b32.xlu0 %v4751, 73
        %v7131 = vpop.permute.xlu0 %7130
        %vm7132 = vcmask 596992
        %v7133 = vsel %vm7132, %v7121, %v7123
        %v7134 = vsel %vm7132, %v7123, %v7125
        %v7135 = vsel %vm7132, %v7127, %v7129
        %v7136 = vsel %vm7132, %v7129, %v7131
        %v7144 = vsel %vm4974, %v7116, 0
        %v7147 = vsel %vm4974, %v7117, 0
        %v7150 = vsel %vm4974, %v7118, 0
        %v7153 = vsel %vm4974, %v7119, 0
        %7155 = vmatpush.msra.mxu0 0.0
        %7156 = vmatpush.msra.mxu0 0.0
        %7157 = vmatpush.msra.mxu0 0.0
        %7158 = vmatpush.msra.mxu0 0.0
        %7159 = vmatpush.msra.mxu0 0.0
        %7160 = vmatpush.msra.mxu0 0.0
        %7161 = vmatpush.msra.mxu0 0.0
        %7162 = vmatpush.msra.mxu0 0.0
        %7163 = vmatpush.msra.mxu0 0.0
        %7164 = vmatpush.msra.mxu0 0.0
        %7165 = vmatpush.msra.mxu0 0.0
        %7166 = vmatpush.msra.mxu0 0.0
        %7167 = vmatpush.msra.mxu0 0.0
        %7168 = vmatpush.msra.mxu0 0.0
        %7169 = vmatpush.msra.mxu0 %v7135
        %7170 = vmatpush.msra.mxu0 %v7133
        %7171 = vmatmul.f32.gmra.mxu0 %v7144
        %v7172 = vpop.f32.mrf.mxu0
        %v7173 = vadd.f32 0.0, %v7172
        %7174 = vmatmul.f32.gmra.mxu0 %v7147
        %v7175 = vpop.f32.mrf.mxu0
        %v7176 = vadd.f32 0.0, %v7175
        %7177 = vmatmul.f32.gmra.mxu0 %v7150
        %v7178 = vpop.f32.mrf.mxu0
        %v7179 = vadd.f32 0.0, %v7178
        %7180 = vmatmul.f32.gmra.mxu0 %v7153
        %v7181 = vpop.f32.mrf.mxu0
        %v7182 = vadd.f32 0.0, %v7181
        %7183 = vdwg.mxu0
        %7184 = vmatpush.msra.mxu0 0.0
        %7185 = vmatpush.msra.mxu0 0.0
        %7186 = vmatpush.msra.mxu0 0.0
        %7187 = vmatpush.msra.mxu0 0.0
        %7188 = vmatpush.msra.mxu0 0.0
        %7189 = vmatpush.msra.mxu0 0.0
        %7190 = vmatpush.msra.mxu0 0.0
        %7191 = vmatpush.msra.mxu0 0.0
        %7192 = vmatpush.msra.mxu0 0.0
        %7193 = vmatpush.msra.mxu0 0.0
        %7194 = vmatpush.msra.mxu0 0.0
        %7195 = vmatpush.msra.mxu0 0.0
        %7196 = vmatpush.msra.mxu0 0.0
        %7197 = vmatpush.msra.mxu0 0.0
        %7198 = vmatpush.msra.mxu0 %v7136
        %7199 = vmatpush.msra.mxu0 %v7134
        %7200 = vmatmul.f32.gmra.mxu0 %v7144
        %v7201 = vpop.f32.mrf.mxu0
        %v7202 = vadd.f32 0.0, %v7201
        %7203 = vmatmul.f32.gmra.mxu0 %v7147
        %v7204 = vpop.f32.mrf.mxu0
        %v7205 = vadd.f32 0.0, %v7204
        %7206 = vmatmul.f32.gmra.mxu0 %v7150
        %v7207 = vpop.f32.mrf.mxu0
        %v7208 = vadd.f32 0.0, %v7207
        %7209 = vmatmul.f32.gmra.mxu0 %v7153
        %v7210 = vpop.f32.mrf.mxu0
        %v7211 = vadd.f32 0.0, %v7210
        %7212 = vdwg.mxu0
        %7213 = vmatpush.msra.mxu0 0.0
        %7214 = vmatpush.msra.mxu0 0.0
        %7215 = vmatpush.msra.mxu0 0.0
        %7216 = vmatpush.msra.mxu0 0.0
        %7217 = vmatpush.msra.mxu0 0.0
        %7218 = vmatpush.msra.mxu0 0.0
        %7219 = vmatpush.msra.mxu0 0.0
        %7220 = vmatpush.msra.mxu0 0.0
        %7221 = vmatpush.msra.mxu0 0.0
        %7222 = vmatpush.msra.mxu0 0.0
        %7223 = vmatpush.msra.mxu0 0.0
        %7224 = vmatpush.msra.mxu0 0.0
        %7225 = vmatpush.msra.mxu0 0.0
        %7226 = vmatpush.msra.mxu0 0.0
        %7227 = vmatpush.msra.mxu0 %v7131
        %7228 = vmatpush.msra.mxu0 %v7125
        %7229 = vmatmul.f32.gmra.mxu0 %v7144
        %v7230 = vpop.f32.mrf.mxu0
        %v7231 = vadd.f32 0.0, %v7230
        %7232 = vmatmul.f32.gmra.mxu0 %v7147
        %v7233 = vpop.f32.mrf.mxu0
        %v7234 = vadd.f32 0.0, %v7233
        %7235 = vmatmul.f32.gmra.mxu0 %v7150
        %v7236 = vpop.f32.mrf.mxu0
        %v7237 = vadd.f32 0.0, %v7236
        %7238 = vmatmul.f32.gmra.mxu0 %v7153
        %v7239 = vpop.f32.mrf.mxu0
        %v7240 = vadd.f32 0.0, %v7239
        %7241 = vdwg.mxu0
        %v7242 = vadd.f32 %v7103, %v7173
        %v7243 = vadd.f32 %v7104, %v7202
        %v7244 = vadd.f32 %v7105, %v7231
        %v7245 = vadd.f32 %v7106, %v7176
        %v7246 = vadd.f32 %v7107, %v7205
        %v7247 = vadd.f32 %v7108, %v7234
        %v7248 = vadd.f32 %v7109, %v7179
        %v7249 = vadd.f32 %v7110, %v7208
        %v7250 = vadd.f32 %v7111, %v7237
        %v7251 = vadd.f32 %v7112, %v7182
        %v7252 = vadd.f32 %v7113, %v7211
        %v7253 = vadd.f32 %v7114, %v7240
        %s7254 = scalar_lea.vmem %s3, 544
        %v7255 = vld [vmem:[%s7254] sm:$0xff]
        %v7256 = vld [vmem:[%s7254 + $0x8] sm:$0xff]
        %v7257 = vld [vmem:[%s7254 + $0x10] sm:$0xff]
        %v7258 = vld [vmem:[%s7254 + $0x18] sm:$0xff]
        %7259 = vrot.lane.b32.xlu0 %v4380, 72
        %v7260 = vpop.permute.xlu0 %7259
        %7261 = vrot.lane.b32.xlu0 %v4564, 72
        %v7262 = vpop.permute.xlu0 %7261
        %7263 = vrot.lane.b32.xlu0 %v4748, 72
        %v7264 = vpop.permute.xlu0 %7263
        %7265 = vrot.lane.b32.xlu0 %v4383, 72
        %v7266 = vpop.permute.xlu0 %7265
        %7267 = vrot.lane.b32.xlu0 %v4567, 72
        %v7268 = vpop.permute.xlu0 %7267
        %7269 = vrot.lane.b32.xlu0 %v4751, 72
        %v7270 = vpop.permute.xlu0 %7269
        %vm7271 = vcmask 588800
        %v7272 = vsel %vm7271, %v7260, %v7262
        %v7273 = vsel %vm7271, %v7262, %v7264
        %v7274 = vsel %vm7271, %v7266, %v7268
        %v7275 = vsel %vm7271, %v7268, %v7270
        %v7283 = vsel %vm4974, %v7255, 0
        %v7286 = vsel %vm4974, %v7256, 0
        %v7289 = vsel %vm4974, %v7257, 0
        %v7292 = vsel %vm4974, %v7258, 0
        %7294 = vmatpush.msra.mxu0 0.0
        %7295 = vmatpush.msra.mxu0 0.0
        %7296 = vmatpush.msra.mxu0 0.0
        %7297 = vmatpush.msra.mxu0 0.0
        %7298 = vmatpush.msra.mxu0 0.0
        %7299 = vmatpush.msra.mxu0 0.0
        %7300 = vmatpush.msra.mxu0 0.0
        %7301 = vmatpush.msra.mxu0 0.0
        %7302 = vmatpush.msra.mxu0 0.0
        %7303 = vmatpush.msra.mxu0 0.0
        %7304 = vmatpush.msra.mxu0 0.0
        %7305 = vmatpush.msra.mxu0 0.0
        %7306 = vmatpush.msra.mxu0 0.0
        %7307 = vmatpush.msra.mxu0 0.0
        %7308 = vmatpush.msra.mxu0 %v7274
        %7309 = vmatpush.msra.mxu0 %v7272
        %7310 = vmatmul.f32.gmra.mxu0 %v7283
        %v7311 = vpop.f32.mrf.mxu0
        %v7312 = vadd.f32 0.0, %v7311
        %7313 = vmatmul.f32.gmra.mxu0 %v7286
        %v7314 = vpop.f32.mrf.mxu0
        %v7315 = vadd.f32 0.0, %v7314
        %7316 = vmatmul.f32.gmra.mxu0 %v7289
        %v7317 = vpop.f32.mrf.mxu0
        %v7318 = vadd.f32 0.0, %v7317
        %7319 = vmatmul.f32.gmra.mxu0 %v7292
        %v7320 = vpop.f32.mrf.mxu0
        %v7321 = vadd.f32 0.0, %v7320
        %7322 = vdwg.mxu0
        %7323 = vmatpush.msra.mxu0 0.0
        %7324 = vmatpush.msra.mxu0 0.0
        %7325 = vmatpush.msra.mxu0 0.0
        %7326 = vmatpush.msra.mxu0 0.0
        %7327 = vmatpush.msra.mxu0 0.0
        %7328 = vmatpush.msra.mxu0 0.0
        %7329 = vmatpush.msra.mxu0 0.0
        %7330 = vmatpush.msra.mxu0 0.0
        %7331 = vmatpush.msra.mxu0 0.0
        %7332 = vmatpush.msra.mxu0 0.0
        %7333 = vmatpush.msra.mxu0 0.0
        %7334 = vmatpush.msra.mxu0 0.0
        %7335 = vmatpush.msra.mxu0 0.0
        %7336 = vmatpush.msra.mxu0 0.0
        %7337 = vmatpush.msra.mxu0 %v7275
        %7338 = vmatpush.msra.mxu0 %v7273
        %7339 = vmatmul.f32.gmra.mxu0 %v7283
        %v7340 = vpop.f32.mrf.mxu0
        %v7341 = vadd.f32 0.0, %v7340
        %7342 = vmatmul.f32.gmra.mxu0 %v7286
        %v7343 = vpop.f32.mrf.mxu0
        %v7344 = vadd.f32 0.0, %v7343
        %7345 = vmatmul.f32.gmra.mxu0 %v7289
        %v7346 = vpop.f32.mrf.mxu0
        %v7347 = vadd.f32 0.0, %v7346
        %7348 = vmatmul.f32.gmra.mxu0 %v7292
        %v7349 = vpop.f32.mrf.mxu0
        %v7350 = vadd.f32 0.0, %v7349
        %7351 = vdwg.mxu0
        %7352 = vmatpush.msra.mxu0 0.0
        %7353 = vmatpush.msra.mxu0 0.0
        %7354 = vmatpush.msra.mxu0 0.0
        %7355 = vmatpush.msra.mxu0 0.0
        %7356 = vmatpush.msra.mxu0 0.0
        %7357 = vmatpush.msra.mxu0 0.0
        %7358 = vmatpush.msra.mxu0 0.0
        %7359 = vmatpush.msra.mxu0 0.0
        %7360 = vmatpush.msra.mxu0 0.0
        %7361 = vmatpush.msra.mxu0 0.0
        %7362 = vmatpush.msra.mxu0 0.0
        %7363 = vmatpush.msra.mxu0 0.0
        %7364 = vmatpush.msra.mxu0 0.0
        %7365 = vmatpush.msra.mxu0 0.0
        %7366 = vmatpush.msra.mxu0 %v7270
        %7367 = vmatpush.msra.mxu0 %v7264
        %7368 = vmatmul.f32.gmra.mxu0 %v7283
        %v7369 = vpop.f32.mrf.mxu0
        %v7370 = vadd.f32 0.0, %v7369
        %7371 = vmatmul.f32.gmra.mxu0 %v7286
        %v7372 = vpop.f32.mrf.mxu0
        %v7373 = vadd.f32 0.0, %v7372
        %7374 = vmatmul.f32.gmra.mxu0 %v7289
        %v7375 = vpop.f32.mrf.mxu0
        %v7376 = vadd.f32 0.0, %v7375
        %7377 = vmatmul.f32.gmra.mxu0 %v7292
        %v7378 = vpop.f32.mrf.mxu0
        %v7379 = vadd.f32 0.0, %v7378
        %7380 = vdwg.mxu0
        %v7381 = vadd.f32 %v7242, %v7312
        %v7382 = vadd.f32 %v7243, %v7341
        %v7383 = vadd.f32 %v7244, %v7370
        %v7384 = vadd.f32 %v7245, %v7315
        %v7385 = vadd.f32 %v7246, %v7344
        %v7386 = vadd.f32 %v7247, %v7373
        %v7387 = vadd.f32 %v7248, %v7318
        %v7388 = vadd.f32 %v7249, %v7347
        %v7389 = vadd.f32 %v7250, %v7376
        %v7390 = vadd.f32 %v7251, %v7321
        %v7391 = vadd.f32 %v7252, %v7350
        %v7392 = vadd.f32 %v7253, %v7379
        %s7393 = scalar_lea.vmem %s3, 576
        %v7394 = vld [vmem:[%s7393] sm:$0xff]
        %v7395 = vld [vmem:[%s7393 + $0x8] sm:$0xff]
        %v7396 = vld [vmem:[%s7393 + $0x10] sm:$0xff]
        %v7397 = vld [vmem:[%s7393 + $0x18] sm:$0xff]
        %7398 = vrot.lane.b32.xlu0 %v4380, 71
        %v7399 = vpop.permute.xlu0 %7398
        %7400 = vrot.lane.b32.xlu0 %v4564, 71
        %v7401 = vpop.permute.xlu0 %7400
        %7402 = vrot.lane.b32.xlu0 %v4748, 71
        %v7403 = vpop.permute.xlu0 %7402
        %7404 = vrot.lane.b32.xlu0 %v4383, 71
        %v7405 = vpop.permute.xlu0 %7404
        %7406 = vrot.lane.b32.xlu0 %v4567, 71
        %v7407 = vpop.permute.xlu0 %7406
        %7408 = vrot.lane.b32.xlu0 %v4751, 71
        %v7409 = vpop.permute.xlu0 %7408
        %vm7410 = vcmask 580608
        %v7411 = vsel %vm7410, %v7399, %v7401
        %v7412 = vsel %vm7410, %v7401, %v7403
        %v7413 = vsel %vm7410, %v7405, %v7407
        %v7414 = vsel %vm7410, %v7407, %v7409
        %v7422 = vsel %vm4974, %v7394, 0
        %v7425 = vsel %vm4974, %v7395, 0
        %v7428 = vsel %vm4974, %v7396, 0
        %v7431 = vsel %vm4974, %v7397, 0
        %7433 = vmatpush.msra.mxu0 0.0
        %7434 = vmatpush.msra.mxu0 0.0
        %7435 = vmatpush.msra.mxu0 0.0
        %7436 = vmatpush.msra.mxu0 0.0
        %7437 = vmatpush.msra.mxu0 0.0
        %7438 = vmatpush.msra.mxu0 0.0
        %7439 = vmatpush.msra.mxu0 0.0
        %7440 = vmatpush.msra.mxu0 0.0
        %7441 = vmatpush.msra.mxu0 0.0
        %7442 = vmatpush.msra.mxu0 0.0
        %7443 = vmatpush.msra.mxu0 0.0
        %7444 = vmatpush.msra.mxu0 0.0
        %7445 = vmatpush.msra.mxu0 0.0
        %7446 = vmatpush.msra.mxu0 0.0
        %7447 = vmatpush.msra.mxu0 %v7413
        %7448 = vmatpush.msra.mxu0 %v7411
        %7449 = vmatmul.f32.gmra.mxu0 %v7422
        %v7450 = vpop.f32.mrf.mxu0
        %v7451 = vadd.f32 0.0, %v7450
        %7452 = vmatmul.f32.gmra.mxu0 %v7425
        %v7453 = vpop.f32.mrf.mxu0
        %v7454 = vadd.f32 0.0, %v7453
        %7455 = vmatmul.f32.gmra.mxu0 %v7428
        %v7456 = vpop.f32.mrf.mxu0
        %v7457 = vadd.f32 0.0, %v7456
        %7458 = vmatmul.f32.gmra.mxu0 %v7431
        %v7459 = vpop.f32.mrf.mxu0
        %v7460 = vadd.f32 0.0, %v7459
        %7461 = vdwg.mxu0
        %7462 = vmatpush.msra.mxu0 0.0
        %7463 = vmatpush.msra.mxu0 0.0
        %7464 = vmatpush.msra.mxu0 0.0
        %7465 = vmatpush.msra.mxu0 0.0
        %7466 = vmatpush.msra.mxu0 0.0
        %7467 = vmatpush.msra.mxu0 0.0
        %7468 = vmatpush.msra.mxu0 0.0
        %7469 = vmatpush.msra.mxu0 0.0
        %7470 = vmatpush.msra.mxu0 0.0
        %7471 = vmatpush.msra.mxu0 0.0
        %7472 = vmatpush.msra.mxu0 0.0
        %7473 = vmatpush.msra.mxu0 0.0
        %7474 = vmatpush.msra.mxu0 0.0
        %7475 = vmatpush.msra.mxu0 0.0
        %7476 = vmatpush.msra.mxu0 %v7414
        %7477 = vmatpush.msra.mxu0 %v7412
        %7478 = vmatmul.f32.gmra.mxu0 %v7422
        %v7479 = vpop.f32.mrf.mxu0
        %v7480 = vadd.f32 0.0, %v7479
        %7481 = vmatmul.f32.gmra.mxu0 %v7425
        %v7482 = vpop.f32.mrf.mxu0
        %v7483 = vadd.f32 0.0, %v7482
        %7484 = vmatmul.f32.gmra.mxu0 %v7428
        %v7485 = vpop.f32.mrf.mxu0
        %v7486 = vadd.f32 0.0, %v7485
        %7487 = vmatmul.f32.gmra.mxu0 %v7431
        %v7488 = vpop.f32.mrf.mxu0
        %v7489 = vadd.f32 0.0, %v7488
        %7490 = vdwg.mxu0
        %7491 = vmatpush.msra.mxu0 0.0
        %7492 = vmatpush.msra.mxu0 0.0
        %7493 = vmatpush.msra.mxu0 0.0
        %7494 = vmatpush.msra.mxu0 0.0
        %7495 = vmatpush.msra.mxu0 0.0
        %7496 = vmatpush.msra.mxu0 0.0
        %7497 = vmatpush.msra.mxu0 0.0
        %7498 = vmatpush.msra.mxu0 0.0
        %7499 = vmatpush.msra.mxu0 0.0
        %7500 = vmatpush.msra.mxu0 0.0
        %7501 = vmatpush.msra.mxu0 0.0
        %7502 = vmatpush.msra.mxu0 0.0
        %7503 = vmatpush.msra.mxu0 0.0
        %7504 = vmatpush.msra.mxu0 0.0
        %7505 = vmatpush.msra.mxu0 %v7409
        %7506 = vmatpush.msra.mxu0 %v7403
        %7507 = vmatmul.f32.gmra.mxu0 %v7422
        %v7508 = vpop.f32.mrf.mxu0
        %v7509 = vadd.f32 0.0, %v7508
        %7510 = vmatmul.f32.gmra.mxu0 %v7425
        %v7511 = vpop.f32.mrf.mxu0
        %v7512 = vadd.f32 0.0, %v7511
        %7513 = vmatmul.f32.gmra.mxu0 %v7428
        %v7514 = vpop.f32.mrf.mxu0
        %v7515 = vadd.f32 0.0, %v7514
        %7516 = vmatmul.f32.gmra.mxu0 %v7431
        %v7517 = vpop.f32.mrf.mxu0
        %v7518 = vadd.f32 0.0, %v7517
        %7519 = vdwg.mxu0
        %v7520 = vadd.f32 %v7381, %v7451
        %v7521 = vadd.f32 %v7382, %v7480
        %v7522 = vadd.f32 %v7383, %v7509
        %v7523 = vadd.f32 %v7384, %v7454
        %v7524 = vadd.f32 %v7385, %v7483
        %v7525 = vadd.f32 %v7386, %v7512
        %v7526 = vadd.f32 %v7387, %v7457
        %v7527 = vadd.f32 %v7388, %v7486
        %v7528 = vadd.f32 %v7389, %v7515
        %v7529 = vadd.f32 %v7390, %v7460
        %v7530 = vadd.f32 %v7391, %v7489
        %v7531 = vadd.f32 %v7392, %v7518
        %s7532 = scalar_lea.vmem %s3, 608
        %v7533 = vld [vmem:[%s7532] sm:$0xff]
        %v7534 = vld [vmem:[%s7532 + $0x8] sm:$0xff]
        %v7535 = vld [vmem:[%s7532 + $0x10] sm:$0xff]
        %v7536 = vld [vmem:[%s7532 + $0x18] sm:$0xff]
        %7537 = vrot.lane.b32.xlu0 %v4380, 70
        %v7538 = vpop.permute.xlu0 %7537
        %7539 = vrot.lane.b32.xlu0 %v4564, 70
        %v7540 = vpop.permute.xlu0 %7539
        %7541 = vrot.lane.b32.xlu0 %v4748, 70
        %v7542 = vpop.permute.xlu0 %7541
        %7543 = vrot.lane.b32.xlu0 %v4383, 70
        %v7544 = vpop.permute.xlu0 %7543
        %7545 = vrot.lane.b32.xlu0 %v4567, 70
        %v7546 = vpop.permute.xlu0 %7545
        %7547 = vrot.lane.b32.xlu0 %v4751, 70
        %v7548 = vpop.permute.xlu0 %7547
        %vm7549 = vcmask 572416
        %v7550 = vsel %vm7549, %v7538, %v7540
        %v7551 = vsel %vm7549, %v7540, %v7542
        %v7552 = vsel %vm7549, %v7544, %v7546
        %v7553 = vsel %vm7549, %v7546, %v7548
        %v7561 = vsel %vm4974, %v7533, 0
        %v7564 = vsel %vm4974, %v7534, 0
        %v7567 = vsel %vm4974, %v7535, 0
        %v7570 = vsel %vm4974, %v7536, 0
        %7572 = vmatpush.msra.mxu0 0.0
        %7573 = vmatpush.msra.mxu0 0.0
        %7574 = vmatpush.msra.mxu0 0.0
        %7575 = vmatpush.msra.mxu0 0.0
        %7576 = vmatpush.msra.mxu0 0.0
        %7577 = vmatpush.msra.mxu0 0.0
        %7578 = vmatpush.msra.mxu0 0.0
        %7579 = vmatpush.msra.mxu0 0.0
        %7580 = vmatpush.msra.mxu0 0.0
        %7581 = vmatpush.msra.mxu0 0.0
        %7582 = vmatpush.msra.mxu0 0.0
        %7583 = vmatpush.msra.mxu0 0.0
        %7584 = vmatpush.msra.mxu0 0.0
        %7585 = vmatpush.msra.mxu0 0.0
        %7586 = vmatpush.msra.mxu0 %v7552
        %7587 = vmatpush.msra.mxu0 %v7550
        %7588 = vmatmul.f32.gmra.mxu0 %v7561
        %v7589 = vpop.f32.mrf.mxu0
        %v7590 = vadd.f32 0.0, %v7589
        %7591 = vmatmul.f32.gmra.mxu0 %v7564
        %v7592 = vpop.f32.mrf.mxu0
        %v7593 = vadd.f32 0.0, %v7592
        %7594 = vmatmul.f32.gmra.mxu0 %v7567
        %v7595 = vpop.f32.mrf.mxu0
        %v7596 = vadd.f32 0.0, %v7595
        %7597 = vmatmul.f32.gmra.mxu0 %v7570
        %v7598 = vpop.f32.mrf.mxu0
        %v7599 = vadd.f32 0.0, %v7598
        %7600 = vdwg.mxu0
        %7601 = vmatpush.msra.mxu0 0.0
        %7602 = vmatpush.msra.mxu0 0.0
        %7603 = vmatpush.msra.mxu0 0.0
        %7604 = vmatpush.msra.mxu0 0.0
        %7605 = vmatpush.msra.mxu0 0.0
        %7606 = vmatpush.msra.mxu0 0.0
        %7607 = vmatpush.msra.mxu0 0.0
        %7608 = vmatpush.msra.mxu0 0.0
        %7609 = vmatpush.msra.mxu0 0.0
        %7610 = vmatpush.msra.mxu0 0.0
        %7611 = vmatpush.msra.mxu0 0.0
        %7612 = vmatpush.msra.mxu0 0.0
        %7613 = vmatpush.msra.mxu0 0.0
        %7614 = vmatpush.msra.mxu0 0.0
        %7615 = vmatpush.msra.mxu0 %v7553
        %7616 = vmatpush.msra.mxu0 %v7551
        %7617 = vmatmul.f32.gmra.mxu0 %v7561
        %v7618 = vpop.f32.mrf.mxu0
        %v7619 = vadd.f32 0.0, %v7618
        %7620 = vmatmul.f32.gmra.mxu0 %v7564
        %v7621 = vpop.f32.mrf.mxu0
        %v7622 = vadd.f32 0.0, %v7621
        %7623 = vmatmul.f32.gmra.mxu0 %v7567
        %v7624 = vpop.f32.mrf.mxu0
        %v7625 = vadd.f32 0.0, %v7624
        %7626 = vmatmul.f32.gmra.mxu0 %v7570
        %v7627 = vpop.f32.mrf.mxu0
        %v7628 = vadd.f32 0.0, %v7627
        %7629 = vdwg.mxu0
        %7630 = vmatpush.msra.mxu0 0.0
        %7631 = vmatpush.msra.mxu0 0.0
        %7632 = vmatpush.msra.mxu0 0.0
        %7633 = vmatpush.msra.mxu0 0.0
        %7634 = vmatpush.msra.mxu0 0.0
        %7635 = vmatpush.msra.mxu0 0.0
        %7636 = vmatpush.msra.mxu0 0.0
        %7637 = vmatpush.msra.mxu0 0.0
        %7638 = vmatpush.msra.mxu0 0.0
        %7639 = vmatpush.msra.mxu0 0.0
        %7640 = vmatpush.msra.mxu0 0.0
        %7641 = vmatpush.msra.mxu0 0.0
        %7642 = vmatpush.msra.mxu0 0.0
        %7643 = vmatpush.msra.mxu0 0.0
        %7644 = vmatpush.msra.mxu0 %v7548
        %7645 = vmatpush.msra.mxu0 %v7542
        %7646 = vmatmul.f32.gmra.mxu0 %v7561
        %v7647 = vpop.f32.mrf.mxu0
        %v7648 = vadd.f32 0.0, %v7647
        %7649 = vmatmul.f32.gmra.mxu0 %v7564
        %v7650 = vpop.f32.mrf.mxu0
        %v7651 = vadd.f32 0.0, %v7650
        %7652 = vmatmul.f32.gmra.mxu0 %v7567
        %v7653 = vpop.f32.mrf.mxu0
        %v7654 = vadd.f32 0.0, %v7653
        %7655 = vmatmul.f32.gmra.mxu0 %v7570
        %v7656 = vpop.f32.mrf.mxu0
        %v7657 = vadd.f32 0.0, %v7656
        %7658 = vdwg.mxu0
        %v7659 = vadd.f32 %v7520, %v7590
        %v7660 = vadd.f32 %v7521, %v7619
        %v7661 = vadd.f32 %v7522, %v7648
        %v7662 = vadd.f32 %v7523, %v7593
        %v7663 = vadd.f32 %v7524, %v7622
        %v7664 = vadd.f32 %v7525, %v7651
        %v7665 = vadd.f32 %v7526, %v7596
        %v7666 = vadd.f32 %v7527, %v7625
        %v7667 = vadd.f32 %v7528, %v7654
        %v7668 = vadd.f32 %v7529, %v7599
        %v7669 = vadd.f32 %v7530, %v7628
        %v7670 = vadd.f32 %v7531, %v7657
        %s7671 = scalar_lea.vmem %s3, 640
        %v7672 = vld [vmem:[%s7671] sm:$0xff]
        %v7673 = vld [vmem:[%s7671 + $0x8] sm:$0xff]
        %v7674 = vld [vmem:[%s7671 + $0x10] sm:$0xff]
        %v7675 = vld [vmem:[%s7671 + $0x18] sm:$0xff]
        %7678 = vrot.lane.b32.xlu0 %v4380, 56
        %v7679 = vpop.permute.xlu0 %7678
        %7680 = vrot.lane.b32.xlu0 %v4564, 56
        %v7681 = vpop.permute.xlu0 %7680
        %7682 = vrot.lane.b32.xlu0 %v4748, 56
        %v7683 = vpop.permute.xlu0 %7682
        %7684 = vrot.lane.b32.xlu0 %v4932, 56
        %v7685 = vpop.permute.xlu0 %7684
        %7686 = vrot.lane.b32.xlu0 %v4383, 56
        %v7687 = vpop.permute.xlu0 %7686
        %7688 = vrot.lane.b32.xlu0 %v4567, 56
        %v7689 = vpop.permute.xlu0 %7688
        %7690 = vrot.lane.b32.xlu0 %v4751, 56
        %v7691 = vpop.permute.xlu0 %7690
        %7692 = vrot.lane.b32.xlu0 %v4935, 56
        %v7693 = vpop.permute.xlu0 %7692
        %vm7694 = vcmask 457728
        %v7695 = vsel %vm7694, %v7679, %v7681
        %v7696 = vsel %vm7694, %v7681, %v7683
        %v7697 = vsel %vm7694, %v7683, %v7685
        %v7698 = vsel %vm7694, %v7687, %v7689
        %v7699 = vsel %vm7694, %v7689, %v7691
        %v7700 = vsel %vm7694, %v7691, %v7693
        %v7708 = vsel %vm4974, %v7672, 0
        %v7711 = vsel %vm4974, %v7673, 0
        %v7714 = vsel %vm4974, %v7674, 0
        %v7717 = vsel %vm4974, %v7675, 0
        %7719 = vmatpush.msra.mxu0 0.0
        %7720 = vmatpush.msra.mxu0 0.0
        %7721 = vmatpush.msra.mxu0 0.0
        %7722 = vmatpush.msra.mxu0 0.0
        %7723 = vmatpush.msra.mxu0 0.0
        %7724 = vmatpush.msra.mxu0 0.0
        %7725 = vmatpush.msra.mxu0 0.0
        %7726 = vmatpush.msra.mxu0 0.0
        %7727 = vmatpush.msra.mxu0 0.0
        %7728 = vmatpush.msra.mxu0 0.0
        %7729 = vmatpush.msra.mxu0 0.0
        %7730 = vmatpush.msra.mxu0 0.0
        %7731 = vmatpush.msra.mxu0 0.0
        %7732 = vmatpush.msra.mxu0 0.0
        %7733 = vmatpush.msra.mxu0 %v7698
        %7734 = vmatpush.msra.mxu0 %v7695
        %7735 = vmatmul.f32.gmra.mxu0 %v7708
        %v7736 = vpop.f32.mrf.mxu0
        %v7737 = vadd.f32 0.0, %v7736
        %7738 = vmatmul.f32.gmra.mxu0 %v7711
        %v7739 = vpop.f32.mrf.mxu0
        %v7740 = vadd.f32 0.0, %v7739
        %7741 = vmatmul.f32.gmra.mxu0 %v7714
        %v7742 = vpop.f32.mrf.mxu0
        %v7743 = vadd.f32 0.0, %v7742
        %7744 = vmatmul.f32.gmra.mxu0 %v7717
        %v7745 = vpop.f32.mrf.mxu0
        %v7746 = vadd.f32 0.0, %v7745
        %7747 = vdwg.mxu0
        %7748 = vmatpush.msra.mxu0 0.0
        %7749 = vmatpush.msra.mxu0 0.0
        %7750 = vmatpush.msra.mxu0 0.0
        %7751 = vmatpush.msra.mxu0 0.0
        %7752 = vmatpush.msra.mxu0 0.0
        %7753 = vmatpush.msra.mxu0 0.0
        %7754 = vmatpush.msra.mxu0 0.0
        %7755 = vmatpush.msra.mxu0 0.0
        %7756 = vmatpush.msra.mxu0 0.0
        %7757 = vmatpush.msra.mxu0 0.0
        %7758 = vmatpush.msra.mxu0 0.0
        %7759 = vmatpush.msra.mxu0 0.0
        %7760 = vmatpush.msra.mxu0 0.0
        %7761 = vmatpush.msra.mxu0 0.0
        %7762 = vmatpush.msra.mxu0 %v7699
        %7763 = vmatpush.msra.mxu0 %v7696
        %7764 = vmatmul.f32.gmra.mxu0 %v7708
        %v7765 = vpop.f32.mrf.mxu0
        %v7766 = vadd.f32 0.0, %v7765
        %7767 = vmatmul.f32.gmra.mxu0 %v7711
        %v7768 = vpop.f32.mrf.mxu0
        %v7769 = vadd.f32 0.0, %v7768
        %7770 = vmatmul.f32.gmra.mxu0 %v7714
        %v7771 = vpop.f32.mrf.mxu0
        %v7772 = vadd.f32 0.0, %v7771
        %7773 = vmatmul.f32.gmra.mxu0 %v7717
        %v7774 = vpop.f32.mrf.mxu0
        %v7775 = vadd.f32 0.0, %v7774
        %7776 = vdwg.mxu0
        %7777 = vmatpush.msra.mxu0 0.0
        %7778 = vmatpush.msra.mxu0 0.0
        %7779 = vmatpush.msra.mxu0 0.0
        %7780 = vmatpush.msra.mxu0 0.0
        %7781 = vmatpush.msra.mxu0 0.0
        %7782 = vmatpush.msra.mxu0 0.0
        %7783 = vmatpush.msra.mxu0 0.0
        %7784 = vmatpush.msra.mxu0 0.0
        %7785 = vmatpush.msra.mxu0 0.0
        %7786 = vmatpush.msra.mxu0 0.0
        %7787 = vmatpush.msra.mxu0 0.0
        %7788 = vmatpush.msra.mxu0 0.0
        %7789 = vmatpush.msra.mxu0 0.0
        %7790 = vmatpush.msra.mxu0 0.0
        %7791 = vmatpush.msra.mxu0 %v7700
        %7792 = vmatpush.msra.mxu0 %v7697
        %7793 = vmatmul.f32.gmra.mxu0 %v7708
        %v7794 = vpop.f32.mrf.mxu0
        %v7795 = vadd.f32 0.0, %v7794
        %7796 = vmatmul.f32.gmra.mxu0 %v7711
        %v7797 = vpop.f32.mrf.mxu0
        %v7798 = vadd.f32 0.0, %v7797
        %7799 = vmatmul.f32.gmra.mxu0 %v7714
        %v7800 = vpop.f32.mrf.mxu0
        %v7801 = vadd.f32 0.0, %v7800
        %7802 = vmatmul.f32.gmra.mxu0 %v7717
        %v7803 = vpop.f32.mrf.mxu0
        %v7804 = vadd.f32 0.0, %v7803
        %7805 = vdwg.mxu0
        %v7806 = vadd.f32 %v7659, %v7737
        %v7807 = vadd.f32 %v7660, %v7766
        %v7808 = vadd.f32 %v7661, %v7795
        %v7809 = vadd.f32 %v7662, %v7740
        %v7810 = vadd.f32 %v7663, %v7769
        %v7811 = vadd.f32 %v7664, %v7798
        %v7812 = vadd.f32 %v7665, %v7743
        %v7813 = vadd.f32 %v7666, %v7772
        %v7814 = vadd.f32 %v7667, %v7801
        %v7815 = vadd.f32 %v7668, %v7746
        %v7816 = vadd.f32 %v7669, %v7775
        %v7817 = vadd.f32 %v7670, %v7804
        %s7818 = scalar_lea.vmem %s3, 672
        %v7819 = vld [vmem:[%s7818] sm:$0xff]
        %v7820 = vld [vmem:[%s7818 + $0x8] sm:$0xff]
        %v7821 = vld [vmem:[%s7818 + $0x10] sm:$0xff]
        %v7822 = vld [vmem:[%s7818 + $0x18] sm:$0xff]
        %7823 = vrot.lane.b32.xlu0 %v4380, 55
        %v7824 = vpop.permute.xlu0 %7823
        %7825 = vrot.lane.b32.xlu0 %v4564, 55
        %v7826 = vpop.permute.xlu0 %7825
        %7827 = vrot.lane.b32.xlu0 %v4748, 55
        %v7828 = vpop.permute.xlu0 %7827
        %7829 = vrot.lane.b32.xlu0 %v4932, 55
        %v7830 = vpop.permute.xlu0 %7829
        %7831 = vrot.lane.b32.xlu0 %v4383, 55
        %v7832 = vpop.permute.xlu0 %7831
        %7833 = vrot.lane.b32.xlu0 %v4567, 55
        %v7834 = vpop.permute.xlu0 %7833
        %7835 = vrot.lane.b32.xlu0 %v4751, 55
        %v7836 = vpop.permute.xlu0 %7835
        %7837 = vrot.lane.b32.xlu0 %v4935, 55
        %v7838 = vpop.permute.xlu0 %7837
        %vm7839 = vcmask 449536
        %v7840 = vsel %vm7839, %v7824, %v7826
        %v7841 = vsel %vm7839, %v7826, %v7828
        %v7842 = vsel %vm7839, %v7828, %v7830
        %v7843 = vsel %vm7839, %v7832, %v7834
        %v7844 = vsel %vm7839, %v7834, %v7836
        %v7845 = vsel %vm7839, %v7836, %v7838
        %v7853 = vsel %vm4974, %v7819, 0
        %v7856 = vsel %vm4974, %v7820, 0
        %v7859 = vsel %vm4974, %v7821, 0
        %v7862 = vsel %vm4974, %v7822, 0
        %7864 = vmatpush.msra.mxu0 0.0
        %7865 = vmatpush.msra.mxu0 0.0
        %7866 = vmatpush.msra.mxu0 0.0
        %7867 = vmatpush.msra.mxu0 0.0
        %7868 = vmatpush.msra.mxu0 0.0
        %7869 = vmatpush.msra.mxu0 0.0
        %7870 = vmatpush.msra.mxu0 0.0
        %7871 = vmatpush.msra.mxu0 0.0
        %7872 = vmatpush.msra.mxu0 0.0
        %7873 = vmatpush.msra.mxu0 0.0
        %7874 = vmatpush.msra.mxu0 0.0
        %7875 = vmatpush.msra.mxu0 0.0
        %7876 = vmatpush.msra.mxu0 0.0
        %7877 = vmatpush.msra.mxu0 0.0
        %7878 = vmatpush.msra.mxu0 %v7843
        %7879 = vmatpush.msra.mxu0 %v7840
        %7880 = vmatmul.f32.gmra.mxu0 %v7853
        %v7881 = vpop.f32.mrf.mxu0
        %v7882 = vadd.f32 0.0, %v7881
        %7883 = vmatmul.f32.gmra.mxu0 %v7856
        %v7884 = vpop.f32.mrf.mxu0
        %v7885 = vadd.f32 0.0, %v7884
        %7886 = vmatmul.f32.gmra.mxu0 %v7859
        %v7887 = vpop.f32.mrf.mxu0
        %v7888 = vadd.f32 0.0, %v7887
        %7889 = vmatmul.f32.gmra.mxu0 %v7862
        %v7890 = vpop.f32.mrf.mxu0
        %v7891 = vadd.f32 0.0, %v7890
        %7892 = vdwg.mxu0
        %7893 = vmatpush.msra.mxu0 0.0
        %7894 = vmatpush.msra.mxu0 0.0
        %7895 = vmatpush.msra.mxu0 0.0
        %7896 = vmatpush.msra.mxu0 0.0
        %7897 = vmatpush.msra.mxu0 0.0
        %7898 = vmatpush.msra.mxu0 0.0
        %7899 = vmatpush.msra.mxu0 0.0
        %7900 = vmatpush.msra.mxu0 0.0
        %7901 = vmatpush.msra.mxu0 0.0
        %7902 = vmatpush.msra.mxu0 0.0
        %7903 = vmatpush.msra.mxu0 0.0
        %7904 = vmatpush.msra.mxu0 0.0
        %7905 = vmatpush.msra.mxu0 0.0
        %7906 = vmatpush.msra.mxu0 0.0
        %7907 = vmatpush.msra.mxu0 %v7844
        %7908 = vmatpush.msra.mxu0 %v7841
        %7909 = vmatmul.f32.gmra.mxu0 %v7853
        %v7910 = vpop.f32.mrf.mxu0
        %v7911 = vadd.f32 0.0, %v7910
        %7912 = vmatmul.f32.gmra.mxu0 %v7856
        %v7913 = vpop.f32.mrf.mxu0
        %v7914 = vadd.f32 0.0, %v7913
        %7915 = vmatmul.f32.gmra.mxu0 %v7859
        %v7916 = vpop.f32.mrf.mxu0
        %v7917 = vadd.f32 0.0, %v7916
        %7918 = vmatmul.f32.gmra.mxu0 %v7862
        %v7919 = vpop.f32.mrf.mxu0
        %v7920 = vadd.f32 0.0, %v7919
        %7921 = vdwg.mxu0
        %7922 = vmatpush.msra.mxu0 0.0
        %7923 = vmatpush.msra.mxu0 0.0
        %7924 = vmatpush.msra.mxu0 0.0
        %7925 = vmatpush.msra.mxu0 0.0
        %7926 = vmatpush.msra.mxu0 0.0
        %7927 = vmatpush.msra.mxu0 0.0
        %7928 = vmatpush.msra.mxu0 0.0
        %7929 = vmatpush.msra.mxu0 0.0
        %7930 = vmatpush.msra.mxu0 0.0
        %7931 = vmatpush.msra.mxu0 0.0
        %7932 = vmatpush.msra.mxu0 0.0
        %7933 = vmatpush.msra.mxu0 0.0
        %7934 = vmatpush.msra.mxu0 0.0
        %7935 = vmatpush.msra.mxu0 0.0
        %7936 = vmatpush.msra.mxu0 %v7845
        %7937 = vmatpush.msra.mxu0 %v7842
        %7938 = vmatmul.f32.gmra.mxu0 %v7853
        %v7939 = vpop.f32.mrf.mxu0
        %v7940 = vadd.f32 0.0, %v7939
        %7941 = vmatmul.f32.gmra.mxu0 %v7856
        %v7942 = vpop.f32.mrf.mxu0
        %v7943 = vadd.f32 0.0, %v7942
        %7944 = vmatmul.f32.gmra.mxu0 %v7859
        %v7945 = vpop.f32.mrf.mxu0
        %v7946 = vadd.f32 0.0, %v7945
        %7947 = vmatmul.f32.gmra.mxu0 %v7862
        %v7948 = vpop.f32.mrf.mxu0
        %v7949 = vadd.f32 0.0, %v7948
        %7950 = vdwg.mxu0
        %v7951 = vadd.f32 %v7806, %v7882
        %v7952 = vadd.f32 %v7807, %v7911
        %v7953 = vadd.f32 %v7808, %v7940
        %v7954 = vadd.f32 %v7809, %v7885
        %v7955 = vadd.f32 %v7810, %v7914
        %v7956 = vadd.f32 %v7811, %v7943
        %v7957 = vadd.f32 %v7812, %v7888
        %v7958 = vadd.f32 %v7813, %v7917
        %v7959 = vadd.f32 %v7814, %v7946
        %v7960 = vadd.f32 %v7815, %v7891
        %v7961 = vadd.f32 %v7816, %v7920
        %v7962 = vadd.f32 %v7817, %v7949
        %s7963 = scalar_lea.vmem %s3, 704
        %v7964 = vld [vmem:[%s7963] sm:$0xff]
        %v7965 = vld [vmem:[%s7963 + $0x8] sm:$0xff]
        %v7966 = vld [vmem:[%s7963 + $0x10] sm:$0xff]
        %v7967 = vld [vmem:[%s7963 + $0x18] sm:$0xff]
        %7968 = vrot.lane.b32.xlu0 %v4380, 54
        %v7969 = vpop.permute.xlu0 %7968
        %7970 = vrot.lane.b32.xlu0 %v4564, 54
        %v7971 = vpop.permute.xlu0 %7970
        %7972 = vrot.lane.b32.xlu0 %v4748, 54
        %v7973 = vpop.permute.xlu0 %7972
        %7974 = vrot.lane.b32.xlu0 %v4932, 54
        %v7975 = vpop.permute.xlu0 %7974
        %7976 = vrot.lane.b32.xlu0 %v4383, 54
        %v7977 = vpop.permute.xlu0 %7976
        %7978 = vrot.lane.b32.xlu0 %v4567, 54
        %v7979 = vpop.permute.xlu0 %7978
        %7980 = vrot.lane.b32.xlu0 %v4751, 54
        %v7981 = vpop.permute.xlu0 %7980
        %7982 = vrot.lane.b32.xlu0 %v4935, 54
        %v7983 = vpop.permute.xlu0 %7982
        %vm7984 = vcmask 441344
        %v7985 = vsel %vm7984, %v7969, %v7971
        %v7986 = vsel %vm7984, %v7971, %v7973
        %v7987 = vsel %vm7984, %v7973, %v7975
        %v7988 = vsel %vm7984, %v7977, %v7979
        %v7989 = vsel %vm7984, %v7979, %v7981
        %v7990 = vsel %vm7984, %v7981, %v7983
        %v7998 = vsel %vm4974, %v7964, 0
        %v8001 = vsel %vm4974, %v7965, 0
        %v8004 = vsel %vm4974, %v7966, 0
        %v8007 = vsel %vm4974, %v7967, 0
        %8009 = vmatpush.msra.mxu0 0.0
        %8010 = vmatpush.msra.mxu0 0.0
        %8011 = vmatpush.msra.mxu0 0.0
        %8012 = vmatpush.msra.mxu0 0.0
        %8013 = vmatpush.msra.mxu0 0.0
        %8014 = vmatpush.msra.mxu0 0.0
        %8015 = vmatpush.msra.mxu0 0.0
        %8016 = vmatpush.msra.mxu0 0.0
        %8017 = vmatpush.msra.mxu0 0.0
        %8018 = vmatpush.msra.mxu0 0.0
        %8019 = vmatpush.msra.mxu0 0.0
        %8020 = vmatpush.msra.mxu0 0.0
        %8021 = vmatpush.msra.mxu0 0.0
        %8022 = vmatpush.msra.mxu0 0.0
        %8023 = vmatpush.msra.mxu0 %v7988
        %8024 = vmatpush.msra.mxu0 %v7985
        %8025 = vmatmul.f32.gmra.mxu0 %v7998
        %v8026 = vpop.f32.mrf.mxu0
        %v8027 = vadd.f32 0.0, %v8026
        %8028 = vmatmul.f32.gmra.mxu0 %v8001
        %v8029 = vpop.f32.mrf.mxu0
        %v8030 = vadd.f32 0.0, %v8029
        %8031 = vmatmul.f32.gmra.mxu0 %v8004
        %v8032 = vpop.f32.mrf.mxu0
        %v8033 = vadd.f32 0.0, %v8032
        %8034 = vmatmul.f32.gmra.mxu0 %v8007
        %v8035 = vpop.f32.mrf.mxu0
        %v8036 = vadd.f32 0.0, %v8035
        %8037 = vdwg.mxu0
        %8038 = vmatpush.msra.mxu0 0.0
        %8039 = vmatpush.msra.mxu0 0.0
        %8040 = vmatpush.msra.mxu0 0.0
        %8041 = vmatpush.msra.mxu0 0.0
        %8042 = vmatpush.msra.mxu0 0.0
        %8043 = vmatpush.msra.mxu0 0.0
        %8044 = vmatpush.msra.mxu0 0.0
        %8045 = vmatpush.msra.mxu0 0.0
        %8046 = vmatpush.msra.mxu0 0.0
        %8047 = vmatpush.msra.mxu0 0.0
        %8048 = vmatpush.msra.mxu0 0.0
        %8049 = vmatpush.msra.mxu0 0.0
        %8050 = vmatpush.msra.mxu0 0.0
        %8051 = vmatpush.msra.mxu0 0.0
        %8052 = vmatpush.msra.mxu0 %v7989
        %8053 = vmatpush.msra.mxu0 %v7986
        %8054 = vmatmul.f32.gmra.mxu0 %v7998
        %v8055 = vpop.f32.mrf.mxu0
        %v8056 = vadd.f32 0.0, %v8055
        %8057 = vmatmul.f32.gmra.mxu0 %v8001
        %v8058 = vpop.f32.mrf.mxu0
        %v8059 = vadd.f32 0.0, %v8058
        %8060 = vmatmul.f32.gmra.mxu0 %v8004
        %v8061 = vpop.f32.mrf.mxu0
        %v8062 = vadd.f32 0.0, %v8061
        %8063 = vmatmul.f32.gmra.mxu0 %v8007
        %v8064 = vpop.f32.mrf.mxu0
        %v8065 = vadd.f32 0.0, %v8064
        %8066 = vdwg.mxu0
        %8067 = vmatpush.msra.mxu0 0.0
        %8068 = vmatpush.msra.mxu0 0.0
        %8069 = vmatpush.msra.mxu0 0.0
        %8070 = vmatpush.msra.mxu0 0.0
        %8071 = vmatpush.msra.mxu0 0.0
        %8072 = vmatpush.msra.mxu0 0.0
        %8073 = vmatpush.msra.mxu0 0.0
        %8074 = vmatpush.msra.mxu0 0.0
        %8075 = vmatpush.msra.mxu0 0.0
        %8076 = vmatpush.msra.mxu0 0.0
        %8077 = vmatpush.msra.mxu0 0.0
        %8078 = vmatpush.msra.mxu0 0.0
        %8079 = vmatpush.msra.mxu0 0.0
        %8080 = vmatpush.msra.mxu0 0.0
        %8081 = vmatpush.msra.mxu0 %v7990
        %8082 = vmatpush.msra.mxu0 %v7987
        %8083 = vmatmul.f32.gmra.mxu0 %v7998
        %v8084 = vpop.f32.mrf.mxu0
        %v8085 = vadd.f32 0.0, %v8084
        %8086 = vmatmul.f32.gmra.mxu0 %v8001
        %v8087 = vpop.f32.mrf.mxu0
        %v8088 = vadd.f32 0.0, %v8087
        %8089 = vmatmul.f32.gmra.mxu0 %v8004
        %v8090 = vpop.f32.mrf.mxu0
        %v8091 = vadd.f32 0.0, %v8090
        %8092 = vmatmul.f32.gmra.mxu0 %v8007
        %v8093 = vpop.f32.mrf.mxu0
        %v8094 = vadd.f32 0.0, %v8093
        %8095 = vdwg.mxu0
        %v8096 = vadd.f32 %v7951, %v8027
        %v8097 = vadd.f32 %v7952, %v8056
        %v8098 = vadd.f32 %v7953, %v8085
        %v8099 = vadd.f32 %v7954, %v8030
        %v8100 = vadd.f32 %v7955, %v8059
        %v8101 = vadd.f32 %v7956, %v8088
        %v8102 = vadd.f32 %v7957, %v8033
        %v8103 = vadd.f32 %v7958, %v8062
        %v8104 = vadd.f32 %v7959, %v8091
        %v8105 = vadd.f32 %v7960, %v8036
        %v8106 = vadd.f32 %v7961, %v8065
        %v8107 = vadd.f32 %v7962, %v8094
        %s8108 = scalar_lea.vmem %s3, 736
        %v8109 = vld [vmem:[%s8108] sm:$0xff]
        %v8110 = vld [vmem:[%s8108 + $0x8] sm:$0xff]
        %v8111 = vld [vmem:[%s8108 + $0x10] sm:$0xff]
        %v8112 = vld [vmem:[%s8108 + $0x18] sm:$0xff]
        %8113 = vrot.lane.b32.xlu0 %v4380, 53
        %v8114 = vpop.permute.xlu0 %8113
        %8115 = vrot.lane.b32.xlu0 %v4564, 53
        %v8116 = vpop.permute.xlu0 %8115
        %8117 = vrot.lane.b32.xlu0 %v4748, 53
        %v8118 = vpop.permute.xlu0 %8117
        %8119 = vrot.lane.b32.xlu0 %v4932, 53
        %v8120 = vpop.permute.xlu0 %8119
        %8121 = vrot.lane.b32.xlu0 %v4383, 53
        %v8122 = vpop.permute.xlu0 %8121
        %8123 = vrot.lane.b32.xlu0 %v4567, 53
        %v8124 = vpop.permute.xlu0 %8123
        %8125 = vrot.lane.b32.xlu0 %v4751, 53
        %v8126 = vpop.permute.xlu0 %8125
        %8127 = vrot.lane.b32.xlu0 %v4935, 53
        %v8128 = vpop.permute.xlu0 %8127
        %vm8129 = vcmask 433152
        %v8130 = vsel %vm8129, %v8114, %v8116
        %v8131 = vsel %vm8129, %v8116, %v8118
        %v8132 = vsel %vm8129, %v8118, %v8120
        %v8133 = vsel %vm8129, %v8122, %v8124
        %v8134 = vsel %vm8129, %v8124, %v8126
        %v8135 = vsel %vm8129, %v8126, %v8128
        %v8143 = vsel %vm4974, %v8109, 0
        %v8146 = vsel %vm4974, %v8110, 0
        %v8149 = vsel %vm4974, %v8111, 0
        %v8152 = vsel %vm4974, %v8112, 0
        %8154 = vmatpush.msra.mxu0 0.0
        %8155 = vmatpush.msra.mxu0 0.0
        %8156 = vmatpush.msra.mxu0 0.0
        %8157 = vmatpush.msra.mxu0 0.0
        %8158 = vmatpush.msra.mxu0 0.0
        %8159 = vmatpush.msra.mxu0 0.0
        %8160 = vmatpush.msra.mxu0 0.0
        %8161 = vmatpush.msra.mxu0 0.0
        %8162 = vmatpush.msra.mxu0 0.0
        %8163 = vmatpush.msra.mxu0 0.0
        %8164 = vmatpush.msra.mxu0 0.0
        %8165 = vmatpush.msra.mxu0 0.0
        %8166 = vmatpush.msra.mxu0 0.0
        %8167 = vmatpush.msra.mxu0 0.0
        %8168 = vmatpush.msra.mxu0 %v8133
        %8169 = vmatpush.msra.mxu0 %v8130
        %8170 = vmatmul.f32.gmra.mxu0 %v8143
        %v8171 = vpop.f32.mrf.mxu0
        %v8172 = vadd.f32 0.0, %v8171
        %8173 = vmatmul.f32.gmra.mxu0 %v8146
        %v8174 = vpop.f32.mrf.mxu0
        %v8175 = vadd.f32 0.0, %v8174
        %8176 = vmatmul.f32.gmra.mxu0 %v8149
        %v8177 = vpop.f32.mrf.mxu0
        %v8178 = vadd.f32 0.0, %v8177
        %8179 = vmatmul.f32.gmra.mxu0 %v8152
        %v8180 = vpop.f32.mrf.mxu0
        %v8181 = vadd.f32 0.0, %v8180
        %8182 = vdwg.mxu0
        %8183 = vmatpush.msra.mxu0 0.0
        %8184 = vmatpush.msra.mxu0 0.0
        %8185 = vmatpush.msra.mxu0 0.0
        %8186 = vmatpush.msra.mxu0 0.0
        %8187 = vmatpush.msra.mxu0 0.0
        %8188 = vmatpush.msra.mxu0 0.0
        %8189 = vmatpush.msra.mxu0 0.0
        %8190 = vmatpush.msra.mxu0 0.0
        %8191 = vmatpush.msra.mxu0 0.0
        %8192 = vmatpush.msra.mxu0 0.0
        %8193 = vmatpush.msra.mxu0 0.0
        %8194 = vmatpush.msra.mxu0 0.0
        %8195 = vmatpush.msra.mxu0 0.0
        %8196 = vmatpush.msra.mxu0 0.0
        %8197 = vmatpush.msra.mxu0 %v8134
        %8198 = vmatpush.msra.mxu0 %v8131
        %8199 = vmatmul.f32.gmra.mxu0 %v8143
        %v8200 = vpop.f32.mrf.mxu0
        %v8201 = vadd.f32 0.0, %v8200
        %8202 = vmatmul.f32.gmra.mxu0 %v8146
        %v8203 = vpop.f32.mrf.mxu0
        %v8204 = vadd.f32 0.0, %v8203
        %8205 = vmatmul.f32.gmra.mxu0 %v8149
        %v8206 = vpop.f32.mrf.mxu0
        %v8207 = vadd.f32 0.0, %v8206
        %8208 = vmatmul.f32.gmra.mxu0 %v8152
        %v8209 = vpop.f32.mrf.mxu0
        %v8210 = vadd.f32 0.0, %v8209
        %8211 = vdwg.mxu0
        %8212 = vmatpush.msra.mxu0 0.0
        %8213 = vmatpush.msra.mxu0 0.0
        %8214 = vmatpush.msra.mxu0 0.0
        %8215 = vmatpush.msra.mxu0 0.0
        %8216 = vmatpush.msra.mxu0 0.0
        %8217 = vmatpush.msra.mxu0 0.0
        %8218 = vmatpush.msra.mxu0 0.0
        %8219 = vmatpush.msra.mxu0 0.0
        %8220 = vmatpush.msra.mxu0 0.0
        %8221 = vmatpush.msra.mxu0 0.0
        %8222 = vmatpush.msra.mxu0 0.0
        %8223 = vmatpush.msra.mxu0 0.0
        %8224 = vmatpush.msra.mxu0 0.0
        %8225 = vmatpush.msra.mxu0 0.0
        %8226 = vmatpush.msra.mxu0 %v8135
        %8227 = vmatpush.msra.mxu0 %v8132
        %8228 = vmatmul.f32.gmra.mxu0 %v8143
        %v8229 = vpop.f32.mrf.mxu0
        %v8230 = vadd.f32 0.0, %v8229
        %8231 = vmatmul.f32.gmra.mxu0 %v8146
        %v8232 = vpop.f32.mrf.mxu0
        %v8233 = vadd.f32 0.0, %v8232
        %8234 = vmatmul.f32.gmra.mxu0 %v8149
        %v8235 = vpop.f32.mrf.mxu0
        %v8236 = vadd.f32 0.0, %v8235
        %8237 = vmatmul.f32.gmra.mxu0 %v8152
        %v8238 = vpop.f32.mrf.mxu0
        %v8239 = vadd.f32 0.0, %v8238
        %8240 = vdwg.mxu0
        %v8241 = vadd.f32 %v8096, %v8172
        %v8242 = vadd.f32 %v8097, %v8201
        %v8243 = vadd.f32 %v8098, %v8230
        %v8244 = vadd.f32 %v8099, %v8175
        %v8245 = vadd.f32 %v8100, %v8204
        %v8246 = vadd.f32 %v8101, %v8233
        %v8247 = vadd.f32 %v8102, %v8178
        %v8248 = vadd.f32 %v8103, %v8207
        %v8249 = vadd.f32 %v8104, %v8236
        %v8250 = vadd.f32 %v8105, %v8181
        %v8251 = vadd.f32 %v8106, %v8210
        %v8252 = vadd.f32 %v8107, %v8239
        %s8253 = scalar_lea.vmem %s3, 768
        %v8254 = vld [vmem:[%s8253] sm:$0xff]
        %v8255 = vld [vmem:[%s8253 + $0x8] sm:$0xff]
        %v8256 = vld [vmem:[%s8253 + $0x10] sm:$0xff]
        %v8257 = vld [vmem:[%s8253 + $0x18] sm:$0xff]
        %8258 = vrot.lane.b32.xlu0 %v4380, 52
        %v8259 = vpop.permute.xlu0 %8258
        %8260 = vrot.lane.b32.xlu0 %v4564, 52
        %v8261 = vpop.permute.xlu0 %8260
        %8262 = vrot.lane.b32.xlu0 %v4748, 52
        %v8263 = vpop.permute.xlu0 %8262
        %8264 = vrot.lane.b32.xlu0 %v4932, 52
        %v8265 = vpop.permute.xlu0 %8264
        %8266 = vrot.lane.b32.xlu0 %v4383, 52
        %v8267 = vpop.permute.xlu0 %8266
        %8268 = vrot.lane.b32.xlu0 %v4567, 52
        %v8269 = vpop.permute.xlu0 %8268
        %8270 = vrot.lane.b32.xlu0 %v4751, 52
        %v8271 = vpop.permute.xlu0 %8270
        %8272 = vrot.lane.b32.xlu0 %v4935, 52
        %v8273 = vpop.permute.xlu0 %8272
        %vm8274 = vcmask 424960
        %v8275 = vsel %vm8274, %v8259, %v8261
        %v8276 = vsel %vm8274, %v8261, %v8263
        %v8277 = vsel %vm8274, %v8263, %v8265
        %v8278 = vsel %vm8274, %v8267, %v8269
        %v8279 = vsel %vm8274, %v8269, %v8271
        %v8280 = vsel %vm8274, %v8271, %v8273
        %v8288 = vsel %vm4974, %v8254, 0
        %v8291 = vsel %vm4974, %v8255, 0
        %v8294 = vsel %vm4974, %v8256, 0
        %v8297 = vsel %vm4974, %v8257, 0
        %8299 = vmatpush.msra.mxu0 0.0
        %8300 = vmatpush.msra.mxu0 0.0
        %8301 = vmatpush.msra.mxu0 0.0
        %8302 = vmatpush.msra.mxu0 0.0
        %8303 = vmatpush.msra.mxu0 0.0
        %8304 = vmatpush.msra.mxu0 0.0
        %8305 = vmatpush.msra.mxu0 0.0
        %8306 = vmatpush.msra.mxu0 0.0
        %8307 = vmatpush.msra.mxu0 0.0
        %8308 = vmatpush.msra.mxu0 0.0
        %8309 = vmatpush.msra.mxu0 0.0
        %8310 = vmatpush.msra.mxu0 0.0
        %8311 = vmatpush.msra.mxu0 0.0
        %8312 = vmatpush.msra.mxu0 0.0
        %8313 = vmatpush.msra.mxu0 %v8278
        %8314 = vmatpush.msra.mxu0 %v8275
        %8315 = vmatmul.f32.gmra.mxu0 %v8288
        %v8316 = vpop.f32.mrf.mxu0
        %v8317 = vadd.f32 0.0, %v8316
        %8318 = vmatmul.f32.gmra.mxu0 %v8291
        %v8319 = vpop.f32.mrf.mxu0
        %v8320 = vadd.f32 0.0, %v8319
        %8321 = vmatmul.f32.gmra.mxu0 %v8294
        %v8322 = vpop.f32.mrf.mxu0
        %v8323 = vadd.f32 0.0, %v8322
        %8324 = vmatmul.f32.gmra.mxu0 %v8297
        %v8325 = vpop.f32.mrf.mxu0
        %v8326 = vadd.f32 0.0, %v8325
        %8327 = vdwg.mxu0
        %8328 = vmatpush.msra.mxu0 0.0
        %8329 = vmatpush.msra.mxu0 0.0
        %8330 = vmatpush.msra.mxu0 0.0
        %8331 = vmatpush.msra.mxu0 0.0
        %8332 = vmatpush.msra.mxu0 0.0
        %8333 = vmatpush.msra.mxu0 0.0
        %8334 = vmatpush.msra.mxu0 0.0
        %8335 = vmatpush.msra.mxu0 0.0
        %8336 = vmatpush.msra.mxu0 0.0
        %8337 = vmatpush.msra.mxu0 0.0
        %8338 = vmatpush.msra.mxu0 0.0
        %8339 = vmatpush.msra.mxu0 0.0
        %8340 = vmatpush.msra.mxu0 0.0
        %8341 = vmatpush.msra.mxu0 0.0
        %8342 = vmatpush.msra.mxu0 %v8279
        %8343 = vmatpush.msra.mxu0 %v8276
        %8344 = vmatmul.f32.gmra.mxu0 %v8288
        %v8345 = vpop.f32.mrf.mxu0
        %v8346 = vadd.f32 0.0, %v8345
        %8347 = vmatmul.f32.gmra.mxu0 %v8291
        %v8348 = vpop.f32.mrf.mxu0
        %v8349 = vadd.f32 0.0, %v8348
        %8350 = vmatmul.f32.gmra.mxu0 %v8294
        %v8351 = vpop.f32.mrf.mxu0
        %v8352 = vadd.f32 0.0, %v8351
        %8353 = vmatmul.f32.gmra.mxu0 %v8297
        %v8354 = vpop.f32.mrf.mxu0
        %v8355 = vadd.f32 0.0, %v8354
        %8356 = vdwg.mxu0
        %8357 = vmatpush.msra.mxu0 0.0
        %8358 = vmatpush.msra.mxu0 0.0
        %8359 = vmatpush.msra.mxu0 0.0
        %8360 = vmatpush.msra.mxu0 0.0
        %8361 = vmatpush.msra.mxu0 0.0
        %8362 = vmatpush.msra.mxu0 0.0
        %8363 = vmatpush.msra.mxu0 0.0
        %8364 = vmatpush.msra.mxu0 0.0
        %8365 = vmatpush.msra.mxu0 0.0
        %8366 = vmatpush.msra.mxu0 0.0
        %8367 = vmatpush.msra.mxu0 0.0
        %8368 = vmatpush.msra.mxu0 0.0
        %8369 = vmatpush.msra.mxu0 0.0
        %8370 = vmatpush.msra.mxu0 0.0
        %8371 = vmatpush.msra.mxu0 %v8280
        %8372 = vmatpush.msra.mxu0 %v8277
        %8373 = vmatmul.f32.gmra.mxu0 %v8288
        %v8374 = vpop.f32.mrf.mxu0
        %v8375 = vadd.f32 0.0, %v8374
        %8376 = vmatmul.f32.gmra.mxu0 %v8291
        %v8377 = vpop.f32.mrf.mxu0
        %v8378 = vadd.f32 0.0, %v8377
        %8379 = vmatmul.f32.gmra.mxu0 %v8294
        %v8380 = vpop.f32.mrf.mxu0
        %v8381 = vadd.f32 0.0, %v8380
        %8382 = vmatmul.f32.gmra.mxu0 %v8297
        %v8383 = vpop.f32.mrf.mxu0
        %v8384 = vadd.f32 0.0, %v8383
        %8385 = vdwg.mxu0
        %v8386 = vadd.f32 %v8241, %v8317
        %v8387 = vadd.f32 %v8242, %v8346
        %v8388 = vadd.f32 %v8243, %v8375
        %v8389 = vadd.f32 %v8244, %v8320
        %v8390 = vadd.f32 %v8245, %v8349
        %v8391 = vadd.f32 %v8246, %v8378
        %v8392 = vadd.f32 %v8247, %v8323
        %v8393 = vadd.f32 %v8248, %v8352
        %v8394 = vadd.f32 %v8249, %v8381
        %v8395 = vadd.f32 %v8250, %v8326
        %v8396 = vadd.f32 %v8251, %v8355
        %v8397 = vadd.f32 %v8252, %v8384
        %v8398 = vld [vmem:[%s4] sm:$0xff]
        %v8399 = vld [vmem:[%s4 + $0x8] sm:$0xff]
        %v8400 = vld [vmem:[%s4 + $0x10] sm:$0xff]
        %v8401 = vld [vmem:[%s4 + $0x18] sm:$0xff]
        %8403 = vset.pattern.permute.xlu0 0
        %8404 = vperm.xlu0 %8403, %v8398
        %v8405 = vpop.permute.xlu0 %8404
        %8408 = vset.pattern.permute.xlu0 0
        %8409 = vperm.xlu0 %8408, %v8399
        %v8410 = vpop.permute.xlu0 %8409
        %8413 = vset.pattern.permute.xlu0 0
        %8414 = vperm.xlu0 %8413, %v8400
        %v8415 = vpop.permute.xlu0 %8414
        %8418 = vset.pattern.permute.xlu0 0
        %8419 = vperm.xlu0 %8418, %v8401
        %v8420 = vpop.permute.xlu0 %8419
        %v8422 = vadd.f32 %v8386, %v8405
        %v8423 = vadd.f32 %v8387, %v8405
        %v8424 = vadd.f32 %v8388, %v8405
        %v8425 = vadd.f32 %v8389, %v8410
        %v8426 = vadd.f32 %v8390, %v8410
        %v8427 = vadd.f32 %v8391, %v8410
        %v8428 = vadd.f32 %v8392, %v8415
        %v8429 = vadd.f32 %v8393, %v8415
        %v8430 = vadd.f32 %v8394, %v8415
        %v8431 = vadd.f32 %v8395, %v8420
        %v8432 = vadd.f32 %v8396, %v8420
        %v8433 = vadd.f32 %v8397, %v8420
        %v8434 = vmax.f32 %v8422, 0.0
        %v8435 = vmax.f32 %v8423, 0.0
        %v8436 = vmax.f32 %v8424, 0.0
        %v8437 = vmax.f32 %v8425, 0.0
        %v8438 = vmax.f32 %v8426, 0.0
        %v8439 = vmax.f32 %v8427, 0.0
        %v8440 = vmax.f32 %v8428, 0.0
        %v8441 = vmax.f32 %v8429, 0.0
        %v8442 = vmax.f32 %v8430, 0.0
        %v8443 = vmax.f32 %v8431, 0.0
        %v8444 = vmax.f32 %v8432, 0.0
        %v8445 = vmax.f32 %v8433, 0.0
        %8458 = vrot.lane.b32.xlu0 %v8434, 127
        %v8459 = vpop.permute.xlu0 %8458
        %8460 = vrot.lane.b32.xlu0 %v8435, 127
        %v8461 = vpop.permute.xlu0 %8460
        %8462 = vrot.lane.b32.xlu0 %v8436, 127
        %v8463 = vpop.permute.xlu0 %8462
        %8464 = vrot.lane.b32.xlu0 %v8437, 127
        %v8465 = vpop.permute.xlu0 %8464
        %8466 = vrot.lane.b32.xlu0 %v8438, 127
        %v8467 = vpop.permute.xlu0 %8466
        %8468 = vrot.lane.b32.xlu0 %v8439, 127
        %v8469 = vpop.permute.xlu0 %8468
        %8470 = vrot.lane.b32.xlu0 %v8440, 127
        %v8471 = vpop.permute.xlu0 %8470
        %8472 = vrot.lane.b32.xlu0 %v8441, 127
        %v8473 = vpop.permute.xlu0 %8472
        %8474 = vrot.lane.b32.xlu0 %v8442, 127
        %v8475 = vpop.permute.xlu0 %8474
        %8476 = vrot.lane.b32.xlu0 %v8443, 127
        %v8477 = vpop.permute.xlu0 %8476
        %8478 = vrot.lane.b32.xlu0 %v8444, 127
        %v8479 = vpop.permute.xlu0 %8478
        %8480 = vrot.lane.b32.xlu0 %v8445, 127
        %v8481 = vpop.permute.xlu0 %8480
        %v8482 = vsel %vm491, %v8459, %v8461
        %v8483 = vsel %vm491, %v8461, %v8463
        %v8484 = vsel %vm491, %v8465, %v8467
        %v8485 = vsel %vm491, %v8467, %v8469
        %v8486 = vsel %vm491, %v8471, %v8473
        %v8487 = vsel %vm491, %v8473, %v8475
        %v8488 = vsel %vm491, %v8477, %v8479
        %v8489 = vsel %vm491, %v8479, %v8481
        %v8502 = vmax.f32 %v8434, %v8482
        %v8503 = vmax.f32 %v8435, %v8483
        %v8504 = vmax.f32 %v8436, %v8463
        %v8505 = vmax.f32 %v8437, %v8484
        %v8506 = vmax.f32 %v8438, %v8485
        %v8507 = vmax.f32 %v8439, %v8469
        %v8508 = vmax.f32 %v8440, %v8486
        %v8509 = vmax.f32 %v8441, %v8487
        %v8510 = vmax.f32 %v8442, %v8475
        %v8511 = vmax.f32 %v8443, %v8488
        %v8512 = vmax.f32 %v8444, %v8489
        %v8513 = vmax.f32 %v8445, %v8481
        %8526 = vrot.lane.b32.xlu0 %v8502, 110
        %v8527 = vpop.permute.xlu0 %8526
        %8528 = vrot.lane.b32.xlu0 %v8503, 110
        %v8529 = vpop.permute.xlu0 %8528
        %8530 = vrot.lane.b32.xlu0 %v8504, 110
        %v8531 = vpop.permute.xlu0 %8530
        %8532 = vrot.lane.b32.xlu0 %v8505, 110
        %v8533 = vpop.permute.xlu0 %8532
        %8534 = vrot.lane.b32.xlu0 %v8506, 110
        %v8535 = vpop.permute.xlu0 %8534
        %8536 = vrot.lane.b32.xlu0 %v8507, 110
        %v8537 = vpop.permute.xlu0 %8536
        %8538 = vrot.lane.b32.xlu0 %v8508, 110
        %v8539 = vpop.permute.xlu0 %8538
        %8540 = vrot.lane.b32.xlu0 %v8509, 110
        %v8541 = vpop.permute.xlu0 %8540
        %8542 = vrot.lane.b32.xlu0 %v8510, 110
        %v8543 = vpop.permute.xlu0 %8542
        %8544 = vrot.lane.b32.xlu0 %v8511, 110
        %v8545 = vpop.permute.xlu0 %8544
        %8546 = vrot.lane.b32.xlu0 %v8512, 110
        %v8547 = vpop.permute.xlu0 %8546
        %8548 = vrot.lane.b32.xlu0 %v8513, 110
        %v8549 = vpop.permute.xlu0 %8548
        %v8550 = vsel %vm5604, %v8527, %v8529
        %v8551 = vsel %vm5604, %v8529, %v8531
        %v8552 = vsel %vm5604, %v8533, %v8535
        %v8553 = vsel %vm5604, %v8535, %v8537
        %v8554 = vsel %vm5604, %v8539, %v8541
        %v8555 = vsel %vm5604, %v8541, %v8543
        %v8556 = vsel %vm5604, %v8545, %v8547
        %v8557 = vsel %vm5604, %v8547, %v8549
        %v8570 = vmax.f32 %v8502, %v8550
        %v8571 = vmax.f32 %v8503, %v8551
        %v8572 = vmax.f32 %v8504, %v8531
        %v8573 = vmax.f32 %v8505, %v8552
        %v8574 = vmax.f32 %v8506, %v8553
        %v8575 = vmax.f32 %v8507, %v8537
        %v8576 = vmax.f32 %v8508, %v8554
        %v8577 = vmax.f32 %v8509, %v8555
        %v8578 = vmax.f32 %v8510, %v8543
        %v8579 = vmax.f32 %v8511, %v8556
        %v8580 = vmax.f32 %v8512, %v8557
        %v8581 = vmax.f32 %v8513, %v8549
        %v8582 = vld [vmem:[%s6] sm:$0xff]
        %v8583 = vld [vmem:[%s6 + $0x8] sm:$0xff]
        %v8584 = vld [vmem:[%s6 + $0x10] sm:$0xff]
        %v8585 = vld [vmem:[%s6 + $0x18] sm:$0xff]
        %v8586 = vld [vmem:[%s6 + $0x20] sm:$0xff]
        %v8587 = vld [vmem:[%s6 + $0x28] sm:$0xff]
        %v8588 = vld [vmem:[%s6 + $0x30] sm:$0xff]
        %v8589 = vld [vmem:[%s6 + $0x38] sm:$0xff]
        %v8590 = vld [vmem:[%s6 + $0x40] sm:$0xff]
        %v8591 = vld [vmem:[%s6 + $0x48] sm:$0xff]
        %v8592 = vld [vmem:[%s6 + $0x50] sm:$0xff]
        %v8593 = vld [vmem:[%s6 + $0x58] sm:$0xff]
        %v8594 = vld [vmem:[%s6 + $0x60] sm:$0xff]
        %v8595 = vld [vmem:[%s6 + $0x68] sm:$0xff]
        %v8596 = vld [vmem:[%s6 + $0x70] sm:$0xff]
        %v8597 = vld [vmem:[%s6 + $0x78] sm:$0xff]
        %v8598 = vld [vmem:[%s6 + $0x80] sm:$0xff]
        %v8599 = vld [vmem:[%s6 + $0x88] sm:$0xff]
        %v8600 = vld [vmem:[%s6 + $0x90] sm:$0xff]
        %v8601 = vld [vmem:[%s6 + $0x98] sm:$0xff]
        %v8602 = vld [vmem:[%s6 + $0xa0] sm:$0xff]
        %v8603 = vld [vmem:[%s6 + $0xa8] sm:$0xff]
        %v8604 = vld [vmem:[%s6 + $0xb0] sm:$0xff]
        %v8605 = vld [vmem:[%s6 + $0xb8] sm:$0xff]
        %v8606 = vld [vmem:[%s6 + $0xc0] sm:$0xff]
        %v8607 = vld [vmem:[%s6 + $0xc8] sm:$0xff]
        %v8608 = vld [vmem:[%s6 + $0xd0] sm:$0xff]
        %v8609 = vld [vmem:[%s6 + $0xd8] sm:$0xff]
        %v8610 = vld [vmem:[%s6 + $0xe0] sm:$0xff]
        %v8611 = vld [vmem:[%s6 + $0xe8] sm:$0xff]
        %v8612 = vld [vmem:[%s6 + $0xf0] sm:$0xff]
        %v8613 = vld [vmem:[%s6 + $0xf8] sm:$0xff]
        %v8614 = vld [vmem:[%s6 + $0x100] sm:$0xff]
        %v8615 = vld [vmem:[%s6 + $0x108] sm:$0xff]
        %v8616 = vld [vmem:[%s6 + $0x110] sm:$0xff]
        %v8617 = vld [vmem:[%s6 + $0x118] sm:$0xff]
        %v8618 = vld [vmem:[%s6 + $0x120] sm:$0xff]
        %v8619 = vld [vmem:[%s6 + $0x128] sm:$0xff]
        %v8620 = vld [vmem:[%s6 + $0x130] sm:$0x1]
        %vm8621 = vcmask 400384
        %v8623 = vsel %vm8621, %v8572, 0
        %v8626 = vsel %vm8621, %v8575, 0
        %v8629 = vsel %vm8621, %v8578, 0
        %v8632 = vsel %vm8621, %v8581, 0
        %vm8634 = vcmask 1040384
        %v8636 = vsel %vm8634, %v8620, 0
        %8638 = vmatpush.msra.mxu0 %v8597
        %8639 = vmatpush.msra.mxu0 %v8596
        %8640 = vmatpush.msra.mxu0 %v8595
        %8641 = vmatpush.msra.mxu0 %v8594
        %8642 = vmatpush.msra.mxu0 %v8593
        %8643 = vmatpush.msra.mxu0 %v8592
        %8644 = vmatpush.msra.mxu0 %v8591
        %8645 = vmatpush.msra.mxu0 %v8590
        %8646 = vmatpush.msra.mxu0 %v8589
        %8647 = vmatpush.msra.mxu0 %v8588
        %8648 = vmatpush.msra.mxu0 %v8587
        %8649 = vmatpush.msra.mxu0 %v8586
        %8650 = vmatpush.msra.mxu0 %v8585
        %8651 = vmatpush.msra.mxu0 %v8584
        %8652 = vmatpush.msra.mxu0 %v8583
        %8653 = vmatpush.msra.mxu0 %v8582
        %8654 = vmatmul.f32.gmra.mxu0 %v8570
        %v8655 = vpop.f32.mrf.mxu0
        %v8656 = vadd.f32 0.0, %v8655
        %8657 = vmatmul.f32.gmra.mxu0 %v8573
        %v8658 = vpop.f32.mrf.mxu0
        %v8659 = vadd.f32 0.0, %v8658
        %8660 = vmatmul.f32.gmra.mxu0 %v8576
        %v8661 = vpop.f32.mrf.mxu0
        %v8662 = vadd.f32 0.0, %v8661
        %8663 = vmatmul.f32.gmra.mxu0 %v8579
        %v8664 = vpop.f32.mrf.mxu0
        %v8665 = vadd.f32 0.0, %v8664
        %8666 = vdwg.mxu0
        %8667 = vmatpush.msra.mxu0 %v8613
        %8668 = vmatpush.msra.mxu0 %v8612
        %8669 = vmatpush.msra.mxu0 %v8611
        %8670 = vmatpush.msra.mxu0 %v8610
        %8671 = vmatpush.msra.mxu0 %v8609
        %8672 = vmatpush.msra.mxu0 %v8608
        %8673 = vmatpush.msra.mxu0 %v8607
        %8674 = vmatpush.msra.mxu0 %v8606
        %8675 = vmatpush.msra.mxu0 %v8605
        %8676 = vmatpush.msra.mxu0 %v8604
        %8677 = vmatpush.msra.mxu0 %v8603
        %8678 = vmatpush.msra.mxu0 %v8602
        %8679 = vmatpush.msra.mxu0 %v8601
        %8680 = vmatpush.msra.mxu0 %v8600
        %8681 = vmatpush.msra.mxu0 %v8599
        %8682 = vmatpush.msra.mxu0 %v8598
        %8683 = vmatmul.f32.gmra.mxu0 %v8571
        %v8684 = vpop.f32.mrf.mxu0
        %v8685 = vadd.f32 %v8656, %v8684
        %8686 = vmatmul.f32.gmra.mxu0 %v8574
        %v8687 = vpop.f32.mrf.mxu0
        %v8688 = vadd.f32 %v8659, %v8687
        %8689 = vmatmul.f32.gmra.mxu0 %v8577
        %v8690 = vpop.f32.mrf.mxu0
        %v8691 = vadd.f32 %v8662, %v8690
        %8692 = vmatmul.f32.gmra.mxu0 %v8580
        %v8693 = vpop.f32.mrf.mxu0
        %v8694 = vadd.f32 %v8665, %v8693
        %8695 = vdwg.mxu0
        %8696 = vmatpush.msra.mxu0 0.0
        %8697 = vmatpush.msra.mxu0 0.0
        %8698 = vmatpush.msra.mxu0 0.0
        %8699 = vmatpush.msra.mxu0 0.0
        %8700 = vmatpush.msra.mxu0 0.0
        %8701 = vmatpush.msra.mxu0 0.0
        %8702 = vmatpush.msra.mxu0 0.0
        %8703 = vmatpush.msra.mxu0 0.0
        %8704 = vmatpush.msra.mxu0 0.0
        %8705 = vmatpush.msra.mxu0 %v8636
        %8706 = vmatpush.msra.mxu0 %v8619
        %8707 = vmatpush.msra.mxu0 %v8618
        %8708 = vmatpush.msra.mxu0 %v8617
        %8709 = vmatpush.msra.mxu0 %v8616
        %8710 = vmatpush.msra.mxu0 %v8615
        %8711 = vmatpush.msra.mxu0 %v8614
        %8712 = vmatmul.f32.gmra.mxu0 %v8623
        %v8713 = vpop.f32.mrf.mxu0
        %v8714 = vadd.f32 %v8685, %v8713
        %8715 = vmatmul.f32.gmra.mxu0 %v8626
        %v8716 = vpop.f32.mrf.mxu0
        %v8717 = vadd.f32 %v8688, %v8716
        %8718 = vmatmul.f32.gmra.mxu0 %v8629
        %v8719 = vpop.f32.mrf.mxu0
        %v8720 = vadd.f32 %v8691, %v8719
        %8721 = vmatmul.f32.gmra.mxu0 %v8632
        %v8722 = vpop.f32.mrf.mxu0
        %v8723 = vadd.f32 %v8694, %v8722
        %8724 = vdwg.mxu0
        %v8725 = vld [vmem:[%s7] sm:$0xff]
        %v8726 = vld [vmem:[%s7 + $0x8] sm:$0xff]
        %v8727 = vld [vmem:[%s7 + $0x10] sm:$0xff]
        %v8728 = vld [vmem:[%s7 + $0x18] sm:$0xff]
        %v8729 = vmul.f32 %v8714, %v8725
        %v8730 = vmul.f32 %v8717, %v8726
        %v8731 = vmul.f32 %v8720, %v8727
        %v8732 = vmul.f32 %v8723, %v8728
        %v8733 = vsel %vm8621, %v8729, 0.0
        %8734 = vadd.xlane.f32.xlu0 %v8733
        %v8735 = vpop.xlane.xlu0 %8734
        %v8736 = vsel %vm8621, %v8730, 0.0
        %8737 = vadd.xlane.f32.xlu0 %v8736
        %v8738 = vpop.xlane.xlu0 %8737
        %v8739 = vsel %vm8621, %v8731, 0.0
        %8740 = vadd.xlane.f32.xlu0 %v8739
        %v8741 = vpop.xlane.xlu0 %8740
        %v8742 = vsel %vm8621, %v8732, 0.0
        %8743 = vadd.xlane.f32.xlu0 %v8742
        %v8744 = vpop.xlane.xlu0 %8743
        %v8745 = vadd.f32 %v8735, %v8738
        %v8746 = vadd.f32 %v8745, %v8741
        %v8747 = vadd.f32 %v8746, %v8744
        %v8748 = vrot.slane %v8747, 4
        %v8749 = vadd.f32 %v8747, %v8748
        %v8750 = vrot.slane %v8749, 2
        %v8751 = vadd.f32 %v8749, %v8750
        %v8752 = vrot.slane %v8751, 1
        %v8753 = vadd.f32 %v8751, %v8752
        %v8754 = vld [vmem:[%s8] sm:$0x1]
        %v8755 = vadd.f32 %v8753, %v8754
        %vm8756 = vcmask 0
        %8757 = vst.msk [vmem:[%s322] sm:$0x1] %vm8756, %v8755
        %s8758 = scalar_lea.vmem %s7, 32
        %v8759 = vld [vmem:[%s8758] sm:$0xff]
        %v8760 = vld [vmem:[%s8758 + $0x8] sm:$0xff]
        %v8761 = vld [vmem:[%s8758 + $0x10] sm:$0xff]
        %v8762 = vld [vmem:[%s8758 + $0x18] sm:$0xff]
        %v8763 = vmul.f32 %v8714, %v8759
        %v8764 = vmul.f32 %v8717, %v8760
        %v8765 = vmul.f32 %v8720, %v8761
        %v8766 = vmul.f32 %v8723, %v8762
        %v8767 = vsel %vm8621, %v8763, 0.0
        %8768 = vadd.xlane.f32.xlu0 %v8767
        %v8769 = vpop.xlane.xlu0 %8768
        %v8770 = vsel %vm8621, %v8764, 0.0
        %8771 = vadd.xlane.f32.xlu0 %v8770
        %v8772 = vpop.xlane.xlu0 %8771
        %v8773 = vsel %vm8621, %v8765, 0.0
        %8774 = vadd.xlane.f32.xlu0 %v8773
        %v8775 = vpop.xlane.xlu0 %8774
        %v8776 = vsel %vm8621, %v8766, 0.0
        %8777 = vadd.xlane.f32.xlu0 %v8776
        %v8778 = vpop.xlane.xlu0 %8777
        %v8779 = vadd.f32 %v8769, %v8772
        %v8780 = vadd.f32 %v8779, %v8775
        %v8781 = vadd.f32 %v8780, %v8778
        %v8782 = vrot.slane %v8781, 4
        %v8783 = vadd.f32 %v8781, %v8782
        %v8784 = vrot.slane %v8783, 2
        %v8785 = vadd.f32 %v8783, %v8784
        %v8786 = vrot.slane %v8785, 1
        %v8787 = vadd.f32 %v8785, %v8786
        %v8788 = vld [vmem:[%s8] sm:$0x1]
        %v8789 = vadd.f32 %v8787, %v8788
        %vm8790 = vcmask 8200
        %8791 = vst.msk [vmem:[%s322] sm:$0x1] %vm8790, %v8789
        %s8792 = scalar_lea.vmem %s7, 64
        %v8793 = vld [vmem:[%s8792] sm:$0xff]
        %v8794 = vld [vmem:[%s8792 + $0x8] sm:$0xff]
        %v8795 = vld [vmem:[%s8792 + $0x10] sm:$0xff]
        %v8796 = vld [vmem:[%s8792 + $0x18] sm:$0xff]
        %v8797 = vmul.f32 %v8714, %v8793
        %v8798 = vmul.f32 %v8717, %v8794
        %v8799 = vmul.f32 %v8720, %v8795
        %v8800 = vmul.f32 %v8723, %v8796
        %v8801 = vsel %vm8621, %v8797, 0.0
        %8802 = vadd.xlane.f32.xlu0 %v8801
        %v8803 = vpop.xlane.xlu0 %8802
        %v8804 = vsel %vm8621, %v8798, 0.0
        %8805 = vadd.xlane.f32.xlu0 %v8804
        %v8806 = vpop.xlane.xlu0 %8805
        %v8807 = vsel %vm8621, %v8799, 0.0
        %8808 = vadd.xlane.f32.xlu0 %v8807
        %v8809 = vpop.xlane.xlu0 %8808
        %v8810 = vsel %vm8621, %v8800, 0.0
        %8811 = vadd.xlane.f32.xlu0 %v8810
        %v8812 = vpop.xlane.xlu0 %8811
        %v8813 = vadd.f32 %v8803, %v8806
        %v8814 = vadd.f32 %v8813, %v8809
        %v8815 = vadd.f32 %v8814, %v8812
        %v8816 = vrot.slane %v8815, 4
        %v8817 = vadd.f32 %v8815, %v8816
        %v8818 = vrot.slane %v8817, 2
        %v8819 = vadd.f32 %v8817, %v8818
        %v8820 = vrot.slane %v8819, 1
        %v8821 = vadd.f32 %v8819, %v8820
        %v8822 = vld [vmem:[%s8] sm:$0x1]
        %v8823 = vadd.f32 %v8821, %v8822
        %vm8824 = vcmask 16400
        %8825 = vst.msk [vmem:[%s322] sm:$0x1] %vm8824, %v8823
        %s8826 = scalar_lea.vmem %s7, 96
        %v8827 = vld [vmem:[%s8826] sm:$0xff]
        %v8828 = vld [vmem:[%s8826 + $0x8] sm:$0xff]
        %v8829 = vld [vmem:[%s8826 + $0x10] sm:$0xff]
        %v8830 = vld [vmem:[%s8826 + $0x18] sm:$0xff]
        %v8831 = vmul.f32 %v8714, %v8827
        %v8832 = vmul.f32 %v8717, %v8828
        %v8833 = vmul.f32 %v8720, %v8829
        %v8834 = vmul.f32 %v8723, %v8830
        %v8835 = vsel %vm8621, %v8831, 0.0
        %8836 = vadd.xlane.f32.xlu0 %v8835
        %v8837 = vpop.xlane.xlu0 %8836
        %v8838 = vsel %vm8621, %v8832, 0.0
        %8839 = vadd.xlane.f32.xlu0 %v8838
        %v8840 = vpop.xlane.xlu0 %8839
        %v8841 = vsel %vm8621, %v8833, 0.0
        %8842 = vadd.xlane.f32.xlu0 %v8841
        %v8843 = vpop.xlane.xlu0 %8842
        %v8844 = vsel %vm8621, %v8834, 0.0
        %8845 = vadd.xlane.f32.xlu0 %v8844
        %v8846 = vpop.xlane.xlu0 %8845
        %v8847 = vadd.f32 %v8837, %v8840
        %v8848 = vadd.f32 %v8847, %v8843
        %v8849 = vadd.f32 %v8848, %v8846
        %v8850 = vrot.slane %v8849, 4
        %v8851 = vadd.f32 %v8849, %v8850
        %v8852 = vrot.slane %v8851, 2
        %v8853 = vadd.f32 %v8851, %v8852
        %v8854 = vrot.slane %v8853, 1
        %v8855 = vadd.f32 %v8853, %v8854
        %v8856 = vld [vmem:[%s8] sm:$0x1]
        %v8857 = vadd.f32 %v8855, %v8856
        %vm8858 = vcmask 24600
        %8859 = vst.msk [vmem:[%s322] sm:$0x1] %vm8858, %v8857
        %s8860 = scalar_lea.vmem %s7, 128
        %v8861 = vld [vmem:[%s8860] sm:$0xff]
        %v8862 = vld [vmem:[%s8860 + $0x8] sm:$0xff]
        %v8863 = vld [vmem:[%s8860 + $0x10] sm:$0xff]
        %v8864 = vld [vmem:[%s8860 + $0x18] sm:$0xff]
        %v8865 = vmul.f32 %v8714, %v8861
        %v8866 = vmul.f32 %v8717, %v8862
        %v8867 = vmul.f32 %v8720, %v8863
        %v8868 = vmul.f32 %v8723, %v8864
        %v8869 = vsel %vm8621, %v8865, 0.0
        %8870 = vadd.xlane.f32.xlu0 %v8869
        %v8871 = vpop.xlane.xlu0 %8870
        %v8872 = vsel %vm8621, %v8866, 0.0
        %8873 = vadd.xlane.f32.xlu0 %v8872
        %v8874 = vpop.xlane.xlu0 %8873
        %v8875 = vsel %vm8621, %v8867, 0.0
        %8876 = vadd.xlane.f32.xlu0 %v8875
        %v8877 = vpop.xlane.xlu0 %8876
        %v8878 = vsel %vm8621, %v8868, 0.0
        %8879 = vadd.xlane.f32.xlu0 %v8878
        %v8880 = vpop.xlane.xlu0 %8879
        %v8881 = vadd.f32 %v8871, %v8874
        %v8882 = vadd.f32 %v8881, %v8877
        %v8883 = vadd.f32 %v8882, %v8880
        %v8884 = vrot.slane %v8883, 4
        %v8885 = vadd.f32 %v8883, %v8884
        %v8886 = vrot.slane %v8885, 2
        %v8887 = vadd.f32 %v8885, %v8886
        %v8888 = vrot.slane %v8887, 1
        %v8889 = vadd.f32 %v8887, %v8888
        %v8890 = vld [vmem:[%s8] sm:$0x1]
        %v8891 = vadd.f32 %v8889, %v8890
        %vm8892 = vcmask 32800
        %8893 = vst.msk [vmem:[%s322] sm:$0x1] %vm8892, %v8891
        %s8894 = scalar_lea.vmem %s7, 160
        %v8895 = vld [vmem:[%s8894] sm:$0xff]
        %v8896 = vld [vmem:[%s8894 + $0x8] sm:$0xff]
        %v8897 = vld [vmem:[%s8894 + $0x10] sm:$0xff]
        %v8898 = vld [vmem:[%s8894 + $0x18] sm:$0xff]
        %v8899 = vmul.f32 %v8714, %v8895
        %v8900 = vmul.f32 %v8717, %v8896
        %v8901 = vmul.f32 %v8720, %v8897
        %v8902 = vmul.f32 %v8723, %v8898
        %v8903 = vsel %vm8621, %v8899, 0.0
        %8904 = vadd.xlane.f32.xlu0 %v8903
        %v8905 = vpop.xlane.xlu0 %8904
        %v8906 = vsel %vm8621, %v8900, 0.0
        %8907 = vadd.xlane.f32.xlu0 %v8906
        %v8908 = vpop.xlane.xlu0 %8907
        %v8909 = vsel %vm8621, %v8901, 0.0
        %8910 = vadd.xlane.f32.xlu0 %v8909
        %v8911 = vpop.xlane.xlu0 %8910
        %v8912 = vsel %vm8621, %v8902, 0.0
        %8913 = vadd.xlane.f32.xlu0 %v8912
        %v8914 = vpop.xlane.xlu0 %8913
        %v8915 = vadd.f32 %v8905, %v8908
        %v8916 = vadd.f32 %v8915, %v8911
        %v8917 = vadd.f32 %v8916, %v8914
        %v8918 = vrot.slane %v8917, 4
        %v8919 = vadd.f32 %v8917, %v8918
        %v8920 = vrot.slane %v8919, 2
        %v8921 = vadd.f32 %v8919, %v8920
        %v8922 = vrot.slane %v8921, 1
        %v8923 = vadd.f32 %v8921, %v8922
        %v8924 = vld [vmem:[%s8] sm:$0x1]
        %v8925 = vadd.f32 %v8923, %v8924
        %vm8926 = vcmask 41000
        %8927 = vst.msk [vmem:[%s322] sm:$0x1] %vm8926, %v8925
        %s8928 = scalar_lea.vmem %s7, 192
        %v8929 = vld [vmem:[%s8928] sm:$0xff]
        %v8930 = vld [vmem:[%s8928 + $0x8] sm:$0xff]
        %v8931 = vld [vmem:[%s8928 + $0x10] sm:$0xff]
        %v8932 = vld [vmem:[%s8928 + $0x18] sm:$0xff]
        %v8933 = vmul.f32 %v8714, %v8929
        %v8934 = vmul.f32 %v8717, %v8930
        %v8935 = vmul.f32 %v8720, %v8931
        %v8936 = vmul.f32 %v8723, %v8932
        %v8937 = vsel %vm8621, %v8933, 0.0
        %8938 = vadd.xlane.f32.xlu0 %v8937
        %v8939 = vpop.xlane.xlu0 %8938
        %v8940 = vsel %vm8621, %v8934, 0.0
        %8941 = vadd.xlane.f32.xlu0 %v8940
        %v8942 = vpop.xlane.xlu0 %8941
        %v8943 = vsel %vm8621, %v8935, 0.0
        %8944 = vadd.xlane.f32.xlu0 %v8943
        %v8945 = vpop.xlane.xlu0 %8944
        %v8946 = vsel %vm8621, %v8936, 0.0
        %8947 = vadd.xlane.f32.xlu0 %v8946
        %v8948 = vpop.xlane.xlu0 %8947
        %v8949 = vadd.f32 %v8939, %v8942
        %v8950 = vadd.f32 %v8949, %v8945
        %v8951 = vadd.f32 %v8950, %v8948
        %v8952 = vrot.slane %v8951, 4
        %v8953 = vadd.f32 %v8951, %v8952
        %v8954 = vrot.slane %v8953, 2
        %v8955 = vadd.f32 %v8953, %v8954
        %v8956 = vrot.slane %v8955, 1
        %v8957 = vadd.f32 %v8955, %v8956
        %v8958 = vld [vmem:[%s8] sm:$0x1]
        %v8959 = vadd.f32 %v8957, %v8958
        %vm8960 = vcmask 49200
        %8961 = vst.msk [vmem:[%s322] sm:$0x1] %vm8960, %v8959
        %s8962 = scalar_lea.vmem %s7, 224
        %v8963 = vld [vmem:[%s8962] sm:$0xff]
        %v8964 = vld [vmem:[%s8962 + $0x8] sm:$0xff]
        %v8965 = vld [vmem:[%s8962 + $0x10] sm:$0xff]
        %v8966 = vld [vmem:[%s8962 + $0x18] sm:$0xff]
        %v8967 = vmul.f32 %v8714, %v8963
        %v8968 = vmul.f32 %v8717, %v8964
        %v8969 = vmul.f32 %v8720, %v8965
        %v8970 = vmul.f32 %v8723, %v8966
        %v8971 = vsel %vm8621, %v8967, 0.0
        %8972 = vadd.xlane.f32.xlu0 %v8971
        %v8973 = vpop.xlane.xlu0 %8972
        %v8974 = vsel %vm8621, %v8968, 0.0
        %8975 = vadd.xlane.f32.xlu0 %v8974
        %v8976 = vpop.xlane.xlu0 %8975
        %v8977 = vsel %vm8621, %v8969, 0.0
        %8978 = vadd.xlane.f32.xlu0 %v8977
        %v8979 = vpop.xlane.xlu0 %8978
        %v8980 = vsel %vm8621, %v8970, 0.0
        %8981 = vadd.xlane.f32.xlu0 %v8980
        %v8982 = vpop.xlane.xlu0 %8981
        %v8983 = vadd.f32 %v8973, %v8976
        %v8984 = vadd.f32 %v8983, %v8979
        %v8985 = vadd.f32 %v8984, %v8982
        %v8986 = vrot.slane %v8985, 4
        %v8987 = vadd.f32 %v8985, %v8986
        %v8988 = vrot.slane %v8987, 2
        %v8989 = vadd.f32 %v8987, %v8988
        %v8990 = vrot.slane %v8989, 1
        %v8991 = vadd.f32 %v8989, %v8990
        %v8992 = vld [vmem:[%s8] sm:$0x1]
        %v8993 = vadd.f32 %v8991, %v8992
        %vm8994 = vcmask 57400
        %8995 = vst.msk [vmem:[%s322] sm:$0x1] %vm8994, %v8993
        %s8996 = scalar_lea.vmem %s7, 256
        %v8997 = vld [vmem:[%s8996] sm:$0xff]
        %v8998 = vld [vmem:[%s8996 + $0x8] sm:$0xff]
        %v8999 = vld [vmem:[%s8996 + $0x10] sm:$0xff]
        %v9000 = vld [vmem:[%s8996 + $0x18] sm:$0xff]
        %v9001 = vmul.f32 %v8714, %v8997
        %v9002 = vmul.f32 %v8717, %v8998
        %v9003 = vmul.f32 %v8720, %v8999
        %v9004 = vmul.f32 %v8723, %v9000
        %v9005 = vsel %vm8621, %v9001, 0.0
        %9006 = vadd.xlane.f32.xlu0 %v9005
        %v9007 = vpop.xlane.xlu0 %9006
        %v9008 = vsel %vm8621, %v9002, 0.0
        %9009 = vadd.xlane.f32.xlu0 %v9008
        %v9010 = vpop.xlane.xlu0 %9009
        %v9011 = vsel %vm8621, %v9003, 0.0
        %9012 = vadd.xlane.f32.xlu0 %v9011
        %v9013 = vpop.xlane.xlu0 %9012
        %v9014 = vsel %vm8621, %v9004, 0.0
        %9015 = vadd.xlane.f32.xlu0 %v9014
        %v9016 = vpop.xlane.xlu0 %9015
        %v9017 = vadd.f32 %v9007, %v9010
        %v9018 = vadd.f32 %v9017, %v9013
        %v9019 = vadd.f32 %v9018, %v9016
        %v9020 = vrot.slane %v9019, 4
        %v9021 = vadd.f32 %v9019, %v9020
        %v9022 = vrot.slane %v9021, 2
        %v9023 = vadd.f32 %v9021, %v9022
        %v9024 = vrot.slane %v9023, 1
        %v9025 = vadd.f32 %v9023, %v9024
        %v9026 = vld [vmem:[%s8] sm:$0x1]
        %v9027 = vadd.f32 %v9025, %v9026
        %vm9028 = vcmask 65600
        %9029 = vst.msk [vmem:[%s322] sm:$0x1] %vm9028, %v9027
        %s9030 = scalar_lea.vmem %s7, 288
        %v9031 = vld [vmem:[%s9030] sm:$0xff]
        %v9032 = vld [vmem:[%s9030 + $0x8] sm:$0xff]
        %v9033 = vld [vmem:[%s9030 + $0x10] sm:$0xff]
        %v9034 = vld [vmem:[%s9030 + $0x18] sm:$0xff]
        %v9035 = vmul.f32 %v8714, %v9031
        %v9036 = vmul.f32 %v8717, %v9032
        %v9037 = vmul.f32 %v8720, %v9033
        %v9038 = vmul.f32 %v8723, %v9034
        %v9039 = vsel %vm8621, %v9035, 0.0
        %9040 = vadd.xlane.f32.xlu0 %v9039
        %v9041 = vpop.xlane.xlu0 %9040
        %v9042 = vsel %vm8621, %v9036, 0.0
        %9043 = vadd.xlane.f32.xlu0 %v9042
        %v9044 = vpop.xlane.xlu0 %9043
        %v9045 = vsel %vm8621, %v9037, 0.0
        %9046 = vadd.xlane.f32.xlu0 %v9045
        %v9047 = vpop.xlane.xlu0 %9046
        %v9048 = vsel %vm8621, %v9038, 0.0
        %9049 = vadd.xlane.f32.xlu0 %v9048
        %v9050 = vpop.xlane.xlu0 %9049
        %v9051 = vadd.f32 %v9041, %v9044
        %v9052 = vadd.f32 %v9051, %v9047
        %v9053 = vadd.f32 %v9052, %v9050
        %v9054 = vrot.slane %v9053, 4
        %v9055 = vadd.f32 %v9053, %v9054
        %v9056 = vrot.slane %v9055, 2
        %v9057 = vadd.f32 %v9055, %v9056
        %v9058 = vrot.slane %v9057, 1
        %v9059 = vadd.f32 %v9057, %v9058
        %v9060 = vld [vmem:[%s8] sm:$0x1]
        %v9061 = vadd.f32 %v9059, %v9060
        %vm9062 = vcmask 73800
        %9063 = vst.msk [vmem:[%s322] sm:$0x1] %vm9062, %v9061
        %s9064 = sand.u32 %s225, 1
        %s9065 = scalar_lea.sflag [#allocation3], %s9064
        %s9066 = sand.u32 %s225, 1
        %s9067 = scalar_lea.vmem [#allocation2], %s9066
        // Predicated region
        $region57: #{cnn_forward.1} parent=55 // pred_check
          %p9068 = pneg %p235
        $region58: #{cnn_forward.1} parent=55 // pred_check_branch
          %9070 = sbr.rel (%p9068) target = $region60
        $region59: #{cnn_forward.1} parent=55 // pred_region
          %9072 = vsyncadd %s9065, 0
          %s9073 = scalar_lea.hbm %s9, %s23
          %s9075 = sshll.u32 %s9067, 4
          %s9076 = int_to_ptr.vmem [resolvable:$true] %s9075
          %s9077 = sshll.u32 %s9073, 4
          %s9078 = int_to_ptr.hbm [resolvable:$true] %s9077
          %9080 = dma.vmem_to_hbm [thread:$0]  %s9076, 16, %s9078, %s9065
        $region60: #{cnn_forward.1} parent=55 // pred_fallthru
          _
      $region56: #{cnn_forward.1} parent=5 // pred_fallthru
        _
      %p9081 = scmp.le.s32.totalorder 2, %s18
      // Predicated region
      $region61: #{cnn_forward.1} parent=5 // pred_check
        %p9082 = pneg %p9081
      $region62: #{cnn_forward.1} parent=5 // pred_check_branch
        %9084 = sbr.rel (%p9082) target = $region64
      $region63: #{cnn_forward.1} parent=5 // pred_region
        %s9085 = ssub.s32 %s18, 2
        // Predicated region
        $region65: #{cnn_forward.1} parent=63 // pred_check
          %p9086 = pneg %p241
        $region66: #{cnn_forward.1} parent=63 // pred_check_branch
          %9088 = sbr.rel (%p9086) target = $region68
        $region67: #{cnn_forward.1} parent=63 // pred_region
          %s9089 = sand.u32 %s226, 1
          %s9090 = scalar_lea.sflag [#allocation3], %s9089
          %s9091 = sand.u32 %s226, 1
          %s9092 = scalar_lea.vmem [#allocation2], %s9091
          %9094 = dma.done %s9090, 16
        $region68: #{cnn_forward.1} parent=63 // pred_fallthru
          _
      $region64: #{cnn_forward.1} parent=5 // pred_fallthru
        _
    $region6: #{cnn_forward.1} parent=1 // loop_footer
      %s22 = sadd.s32 1, %s18
    $region7: #{cnn_forward.1} parent=1 // loop_footer_branch
      %17 = sbr.rel target = $region3
    $region8: #{cnn_forward.1} parent=1 // loop_exit
      _
    %9095 = vsyncpa [#allocation3], 1
    %s9096 = scalar_lea.sflag [#allocation3], 1
    %9097 = vsyncpa %s9096, 1

</llo_original>
